<compile_context>
chip_gen: v7x
topology: tpu7x:2x2x1
jax: 0.10.0
libtpu: 0.0.40
codegen_flags: <defaults>
</compile_context>

<pallas_src>
import functools

import jax
import jax.numpy as jnp
from jax import lax
from jax.experimental import pallas as pl
from jax.experimental.pallas import tpu as pltpu


def _round_up(x, m):
    return ((x + m - 1) // m) * m


# ----------------------------------------------------------------------------
# Fused encoder kernel: one grid step == one branch (3d / traj)
# ----------------------------------------------------------------------------
def _guidance_encoder_kernel(nhead, nt,
                             pre_ref, freq_ref, mask_ref,
                             in_w_ref, in_b_ref, out_w_ref, out_b_ref,
                             ffn1_w_ref, ffn1_b_ref, ffn2_w_ref, ffn2_b_ref,
                             o_ref):
    f32, bf16 = jnp.float32, jnp.bfloat16

    # ---- positional embedding: pure VPU multiply + EUP sin/cos, all f32 -------------
    # pre_ref holds row-concatenated [query coords ; key coords], already column-repeated.
    pre = pre_ref[...] * freq_ref[...]                    # (R, kF) f32
    sin_all = jnp.sin(pre).astype(bf16)
    cos_all = jnp.cos(pre).astype(bf16)

    e = in_w_ref.shape[0]           # embedding dim (384)
    kf = e // 2                     # sin / cos half width (192)
    eh = out_w_ref.shape[0]         # nhead * padded head dim (512)
    dh = eh // nhead                # padded head dim (64)

    in_w = in_w_ref[...]
    # emb = [sin | cos] would place the cos half at lane kf (192, crossing the 128-lane
    # boundary).  Split instead: qkv = sin @ W[:kf] + cos @ W[kf:], fused Q+KV over all
    # (Nt + N) rows in a single weight push.
    qkv = (jnp.dot(sin_all, in_w[:kf, :], preferred_element_type=f32)
           + jnp.dot(cos_all, in_w[kf:, :], preferred_element_type=f32)
           + in_b_ref[...])                               # (R, 3*eh) f32

    q = qkv[:nt, 0:eh].astype(bf16)                       # (Nt, eh)  1/sqrt(dh) folded in W_q
    k = qkv[nt:, eh:2 * eh].astype(bf16)                  # (N,  eh)
    v = qkv[nt:, 2 * eh:3 * eh].astype(bf16)              # (N,  eh)
    mask = mask_ref[...]                                  # (1, N) additive key-padding mask

    out_w = out_w_ref[...]
    proj = jnp.zeros(o_ref.shape, dtype=f32) + out_b_ref[...]   # (Nt, e) accumulator
    for h in range(nhead):                                # static unroll: all heads, one call
        lo, hi = h * dh, (h + 1) * dh                     # 64-lane-aligned head slices
        # contract last dims of BOTH operands -> feeds MXU directly, no k.T / XLU transpose
        s = lax.dot_general(q[:, lo:hi], k[:, lo:hi],
                            (((1,), (1,)), ((), ())),
                            preferred_element_type=f32) + mask      # (Nt, N) f32
        m = jnp.max(s, axis=-1, keepdims=True)
        p = jnp.exp(s - m)
        p = p * pl.reciprocal(jnp.sum(p, axis=-1, keepdims=True), approx=True)
        hv = jnp.dot(p.astype(bf16), v[:, lo:hi], preferred_element_type=f32)   # (Nt, dh)
        # accumulate this head straight into the out-projection (no head concat),
        # out_w row slice is sublane-aligned, output is lane-dense (Nt, e=384)
        proj = proj + jnp.dot(hv.astype(bf16), out_w[lo:hi, :],
                              preferred_element_type=f32)

    # ---- FFN: Linear -> ReLU -> Linear (no residual / LayerNorm in the reference) ----
    h1 = jnp.dot(proj.astype(bf16), ffn1_w_ref[...],
                 preferred_element_type=f32) + ffn1_b_ref[...]
    h1 = jnp.maximum(h1, 0.0)
    o_ref[...] = (jnp.dot(h1.astype(bf16), ffn2_w_ref[...],
                          preferred_element_type=f32) + ffn2_b_ref[...])        # (Nt, e)


def fused_guidance_encoders(pre_all, freq_all, mask_all, w, nhead, nt_pad):
    """One pallas_call for both branches: grid=(2,) over the branch axis."""
    nb = pre_all.shape[0]
    e = w["ffn2_w"].shape[-1]
    operands = (pre_all, freq_all, mask_all,
                w["in_w"], w["in_b"], w["out_w"], w["out_b"],
                w["ffn1_w"], w["ffn1_b"], w["ffn2_w"], w["ffn2_b"])
    # every operand is (n_branches, rows, cols): take the full slab of the current branch
    in_specs = [pl.BlockSpec((None,) + a.shape[1:], lambda b: (b, 0, 0)) for a in operands]
    return pl.pallas_call(
        functools.partial(_guidance_encoder_kernel, nhead, nt_pad),
        out_shape=jax.ShapeDtypeStruct((nb, nt_pad, e), jnp.float32),
        grid=(nb,),
        in_specs=in_specs,
        out_specs=pl.BlockSpec((None, nt_pad, e), lambda b: (b, 0, 0)),
        compiler_params=pltpu.CompilerParams(
            # branch axis parallel: one branch per TensorCore on v7x; overlapped weight
            # DMA / compute across branches on v5e / v6e.
            dimension_semantics=("parallel",),
        ),
    )(*operands)


# ----------------------------------------------------------------------------
# Wrapper-side plumbing (tiny, stays in plain JAX)
# ----------------------------------------------------------------------------
def _pack_branch(coords_q, coords_k, num_freqs, nt_pad, n_pad, kf):
    """Row-concat [queries ; keys], column-repeat for positional emb, pad to common shape."""
    nt, k = coords_q.shape
    n = coords_k.shape[0]
    rep_q = jnp.repeat(coords_q, num_freqs, axis=1)            # (nt, k*F)
    rep_k = jnp.repeat(coords_k, num_freqs, axis=1)            # (n,  k*F)
    pre = jnp.zeros((nt_pad + n_pad, kf), jnp.float32)
    pre = pre.at[:nt, :].set(rep_q)
    pre = pre.at[nt_pad:nt_pad + n, :].set(rep_k)
    freq = jnp.tile((2.0 ** jnp.arange(num_freqs, dtype=jnp.float32)) * jnp.pi, k)
    freq = freq.reshape(1, kf)
    mask = jnp.where(jnp.arange(n_pad) < n, 0.0, -1e30).astype(jnp.float32).reshape(1, n_pad)
    return pre, freq, mask


def guidance_forward(stacked_params, P_3d, P_traj, cfg, keys):
    # --- branch 0: 3D point cloud ---
    n3 = P_3d.shape[0]
    nt3 = n3 // 8
    q3 = P_3d[jax.random.permutation(keys[0], n3)[:nt3]]       # random subset w/o replacement

    # --- branch 1: trajectory (P[:, 4:] *= pi, append normalized time) ---
    nT = P_traj.shape[0]
    Pt = jnp.concatenate([P_traj[:, :4], P_traj[:, 4:] * jnp.pi], axis=1)
    tcol = (jnp.arange(nT, dtype=jnp.float32) / (nT - 1)).reshape(-1, 1)
    Pt = jnp.concatenate([Pt, tcol], axis=1)                   # (N, 8)
    ntT = nT // 2
    qT = Pt[jax.random.permutation(keys[1], nT)[:ntT]]

    kf3 = 3 * cfg["num_freqs_3d"]
    kfT = 8 * cfg["num_freqs_traj"]
    assert kf3 == kfT, "merged-branch kernel requires equal embedding dims"
    nt_pad = _round_up(max(nt3, ntT), 8)
    n_pad = _round_up(max(n3, nT), 8)

    pre0, f0, m0 = _pack_branch(q3, P_3d, cfg["num_freqs_3d"], nt_pad, n_pad, kf3)
    pre1, f1, m1 = _pack_branch(qT, Pt, cfg["num_freqs_traj"], nt_pad, n_pad, kfT)

    out = fused_guidance_encoders(
        jnp.stack([pre0, pre1]), jnp.stack([f0, f1]), jnp.stack([m0, m1]),
        stacked_params, cfg["nhead"], nt_pad)
    return out[0, :nt3], out[1, :ntT]


# ----------------------------------------------------------------------------
# Parameter construction (torch layouts -> merged-kernel-ready, bf16 weights)
# ----------------------------------------------------------------------------
def init_torch_layout_params(key, e, dff):
    ks = jax.random.split(key, 6)

    def u(kk, shape, fan_in):
        b = float(fan_in) ** -0.5
        return jax.random.uniform(kk, shape, jnp.float32, -b, b)

    return dict(
        in_proj_weight=u(ks[0], (3 * e, e), e),        # (3E, E)
        in_proj_bias=jnp.zeros((3 * e,), jnp.float32),
        out_proj_weight=u(ks[1], (e, e), e),           # (E, E)
        out_proj_bias=jnp.zeros((e,), jnp.float32),
        ffn1_weight=u(ks[2], (dff, e), e),
        ffn1_bias=u(ks[3], (dff,), e),
        ffn2_weight=u(ks[4], (e, dff), dff),
        ffn2_bias=u(ks[5], (e,), dff),
    )


def prep_encoder_params(tp, nhead):
    """torch layouts -> x@W form, heads re-pitched 48->64 lanes, 1/sqrt(dh) folded into Q."""
    e = tp["out_proj_weight"].shape[0]
    dff = tp["ffn1_weight"].shape[0]
    dh = e // nhead
    dh_pad = _round_up(dh, 64)
    eh = nhead * dh_pad
    scale = 1.0 / float(dh) ** 0.5

    def pad_cols(w_t, s=1.0):                          # (E, E) -> (E, eh), 64-lane head pitch
        w3 = (w_t * s).reshape(e, nhead, dh)
        return jnp.pad(w3, ((0, 0), (0, 0), (0, dh_pad - dh))).reshape(e, eh)

    def pad_bias(b, s=1.0):                            # (E,) -> (eh,)
        b2 = (b * s).reshape(nhead, dh)
        return jnp.pad(b2, ((0, 0), (0, dh_pad - dh))).reshape(eh)

    wq = tp["in_proj_weight"][:e].T
    wk = tp["in_proj_weight"][e:2 * e].T
    wv = tp["in_proj_weight"][2 * e:].T
    bq, bk, bv = tp["in_proj_bias"][:e], tp["in_proj_bias"][e:2 * e], tp["in_proj_bias"][2 * e:]

    in_w = jnp.concatenate([pad_cols(wq, scale), pad_cols(wk), pad_cols(wv)], axis=1)
    in_b = jnp.concatenate([pad_bias(bq, scale), pad_bias(bk), pad_bias(bv)]).reshape(1, 3 * eh)

    wo3 = tp["out_proj_weight"].T.reshape(nhead, dh, e)              # rows = head dims
    out_w = jnp.pad(wo3, ((0, 0), (0, dh_pad - dh), (0, 0))).reshape(eh, e)

    return dict(
        in_w=in_w.astype(jnp.bfloat16),                # (E, 3*eh)
        in_b=in_b.astype(jnp.float32),                 # (1, 3*eh)
        out_w=out_w.astype(jnp.bfloat16),              # (eh, E)
        out_b=tp["out_proj_bias"].reshape(1, e).astype(jnp.float32),
        ffn1_w=tp["ffn1_weight"].T.astype(jnp.bfloat16),   # (E, dff)
        ffn1_b=tp["ffn1_bias"].reshape(1, dff).astype(jnp.float32),
        ffn2_w=tp["ffn2_weight"].T.astype(jnp.bfloat16),   # (dff, E)
        ffn2_b=tp["ffn2_bias"].reshape(1, e).astype(jnp.float32),
    )


# ----------------------------------------------------------------------------
# Main
# ----------------------------------------------------------------------------
if __name__ == "__main__":
    # Small-shape configuration consistent with the module (defaults scaled down);
    # embedding dims of both branches are equal by construction (as in the module defaults).
    cfg = dict(num_freqs_3d=64, num_freqs_traj=24, nhead=8, dim_feedforward=256)
    e = 2 * 3 * cfg["num_freqs_3d"]                    # 384
    assert e == 2 * 8 * cfg["num_freqs_traj"]

    root = jax.random.PRNGKey(0)
    k_p3d, k_ptraj, k_w3d, k_wtraj, k_s3d, k_straj = jax.random.split(root, 6)

    N_3d, N_traj = 64, 16
    P_3d = jax.random.normal(k_p3d, (N_3d, 3), jnp.float32)
    P_traj = jax.random.normal(k_ptraj, (N_traj, 7), jnp.float32)

    p3d = prep_encoder_params(init_torch_layout_params(k_w3d, e, cfg["dim_feedforward"]),
                              cfg["nhead"])
    ptraj = prep_encoder_params(init_torch_layout_params(k_wtraj, e, cfg["dim_feedforward"]),
                                cfg["nhead"])
    stacked = {name: jnp.stack([p3d[name], ptraj[name]]) for name in p3d}

    f3d, ftraj = guidance_forward(stacked, P_3d, P_traj, cfg, (k_s3d, k_straj))
    jax.block_until_ready((f3d, ftraj))

    assert f3d.shape == (N_3d // 8, e), f3d.shape
    assert ftraj.shape == (N_traj // 2, e), ftraj.shape
    assert bool(jnp.all(jnp.isfinite(f3d))) and bool(jnp.all(jnp.isfinite(ftraj)))
    print("KERNEL_OK")
</pallas_src>

<mosaic_0001>
module attributes {stable_mosaic.version = 11 : i64} {
  func.func @_guidance_encoder_kernel(%arg0: i32, %arg1: memref<1x72x192xf32, #tpu.memory_space<vmem>>, %arg2: memref<1x1x192xf32, #tpu.memory_space<vmem>>, %arg3: memref<1x1x64xf32, #tpu.memory_space<vmem>>, %arg4: memref<1x384x1536xbf16, #tpu.memory_space<vmem>>, %arg5: memref<1x1x1536xf32, #tpu.memory_space<vmem>>, %arg6: memref<1x512x384xbf16, #tpu.memory_space<vmem>>, %arg7: memref<1x1x384xf32, #tpu.memory_space<vmem>>, %arg8: memref<1x384x256xbf16, #tpu.memory_space<vmem>>, %arg9: memref<1x1x256xf32, #tpu.memory_space<vmem>>, %arg10: memref<1x256x384xbf16, #tpu.memory_space<vmem>>, %arg11: memref<1x1x384xf32, #tpu.memory_space<vmem>>, %arg12: memref<1x8x384xf32, #tpu.memory_space<vmem>>) attributes {dimension_semantics = [#tpu.dimension_semantics<parallel>], iteration_bounds = array<i64: 2>, scalar_prefetch = 0 : i64, scratch_operands = 0 : i64, tpu.core_type = #tpu.core_type<tc>, window_params = [{transform_indices = @transform_0, window_bounds = array<i64: 1, 72, 192>}, {transform_indices = @transform_1, window_bounds = array<i64: 1, 1, 192>}, {transform_indices = @transform_2, window_bounds = array<i64: 1, 1, 64>}, {transform_indices = @transform_3, window_bounds = array<i64: 1, 384, 1536>}, {transform_indices = @transform_4, window_bounds = array<i64: 1, 1, 1536>}, {transform_indices = @transform_5, window_bounds = array<i64: 1, 512, 384>}, {transform_indices = @transform_6, window_bounds = array<i64: 1, 1, 384>}, {transform_indices = @transform_7, window_bounds = array<i64: 1, 384, 256>}, {transform_indices = @transform_8, window_bounds = array<i64: 1, 1, 256>}, {transform_indices = @transform_9, window_bounds = array<i64: 1, 256, 384>}, {transform_indices = @transform_10, window_bounds = array<i64: 1, 1, 384>}, {transform_indices = @transform_11, window_bounds = array<i64: 1, 8, 384>}]} {
    %c0 = arith.constant 0 : index
    %c0_0 = arith.constant 0 : index
    %c0_1 = arith.constant 0 : index
    %0 = vector.load %arg1[%c0, %c0_0, %c0_1] : memref<1x72x192xf32, #tpu.memory_space<vmem>>, vector<1x72x192xf32>
    %1 = vector.shape_cast %0 : vector<1x72x192xf32> to vector<72x192xf32>
    %c0_2 = arith.constant 0 : index
    %c0_3 = arith.constant 0 : index
    %c0_4 = arith.constant 0 : index
    %2 = vector.load %arg2[%c0_2, %c0_3, %c0_4] : memref<1x1x192xf32, #tpu.memory_space<vmem>>, vector<1x1x192xf32>
    %3 = vector.shape_cast %2 : vector<1x1x192xf32> to vector<1x192xf32>
    %4 = vector.broadcast %3 : vector<1x192xf32> to vector<72x192xf32>
    %5 = arith.mulf %1, %4 : vector<72x192xf32>
    %6 = math.sin %5 : vector<72x192xf32>
    %7 = arith.truncf %6 : vector<72x192xf32> to vector<72x192xbf16>
    %8 = math.cos %5 : vector<72x192xf32>
    %9 = arith.truncf %8 : vector<72x192xf32> to vector<72x192xbf16>
    %c0_5 = arith.constant 0 : index
    %c0_6 = arith.constant 0 : index
    %c0_7 = arith.constant 0 : index
    %10 = vector.load %arg4[%c0_5, %c0_6, %c0_7] : memref<1x384x1536xbf16, #tpu.memory_space<vmem>>, vector<1x384x1536xbf16>
    %11 = vector.shape_cast %10 : vector<1x384x1536xbf16> to vector<384x1536xbf16>
    %12 = vector.extract_strided_slice %11 {offsets = [0, 0], sizes = [192, 1536], strides = [1, 1]} : vector<384x1536xbf16> to vector<192x1536xbf16>
    %cst = arith.constant dense<0.000000e+00> : vector<72x1536xf32>
    %13 = tpu.matmul %7, %12, %cst {dimension_numbers = #tpu.dot_dimension_numbers<[1], [0], [0], [1], [0, 0, 1, 1], [], []>} : vector<72x192xbf16>, vector<192x1536xbf16>, vector<72x1536xf32> -> vector<72x1536xf32>
    %14 = vector.extract_strided_slice %11 {offsets = [192, 0], sizes = [192, 1536], strides = [1, 1]} : vector<384x1536xbf16> to vector<192x1536xbf16>
    %cst_8 = arith.constant dense<0.000000e+00> : vector<72x1536xf32>
    %15 = tpu.matmul %9, %14, %cst_8 {dimension_numbers = #tpu.dot_dimension_numbers<[1], [0], [0], [1], [0, 0, 1, 1], [], []>} : vector<72x192xbf16>, vector<192x1536xbf16>, vector<72x1536xf32> -> vector<72x1536xf32>
    %16 = arith.addf %13, %15 : vector<72x1536xf32>
    %c0_9 = arith.constant 0 : index
    %c0_10 = arith.constant 0 : index
    %c0_11 = arith.constant 0 : index
    %17 = vector.load %arg5[%c0_9, %c0_10, %c0_11] : memref<1x1x1536xf32, #tpu.memory_space<vmem>>, vector<1x1x1536xf32>
    %18 = vector.shape_cast %17 : vector<1x1x1536xf32> to vector<1x1536xf32>
    %19 = vector.broadcast %18 : vector<1x1536xf32> to vector<72x1536xf32>
    %20 = arith.addf %16, %19 : vector<72x1536xf32>
    %21 = vector.extract_strided_slice %20 {offsets = [0, 0], sizes = [8, 512], strides = [1, 1]} : vector<72x1536xf32> to vector<8x512xf32>
    %22 = arith.truncf %21 : vector<8x512xf32> to vector<8x512xbf16>
    %23 = vector.extract_strided_slice %20 {offsets = [8, 512], sizes = [64, 512], strides = [1, 1]} : vector<72x1536xf32> to vector<64x512xf32>
    %24 = arith.truncf %23 : vector<64x512xf32> to vector<64x512xbf16>
    %25 = vector.extract_strided_slice %20 {offsets = [8, 1024], sizes = [64, 512], strides = [1, 1]} : vector<72x1536xf32> to vector<64x512xf32>
    %26 = arith.truncf %25 : vector<64x512xf32> to vector<64x512xbf16>
    %c0_12 = arith.constant 0 : index
    %c0_13 = arith.constant 0 : index
    %c0_14 = arith.constant 0 : index
    %27 = vector.load %arg3[%c0_12, %c0_13, %c0_14] : memref<1x1x64xf32, #tpu.memory_space<vmem>>, vector<1x1x64xf32>
    %28 = vector.shape_cast %27 : vector<1x1x64xf32> to vector<1x64xf32>
    %c0_15 = arith.constant 0 : index
    %c0_16 = arith.constant 0 : index
    %c0_17 = arith.constant 0 : index
    %29 = vector.load %arg6[%c0_15, %c0_16, %c0_17] : memref<1x512x384xbf16, #tpu.memory_space<vmem>>, vector<1x512x384xbf16>
    %30 = vector.shape_cast %29 : vector<1x512x384xbf16> to vector<512x384xbf16>
    %cst_18 = arith.constant 0.000000e+00 : f32
    %31 = vector.broadcast %cst_18 : f32 to vector<8x384xf32>
    %c0_19 = arith.constant 0 : index
    %c0_20 = arith.constant 0 : index
    %c0_21 = arith.constant 0 : index
    %32 = vector.load %arg7[%c0_19, %c0_20, %c0_21] : memref<1x1x384xf32, #tpu.memory_space<vmem>>, vector<1x1x384xf32>
    %33 = vector.shape_cast %32 : vector<1x1x384xf32> to vector<1x384xf32>
    %34 = vector.broadcast %33 : vector<1x384xf32> to vector<8x384xf32>
    %35 = arith.addf %31, %34 : vector<8x384xf32>
    %36 = vector.extract_strided_slice %22 {offsets = [0, 0], sizes = [8, 64], strides = [1, 1]} : vector<8x512xbf16> to vector<8x64xbf16>
    %37 = vector.extract_strided_slice %24 {offsets = [0, 0], sizes = [64, 64], strides = [1, 1]} : vector<64x512xbf16> to vector<64x64xbf16>
    %cst_22 = arith.constant dense<0.000000e+00> : vector<8x64xf32>
    %38 = tpu.matmul %36, %37, %cst_22 {dimension_numbers = #tpu.dot_dimension_numbers<[1], [1], [0], [0], [0, 0, 1, 0], [], []>} : vector<8x64xbf16>, vector<64x64xbf16>, vector<8x64xf32> -> vector<8x64xf32>
    %39 = vector.broadcast %28 : vector<1x64xf32> to vector<8x64xf32>
    %40 = arith.addf %38, %39 : vector<8x64xf32>
    %cst_23 = arith.constant dense<0xFF800000> : vector<8xf32>
    %41 = vector.multi_reduction <maximumf>, %40, %cst_23 [1] : vector<8x64xf32> to vector<8xf32>
    %42 = vector.shape_cast %41 : vector<8xf32> to vector<8x1xf32>
    %43 = vector.broadcast %42 : vector<8x1xf32> to vector<8x64xf32>
    %44 = arith.subf %40, %43 : vector<8x64xf32>
    %45 = math.exp %44 : vector<8x64xf32>
    %cst_24 = arith.constant dense<0.000000e+00> : vector<8xf32>
    %46 = vector.multi_reduction <add>, %45, %cst_24 [1] : vector<8x64xf32> to vector<8xf32>
    %47 = vector.shape_cast %46 : vector<8xf32> to vector<8x1xf32>
    %48 = tpu.reciprocal %47 {approx = true} : vector<8x1xf32> -> vector<8x1xf32>
    %49 = vector.broadcast %48 : vector<8x1xf32> to vector<8x64xf32>
    %50 = arith.mulf %45, %49 : vector<8x64xf32>
    %51 = arith.truncf %50 : vector<8x64xf32> to vector<8x64xbf16>
    %52 = vector.extract_strided_slice %26 {offsets = [0, 0], sizes = [64, 64], strides = [1, 1]} : vector<64x512xbf16> to vector<64x64xbf16>
    %cst_25 = arith.constant dense<0.000000e+00> : vector<8x64xf32>
    %53 = tpu.matmul %51, %52, %cst_25 {dimension_numbers = #tpu.dot_dimension_numbers<[1], [0], [0], [1], [0, 0, 1, 1], [], []>} : vector<8x64xbf16>, vector<64x64xbf16>, vector<8x64xf32> -> vector<8x64xf32>
    %54 = arith.truncf %53 : vector<8x64xf32> to vector<8x64xbf16>
    %55 = vector.extract_strided_slice %30 {offsets = [0, 0], sizes = [64, 384], strides = [1, 1]} : vector<512x384xbf16> to vector<64x384xbf16>
    %cst_26 = arith.constant dense<0.000000e+00> : vector<8x384xf32>
    %56 = tpu.matmul %54, %55, %cst_26 {dimension_numbers = #tpu.dot_dimension_numbers<[1], [0], [0], [1], [0, 0, 1, 1], [], []>} : vector<8x64xbf16>, vector<64x384xbf16>, vector<8x384xf32> -> vector<8x384xf32>
    %57 = arith.addf %35, %56 : vector<8x384xf32>
    %58 = vector.extract_strided_slice %22 {offsets = [0, 64], sizes = [8, 64], strides = [1, 1]} : vector<8x512xbf16> to vector<8x64xbf16>
    %59 = vector.extract_strided_slice %24 {offsets = [0, 64], sizes = [64, 64], strides = [1, 1]} : vector<64x512xbf16> to vector<64x64xbf16>
    %cst_27 = arith.constant dense<0.000000e+00> : vector<8x64xf32>
    %60 = tpu.matmul %58, %59, %cst_27 {dimension_numbers = #tpu.dot_dimension_numbers<[1], [1], [0], [0], [0, 0, 1, 0], [], []>} : vector<8x64xbf16>, vector<64x64xbf16>, vector<8x64xf32> -> vector<8x64xf32>
    %61 = vector.broadcast %28 : vector<1x64xf32> to vector<8x64xf32>
    %62 = arith.addf %60, %61 : vector<8x64xf32>
    %cst_28 = arith.constant dense<0xFF800000> : vector<8xf32>
    %63 = vector.multi_reduction <maximumf>, %62, %cst_28 [1] : vector<8x64xf32> to vector<8xf32>
    %64 = vector.shape_cast %63 : vector<8xf32> to vector<8x1xf32>
    %65 = vector.broadcast %64 : vector<8x1xf32> to vector<8x64xf32>
    %66 = arith.subf %62, %65 : vector<8x64xf32>
    %67 = math.exp %66 : vector<8x64xf32>
    %cst_29 = arith.constant dense<0.000000e+00> : vector<8xf32>
    %68 = vector.multi_reduction <add>, %67, %cst_29 [1] : vector<8x64xf32> to vector<8xf32>
    %69 = vector.shape_cast %68 : vector<8xf32> to vector<8x1xf32>
    %70 = tpu.reciprocal %69 {approx = true} : vector<8x1xf32> -> vector<8x1xf32>
    %71 = vector.broadcast %70 : vector<8x1xf32> to vector<8x64xf32>
    %72 = arith.mulf %67, %71 : vector<8x64xf32>
    %73 = arith.truncf %72 : vector<8x64xf32> to vector<8x64xbf16>
    %74 = vector.extract_strided_slice %26 {offsets = [0, 64], sizes = [64, 64], strides = [1, 1]} : vector<64x512xbf16> to vector<64x64xbf16>
    %cst_30 = arith.constant dense<0.000000e+00> : vector<8x64xf32>
    %75 = tpu.matmul %73, %74, %cst_30 {dimension_numbers = #tpu.dot_dimension_numbers<[1], [0], [0], [1], [0, 0, 1, 1], [], []>} : vector<8x64xbf16>, vector<64x64xbf16>, vector<8x64xf32> -> vector<8x64xf32>
    %76 = arith.truncf %75 : vector<8x64xf32> to vector<8x64xbf16>
    %77 = vector.extract_strided_slice %30 {offsets = [64, 0], sizes = [64, 384], strides = [1, 1]} : vector<512x384xbf16> to vector<64x384xbf16>
    %cst_31 = arith.constant dense<0.000000e+00> : vector<8x384xf32>
    %78 = tpu.matmul %76, %77, %cst_31 {dimension_numbers = #tpu.dot_dimension_numbers<[1], [0], [0], [1], [0, 0, 1, 1], [], []>} : vector<8x64xbf16>, vector<64x384xbf16>, vector<8x384xf32> -> vector<8x384xf32>
    %79 = arith.addf %57, %78 : vector<8x384xf32>
    %80 = vector.extract_strided_slice %22 {offsets = [0, 128], sizes = [8, 64], strides = [1, 1]} : vector<8x512xbf16> to vector<8x64xbf16>
    %81 = vector.extract_strided_slice %24 {offsets = [0, 128], sizes = [64, 64], strides = [1, 1]} : vector<64x512xbf16> to vector<64x64xbf16>
    %cst_32 = arith.constant dense<0.000000e+00> : vector<8x64xf32>
    %82 = tpu.matmul %80, %81, %cst_32 {dimension_numbers = #tpu.dot_dimension_numbers<[1], [1], [0], [0], [0, 0, 1, 0], [], []>} : vector<8x64xbf16>, vector<64x64xbf16>, vector<8x64xf32> -> vector<8x64xf32>
    %83 = vector.broadcast %28 : vector<1x64xf32> to vector<8x64xf32>
    %84 = arith.addf %82, %83 : vector<8x64xf32>
    %cst_33 = arith.constant dense<0xFF800000> : vector<8xf32>
    %85 = vector.multi_reduction <maximumf>, %84, %cst_33 [1] : vector<8x64xf32> to vector<8xf32>
    %86 = vector.shape_cast %85 : vector<8xf32> to vector<8x1xf32>
    %87 = vector.broadcast %86 : vector<8x1xf32> to vector<8x64xf32>
    %88 = arith.subf %84, %87 : vector<8x64xf32>
    %89 = math.exp %88 : vector<8x64xf32>
    %cst_34 = arith.constant dense<0.000000e+00> : vector<8xf32>
    %90 = vector.multi_reduction <add>, %89, %cst_34 [1] : vector<8x64xf32> to vector<8xf32>
    %91 = vector.shape_cast %90 : vector<8xf32> to vector<8x1xf32>
    %92 = tpu.reciprocal %91 {approx = true} : vector<8x1xf32> -> vector<8x1xf32>
    %93 = vector.broadcast %92 : vector<8x1xf32> to vector<8x64xf32>
    %94 = arith.mulf %89, %93 : vector<8x64xf32>
    %95 = arith.truncf %94 : vector<8x64xf32> to vector<8x64xbf16>
    %96 = vector.extract_strided_slice %26 {offsets = [0, 128], sizes = [64, 64], strides = [1, 1]} : vector<64x512xbf16> to vector<64x64xbf16>
    %cst_35 = arith.constant dense<0.000000e+00> : vector<8x64xf32>
    %97 = tpu.matmul %95, %96, %cst_35 {dimension_numbers = #tpu.dot_dimension_numbers<[1], [0], [0], [1], [0, 0, 1, 1], [], []>} : vector<8x64xbf16>, vector<64x64xbf16>, vector<8x64xf32> -> vector<8x64xf32>
    %98 = arith.truncf %97 : vector<8x64xf32> to vector<8x64xbf16>
    %99 = vector.extract_strided_slice %30 {offsets = [128, 0], sizes = [64, 384], strides = [1, 1]} : vector<512x384xbf16> to vector<64x384xbf16>
    %cst_36 = arith.constant dense<0.000000e+00> : vector<8x384xf32>
    %100 = tpu.matmul %98, %99, %cst_36 {dimension_numbers = #tpu.dot_dimension_numbers<[1], [0], [0], [1], [0, 0, 1, 1], [], []>} : vector<8x64xbf16>, vector<64x384xbf16>, vector<8x384xf32> -> vector<8x384xf32>
    %101 = arith.addf %79, %100 : vector<8x384xf32>
    %102 = vector.extract_strided_slice %22 {offsets = [0, 192], sizes = [8, 64], strides = [1, 1]} : vector<8x512xbf16> to vector<8x64xbf16>
    %103 = vector.extract_strided_slice %24 {offsets = [0, 192], sizes = [64, 64], strides = [1, 1]} : vector<64x512xbf16> to vector<64x64xbf16>
    %cst_37 = arith.constant dense<0.000000e+00> : vector<8x64xf32>
    %104 = tpu.matmul %102, %103, %cst_37 {dimension_numbers = #tpu.dot_dimension_numbers<[1], [1], [0], [0], [0, 0, 1, 0], [], []>} : vector<8x64xbf16>, vector<64x64xbf16>, vector<8x64xf32> -> vector<8x64xf32>
    %105 = vector.broadcast %28 : vector<1x64xf32> to vector<8x64xf32>
    %106 = arith.addf %104, %105 : vector<8x64xf32>
    %cst_38 = arith.constant dense<0xFF800000> : vector<8xf32>
    %107 = vector.multi_reduction <maximumf>, %106, %cst_38 [1] : vector<8x64xf32> to vector<8xf32>
    %108 = vector.shape_cast %107 : vector<8xf32> to vector<8x1xf32>
    %109 = vector.broadcast %108 : vector<8x1xf32> to vector<8x64xf32>
    %110 = arith.subf %106, %109 : vector<8x64xf32>
    %111 = math.exp %110 : vector<8x64xf32>
    %cst_39 = arith.constant dense<0.000000e+00> : vector<8xf32>
    %112 = vector.multi_reduction <add>, %111, %cst_39 [1] : vector<8x64xf32> to vector<8xf32>
    %113 = vector.shape_cast %112 : vector<8xf32> to vector<8x1xf32>
    %114 = tpu.reciprocal %113 {approx = true} : vector<8x1xf32> -> vector<8x1xf32>
    %115 = vector.broadcast %114 : vector<8x1xf32> to vector<8x64xf32>
    %116 = arith.mulf %111, %115 : vector<8x64xf32>
    %117 = arith.truncf %116 : vector<8x64xf32> to vector<8x64xbf16>
    %118 = vector.extract_strided_slice %26 {offsets = [0, 192], sizes = [64, 64], strides = [1, 1]} : vector<64x512xbf16> to vector<64x64xbf16>
    %cst_40 = arith.constant dense<0.000000e+00> : vector<8x64xf32>
    %119 = tpu.matmul %117, %118, %cst_40 {dimension_numbers = #tpu.dot_dimension_numbers<[1], [0], [0], [1], [0, 0, 1, 1], [], []>} : vector<8x64xbf16>, vector<64x64xbf16>, vector<8x64xf32> -> vector<8x64xf32>
    %120 = arith.truncf %119 : vector<8x64xf32> to vector<8x64xbf16>
    %121 = vector.extract_strided_slice %30 {offsets = [192, 0], sizes = [64, 384], strides = [1, 1]} : vector<512x384xbf16> to vector<64x384xbf16>
    %cst_41 = arith.constant dense<0.000000e+00> : vector<8x384xf32>
    %122 = tpu.matmul %120, %121, %cst_41 {dimension_numbers = #tpu.dot_dimension_numbers<[1], [0], [0], [1], [0, 0, 1, 1], [], []>} : vector<8x64xbf16>, vector<64x384xbf16>, vector<8x384xf32> -> vector<8x384xf32>
    %123 = arith.addf %101, %122 : vector<8x384xf32>
    %124 = vector.extract_strided_slice %22 {offsets = [0, 256], sizes = [8, 64], strides = [1, 1]} : vector<8x512xbf16> to vector<8x64xbf16>
    %125 = vector.extract_strided_slice %24 {offsets = [0, 256], sizes = [64, 64], strides = [1, 1]} : vector<64x512xbf16> to vector<64x64xbf16>
    %cst_42 = arith.constant dense<0.000000e+00> : vector<8x64xf32>
    %126 = tpu.matmul %124, %125, %cst_42 {dimension_numbers = #tpu.dot_dimension_numbers<[1], [1], [0], [0], [0, 0, 1, 0], [], []>} : vector<8x64xbf16>, vector<64x64xbf16>, vector<8x64xf32> -> vector<8x64xf32>
    %127 = vector.broadcast %28 : vector<1x64xf32> to vector<8x64xf32>
    %128 = arith.addf %126, %127 : vector<8x64xf32>
    %cst_43 = arith.constant dense<0xFF800000> : vector<8xf32>
    %129 = vector.multi_reduction <maximumf>, %128, %cst_43 [1] : vector<8x64xf32> to vector<8xf32>
    %130 = vector.shape_cast %129 : vector<8xf32> to vector<8x1xf32>
    %131 = vector.broadcast %130 : vector<8x1xf32> to vector<8x64xf32>
    %132 = arith.subf %128, %131 : vector<8x64xf32>
    %133 = math.exp %132 : vector<8x64xf32>
    %cst_44 = arith.constant dense<0.000000e+00> : vector<8xf32>
    %134 = vector.multi_reduction <add>, %133, %cst_44 [1] : vector<8x64xf32> to vector<8xf32>
    %135 = vector.shape_cast %134 : vector<8xf32> to vector<8x1xf32>
    %136 = tpu.reciprocal %135 {approx = true} : vector<8x1xf32> -> vector<8x1xf32>
    %137 = vector.broadcast %136 : vector<8x1xf32> to vector<8x64xf32>
    %138 = arith.mulf %133, %137 : vector<8x64xf32>
    %139 = arith.truncf %138 : vector<8x64xf32> to vector<8x64xbf16>
    %140 = vector.extract_strided_slice %26 {offsets = [0, 256], sizes = [64, 64], strides = [1, 1]} : vector<64x512xbf16> to vector<64x64xbf16>
    %cst_45 = arith.constant dense<0.000000e+00> : vector<8x64xf32>
    %141 = tpu.matmul %139, %140, %cst_45 {dimension_numbers = #tpu.dot_dimension_numbers<[1], [0], [0], [1], [0, 0, 1, 1], [], []>} : vector<8x64xbf16>, vector<64x64xbf16>, vector<8x64xf32> -> vector<8x64xf32>
    %142 = arith.truncf %141 : vector<8x64xf32> to vector<8x64xbf16>
    %143 = vector.extract_strided_slice %30 {offsets = [256, 0], sizes = [64, 384], strides = [1, 1]} : vector<512x384xbf16> to vector<64x384xbf16>
    %cst_46 = arith.constant dense<0.000000e+00> : vector<8x384xf32>
    %144 = tpu.matmul %142, %143, %cst_46 {dimension_numbers = #tpu.dot_dimension_numbers<[1], [0], [0], [1], [0, 0, 1, 1], [], []>} : vector<8x64xbf16>, vector<64x384xbf16>, vector<8x384xf32> -> vector<8x384xf32>
    %145 = arith.addf %123, %144 : vector<8x384xf32>
    %146 = vector.extract_strided_slice %22 {offsets = [0, 320], sizes = [8, 64], strides = [1, 1]} : vector<8x512xbf16> to vector<8x64xbf16>
    %147 = vector.extract_strided_slice %24 {offsets = [0, 320], sizes = [64, 64], strides = [1, 1]} : vector<64x512xbf16> to vector<64x64xbf16>
    %cst_47 = arith.constant dense<0.000000e+00> : vector<8x64xf32>
    %148 = tpu.matmul %146, %147, %cst_47 {dimension_numbers = #tpu.dot_dimension_numbers<[1], [1], [0], [0], [0, 0, 1, 0], [], []>} : vector<8x64xbf16>, vector<64x64xbf16>, vector<8x64xf32> -> vector<8x64xf32>
    %149 = vector.broadcast %28 : vector<1x64xf32> to vector<8x64xf32>
    %150 = arith.addf %148, %149 : vector<8x64xf32>
    %cst_48 = arith.constant dense<0xFF800000> : vector<8xf32>
    %151 = vector.multi_reduction <maximumf>, %150, %cst_48 [1] : vector<8x64xf32> to vector<8xf32>
    %152 = vector.shape_cast %151 : vector<8xf32> to vector<8x1xf32>
    %153 = vector.broadcast %152 : vector<8x1xf32> to vector<8x64xf32>
    %154 = arith.subf %150, %153 : vector<8x64xf32>
    %155 = math.exp %154 : vector<8x64xf32>
    %cst_49 = arith.constant dense<0.000000e+00> : vector<8xf32>
    %156 = vector.multi_reduction <add>, %155, %cst_49 [1] : vector<8x64xf32> to vector<8xf32>
    %157 = vector.shape_cast %156 : vector<8xf32> to vector<8x1xf32>
    %158 = tpu.reciprocal %157 {approx = true} : vector<8x1xf32> -> vector<8x1xf32>
    %159 = vector.broadcast %158 : vector<8x1xf32> to vector<8x64xf32>
    %160 = arith.mulf %155, %159 : vector<8x64xf32>
    %161 = arith.truncf %160 : vector<8x64xf32> to vector<8x64xbf16>
    %162 = vector.extract_strided_slice %26 {offsets = [0, 320], sizes = [64, 64], strides = [1, 1]} : vector<64x512xbf16> to vector<64x64xbf16>
    %cst_50 = arith.constant dense<0.000000e+00> : vector<8x64xf32>
    %163 = tpu.matmul %161, %162, %cst_50 {dimension_numbers = #tpu.dot_dimension_numbers<[1], [0], [0], [1], [0, 0, 1, 1], [], []>} : vector<8x64xbf16>, vector<64x64xbf16>, vector<8x64xf32> -> vector<8x64xf32>
    %164 = arith.truncf %163 : vector<8x64xf32> to vector<8x64xbf16>
    %165 = vector.extract_strided_slice %30 {offsets = [320, 0], sizes = [64, 384], strides = [1, 1]} : vector<512x384xbf16> to vector<64x384xbf16>
    %cst_51 = arith.constant dense<0.000000e+00> : vector<8x384xf32>
    %166 = tpu.matmul %164, %165, %cst_51 {dimension_numbers = #tpu.dot_dimension_numbers<[1], [0], [0], [1], [0, 0, 1, 1], [], []>} : vector<8x64xbf16>, vector<64x384xbf16>, vector<8x384xf32> -> vector<8x384xf32>
    %167 = arith.addf %145, %166 : vector<8x384xf32>
    %168 = vector.extract_strided_slice %22 {offsets = [0, 384], sizes = [8, 64], strides = [1, 1]} : vector<8x512xbf16> to vector<8x64xbf16>
    %169 = vector.extract_strided_slice %24 {offsets = [0, 384], sizes = [64, 64], strides = [1, 1]} : vector<64x512xbf16> to vector<64x64xbf16>
    %cst_52 = arith.constant dense<0.000000e+00> : vector<8x64xf32>
    %170 = tpu.matmul %168, %169, %cst_52 {dimension_numbers = #tpu.dot_dimension_numbers<[1], [1], [0], [0], [0, 0, 1, 0], [], []>} : vector<8x64xbf16>, vector<64x64xbf16>, vector<8x64xf32> -> vector<8x64xf32>
    %171 = vector.broadcast %28 : vector<1x64xf32> to vector<8x64xf32>
    %172 = arith.addf %170, %171 : vector<8x64xf32>
    %cst_53 = arith.constant dense<0xFF800000> : vector<8xf32>
    %173 = vector.multi_reduction <maximumf>, %172, %cst_53 [1] : vector<8x64xf32> to vector<8xf32>
    %174 = vector.shape_cast %173 : vector<8xf32> to vector<8x1xf32>
    %175 = vector.broadcast %174 : vector<8x1xf32> to vector<8x64xf32>
    %176 = arith.subf %172, %175 : vector<8x64xf32>
    %177 = math.exp %176 : vector<8x64xf32>
    %cst_54 = arith.constant dense<0.000000e+00> : vector<8xf32>
    %178 = vector.multi_reduction <add>, %177, %cst_54 [1] : vector<8x64xf32> to vector<8xf32>
    %179 = vector.shape_cast %178 : vector<8xf32> to vector<8x1xf32>
    %180 = tpu.reciprocal %179 {approx = true} : vector<8x1xf32> -> vector<8x1xf32>
    %181 = vector.broadcast %180 : vector<8x1xf32> to vector<8x64xf32>
    %182 = arith.mulf %177, %181 : vector<8x64xf32>
    %183 = arith.truncf %182 : vector<8x64xf32> to vector<8x64xbf16>
    %184 = vector.extract_strided_slice %26 {offsets = [0, 384], sizes = [64, 64], strides = [1, 1]} : vector<64x512xbf16> to vector<64x64xbf16>
    %cst_55 = arith.constant dense<0.000000e+00> : vector<8x64xf32>
    %185 = tpu.matmul %183, %184, %cst_55 {dimension_numbers = #tpu.dot_dimension_numbers<[1], [0], [0], [1], [0, 0, 1, 1], [], []>} : vector<8x64xbf16>, vector<64x64xbf16>, vector<8x64xf32> -> vector<8x64xf32>
    %186 = arith.truncf %185 : vector<8x64xf32> to vector<8x64xbf16>
    %187 = vector.extract_strided_slice %30 {offsets = [384, 0], sizes = [64, 384], strides = [1, 1]} : vector<512x384xbf16> to vector<64x384xbf16>
    %cst_56 = arith.constant dense<0.000000e+00> : vector<8x384xf32>
    %188 = tpu.matmul %186, %187, %cst_56 {dimension_numbers = #tpu.dot_dimension_numbers<[1], [0], [0], [1], [0, 0, 1, 1], [], []>} : vector<8x64xbf16>, vector<64x384xbf16>, vector<8x384xf32> -> vector<8x384xf32>
    %189 = arith.addf %167, %188 : vector<8x384xf32>
    %190 = vector.extract_strided_slice %22 {offsets = [0, 448], sizes = [8, 64], strides = [1, 1]} : vector<8x512xbf16> to vector<8x64xbf16>
    %191 = vector.extract_strided_slice %24 {offsets = [0, 448], sizes = [64, 64], strides = [1, 1]} : vector<64x512xbf16> to vector<64x64xbf16>
    %cst_57 = arith.constant dense<0.000000e+00> : vector<8x64xf32>
    %192 = tpu.matmul %190, %191, %cst_57 {dimension_numbers = #tpu.dot_dimension_numbers<[1], [1], [0], [0], [0, 0, 1, 0], [], []>} : vector<8x64xbf16>, vector<64x64xbf16>, vector<8x64xf32> -> vector<8x64xf32>
    %193 = vector.broadcast %28 : vector<1x64xf32> to vector<8x64xf32>
    %194 = arith.addf %192, %193 : vector<8x64xf32>
    %cst_58 = arith.constant dense<0xFF800000> : vector<8xf32>
    %195 = vector.multi_reduction <maximumf>, %194, %cst_58 [1] : vector<8x64xf32> to vector<8xf32>
    %196 = vector.shape_cast %195 : vector<8xf32> to vector<8x1xf32>
    %197 = vector.broadcast %196 : vector<8x1xf32> to vector<8x64xf32>
    %198 = arith.subf %194, %197 : vector<8x64xf32>
    %199 = math.exp %198 : vector<8x64xf32>
    %cst_59 = arith.constant dense<0.000000e+00> : vector<8xf32>
    %200 = vector.multi_reduction <add>, %199, %cst_59 [1] : vector<8x64xf32> to vector<8xf32>
    %201 = vector.shape_cast %200 : vector<8xf32> to vector<8x1xf32>
    %202 = tpu.reciprocal %201 {approx = true} : vector<8x1xf32> -> vector<8x1xf32>
    %203 = vector.broadcast %202 : vector<8x1xf32> to vector<8x64xf32>
    %204 = arith.mulf %199, %203 : vector<8x64xf32>
    %205 = arith.truncf %204 : vector<8x64xf32> to vector<8x64xbf16>
    %206 = vector.extract_strided_slice %26 {offsets = [0, 448], sizes = [64, 64], strides = [1, 1]} : vector<64x512xbf16> to vector<64x64xbf16>
    %cst_60 = arith.constant dense<0.000000e+00> : vector<8x64xf32>
    %207 = tpu.matmul %205, %206, %cst_60 {dimension_numbers = #tpu.dot_dimension_numbers<[1], [0], [0], [1], [0, 0, 1, 1], [], []>} : vector<8x64xbf16>, vector<64x64xbf16>, vector<8x64xf32> -> vector<8x64xf32>
    %208 = arith.truncf %207 : vector<8x64xf32> to vector<8x64xbf16>
    %209 = vector.extract_strided_slice %30 {offsets = [448, 0], sizes = [64, 384], strides = [1, 1]} : vector<512x384xbf16> to vector<64x384xbf16>
    %cst_61 = arith.constant dense<0.000000e+00> : vector<8x384xf32>
    %210 = tpu.matmul %208, %209, %cst_61 {dimension_numbers = #tpu.dot_dimension_numbers<[1], [0], [0], [1], [0, 0, 1, 1], [], []>} : vector<8x64xbf16>, vector<64x384xbf16>, vector<8x384xf32> -> vector<8x384xf32>
    %211 = arith.addf %189, %210 : vector<8x384xf32>
    %212 = arith.truncf %211 : vector<8x384xf32> to vector<8x384xbf16>
    %c0_62 = arith.constant 0 : index
    %c0_63 = arith.constant 0 : index
    %c0_64 = arith.constant 0 : index
    %213 = vector.load %arg8[%c0_62, %c0_63, %c0_64] : memref<1x384x256xbf16, #tpu.memory_space<vmem>>, vector<1x384x256xbf16>
    %214 = vector.shape_cast %213 : vector<1x384x256xbf16> to vector<384x256xbf16>
    %cst_65 = arith.constant dense<0.000000e+00> : vector<8x256xf32>
    %215 = tpu.matmul %212, %214, %cst_65 {dimension_numbers = #tpu.dot_dimension_numbers<[1], [0], [0], [1], [0, 0, 1, 1], [], []>} : vector<8x384xbf16>, vector<384x256xbf16>, vector<8x256xf32> -> vector<8x256xf32>
    %c0_66 = arith.constant 0 : index
    %c0_67 = arith.constant 0 : index
    %c0_68 = arith.constant 0 : index
    %216 = vector.load %arg9[%c0_66, %c0_67, %c0_68] : memref<1x1x256xf32, #tpu.memory_space<vmem>>, vector<1x1x256xf32>
    %217 = vector.shape_cast %216 : vector<1x1x256xf32> to vector<1x256xf32>
    %218 = vector.broadcast %217 : vector<1x256xf32> to vector<8x256xf32>
    %219 = arith.addf %215, %218 : vector<8x256xf32>
    %cst_69 = arith.constant 0.000000e+00 : f32
    %220 = vector.broadcast %cst_69 : f32 to vector<8x256xf32>
    %221 = arith.maximumf %219, %220 : vector<8x256xf32>
    %222 = arith.truncf %221 : vector<8x256xf32> to vector<8x256xbf16>
    %c0_70 = arith.constant 0 : index
    %c0_71 = arith.constant 0 : index
    %c0_72 = arith.constant 0 : index
    %223 = vector.load %arg10[%c0_70, %c0_71, %c0_72] : memref<1x256x384xbf16, #tpu.memory_space<vmem>>, vector<1x256x384xbf16>
    %224 = vector.shape_cast %223 : vector<1x256x384xbf16> to vector<256x384xbf16>
    %cst_73 = arith.constant dense<0.000000e+00> : vector<8x384xf32>
    %225 = tpu.matmul %222, %224, %cst_73 {dimension_numbers = #tpu.dot_dimension_numbers<[1], [0], [0], [1], [0, 0, 1, 1], [], []>} : vector<8x256xbf16>, vector<256x384xbf16>, vector<8x384xf32> -> vector<8x384xf32>
    %c0_74 = arith.constant 0 : index
    %c0_75 = arith.constant 0 : index
    %c0_76 = arith.constant 0 : index
    %226 = vector.load %arg11[%c0_74, %c0_75, %c0_76] : memref<1x1x384xf32, #tpu.memory_space<vmem>>, vector<1x1x384xf32>
    %227 = vector.shape_cast %226 : vector<1x1x384xf32> to vector<1x384xf32>
    %228 = vector.broadcast %227 : vector<1x384xf32> to vector<8x384xf32>
    %229 = arith.addf %225, %228 : vector<8x384xf32>
    %c0_77 = arith.constant 0 : index
    %c0_78 = arith.constant 0 : index
    %c0_79 = arith.constant 0 : index
    %230 = vector.load %arg12[%c0_77, %c0_78, %c0_79] : memref<1x8x384xf32, #tpu.memory_space<vmem>>, vector<1x8x384xf32>
    %231 = vector.shape_cast %230 : vector<1x8x384xf32> to vector<8x384xf32>
    %232 = vector.shape_cast %229 : vector<8x384xf32> to vector<1x8x384xf32>
    tpu.vector_store %arg12[%c0_77, %c0_78, %c0_79], %232 {strides = array<i32>} : memref<1x8x384xf32, #tpu.memory_space<vmem>>, vector<1x8x384xf32>,
    return
  }
  func.func @transform_0(%arg0: i32) -> (i32, i32, i32) {
    %c0_i32 = arith.constant 0 : i32
    %c0_i32_0 = arith.constant 0 : i32
    %c0_i32_1 = arith.constant 0 : i32
    return %arg0, %c0_i32, %c0_i32_0 : i32, i32, i32
  }
  func.func @transform_1(%arg0: i32) -> (i32, i32, i32) {
    %c0_i32 = arith.constant 0 : i32
    %c0_i32_0 = arith.constant 0 : i32
    %c0_i32_1 = arith.constant 0 : i32
    return %arg0, %c0_i32, %c0_i32_0 : i32, i32, i32
  }
  func.func @transform_2(%arg0: i32) -> (i32, i32, i32) {
    %c0_i32 = arith.constant 0 : i32
    %c0_i32_0 = arith.constant 0 : i32
    %c0_i32_1 = arith.constant 0 : i32
    return %arg0, %c0_i32, %c0_i32_0 : i32, i32, i32
  }
  func.func @transform_3(%arg0: i32) -> (i32, i32, i32) {
    %c0_i32 = arith.constant 0 : i32
    %c0_i32_0 = arith.constant 0 : i32
    %c0_i32_1 = arith.constant 0 : i32
    return %arg0, %c0_i32, %c0_i32_0 : i32, i32, i32
  }
  func.func @transform_4(%arg0: i32) -> (i32, i32, i32) {
    %c0_i32 = arith.constant 0 : i32
    %c0_i32_0 = arith.constant 0 : i32
    %c0_i32_1 = arith.constant 0 : i32
    return %arg0, %c0_i32, %c0_i32_0 : i32, i32, i32
  }
  func.func @transform_5(%arg0: i32) -> (i32, i32, i32) {
    %c0_i32 = arith.constant 0 : i32
    %c0_i32_0 = arith.constant 0 : i32
    %c0_i32_1 = arith.constant 0 : i32
    return %arg0, %c0_i32, %c0_i32_0 : i32, i32, i32
  }
  func.func @transform_6(%arg0: i32) -> (i32, i32, i32) {
    %c0_i32 = arith.constant 0 : i32
    %c0_i32_0 = arith.constant 0 : i32
    %c0_i32_1 = arith.constant 0 : i32
    return %arg0, %c0_i32, %c0_i32_0 : i32, i32, i32
  }
  func.func @transform_7(%arg0: i32) -> (i32, i32, i32) {
    %c0_i32 = arith.constant 0 : i32
    %c0_i32_0 = arith.constant 0 : i32
    %c0_i32_1 = arith.constant 0 : i32
    return %arg0, %c0_i32, %c0_i32_0 : i32, i32, i32
  }
  func.func @transform_8(%arg0: i32) -> (i32, i32, i32) {
    %c0_i32 = arith.constant 0 : i32
    %c0_i32_0 = arith.constant 0 : i32
    %c0_i32_1 = arith.constant 0 : i32
    return %arg0, %c0_i32, %c0_i32_0 : i32, i32, i32
  }
  func.func @transform_9(%arg0: i32) -> (i32, i32, i32) {
    %c0_i32 = arith.constant 0 : i32
    %c0_i32_0 = arith.constant 0 : i32
    %c0_i32_1 = arith.constant 0 : i32
    return %arg0, %c0_i32, %c0_i32_0 : i32, i32, i32
  }
  func.func @transform_10(%arg0: i32) -> (i32, i32, i32) {
    %c0_i32 = arith.constant 0 : i32
    %c0_i32_0 = arith.constant 0 : i32
    %c0_i32_1 = arith.constant 0 : i32
    return %arg0, %c0_i32, %c0_i32_0 : i32, i32, i32
  }
  func.func @transform_11(%arg0: i32) -> (i32, i32, i32) {
    %c0_i32 = arith.constant 0 : i32
    %c0_i32_0 = arith.constant 0 : i32
    %c0_i32_1 = arith.constant 0 : i32
    return %arg0, %c0_i32, %c0_i32_0 : i32, i32, i32
  }
}

</mosaic_0001>

<llo_original>
// kernel: tpu_custom_call.1
$region0: #{tpu_custom_call.1}
  #allocation0 [shape = 'u32[]', space=smem, size = 0x4, offset = 0x4, fixed_abs, tag = 'smem constant byte address 0x4 - core index']
  #allocation1 [shape = 'u32[144,128]{1,0:T(1,128)}', space=vmem, size = 0x12000, scoped, tag = 'internal scratch']
  %s0 = inlined_call_operand.hbm [shape: f32[2,72,192], index: 0, kind: input, shape index: {}]
  %s1 = inlined_call_operand.hbm [shape: f32[2,1,192], index: 1, kind: input, shape index: {}]
  %s2 = inlined_call_operand.hbm [shape: f32[2,1,64], index: 2, kind: input, shape index: {}]
  %s3 = inlined_call_operand.hbm [shape: bf16[2,384,1536], index: 3, kind: input, shape index: {}]
  %s4 = inlined_call_operand.hbm [shape: f32[2,1,1536], index: 4, kind: input, shape index: {}]
  %s5 = inlined_call_operand.hbm [shape: bf16[2,512,384], index: 5, kind: input, shape index: {}]
  %s6 = inlined_call_operand.hbm [shape: f32[2,1,384], index: 6, kind: input, shape index: {}]
  %s7 = inlined_call_operand.hbm [shape: bf16[2,384,256], index: 7, kind: input, shape index: {}]
  %s8 = inlined_call_operand.hbm [shape: f32[2,1,256], index: 8, kind: input, shape index: {}]
  %s9 = inlined_call_operand.hbm [shape: bf16[2,256,384], index: 9, kind: input, shape index: {}]
  %s10 = inlined_call_operand.hbm [shape: f32[2,1,384], index: 10, kind: input, shape index: {}]
  %s11 = inlined_call_operand.hbm [shape: f32[2,8,384], index: 11, kind: output, shape index: {}]
  %s12 = sld [smem:[#allocation0]]
  $region121: #{tpu_custom_call.1} parent=0
    _
  %s14 = ssub.s32 1, %s12
  %s15 = scalar_select 0, %s14, %s12
  $region1: #{tpu_custom_call.1} parent=0
    #allocation2 [shape = 'u8[147456]{0}', space=vmem, size = 0x24000, scoped, tag = 'input window, operand 0']
    #allocation3 [shape = 's32[2]{0}', space=sflag, size = 0x8, scoped, tag = 'scoped memory for tpu_custom_call.1']
    #allocation4 [shape = 's32[2]{0}', space=sflag, size = 0x8, scoped, tag = 'scoped memory for tpu_custom_call.1']
    #allocation5 [shape = 'u8[2048]{0}', space=vmem, size = 0x800, scoped, tag = 'input window, operand 1']
    #allocation6 [shape = 's32[2]{0}', space=sflag, size = 0x8, scoped, tag = 'scoped memory for tpu_custom_call.1']
    #allocation7 [shape = 'u8[1024]{0}', space=vmem, size = 0x400, scoped, tag = 'input window, operand 2']
    #allocation8 [shape = 'u8[2359296]{0}', space=vmem, size = 0x240000, scoped, tag = 'input window, operand 3']
    #allocation9 [shape = 's32[2]{0}', space=sflag, size = 0x8, scoped, tag = 'scoped memory for tpu_custom_call.1']
    #allocation10 [shape = 'u8[12288]{0}', space=vmem, size = 0x3000, scoped, tag = 'input window, operand 4']
    #allocation11 [shape = 'u8[786432]{0}', space=vmem, size = 0xc0000, scoped, tag = 'input window, operand 5']
    #allocation12 [shape = 's32[2]{0}', space=sflag, size = 0x8, scoped, tag = 'scoped memory for tpu_custom_call.1']
    #allocation13 [shape = 'u8[3072]{0}', space=vmem, size = 0xc00, scoped, tag = 'input window, operand 6']
    #allocation14 [shape = 'u8[393216]{0}', space=vmem, size = 0x60000, scoped, tag = 'input window, operand 7']
    #allocation15 [shape = 's32[2]{0}', space=sflag, size = 0x8, scoped, tag = 'scoped memory for tpu_custom_call.1']
    #allocation16 [shape = 'u8[2048]{0}', space=vmem, size = 0x800, scoped, tag = 'input window, operand 8']
    #allocation17 [shape = 'u8[393216]{0}', space=vmem, size = 0x60000, scoped, tag = 'input window, operand 9']
    #allocation18 [shape = 's32[2]{0}', space=sflag, size = 0x8, scoped, tag = 'scoped memory for tpu_custom_call.1']
    #allocation19 [shape = 'u8[3072]{0}', space=vmem, size = 0xc00, scoped, tag = 'input window, operand 10']
    #allocation20 [shape = 'u8[24576]{0}', space=vmem, size = 0x6000, scoped, tag = 'output window, operand 0']
    %16 = vsyncpa [#allocation3], 0
    %s17 = scalar_lea.sflag [#allocation3], 1
    %18 = vsyncpa %s17, 0
    %19 = vsyncpa [#allocation6], 0
    %s20 = scalar_lea.sflag [#allocation6], 1
    %21 = vsyncpa %s20, 0
    %22 = vsyncpa [#allocation9], 0
    %s23 = scalar_lea.sflag [#allocation9], 1
    %24 = vsyncpa %s23, 0
    %25 = vsyncpa [#allocation12], 0
    %s26 = scalar_lea.sflag [#allocation12], 1
    %27 = vsyncpa %s26, 0
    %28 = vsyncpa [#allocation15], 0
    %s29 = scalar_lea.sflag [#allocation15], 1
    %30 = vsyncpa %s29, 0
    %31 = vsyncpa [#allocation18], 0
    %s32 = scalar_lea.sflag [#allocation18], 1
    %33 = vsyncpa %s32, 0
    %34 = vsyncpa [#allocation4], 0
    %s35 = scalar_lea.sflag [#allocation4], 1
    %36 = vsyncpa %s35, 0
    loop: start=0, step=1, limit=4
    $region2: #{tpu_custom_call.1} parent=1 // loop_pre_header
      _
    $region3: #{tpu_custom_call.1} parent=1 // loop_header
      %s38 = sphi 0, %s42
      %p39 = scmp.ge.s32.totalorder %s38, 4
      %s48 = sphi 0, %s50
      %s51 = sphi 0, %s48
      %s52 = sphi 0, %s51
      %s68 = sphi 0, %s52
      %s74 = sphi 0, %s76
      %s77 = sphi 0, %s74
      %s78 = sphi 0, %s77
      %s94 = sphi 0, %s78
      %s100 = sphi 0, %s102
      %s103 = sphi 0, %s100
      %s104 = sphi 0, %s103
      %s120 = sphi 0, %s104
      %s126 = sphi 0, %s128
      %s129 = sphi 0, %s126
      %s130 = sphi 0, %s129
      %s146 = sphi 0, %s130
      %s152 = sphi 0, %s154
      %s155 = sphi 0, %s152
      %s156 = sphi 0, %s155
      %s172 = sphi 0, %s156
      %s178 = sphi 0, %s180
      %s181 = sphi 0, %s178
      %s182 = sphi 0, %s181
      %s198 = sphi 0, %s182
      %s204 = sphi 0, %s206
      %s207 = sphi 0, %s204
      %s208 = sphi 0, %s207
      %s224 = sphi 0, %s208
      %s230 = sphi 0, %s232
      %s233 = sphi 0, %s230
      %s234 = sphi 0, %s233
      %s250 = sphi 0, %s234
      %s256 = sphi 0, %s258
      %s259 = sphi 0, %s256
      %s260 = sphi 0, %s259
      %s276 = sphi 0, %s260
      %s282 = sphi 0, %s284
      %s285 = sphi 0, %s282
      %s286 = sphi 0, %s285
      %s302 = sphi 0, %s286
      %s308 = sphi 0, %s310
      %s311 = sphi 0, %s308
      %s312 = sphi 0, %s311
      %s328 = sphi 0, %s312
      %s334 = sphi 0, %s336
      %s337 = sphi 0, %s334
      %s338 = sphi 0, %s337
      %s354 = sphi 0, %s338
    $region4: #{tpu_custom_call.1} parent=1 // loop_header_branch
      %41 = sbr.rel (%p39) target = $region8
    $region5: #{tpu_custom_call.1} parent=1 // loop_body
      %s43 = ssub.s32 %s38, 1
      %s44 = ssub.s32 %s38, 2
      %s45 = sadd.s32 %s38, 1
      %s46 = ssub.s32 %s38, %s45
      %p47 = scmp.eq.s32.totalorder %s46, 0
      %s49 = sadd.s32 %s48, 1
      %s50 = scalar_select %p47, %s48, %s49
      %p53 = pneg %p47
      %p54 = scmp.eq.s32.totalorder %s38, 1
      %p55 = por %p53, %p54
      %p56 = scmp.ne.s32.totalorder %s48, %s51
      %p57 = scmp.eq.s32.totalorder %s38, 0
      %p58 = por %p56, %p57
      %p59 = scmp.ne.s32.totalorder %s48, %s51
      %p60 = scmp.eq.s32.totalorder %s43, 1
      %p61 = por %p59, %p60
      %p62 = scmp.ne.s32.totalorder %s51, %s52
      %p63 = scmp.eq.s32.totalorder %s43, 0
      %p64 = por %p62, %p63
      %p65 = scmp.ne.s32.totalorder %s51, %s52
      %p66 = scmp.eq.s32.totalorder %s44, 1
      %p67 = por %p65, %p66
      %p69 = scmp.ne.s32.totalorder %s52, %s68
      %p70 = scmp.eq.s32.totalorder %s44, 0
      %p71 = por %p69, %p70
      %s72 = ssub.s32 %s38, %s45
      %p73 = scmp.eq.s32.totalorder %s72, 0
      %s75 = sadd.s32 %s74, 1
      %s76 = scalar_select %p73, %s74, %s75
      %p79 = pneg %p73
      %p80 = scmp.eq.s32.totalorder %s38, 1
      %p81 = por %p79, %p80
      %p82 = scmp.ne.s32.totalorder %s74, %s77
      %p83 = scmp.eq.s32.totalorder %s38, 0
      %p84 = por %p82, %p83
      %p85 = scmp.ne.s32.totalorder %s74, %s77
      %p86 = scmp.eq.s32.totalorder %s43, 1
      %p87 = por %p85, %p86
      %p88 = scmp.ne.s32.totalorder %s77, %s78
      %p89 = scmp.eq.s32.totalorder %s43, 0
      %p90 = por %p88, %p89
      %p91 = scmp.ne.s32.totalorder %s77, %s78
      %p92 = scmp.eq.s32.totalorder %s44, 1
      %p93 = por %p91, %p92
      %p95 = scmp.ne.s32.totalorder %s78, %s94
      %p96 = scmp.eq.s32.totalorder %s44, 0
      %p97 = por %p95, %p96
      %s98 = ssub.s32 %s38, %s45
      %p99 = scmp.eq.s32.totalorder %s98, 0
      %s101 = sadd.s32 %s100, 1
      %s102 = scalar_select %p99, %s100, %s101
      %p105 = pneg %p99
      %p106 = scmp.eq.s32.totalorder %s38, 1
      %p107 = por %p105, %p106
      %p108 = scmp.ne.s32.totalorder %s100, %s103
      %p109 = scmp.eq.s32.totalorder %s38, 0
      %p110 = por %p108, %p109
      %p111 = scmp.ne.s32.totalorder %s100, %s103
      %p112 = scmp.eq.s32.totalorder %s43, 1
      %p113 = por %p111, %p112
      %p114 = scmp.ne.s32.totalorder %s103, %s104
      %p115 = scmp.eq.s32.totalorder %s43, 0
      %p116 = por %p114, %p115
      %p117 = scmp.ne.s32.totalorder %s103, %s104
      %p118 = scmp.eq.s32.totalorder %s44, 1
      %p119 = por %p117, %p118
      %p121 = scmp.ne.s32.totalorder %s104, %s120
      %p122 = scmp.eq.s32.totalorder %s44, 0
      %p123 = por %p121, %p122
      %s124 = ssub.s32 %s38, %s45
      %p125 = scmp.eq.s32.totalorder %s124, 0
      %s127 = sadd.s32 %s126, 1
      %s128 = scalar_select %p125, %s126, %s127
      %p131 = pneg %p125
      %p132 = scmp.eq.s32.totalorder %s38, 1
      %p133 = por %p131, %p132
      %p134 = scmp.ne.s32.totalorder %s126, %s129
      %p135 = scmp.eq.s32.totalorder %s38, 0
      %p136 = por %p134, %p135
      %p137 = scmp.ne.s32.totalorder %s126, %s129
      %p138 = scmp.eq.s32.totalorder %s43, 1
      %p139 = por %p137, %p138
      %p140 = scmp.ne.s32.totalorder %s129, %s130
      %p141 = scmp.eq.s32.totalorder %s43, 0
      %p142 = por %p140, %p141
      %p143 = scmp.ne.s32.totalorder %s129, %s130
      %p144 = scmp.eq.s32.totalorder %s44, 1
      %p145 = por %p143, %p144
      %p147 = scmp.ne.s32.totalorder %s130, %s146
      %p148 = scmp.eq.s32.totalorder %s44, 0
      %p149 = por %p147, %p148
      %s150 = ssub.s32 %s38, %s45
      %p151 = scmp.eq.s32.totalorder %s150, 0
      %s153 = sadd.s32 %s152, 1
      %s154 = scalar_select %p151, %s152, %s153
      %p157 = pneg %p151
      %p158 = scmp.eq.s32.totalorder %s38, 1
      %p159 = por %p157, %p158
      %p160 = scmp.ne.s32.totalorder %s152, %s155
      %p161 = scmp.eq.s32.totalorder %s38, 0
      %p162 = por %p160, %p161
      %p163 = scmp.ne.s32.totalorder %s152, %s155
      %p164 = scmp.eq.s32.totalorder %s43, 1
      %p165 = por %p163, %p164
      %p166 = scmp.ne.s32.totalorder %s155, %s156
      %p167 = scmp.eq.s32.totalorder %s43, 0
      %p168 = por %p166, %p167
      %p169 = scmp.ne.s32.totalorder %s155, %s156
      %p170 = scmp.eq.s32.totalorder %s44, 1
      %p171 = por %p169, %p170
      %p173 = scmp.ne.s32.totalorder %s156, %s172
      %p174 = scmp.eq.s32.totalorder %s44, 0
      %p175 = por %p173, %p174
      %s176 = ssub.s32 %s38, %s45
      %p177 = scmp.eq.s32.totalorder %s176, 0
      %s179 = sadd.s32 %s178, 1
      %s180 = scalar_select %p177, %s178, %s179
      %p183 = pneg %p177
      %p184 = scmp.eq.s32.totalorder %s38, 1
      %p185 = por %p183, %p184
      %p186 = scmp.ne.s32.totalorder %s178, %s181
      %p187 = scmp.eq.s32.totalorder %s38, 0
      %p188 = por %p186, %p187
      %p189 = scmp.ne.s32.totalorder %s178, %s181
      %p190 = scmp.eq.s32.totalorder %s43, 1
      %p191 = por %p189, %p190
      %p192 = scmp.ne.s32.totalorder %s181, %s182
      %p193 = scmp.eq.s32.totalorder %s43, 0
      %p194 = por %p192, %p193
      %p195 = scmp.ne.s32.totalorder %s181, %s182
      %p196 = scmp.eq.s32.totalorder %s44, 1
      %p197 = por %p195, %p196
      %p199 = scmp.ne.s32.totalorder %s182, %s198
      %p200 = scmp.eq.s32.totalorder %s44, 0
      %p201 = por %p199, %p200
      %s202 = ssub.s32 %s38, %s45
      %p203 = scmp.eq.s32.totalorder %s202, 0
      %s205 = sadd.s32 %s204, 1
      %s206 = scalar_select %p203, %s204, %s205
      %p209 = pneg %p203
      %p210 = scmp.eq.s32.totalorder %s38, 1
      %p211 = por %p209, %p210
      %p212 = scmp.ne.s32.totalorder %s204, %s207
      %p213 = scmp.eq.s32.totalorder %s38, 0
      %p214 = por %p212, %p213
      %p215 = scmp.ne.s32.totalorder %s204, %s207
      %p216 = scmp.eq.s32.totalorder %s43, 1
      %p217 = por %p215, %p216
      %p218 = scmp.ne.s32.totalorder %s207, %s208
      %p219 = scmp.eq.s32.totalorder %s43, 0
      %p220 = por %p218, %p219
      %p221 = scmp.ne.s32.totalorder %s207, %s208
      %p222 = scmp.eq.s32.totalorder %s44, 1
      %p223 = por %p221, %p222
      %p225 = scmp.ne.s32.totalorder %s208, %s224
      %p226 = scmp.eq.s32.totalorder %s44, 0
      %p227 = por %p225, %p226
      %s228 = ssub.s32 %s38, %s45
      %p229 = scmp.eq.s32.totalorder %s228, 0
      %s231 = sadd.s32 %s230, 1
      %s232 = scalar_select %p229, %s230, %s231
      %p235 = pneg %p229
      %p236 = scmp.eq.s32.totalorder %s38, 1
      %p237 = por %p235, %p236
      %p238 = scmp.ne.s32.totalorder %s230, %s233
      %p239 = scmp.eq.s32.totalorder %s38, 0
      %p240 = por %p238, %p239
      %p241 = scmp.ne.s32.totalorder %s230, %s233
      %p242 = scmp.eq.s32.totalorder %s43, 1
      %p243 = por %p241, %p242
      %p244 = scmp.ne.s32.totalorder %s233, %s234
      %p245 = scmp.eq.s32.totalorder %s43, 0
      %p246 = por %p244, %p245
      %p247 = scmp.ne.s32.totalorder %s233, %s234
      %p248 = scmp.eq.s32.totalorder %s44, 1
      %p249 = por %p247, %p248
      %p251 = scmp.ne.s32.totalorder %s234, %s250
      %p252 = scmp.eq.s32.totalorder %s44, 0
      %p253 = por %p251, %p252
      %s254 = ssub.s32 %s38, %s45
      %p255 = scmp.eq.s32.totalorder %s254, 0
      %s257 = sadd.s32 %s256, 1
      %s258 = scalar_select %p255, %s256, %s257
      %p261 = pneg %p255
      %p262 = scmp.eq.s32.totalorder %s38, 1
      %p263 = por %p261, %p262
      %p264 = scmp.ne.s32.totalorder %s256, %s259
      %p265 = scmp.eq.s32.totalorder %s38, 0
      %p266 = por %p264, %p265
      %p267 = scmp.ne.s32.totalorder %s256, %s259
      %p268 = scmp.eq.s32.totalorder %s43, 1
      %p269 = por %p267, %p268
      %p270 = scmp.ne.s32.totalorder %s259, %s260
      %p271 = scmp.eq.s32.totalorder %s43, 0
      %p272 = por %p270, %p271
      %p273 = scmp.ne.s32.totalorder %s259, %s260
      %p274 = scmp.eq.s32.totalorder %s44, 1
      %p275 = por %p273, %p274
      %p277 = scmp.ne.s32.totalorder %s260, %s276
      %p278 = scmp.eq.s32.totalorder %s44, 0
      %p279 = por %p277, %p278
      %s280 = ssub.s32 %s38, %s45
      %p281 = scmp.eq.s32.totalorder %s280, 0
      %s283 = sadd.s32 %s282, 1
      %s284 = scalar_select %p281, %s282, %s283
      %p287 = pneg %p281
      %p288 = scmp.eq.s32.totalorder %s38, 1
      %p289 = por %p287, %p288
      %p290 = scmp.ne.s32.totalorder %s282, %s285
      %p291 = scmp.eq.s32.totalorder %s38, 0
      %p292 = por %p290, %p291
      %p293 = scmp.ne.s32.totalorder %s282, %s285
      %p294 = scmp.eq.s32.totalorder %s43, 1
      %p295 = por %p293, %p294
      %p296 = scmp.ne.s32.totalorder %s285, %s286
      %p297 = scmp.eq.s32.totalorder %s43, 0
      %p298 = por %p296, %p297
      %p299 = scmp.ne.s32.totalorder %s285, %s286
      %p300 = scmp.eq.s32.totalorder %s44, 1
      %p301 = por %p299, %p300
      %p303 = scmp.ne.s32.totalorder %s286, %s302
      %p304 = scmp.eq.s32.totalorder %s44, 0
      %p305 = por %p303, %p304
      %s306 = ssub.s32 %s38, %s45
      %p307 = scmp.eq.s32.totalorder %s306, 0
      %s309 = sadd.s32 %s308, 1
      %s310 = scalar_select %p307, %s308, %s309
      %p313 = pneg %p307
      %p314 = scmp.eq.s32.totalorder %s38, 1
      %p315 = por %p313, %p314
      %p316 = scmp.ne.s32.totalorder %s308, %s311
      %p317 = scmp.eq.s32.totalorder %s38, 0
      %p318 = por %p316, %p317
      %p319 = scmp.ne.s32.totalorder %s308, %s311
      %p320 = scmp.eq.s32.totalorder %s43, 1
      %p321 = por %p319, %p320
      %p322 = scmp.ne.s32.totalorder %s311, %s312
      %p323 = scmp.eq.s32.totalorder %s43, 0
      %p324 = por %p322, %p323
      %p325 = scmp.ne.s32.totalorder %s311, %s312
      %p326 = scmp.eq.s32.totalorder %s44, 1
      %p327 = por %p325, %p326
      %p329 = scmp.ne.s32.totalorder %s312, %s328
      %p330 = scmp.eq.s32.totalorder %s44, 0
      %p331 = por %p329, %p330
      %s332 = ssub.s32 %s38, %s45
      %p333 = scmp.eq.s32.totalorder %s332, 0
      %s335 = sadd.s32 %s334, 1
      %s336 = scalar_select %p333, %s334, %s335
      %p339 = pneg %p333
      %p340 = scmp.eq.s32.totalorder %s38, 1
      %p341 = por %p339, %p340
      %p342 = scmp.ne.s32.totalorder %s334, %s337
      %p343 = scmp.eq.s32.totalorder %s38, 0
      %p344 = por %p342, %p343
      %p345 = scmp.ne.s32.totalorder %s334, %s337
      %p346 = scmp.eq.s32.totalorder %s43, 1
      %p347 = por %p345, %p346
      %p348 = scmp.ne.s32.totalorder %s337, %s338
      %p349 = scmp.eq.s32.totalorder %s43, 0
      %p350 = por %p348, %p349
      %p351 = scmp.ne.s32.totalorder %s337, %s338
      %p352 = scmp.eq.s32.totalorder %s44, 1
      %p353 = por %p351, %p352
      %p355 = scmp.ne.s32.totalorder %s338, %s354
      %p356 = scmp.eq.s32.totalorder %s44, 0
      %p357 = por %p355, %p356
      %p358 = scmp.le.s32.totalorder 1, %s38
      %p359 = scmp.lt.s32.totalorder %s38, 3
      %p360 = pnand %p358, %p359
      %p361 = pneg %p360
      // Predicated region
      $region9: #{tpu_custom_call.1} parent=5 // pred_check
        _
      $region10: #{tpu_custom_call.1} parent=5 // pred_check_branch
        %363 = sbr.rel (%p360) target = $region12
      $region11: #{tpu_custom_call.1} parent=5 // pred_region
        %s364 = ssub.s32 %s38, 1
      $region12: #{tpu_custom_call.1} parent=5 // pred_fallthru
        _
      %p365 = scmp.lt.s32.totalorder %s38, 2
      // Predicated region
      $region13: #{tpu_custom_call.1} parent=5 // pred_check
        %p366 = pneg %p365
      $region14: #{tpu_custom_call.1} parent=5 // pred_check_branch
        %368 = sbr.rel (%p366) target = $region16
      $region15: #{tpu_custom_call.1} parent=5 // pred_region
        // Predicated region
        $region17: #{tpu_custom_call.1} parent=15 // pred_check
          %p369 = pneg %p58
        $region18: #{tpu_custom_call.1} parent=15 // pred_check_branch
          %371 = sbr.rel (%p369) target = $region20
        $region19: #{tpu_custom_call.1} parent=15 // pred_region
          %s372 = sand.u32 %s48, 1
          %s373 = scalar_lea.sflag [#allocation3], %s372
          %s374 = sand.u32 %s48, 1
          %s375 = smul.addr %s374, 144
          %s376 = scalar_lea.vmem [#allocation2], %s375
          %s378 = ssub.s32 2304, 2304
          %379 = vsyncadd %s373, %s378
          %s380 = smul.addr %s38, 18
          %s381 = smul.addr %s380, 128
          %s382 = scalar_lea.hbm %s0, %s381
          %s383 = sshll.u32 %s376, 4
          %s384 = int_to_ptr.vmem [resolvable:$true] %s383
          %389 = dma.hbm_to_vmem [thread:$0]  %s382, 2304, %s384, %s373, 256, 256, 16
        $region20: #{tpu_custom_call.1} parent=15 // pred_fallthru
          _
        // Predicated region
        $region21: #{tpu_custom_call.1} parent=15 // pred_check
          %p390 = pneg %p84
        $region22: #{tpu_custom_call.1} parent=15 // pred_check_branch
          %392 = sbr.rel (%p390) target = $region24
        $region23: #{tpu_custom_call.1} parent=15 // pred_region
          %s393 = sand.u32 %s38, 1
          %s394 = scalar_lea.sflag [#allocation6], %s393
          %s395 = sand.u32 %s74, 1
          %s396 = smul.addr %s395, 2
          %s397 = scalar_lea.vmem [#allocation5], %s396
          %s399 = ssub.s32 32, 32
          %400 = vsyncadd %s394, %s399
          %s401 = smul.addr %s38, 2
          %s402 = smul.addr %s401, 16
          %s403 = scalar_lea.hbm %s1, %s402
          %s405 = sshll.u32 %s397, 4
          %s406 = int_to_ptr.vmem [resolvable:$true] %s405
          %408 = dma.hbm_to_vmem [thread:$0]  %s403, 32, %s406, %s394
        $region24: #{tpu_custom_call.1} parent=15 // pred_fallthru
          _
        // Predicated region
        $region25: #{tpu_custom_call.1} parent=15 // pred_check
          %p409 = pneg %p110
        $region26: #{tpu_custom_call.1} parent=15 // pred_check_branch
          %411 = sbr.rel (%p409) target = $region28
        $region27: #{tpu_custom_call.1} parent=15 // pred_region
          %s412 = sand.u32 %s38, 1
          %s413 = scalar_lea.sflag [#allocation6], %s412
          %s414 = sand.u32 %s100, 1
          %s415 = scalar_lea.vmem [#allocation7], %s414
          %s417 = ssub.s32 16, 16
          %418 = vsyncadd %s413, %s417
          %s419 = smul.addr %s38, 16
          %s420 = scalar_lea.hbm %s2, %s419
          %s422 = sshll.u32 %s415, 4
          %s423 = int_to_ptr.vmem [resolvable:$true] %s422
          %425 = dma.hbm_to_vmem [thread:$0]  %s420, 16, %s423, %s413
        $region28: #{tpu_custom_call.1} parent=15 // pred_fallthru
          _
        // Predicated region
        $region29: #{tpu_custom_call.1} parent=15 // pred_check
          %p426 = pneg %p136
        $region30: #{tpu_custom_call.1} parent=15 // pred_check_branch
          %428 = sbr.rel (%p426) target = $region32
        $region31: #{tpu_custom_call.1} parent=15 // pred_region
          %s429 = sand.u32 %s38, 1
          %s430 = scalar_lea.sflag [#allocation9], %s429
          %s431 = sand.u32 %s126, 1
          %s432 = smul.addr %s431, 2304
          %s433 = scalar_lea.vmem [#allocation8], %s432
          %s435 = ssub.s32 36864, 36864
          %436 = vsyncadd %s430, %s435
          %s437 = smul.addr %s38, 576
          %s438 = smul.addr %s437, 64
          %s439 = scalar_lea.hbm %s3, %s438
          %s440 = sshll.u32 %s433, 4
          %s441 = int_to_ptr.vmem [resolvable:$true] %s440
          %446 = dma.hbm_to_vmem [thread:$0]  %s439, 36864, %s441, %s430, 768, 768, 48
        $region32: #{tpu_custom_call.1} parent=15 // pred_fallthru
          _
        // Predicated region
        $region33: #{tpu_custom_call.1} parent=15 // pred_check
          %p447 = pneg %p162
        $region34: #{tpu_custom_call.1} parent=15 // pred_check_branch
          %449 = sbr.rel (%p447) target = $region36
        $region35: #{tpu_custom_call.1} parent=15 // pred_region
          %s450 = sand.u32 %s38, 1
          %s451 = scalar_lea.sflag [#allocation9], %s450
          %s452 = sand.u32 %s152, 1
          %s453 = smul.addr %s452, 12
          %s454 = scalar_lea.vmem [#allocation10], %s453
          %s456 = ssub.s32 192, 192
          %457 = vsyncadd %s451, %s456
          %s458 = smul.addr %s38, 12
          %s459 = smul.addr %s458, 16
          %s460 = scalar_lea.hbm %s4, %s459
          %s462 = sshll.u32 %s454, 4
          %s463 = int_to_ptr.vmem [resolvable:$true] %s462
          %465 = dma.hbm_to_vmem [thread:$0]  %s460, 192, %s463, %s451
        $region36: #{tpu_custom_call.1} parent=15 // pred_fallthru
          _
        // Predicated region
        $region37: #{tpu_custom_call.1} parent=15 // pred_check
          %p466 = pneg %p188
        $region38: #{tpu_custom_call.1} parent=15 // pred_check_branch
          %468 = sbr.rel (%p466) target = $region40
        $region39: #{tpu_custom_call.1} parent=15 // pred_region
          %s469 = sand.u32 %s38, 1
          %s470 = scalar_lea.sflag [#allocation12], %s469
          %s471 = sand.u32 %s178, 1
          %s472 = smul.addr %s471, 768
          %s473 = scalar_lea.vmem [#allocation11], %s472
          %s475 = ssub.s32 12288, 12288
          %476 = vsyncadd %s470, %s475
          %s477 = smul.addr %s38, 192
          %s478 = smul.addr %s477, 64
          %s479 = scalar_lea.hbm %s5, %s478
          %s480 = sshll.u32 %s473, 4
          %s481 = int_to_ptr.vmem [resolvable:$true] %s480
          %486 = dma.hbm_to_vmem [thread:$0]  %s479, 12288, %s481, %s470, 192, 192, 12
        $region40: #{tpu_custom_call.1} parent=15 // pred_fallthru
          _
        // Predicated region
        $region41: #{tpu_custom_call.1} parent=15 // pred_check
          %p487 = pneg %p214
        $region42: #{tpu_custom_call.1} parent=15 // pred_check_branch
          %489 = sbr.rel (%p487) target = $region44
        $region43: #{tpu_custom_call.1} parent=15 // pred_region
          %s490 = sand.u32 %s38, 1
          %s491 = scalar_lea.sflag [#allocation12], %s490
          %s492 = sand.u32 %s204, 1
          %s493 = smul.addr %s492, 3
          %s494 = scalar_lea.vmem [#allocation13], %s493
          %s496 = ssub.s32 48, 48
          %497 = vsyncadd %s491, %s496
          %s498 = smul.addr %s38, 3
          %s499 = smul.addr %s498, 16
          %s500 = scalar_lea.hbm %s6, %s499
          %s502 = sshll.u32 %s494, 4
          %s503 = int_to_ptr.vmem [resolvable:$true] %s502
          %505 = dma.hbm_to_vmem [thread:$0]  %s500, 48, %s503, %s491
        $region44: #{tpu_custom_call.1} parent=15 // pred_fallthru
          _
        // Predicated region
        $region45: #{tpu_custom_call.1} parent=15 // pred_check
          %p506 = pneg %p240
        $region46: #{tpu_custom_call.1} parent=15 // pred_check_branch
          %508 = sbr.rel (%p506) target = $region48
        $region47: #{tpu_custom_call.1} parent=15 // pred_region
          %s509 = sand.u32 %s38, 1
          %s510 = scalar_lea.sflag [#allocation15], %s509
          %s511 = sand.u32 %s230, 1
          %s512 = smul.addr %s511, 384
          %s513 = scalar_lea.vmem [#allocation14], %s512
          %s515 = ssub.s32 6144, 6144
          %516 = vsyncadd %s510, %s515
          %s517 = smul.addr %s38, 96
          %s518 = smul.addr %s517, 64
          %s519 = scalar_lea.hbm %s7, %s518
          %s520 = sshll.u32 %s513, 4
          %s521 = int_to_ptr.vmem [resolvable:$true] %s520
          %526 = dma.hbm_to_vmem [thread:$0]  %s519, 6144, %s521, %s510, 128, 128, 8
        $region48: #{tpu_custom_call.1} parent=15 // pred_fallthru
          _
        // Predicated region
        $region49: #{tpu_custom_call.1} parent=15 // pred_check
          %p527 = pneg %p266
        $region50: #{tpu_custom_call.1} parent=15 // pred_check_branch
          %529 = sbr.rel (%p527) target = $region52
        $region51: #{tpu_custom_call.1} parent=15 // pred_region
          %s530 = sand.u32 %s38, 1
          %s531 = scalar_lea.sflag [#allocation15], %s530
          %s532 = sand.u32 %s256, 1
          %s533 = smul.addr %s532, 2
          %s534 = scalar_lea.vmem [#allocation16], %s533
          %s536 = ssub.s32 32, 32
          %537 = vsyncadd %s531, %s536
          %s538 = smul.addr %s38, 2
          %s539 = smul.addr %s538, 16
          %s540 = scalar_lea.hbm %s8, %s539
          %s542 = sshll.u32 %s534, 4
          %s543 = int_to_ptr.vmem [resolvable:$true] %s542
          %545 = dma.hbm_to_vmem [thread:$0]  %s540, 32, %s543, %s531
        $region52: #{tpu_custom_call.1} parent=15 // pred_fallthru
          _
        // Predicated region
        $region53: #{tpu_custom_call.1} parent=15 // pred_check
          %p546 = pneg %p292
        $region54: #{tpu_custom_call.1} parent=15 // pred_check_branch
          %548 = sbr.rel (%p546) target = $region56
        $region55: #{tpu_custom_call.1} parent=15 // pred_region
          %s549 = sand.u32 %s38, 1
          %s550 = scalar_lea.sflag [#allocation18], %s549
          %s551 = sand.u32 %s282, 1
          %s552 = smul.addr %s551, 384
          %s553 = scalar_lea.vmem [#allocation17], %s552
          %s555 = ssub.s32 6144, 6144
          %556 = vsyncadd %s550, %s555
          %s557 = smul.addr %s38, 96
          %s558 = smul.addr %s557, 64
          %s559 = scalar_lea.hbm %s9, %s558
          %s560 = sshll.u32 %s553, 4
          %s561 = int_to_ptr.vmem [resolvable:$true] %s560
          %566 = dma.hbm_to_vmem [thread:$0]  %s559, 6144, %s561, %s550, 192, 192, 12
        $region56: #{tpu_custom_call.1} parent=15 // pred_fallthru
          _
        // Predicated region
        $region57: #{tpu_custom_call.1} parent=15 // pred_check
          %p567 = pneg %p318
        $region58: #{tpu_custom_call.1} parent=15 // pred_check_branch
          %569 = sbr.rel (%p567) target = $region60
        $region59: #{tpu_custom_call.1} parent=15 // pred_region
          %s570 = sand.u32 %s38, 1
          %s571 = scalar_lea.sflag [#allocation18], %s570
          %s572 = sand.u32 %s308, 1
          %s573 = smul.addr %s572, 3
          %s574 = scalar_lea.vmem [#allocation19], %s573
          %s576 = ssub.s32 48, 48
          %577 = vsyncadd %s571, %s576
          %s578 = smul.addr %s38, 3
          %s579 = smul.addr %s578, 16
          %s580 = scalar_lea.hbm %s10, %s579
          %s582 = sshll.u32 %s574, 4
          %s583 = int_to_ptr.vmem [resolvable:$true] %s582
          %585 = dma.hbm_to_vmem [thread:$0]  %s580, 48, %s583, %s571
        $region60: #{tpu_custom_call.1} parent=15 // pred_fallthru
          _
      $region16: #{tpu_custom_call.1} parent=5 // pred_fallthru
        _
      %p586 = scmp.le.s32.totalorder 1, %s38
      %p587 = scmp.lt.s32.totalorder %s38, 3
      %p588 = pnand %p586, %p587
      %p589 = pneg %p588
      // Predicated region
      $region61: #{tpu_custom_call.1} parent=5 // pred_check
        _
      $region62: #{tpu_custom_call.1} parent=5 // pred_check_branch
        %591 = sbr.rel (%p588) target = $region64
      $region63: #{tpu_custom_call.1} parent=5 // pred_region
        %s592 = ssub.s32 %s38, 1
        %s593 = sand.u32 %s51, 1
        %s594 = scalar_lea.sflag [#allocation3], %s593
        %s595 = sand.u32 %s51, 1
        %s596 = smul.addr %s595, 144
        %s597 = scalar_lea.vmem [#allocation2], %s596
        // Predicated region
        $region65: #{tpu_custom_call.1} parent=63 // pred_check
          %p598 = pneg %p64
        $region66: #{tpu_custom_call.1} parent=63 // pred_check_branch
          %600 = sbr.rel (%p598) target = $region68
        $region67: #{tpu_custom_call.1} parent=63 // pred_region
          %601 = dma.done %s594, 2304
        $region68: #{tpu_custom_call.1} parent=63 // pred_fallthru
          _
        %s602 = sand.u32 %s43, 1
        %s603 = scalar_lea.sflag [#allocation6], %s602
        %s604 = sand.u32 %s77, 1
        %s605 = smul.addr %s604, 2
        %s606 = scalar_lea.vmem [#allocation5], %s605
        // Predicated region
        $region69: #{tpu_custom_call.1} parent=63 // pred_check
          %p607 = pneg %p90
        $region70: #{tpu_custom_call.1} parent=63 // pred_check_branch
          %609 = sbr.rel (%p607) target = $region72
        $region71: #{tpu_custom_call.1} parent=63 // pred_region
          %610 = dma.done %s603, 32
        $region72: #{tpu_custom_call.1} parent=63 // pred_fallthru
          _
        %s611 = sand.u32 %s43, 1
        %s612 = scalar_lea.sflag [#allocation6], %s611
        %s613 = sand.u32 %s103, 1
        %s614 = scalar_lea.vmem [#allocation7], %s613
        // Predicated region
        $region73: #{tpu_custom_call.1} parent=63 // pred_check
          %p615 = pneg %p116
        $region74: #{tpu_custom_call.1} parent=63 // pred_check_branch
          %617 = sbr.rel (%p615) target = $region76
        $region75: #{tpu_custom_call.1} parent=63 // pred_region
          %618 = dma.done %s612, 16
        $region76: #{tpu_custom_call.1} parent=63 // pred_fallthru
          _
        %s619 = sand.u32 %s43, 1
        %s620 = scalar_lea.sflag [#allocation9], %s619
        %s621 = sand.u32 %s129, 1
        %s622 = smul.addr %s621, 2304
        %s623 = scalar_lea.vmem [#allocation8], %s622
        // Predicated region
        $region77: #{tpu_custom_call.1} parent=63 // pred_check
          %p624 = pneg %p142
        $region78: #{tpu_custom_call.1} parent=63 // pred_check_branch
          %626 = sbr.rel (%p624) target = $region80
        $region79: #{tpu_custom_call.1} parent=63 // pred_region
          %627 = dma.done %s620, 36864
        $region80: #{tpu_custom_call.1} parent=63 // pred_fallthru
          _
        %s628 = sand.u32 %s43, 1
        %s629 = scalar_lea.sflag [#allocation9], %s628
        %s630 = sand.u32 %s155, 1
        %s631 = smul.addr %s630, 12
        %s632 = scalar_lea.vmem [#allocation10], %s631
        // Predicated region
        $region81: #{tpu_custom_call.1} parent=63 // pred_check
          %p633 = pneg %p168
        $region82: #{tpu_custom_call.1} parent=63 // pred_check_branch
          %635 = sbr.rel (%p633) target = $region84
        $region83: #{tpu_custom_call.1} parent=63 // pred_region
          %636 = dma.done %s629, 192
        $region84: #{tpu_custom_call.1} parent=63 // pred_fallthru
          _
        %s637 = sand.u32 %s43, 1
        %s638 = scalar_lea.sflag [#allocation12], %s637
        %s639 = sand.u32 %s181, 1
        %s640 = smul.addr %s639, 768
        %s641 = scalar_lea.vmem [#allocation11], %s640
        // Predicated region
        $region85: #{tpu_custom_call.1} parent=63 // pred_check
          %p642 = pneg %p194
        $region86: #{tpu_custom_call.1} parent=63 // pred_check_branch
          %644 = sbr.rel (%p642) target = $region88
        $region87: #{tpu_custom_call.1} parent=63 // pred_region
          %645 = dma.done %s638, 12288
        $region88: #{tpu_custom_call.1} parent=63 // pred_fallthru
          _
        %s646 = sand.u32 %s43, 1
        %s647 = scalar_lea.sflag [#allocation12], %s646
        %s648 = sand.u32 %s207, 1
        %s649 = smul.addr %s648, 3
        %s650 = scalar_lea.vmem [#allocation13], %s649
        // Predicated region
        $region89: #{tpu_custom_call.1} parent=63 // pred_check
          %p651 = pneg %p220
        $region90: #{tpu_custom_call.1} parent=63 // pred_check_branch
          %653 = sbr.rel (%p651) target = $region92
        $region91: #{tpu_custom_call.1} parent=63 // pred_region
          %654 = dma.done %s647, 48
        $region92: #{tpu_custom_call.1} parent=63 // pred_fallthru
          _
        %s655 = sand.u32 %s43, 1
        %s656 = scalar_lea.sflag [#allocation15], %s655
        %s657 = sand.u32 %s233, 1
        %s658 = smul.addr %s657, 384
        %s659 = scalar_lea.vmem [#allocation14], %s658
        // Predicated region
        $region93: #{tpu_custom_call.1} parent=63 // pred_check
          %p660 = pneg %p246
        $region94: #{tpu_custom_call.1} parent=63 // pred_check_branch
          %662 = sbr.rel (%p660) target = $region96
        $region95: #{tpu_custom_call.1} parent=63 // pred_region
          %663 = dma.done %s656, 6144
        $region96: #{tpu_custom_call.1} parent=63 // pred_fallthru
          _
        %s664 = sand.u32 %s43, 1
        %s665 = scalar_lea.sflag [#allocation15], %s664
        %s666 = sand.u32 %s259, 1
        %s667 = smul.addr %s666, 2
        %s668 = scalar_lea.vmem [#allocation16], %s667
        // Predicated region
        $region97: #{tpu_custom_call.1} parent=63 // pred_check
          %p669 = pneg %p272
        $region98: #{tpu_custom_call.1} parent=63 // pred_check_branch
          %671 = sbr.rel (%p669) target = $region100
        $region99: #{tpu_custom_call.1} parent=63 // pred_region
          %672 = dma.done %s665, 32
        $region100: #{tpu_custom_call.1} parent=63 // pred_fallthru
          _
        %s673 = sand.u32 %s43, 1
        %s674 = scalar_lea.sflag [#allocation18], %s673
        %s675 = sand.u32 %s285, 1
        %s676 = smul.addr %s675, 384
        %s677 = scalar_lea.vmem [#allocation17], %s676
        // Predicated region
        $region101: #{tpu_custom_call.1} parent=63 // pred_check
          %p678 = pneg %p298
        $region102: #{tpu_custom_call.1} parent=63 // pred_check_branch
          %680 = sbr.rel (%p678) target = $region104
        $region103: #{tpu_custom_call.1} parent=63 // pred_region
          %681 = dma.done %s674, 6144
        $region104: #{tpu_custom_call.1} parent=63 // pred_fallthru
          _
        %s682 = sand.u32 %s43, 1
        %s683 = scalar_lea.sflag [#allocation18], %s682
        %s684 = sand.u32 %s311, 1
        %s685 = smul.addr %s684, 3
        %s686 = scalar_lea.vmem [#allocation19], %s685
        // Predicated region
        $region105: #{tpu_custom_call.1} parent=63 // pred_check
          %p687 = pneg %p324
        $region106: #{tpu_custom_call.1} parent=63 // pred_check_branch
          %689 = sbr.rel (%p687) target = $region108
        $region107: #{tpu_custom_call.1} parent=63 // pred_region
          %690 = dma.done %s683, 48
        $region108: #{tpu_custom_call.1} parent=63 // pred_fallthru
          _
        %s691 = sand.u32 %s51, 1
        %s692 = scalar_lea.sflag [#allocation3], %s691
        %s693 = sand.u32 %s51, 1
        %s694 = smul.addr %s693, 144
        %s695 = scalar_lea.vmem [#allocation2], %s694
        %p696 = pneg %p64
        %p697 = pneg %p61
        %s698 = sand.u32 %s43, 1
        %s699 = scalar_lea.sflag [#allocation6], %s698
        %s700 = sand.u32 %s77, 1
        %s701 = smul.addr %s700, 2
        %s702 = scalar_lea.vmem [#allocation5], %s701
        %p703 = pneg %p90
        %p704 = pneg %p87
        %s705 = sand.u32 %s43, 1
        %s706 = scalar_lea.sflag [#allocation6], %s705
        %s707 = sand.u32 %s103, 1
        %s708 = scalar_lea.vmem [#allocation7], %s707
        %p709 = pneg %p116
        %p710 = pneg %p113
        %s711 = sand.u32 %s43, 1
        %s712 = scalar_lea.sflag [#allocation9], %s711
        %s713 = sand.u32 %s129, 1
        %s714 = smul.addr %s713, 2304
        %s715 = scalar_lea.vmem [#allocation8], %s714
        %p716 = pneg %p142
        %p717 = pneg %p139
        %s718 = sand.u32 %s43, 1
        %s719 = scalar_lea.sflag [#allocation9], %s718
        %s720 = sand.u32 %s155, 1
        %s721 = smul.addr %s720, 12
        %s722 = scalar_lea.vmem [#allocation10], %s721
        %p723 = pneg %p168
        %p724 = pneg %p165
        %s725 = sand.u32 %s43, 1
        %s726 = scalar_lea.sflag [#allocation12], %s725
        %s727 = sand.u32 %s181, 1
        %s728 = smul.addr %s727, 768
        %s729 = scalar_lea.vmem [#allocation11], %s728
        %p730 = pneg %p194
        %p731 = pneg %p191
        %s732 = sand.u32 %s43, 1
        %s733 = scalar_lea.sflag [#allocation12], %s732
        %s734 = sand.u32 %s207, 1
        %s735 = smul.addr %s734, 3
        %s736 = scalar_lea.vmem [#allocation13], %s735
        %p737 = pneg %p220
        %p738 = pneg %p217
        %s739 = sand.u32 %s43, 1
        %s740 = scalar_lea.sflag [#allocation15], %s739
        %s741 = sand.u32 %s233, 1
        %s742 = smul.addr %s741, 384
        %s743 = scalar_lea.vmem [#allocation14], %s742
        %p744 = pneg %p246
        %p745 = pneg %p243
        %s746 = sand.u32 %s43, 1
        %s747 = scalar_lea.sflag [#allocation15], %s746
        %s748 = sand.u32 %s259, 1
        %s749 = smul.addr %s748, 2
        %s750 = scalar_lea.vmem [#allocation16], %s749
        %p751 = pneg %p272
        %p752 = pneg %p269
        %s753 = sand.u32 %s43, 1
        %s754 = scalar_lea.sflag [#allocation18], %s753
        %s755 = sand.u32 %s285, 1
        %s756 = smul.addr %s755, 384
        %s757 = scalar_lea.vmem [#allocation17], %s756
        %p758 = pneg %p298
        %p759 = pneg %p295
        %s760 = sand.u32 %s43, 1
        %s761 = scalar_lea.sflag [#allocation18], %s760
        %s762 = sand.u32 %s311, 1
        %s763 = smul.addr %s762, 3
        %s764 = scalar_lea.vmem [#allocation19], %s763
        %p765 = pneg %p324
        %p766 = pneg %p321
        %p767 = pneg %p350
        %p768 = pneg %p347
        %s769 = sand.u32 %s337, 1
        %s770 = scalar_lea.sflag [#allocation4], %s769
        %s771 = sand.u32 %s337, 1
        %s772 = smul.addr %s771, 24
        %s773 = scalar_lea.vmem [#allocation20], %s772
        %v775 = vld [vmem:[%s597] sm:$0xff]
        %v776 = vld [vmem:[%s597 + $0x8] sm:$0xff]
        %v777 = vld [vmem:[%s597 + $0x10] sm:$0xff]
        %v778 = vld [vmem:[%s597 + $0x18] sm:$0xff]
        %v779 = vld [vmem:[%s597 + $0x20] sm:$0xff]
        %v780 = vld [vmem:[%s597 + $0x28] sm:$0xff]
        %v781 = vld [vmem:[%s597 + $0x30] sm:$0xff]
        %v782 = vld [vmem:[%s597 + $0x38] sm:$0xff]
        %v783 = vld [vmem:[%s597 + $0x40] sm:$0xff]
        %v784 = vld [vmem:[%s597 + $0x48] sm:$0xff]
        %v785 = vld [vmem:[%s597 + $0x50] sm:$0xff]
        %v786 = vld [vmem:[%s597 + $0x58] sm:$0xff]
        %v787 = vld [vmem:[%s597 + $0x60] sm:$0xff]
        %v788 = vld [vmem:[%s597 + $0x68] sm:$0xff]
        %v789 = vld [vmem:[%s597 + $0x70] sm:$0xff]
        %v790 = vld [vmem:[%s597 + $0x78] sm:$0xff]
        %v791 = vld [vmem:[%s597 + $0x80] sm:$0xff]
        %v792 = vld [vmem:[%s597 + $0x88] sm:$0xff]
        %v793 = vld [vmem:[%s606] sm:$0x3]
        %v795 = vlaneseq
        %v796 = vshrl.u32 %v795, 7
        %v797 = vsub.s32 0, %v796
        %v798 = vrot.slane %v793, %v797
        %v799 = vlaneseq
        %v800 = vshrl.u32 %v799, 7
        %v801 = vsub.s32 1, %v800
        %v802 = vrot.slane %v793, %v801
        %v805 = vmul.f32 %v775, %v798
        %v806 = vmul.f32 %v776, %v802
        %v807 = vmul.f32 %v777, %v798
        %v808 = vmul.f32 %v778, %v802
        %v809 = vmul.f32 %v779, %v798
        %v810 = vmul.f32 %v780, %v802
        %v811 = vmul.f32 %v781, %v798
        %v812 = vmul.f32 %v782, %v802
        %v813 = vmul.f32 %v783, %v798
        %v814 = vmul.f32 %v784, %v802
        %v815 = vmul.f32 %v785, %v798
        %v816 = vmul.f32 %v786, %v802
        %v817 = vmul.f32 %v787, %v798
        %v818 = vmul.f32 %v788, %v802
        %v819 = vmul.f32 %v789, %v798
        %v820 = vmul.f32 %v790, %v802
        %v821 = vmul.f32 %v791, %v798
        %v822 = vmul.f32 %v792, %v802
        %v823 = vand.u32 2147483647, %v805
        %vm824 = vcmp.le.f32.partialorder %v823, 0.7853982
        %vm825 = vcmp.lt.s32.totalorder %v805, 0
        %v826 = vand.u32 %v805, 2139095040
        %v827 = vshrl.u32 %v826, 23
        %v828 = vsub.s32 %v827, 127
        %v829 = vand.u32 2147483647, %v805
        %v830 = vand.u32 %v829, 8388607
        %v831 = vor.u32 %v830, 8388608
        %v832 = vsub.s32 0, %v831
        %v833 = vadd.s32 %v828, 1
        %vm834 = vcmp.gt.s32.totalorder %v833, 0
        %v835 = vsel %vm834, %v833, 0
        %v836 = vshrl.u32 %v835, 5
        %v837 = vand.u32 %v835, 31
        %v838 = vsub.s32 32, %v837
        %v839 = vshrl.u32 683565275, %v838
        %v840 = vshll.u32 683565275, %v837
        %v841 = vshrl.u32 2475754826, %v838
        %v842 = vor.u32 %v840, %v841
        %v843 = vshll.u32 2475754826, %v837
        %v844 = vshrl.u32 2131351028, %v838
        %v845 = vor.u32 %v843, %v844
        %v846 = vshll.u32 2131351028, %v837
        %v847 = vshrl.u32 2102212464, %v838
        %v848 = vor.u32 %v846, %v847
        %v849 = vshll.u32 2102212464, %v837
        %v850 = vshrl.u32 920167782, %v838
        %v851 = vor.u32 %v849, %v850
        %v852 = vshll.u32 920167782, %v837
        %v853 = vshrl.u32 1326507024, %v838
        %v854 = vor.u32 %v852, %v853
        %vm855 = vcmp.lt.s32.totalorder %v836, 1
        %vm856 = vcmp.lt.s32.totalorder %v836, 2
        %vm857 = vcmp.lt.s32.totalorder %v836, 3
        %vm858 = vcmp.lt.s32.totalorder %v836, 4
        %v859 = vsel %vm855, %v839, %v842
        %v860 = vsel %vm858, %v848, 2102212464
        %v861 = vsel %vm857, %v845, %v860
        %v862 = vsel %vm856, %v859, %v861
        %v863 = vsel %vm855, %v842, %v845
        %v864 = vsel %vm858, %v851, 920167782
        %v865 = vsel %vm857, %v848, %v864
        %v866 = vsel %vm856, %v863, %v865
        %v867 = vsel %vm855, %v845, %v848
        %v868 = vsel %vm858, %v854, 1326507024
        %v869 = vsel %vm857, %v851, %v868
        %v870 = vsel %vm856, %v867, %v869
        %v871 = vshll.u32 %v831, 8
        %v872 = vmul.u32.u64.compose %v871, %v870
        %v873 = vextract.low.u32 %v872
        %v874 = vextract.high.u32 %v872
        %v875 = vmul.u32.u64.compose %v871, %v866
        %v876 = vextract.low.u32 %v875
        %v877 = vextract.high.u32 %v875
        %v878 = vmul.u32 %v871, %v862
        %v879 = vadd.s32 %v874, %v876
        %vm880 = vc.u32 %v874, %v876
        %v881 = vadd.s32 %v877, 1
        %v882 = vsel %vm880, %v881, %v877
        %v883 = vadd.s32 %v878, %v882
        %v884 = vadd.s32 %v883, 536870912
        %v885 = vshrl.u32 %v884, 30
        %v886 = vshll.u32 %v885, 30
        %v887 = vsub.s32 %v883, %v886
        %vm888 = vcmp.lt.s32.totalorder %v887, 0
        %v889 = vsub.s32 0, %v887
        %v890 = vsel %vm888, %v889, %v887
        %v891 = vclz %v890
        %v892 = vsub.s32 %v891, 2
        %vm893 = vcmp.gt.s32.totalorder 0, %v892
        %v894 = vsel %vm893, 0, %v892
        %v895 = vsub.s32 32, %v894
        %v896 = vshll.u32 %v887, %v894
        %v897 = vshrl.u32 %v879, %v895
        %v898 = vor.u32 %v896, %v897
        %v899 = vsub.s32 4294967266, %v894
        %v900 = vadd.s32 %v899, 127
        %v901 = vshll.u32 %v900, 23
        %v902 = vor.u32 4788187, %v901
        %v903 = vand.u32 2147483647, %v902
        %v905 = vcvt.s32.f32 %v898
        %v906 = vmul.f32 %v905, %v903
        %v907 = vxor.u32 %v906, 2147483648
        %v908 = vsel %vm825, %v907, %v906
        %v909 = vsub.s32 4, %v885
        %v910 = vsel %vm825, %v909, %v885
        %v911 = vsel %vm824, %v805, %v908
        %v912 = vsel %vm824, 0, %v910
        %v913 = vcosq.f32.pop %v911
        %v914 = vsinq.f32.pop %v911
        %vm915 = vweird.f32 %v805
        %v916 = vadd.s32 %v912, 3
        %v917 = vand.u32 %v916, 3
        %vm918 = vcmp.lt.s32.totalorder %v917, 2
        %vm919 = vcmp.eq.s32.totalorder %v917, 0
        %v920 = vxor.u32 %v914, 2147483648
        %v921 = vsel %vm919, %v913, %v920
        %vm922 = vcmp.eq.s32.totalorder %v917, 2
        %v923 = vxor.u32 %v913, 2147483648
        %v924 = vsel %vm922, %v923, %v914
        %v925 = vsel %vm918, %v921, %v924
        %v926 = vsel %vm915, nan, %v925
        %v927 = vand.u32 2147483647, %v806
        %vm928 = vcmp.le.f32.partialorder %v927, 0.7853982
        %vm929 = vcmp.lt.s32.totalorder %v806, 0
        %v930 = vand.u32 %v806, 2139095040
        %v931 = vshrl.u32 %v930, 23
        %v932 = vsub.s32 %v931, 127
        %v933 = vand.u32 2147483647, %v806
        %v934 = vand.u32 %v933, 8388607
        %v935 = vor.u32 %v934, 8388608
        %v936 = vsub.s32 0, %v935
        %v937 = vadd.s32 %v932, 1
        %vm938 = vcmp.gt.s32.totalorder %v937, 0
        %v939 = vsel %vm938, %v937, 0
        %v940 = vshrl.u32 %v939, 5
        %v941 = vand.u32 %v939, 31
        %v942 = vsub.s32 32, %v941
        %v943 = vshrl.u32 683565275, %v942
        %v944 = vshll.u32 683565275, %v941
        %v945 = vshrl.u32 2475754826, %v942
        %v946 = vor.u32 %v944, %v945
        %v947 = vshll.u32 2475754826, %v941
        %v948 = vshrl.u32 2131351028, %v942
        %v949 = vor.u32 %v947, %v948
        %v950 = vshll.u32 2131351028, %v941
        %v951 = vshrl.u32 2102212464, %v942
        %v952 = vor.u32 %v950, %v951
        %v953 = vshll.u32 2102212464, %v941
        %v954 = vshrl.u32 920167782, %v942
        %v955 = vor.u32 %v953, %v954
        %v956 = vshll.u32 920167782, %v941
        %v957 = vshrl.u32 1326507024, %v942
        %v958 = vor.u32 %v956, %v957
        %vm959 = vcmp.lt.s32.totalorder %v940, 1
        %vm960 = vcmp.lt.s32.totalorder %v940, 2
        %vm961 = vcmp.lt.s32.totalorder %v940, 3
        %vm962 = vcmp.lt.s32.totalorder %v940, 4
        %v963 = vsel %vm959, %v943, %v946
        %v964 = vsel %vm962, %v952, 2102212464
        %v965 = vsel %vm961, %v949, %v964
        %v966 = vsel %vm960, %v963, %v965
        %v967 = vsel %vm959, %v946, %v949
        %v968 = vsel %vm962, %v955, 920167782
        %v969 = vsel %vm961, %v952, %v968
        %v970 = vsel %vm960, %v967, %v969
        %v971 = vsel %vm959, %v949, %v952
        %v972 = vsel %vm962, %v958, 1326507024
        %v973 = vsel %vm961, %v955, %v972
        %v974 = vsel %vm960, %v971, %v973
        %v975 = vshll.u32 %v935, 8
        %v976 = vmul.u32.u64.compose %v975, %v974
        %v977 = vextract.low.u32 %v976
        %v978 = vextract.high.u32 %v976
        %v979 = vmul.u32.u64.compose %v975, %v970
        %v980 = vextract.low.u32 %v979
        %v981 = vextract.high.u32 %v979
        %v982 = vmul.u32 %v975, %v966
        %v983 = vadd.s32 %v978, %v980
        %vm984 = vc.u32 %v978, %v980
        %v985 = vadd.s32 %v981, 1
        %v986 = vsel %vm984, %v985, %v981
        %v987 = vadd.s32 %v982, %v986
        %v988 = vadd.s32 %v987, 536870912
        %v989 = vshrl.u32 %v988, 30
        %v990 = vshll.u32 %v989, 30
        %v991 = vsub.s32 %v987, %v990
        %vm992 = vcmp.lt.s32.totalorder %v991, 0
        %v993 = vsub.s32 0, %v991
        %v994 = vsel %vm992, %v993, %v991
        %v995 = vclz %v994
        %v996 = vsub.s32 %v995, 2
        %vm997 = vcmp.gt.s32.totalorder 0, %v996
        %v998 = vsel %vm997, 0, %v996
        %v999 = vsub.s32 32, %v998
        %v1000 = vshll.u32 %v991, %v998
        %v1001 = vshrl.u32 %v983, %v999
        %v1002 = vor.u32 %v1000, %v1001
        %v1003 = vsub.s32 4294967266, %v998
        %v1004 = vadd.s32 %v1003, 127
        %v1005 = vshll.u32 %v1004, 23
        %v1006 = vor.u32 4788187, %v1005
        %v1007 = vand.u32 2147483647, %v1006
        %v1009 = vcvt.s32.f32 %v1002
        %v1010 = vmul.f32 %v1009, %v1007
        %v1011 = vxor.u32 %v1010, 2147483648
        %v1012 = vsel %vm929, %v1011, %v1010
        %v1013 = vsub.s32 4, %v989
        %v1014 = vsel %vm929, %v1013, %v989
        %v1015 = vsel %vm928, %v806, %v1012
        %v1016 = vsel %vm928, 0, %v1014
        %v1017 = vcosq.f32.pop %v1015
        %v1018 = vsinq.f32.pop %v1015
        %vm1019 = vweird.f32 %v806
        %v1020 = vadd.s32 %v1016, 3
        %v1021 = vand.u32 %v1020, 3
        %vm1022 = vcmp.lt.s32.totalorder %v1021, 2
        %vm1023 = vcmp.eq.s32.totalorder %v1021, 0
        %v1024 = vxor.u32 %v1018, 2147483648
        %v1025 = vsel %vm1023, %v1017, %v1024
        %vm1026 = vcmp.eq.s32.totalorder %v1021, 2
        %v1027 = vxor.u32 %v1017, 2147483648
        %v1028 = vsel %vm1026, %v1027, %v1018
        %v1029 = vsel %vm1022, %v1025, %v1028
        %v1030 = vsel %vm1019, nan, %v1029
        %v1031 = vand.u32 2147483647, %v807
        %vm1032 = vcmp.le.f32.partialorder %v1031, 0.7853982
        %vm1033 = vcmp.lt.s32.totalorder %v807, 0
        %v1034 = vand.u32 %v807, 2139095040
        %v1035 = vshrl.u32 %v1034, 23
        %v1036 = vsub.s32 %v1035, 127
        %v1037 = vand.u32 2147483647, %v807
        %v1038 = vand.u32 %v1037, 8388607
        %v1039 = vor.u32 %v1038, 8388608
        %v1040 = vsub.s32 0, %v1039
        %v1041 = vadd.s32 %v1036, 1
        %vm1042 = vcmp.gt.s32.totalorder %v1041, 0
        %v1043 = vsel %vm1042, %v1041, 0
        %v1044 = vshrl.u32 %v1043, 5
        %v1045 = vand.u32 %v1043, 31
        %v1046 = vsub.s32 32, %v1045
        %v1047 = vshrl.u32 683565275, %v1046
        %v1048 = vshll.u32 683565275, %v1045
        %v1049 = vshrl.u32 2475754826, %v1046
        %v1050 = vor.u32 %v1048, %v1049
        %v1051 = vshll.u32 2475754826, %v1045
        %v1052 = vshrl.u32 2131351028, %v1046
        %v1053 = vor.u32 %v1051, %v1052
        %v1054 = vshll.u32 2131351028, %v1045
        %v1055 = vshrl.u32 2102212464, %v1046
        %v1056 = vor.u32 %v1054, %v1055
        %v1057 = vshll.u32 2102212464, %v1045
        %v1058 = vshrl.u32 920167782, %v1046
        %v1059 = vor.u32 %v1057, %v1058
        %v1060 = vshll.u32 920167782, %v1045
        %v1061 = vshrl.u32 1326507024, %v1046
        %v1062 = vor.u32 %v1060, %v1061
        %vm1063 = vcmp.lt.s32.totalorder %v1044, 1
        %vm1064 = vcmp.lt.s32.totalorder %v1044, 2
        %vm1065 = vcmp.lt.s32.totalorder %v1044, 3
        %vm1066 = vcmp.lt.s32.totalorder %v1044, 4
        %v1067 = vsel %vm1063, %v1047, %v1050
        %v1068 = vsel %vm1066, %v1056, 2102212464
        %v1069 = vsel %vm1065, %v1053, %v1068
        %v1070 = vsel %vm1064, %v1067, %v1069
        %v1071 = vsel %vm1063, %v1050, %v1053
        %v1072 = vsel %vm1066, %v1059, 920167782
        %v1073 = vsel %vm1065, %v1056, %v1072
        %v1074 = vsel %vm1064, %v1071, %v1073
        %v1075 = vsel %vm1063, %v1053, %v1056
        %v1076 = vsel %vm1066, %v1062, 1326507024
        %v1077 = vsel %vm1065, %v1059, %v1076
        %v1078 = vsel %vm1064, %v1075, %v1077
        %v1079 = vshll.u32 %v1039, 8
        %v1080 = vmul.u32.u64.compose %v1079, %v1078
        %v1081 = vextract.low.u32 %v1080
        %v1082 = vextract.high.u32 %v1080
        %v1083 = vmul.u32.u64.compose %v1079, %v1074
        %v1084 = vextract.low.u32 %v1083
        %v1085 = vextract.high.u32 %v1083
        %v1086 = vmul.u32 %v1079, %v1070
        %v1087 = vadd.s32 %v1082, %v1084
        %vm1088 = vc.u32 %v1082, %v1084
        %v1089 = vadd.s32 %v1085, 1
        %v1090 = vsel %vm1088, %v1089, %v1085
        %v1091 = vadd.s32 %v1086, %v1090
        %v1092 = vadd.s32 %v1091, 536870912
        %v1093 = vshrl.u32 %v1092, 30
        %v1094 = vshll.u32 %v1093, 30
        %v1095 = vsub.s32 %v1091, %v1094
        %vm1096 = vcmp.lt.s32.totalorder %v1095, 0
        %v1097 = vsub.s32 0, %v1095
        %v1098 = vsel %vm1096, %v1097, %v1095
        %v1099 = vclz %v1098
        %v1100 = vsub.s32 %v1099, 2
        %vm1101 = vcmp.gt.s32.totalorder 0, %v1100
        %v1102 = vsel %vm1101, 0, %v1100
        %v1103 = vsub.s32 32, %v1102
        %v1104 = vshll.u32 %v1095, %v1102
        %v1105 = vshrl.u32 %v1087, %v1103
        %v1106 = vor.u32 %v1104, %v1105
        %v1107 = vsub.s32 4294967266, %v1102
        %v1108 = vadd.s32 %v1107, 127
        %v1109 = vshll.u32 %v1108, 23
        %v1110 = vor.u32 4788187, %v1109
        %v1111 = vand.u32 2147483647, %v1110
        %v1113 = vcvt.s32.f32 %v1106
        %v1114 = vmul.f32 %v1113, %v1111
        %v1115 = vxor.u32 %v1114, 2147483648
        %v1116 = vsel %vm1033, %v1115, %v1114
        %v1117 = vsub.s32 4, %v1093
        %v1118 = vsel %vm1033, %v1117, %v1093
        %v1119 = vsel %vm1032, %v807, %v1116
        %v1120 = vsel %vm1032, 0, %v1118
        %v1121 = vcosq.f32.pop %v1119
        %v1122 = vsinq.f32.pop %v1119
        %vm1123 = vweird.f32 %v807
        %v1124 = vadd.s32 %v1120, 3
        %v1125 = vand.u32 %v1124, 3
        %vm1126 = vcmp.lt.s32.totalorder %v1125, 2
        %vm1127 = vcmp.eq.s32.totalorder %v1125, 0
        %v1128 = vxor.u32 %v1122, 2147483648
        %v1129 = vsel %vm1127, %v1121, %v1128
        %vm1130 = vcmp.eq.s32.totalorder %v1125, 2
        %v1131 = vxor.u32 %v1121, 2147483648
        %v1132 = vsel %vm1130, %v1131, %v1122
        %v1133 = vsel %vm1126, %v1129, %v1132
        %v1134 = vsel %vm1123, nan, %v1133
        %v1135 = vand.u32 2147483647, %v808
        %vm1136 = vcmp.le.f32.partialorder %v1135, 0.7853982
        %vm1137 = vcmp.lt.s32.totalorder %v808, 0
        %v1138 = vand.u32 %v808, 2139095040
        %v1139 = vshrl.u32 %v1138, 23
        %v1140 = vsub.s32 %v1139, 127
        %v1141 = vand.u32 2147483647, %v808
        %v1142 = vand.u32 %v1141, 8388607
        %v1143 = vor.u32 %v1142, 8388608
        %v1144 = vsub.s32 0, %v1143
        %v1145 = vadd.s32 %v1140, 1
        %vm1146 = vcmp.gt.s32.totalorder %v1145, 0
        %v1147 = vsel %vm1146, %v1145, 0
        %v1148 = vshrl.u32 %v1147, 5
        %v1149 = vand.u32 %v1147, 31
        %v1150 = vsub.s32 32, %v1149
        %v1151 = vshrl.u32 683565275, %v1150
        %v1152 = vshll.u32 683565275, %v1149
        %v1153 = vshrl.u32 2475754826, %v1150
        %v1154 = vor.u32 %v1152, %v1153
        %v1155 = vshll.u32 2475754826, %v1149
        %v1156 = vshrl.u32 2131351028, %v1150
        %v1157 = vor.u32 %v1155, %v1156
        %v1158 = vshll.u32 2131351028, %v1149
        %v1159 = vshrl.u32 2102212464, %v1150
        %v1160 = vor.u32 %v1158, %v1159
        %v1161 = vshll.u32 2102212464, %v1149
        %v1162 = vshrl.u32 920167782, %v1150
        %v1163 = vor.u32 %v1161, %v1162
        %v1164 = vshll.u32 920167782, %v1149
        %v1165 = vshrl.u32 1326507024, %v1150
        %v1166 = vor.u32 %v1164, %v1165
        %vm1167 = vcmp.lt.s32.totalorder %v1148, 1
        %vm1168 = vcmp.lt.s32.totalorder %v1148, 2
        %vm1169 = vcmp.lt.s32.totalorder %v1148, 3
        %vm1170 = vcmp.lt.s32.totalorder %v1148, 4
        %v1171 = vsel %vm1167, %v1151, %v1154
        %v1172 = vsel %vm1170, %v1160, 2102212464
        %v1173 = vsel %vm1169, %v1157, %v1172
        %v1174 = vsel %vm1168, %v1171, %v1173
        %v1175 = vsel %vm1167, %v1154, %v1157
        %v1176 = vsel %vm1170, %v1163, 920167782
        %v1177 = vsel %vm1169, %v1160, %v1176
        %v1178 = vsel %vm1168, %v1175, %v1177
        %v1179 = vsel %vm1167, %v1157, %v1160
        %v1180 = vsel %vm1170, %v1166, 1326507024
        %v1181 = vsel %vm1169, %v1163, %v1180
        %v1182 = vsel %vm1168, %v1179, %v1181
        %v1183 = vshll.u32 %v1143, 8
        %v1184 = vmul.u32.u64.compose %v1183, %v1182
        %v1185 = vextract.low.u32 %v1184
        %v1186 = vextract.high.u32 %v1184
        %v1187 = vmul.u32.u64.compose %v1183, %v1178
        %v1188 = vextract.low.u32 %v1187
        %v1189 = vextract.high.u32 %v1187
        %v1190 = vmul.u32 %v1183, %v1174
        %v1191 = vadd.s32 %v1186, %v1188
        %vm1192 = vc.u32 %v1186, %v1188
        %v1193 = vadd.s32 %v1189, 1
        %v1194 = vsel %vm1192, %v1193, %v1189
        %v1195 = vadd.s32 %v1190, %v1194
        %v1196 = vadd.s32 %v1195, 536870912
        %v1197 = vshrl.u32 %v1196, 30
        %v1198 = vshll.u32 %v1197, 30
        %v1199 = vsub.s32 %v1195, %v1198
        %vm1200 = vcmp.lt.s32.totalorder %v1199, 0
        %v1201 = vsub.s32 0, %v1199
        %v1202 = vsel %vm1200, %v1201, %v1199
        %v1203 = vclz %v1202
        %v1204 = vsub.s32 %v1203, 2
        %vm1205 = vcmp.gt.s32.totalorder 0, %v1204
        %v1206 = vsel %vm1205, 0, %v1204
        %v1207 = vsub.s32 32, %v1206
        %v1208 = vshll.u32 %v1199, %v1206
        %v1209 = vshrl.u32 %v1191, %v1207
        %v1210 = vor.u32 %v1208, %v1209
        %v1211 = vsub.s32 4294967266, %v1206
        %v1212 = vadd.s32 %v1211, 127
        %v1213 = vshll.u32 %v1212, 23
        %v1214 = vor.u32 4788187, %v1213
        %v1215 = vand.u32 2147483647, %v1214
        %v1217 = vcvt.s32.f32 %v1210
        %v1218 = vmul.f32 %v1217, %v1215
        %v1219 = vxor.u32 %v1218, 2147483648
        %v1220 = vsel %vm1137, %v1219, %v1218
        %v1221 = vsub.s32 4, %v1197
        %v1222 = vsel %vm1137, %v1221, %v1197
        %v1223 = vsel %vm1136, %v808, %v1220
        %v1224 = vsel %vm1136, 0, %v1222
        %v1225 = vcosq.f32.pop %v1223
        %v1226 = vsinq.f32.pop %v1223
        %vm1227 = vweird.f32 %v808
        %v1228 = vadd.s32 %v1224, 3
        %v1229 = vand.u32 %v1228, 3
        %vm1230 = vcmp.lt.s32.totalorder %v1229, 2
        %vm1231 = vcmp.eq.s32.totalorder %v1229, 0
        %v1232 = vxor.u32 %v1226, 2147483648
        %v1233 = vsel %vm1231, %v1225, %v1232
        %vm1234 = vcmp.eq.s32.totalorder %v1229, 2
        %v1235 = vxor.u32 %v1225, 2147483648
        %v1236 = vsel %vm1234, %v1235, %v1226
        %v1237 = vsel %vm1230, %v1233, %v1236
        %v1238 = vsel %vm1227, nan, %v1237
        %v1239 = vand.u32 2147483647, %v809
        %vm1240 = vcmp.le.f32.partialorder %v1239, 0.7853982
        %vm1241 = vcmp.lt.s32.totalorder %v809, 0
        %v1242 = vand.u32 %v809, 2139095040
        %v1243 = vshrl.u32 %v1242, 23
        %v1244 = vsub.s32 %v1243, 127
        %v1245 = vand.u32 2147483647, %v809
        %v1246 = vand.u32 %v1245, 8388607
        %v1247 = vor.u32 %v1246, 8388608
        %v1248 = vsub.s32 0, %v1247
        %v1249 = vadd.s32 %v1244, 1
        %vm1250 = vcmp.gt.s32.totalorder %v1249, 0
        %v1251 = vsel %vm1250, %v1249, 0
        %v1252 = vshrl.u32 %v1251, 5
        %v1253 = vand.u32 %v1251, 31
        %v1254 = vsub.s32 32, %v1253
        %v1255 = vshrl.u32 683565275, %v1254
        %v1256 = vshll.u32 683565275, %v1253
        %v1257 = vshrl.u32 2475754826, %v1254
        %v1258 = vor.u32 %v1256, %v1257
        %v1259 = vshll.u32 2475754826, %v1253
        %v1260 = vshrl.u32 2131351028, %v1254
        %v1261 = vor.u32 %v1259, %v1260
        %v1262 = vshll.u32 2131351028, %v1253
        %v1263 = vshrl.u32 2102212464, %v1254
        %v1264 = vor.u32 %v1262, %v1263
        %v1265 = vshll.u32 2102212464, %v1253
        %v1266 = vshrl.u32 920167782, %v1254
        %v1267 = vor.u32 %v1265, %v1266
        %v1268 = vshll.u32 920167782, %v1253
        %v1269 = vshrl.u32 1326507024, %v1254
        %v1270 = vor.u32 %v1268, %v1269
        %vm1271 = vcmp.lt.s32.totalorder %v1252, 1
        %vm1272 = vcmp.lt.s32.totalorder %v1252, 2
        %vm1273 = vcmp.lt.s32.totalorder %v1252, 3
        %vm1274 = vcmp.lt.s32.totalorder %v1252, 4
        %v1275 = vsel %vm1271, %v1255, %v1258
        %v1276 = vsel %vm1274, %v1264, 2102212464
        %v1277 = vsel %vm1273, %v1261, %v1276
        %v1278 = vsel %vm1272, %v1275, %v1277
        %v1279 = vsel %vm1271, %v1258, %v1261
        %v1280 = vsel %vm1274, %v1267, 920167782
        %v1281 = vsel %vm1273, %v1264, %v1280
        %v1282 = vsel %vm1272, %v1279, %v1281
        %v1283 = vsel %vm1271, %v1261, %v1264
        %v1284 = vsel %vm1274, %v1270, 1326507024
        %v1285 = vsel %vm1273, %v1267, %v1284
        %v1286 = vsel %vm1272, %v1283, %v1285
        %v1287 = vshll.u32 %v1247, 8
        %v1288 = vmul.u32.u64.compose %v1287, %v1286
        %v1289 = vextract.low.u32 %v1288
        %v1290 = vextract.high.u32 %v1288
        %v1291 = vmul.u32.u64.compose %v1287, %v1282
        %v1292 = vextract.low.u32 %v1291
        %v1293 = vextract.high.u32 %v1291
        %v1294 = vmul.u32 %v1287, %v1278
        %v1295 = vadd.s32 %v1290, %v1292
        %vm1296 = vc.u32 %v1290, %v1292
        %v1297 = vadd.s32 %v1293, 1
        %v1298 = vsel %vm1296, %v1297, %v1293
        %v1299 = vadd.s32 %v1294, %v1298
        %v1300 = vadd.s32 %v1299, 536870912
        %v1301 = vshrl.u32 %v1300, 30
        %v1302 = vshll.u32 %v1301, 30
        %v1303 = vsub.s32 %v1299, %v1302
        %vm1304 = vcmp.lt.s32.totalorder %v1303, 0
        %v1305 = vsub.s32 0, %v1303
        %v1306 = vsel %vm1304, %v1305, %v1303
        %v1307 = vclz %v1306
        %v1308 = vsub.s32 %v1307, 2
        %vm1309 = vcmp.gt.s32.totalorder 0, %v1308
        %v1310 = vsel %vm1309, 0, %v1308
        %v1311 = vsub.s32 32, %v1310
        %v1312 = vshll.u32 %v1303, %v1310
        %v1313 = vshrl.u32 %v1295, %v1311
        %v1314 = vor.u32 %v1312, %v1313
        %v1315 = vsub.s32 4294967266, %v1310
        %v1316 = vadd.s32 %v1315, 127
        %v1317 = vshll.u32 %v1316, 23
        %v1318 = vor.u32 4788187, %v1317
        %v1319 = vand.u32 2147483647, %v1318
        %v1321 = vcvt.s32.f32 %v1314
        %v1322 = vmul.f32 %v1321, %v1319
        %v1323 = vxor.u32 %v1322, 2147483648
        %v1324 = vsel %vm1241, %v1323, %v1322
        %v1325 = vsub.s32 4, %v1301
        %v1326 = vsel %vm1241, %v1325, %v1301
        %v1327 = vsel %vm1240, %v809, %v1324
        %v1328 = vsel %vm1240, 0, %v1326
        %v1329 = vcosq.f32.pop %v1327
        %v1330 = vsinq.f32.pop %v1327
        %vm1331 = vweird.f32 %v809
        %v1332 = vadd.s32 %v1328, 3
        %v1333 = vand.u32 %v1332, 3
        %vm1334 = vcmp.lt.s32.totalorder %v1333, 2
        %vm1335 = vcmp.eq.s32.totalorder %v1333, 0
        %v1336 = vxor.u32 %v1330, 2147483648
        %v1337 = vsel %vm1335, %v1329, %v1336
        %vm1338 = vcmp.eq.s32.totalorder %v1333, 2
        %v1339 = vxor.u32 %v1329, 2147483648
        %v1340 = vsel %vm1338, %v1339, %v1330
        %v1341 = vsel %vm1334, %v1337, %v1340
        %v1342 = vsel %vm1331, nan, %v1341
        %v1343 = vand.u32 2147483647, %v810
        %vm1344 = vcmp.le.f32.partialorder %v1343, 0.7853982
        %vm1345 = vcmp.lt.s32.totalorder %v810, 0
        %v1346 = vand.u32 %v810, 2139095040
        %v1347 = vshrl.u32 %v1346, 23
        %v1348 = vsub.s32 %v1347, 127
        %v1349 = vand.u32 2147483647, %v810
        %v1350 = vand.u32 %v1349, 8388607
        %v1351 = vor.u32 %v1350, 8388608
        %v1352 = vsub.s32 0, %v1351
        %v1353 = vadd.s32 %v1348, 1
        %vm1354 = vcmp.gt.s32.totalorder %v1353, 0
        %v1355 = vsel %vm1354, %v1353, 0
        %v1356 = vshrl.u32 %v1355, 5
        %v1357 = vand.u32 %v1355, 31
        %v1358 = vsub.s32 32, %v1357
        %v1359 = vshrl.u32 683565275, %v1358
        %v1360 = vshll.u32 683565275, %v1357
        %v1361 = vshrl.u32 2475754826, %v1358
        %v1362 = vor.u32 %v1360, %v1361
        %v1363 = vshll.u32 2475754826, %v1357
        %v1364 = vshrl.u32 2131351028, %v1358
        %v1365 = vor.u32 %v1363, %v1364
        %v1366 = vshll.u32 2131351028, %v1357
        %v1367 = vshrl.u32 2102212464, %v1358
        %v1368 = vor.u32 %v1366, %v1367
        %v1369 = vshll.u32 2102212464, %v1357
        %v1370 = vshrl.u32 920167782, %v1358
        %v1371 = vor.u32 %v1369, %v1370
        %v1372 = vshll.u32 920167782, %v1357
        %v1373 = vshrl.u32 1326507024, %v1358
        %v1374 = vor.u32 %v1372, %v1373
        %vm1375 = vcmp.lt.s32.totalorder %v1356, 1
        %vm1376 = vcmp.lt.s32.totalorder %v1356, 2
        %vm1377 = vcmp.lt.s32.totalorder %v1356, 3
        %vm1378 = vcmp.lt.s32.totalorder %v1356, 4
        %v1379 = vsel %vm1375, %v1359, %v1362
        %v1380 = vsel %vm1378, %v1368, 2102212464
        %v1381 = vsel %vm1377, %v1365, %v1380
        %v1382 = vsel %vm1376, %v1379, %v1381
        %v1383 = vsel %vm1375, %v1362, %v1365
        %v1384 = vsel %vm1378, %v1371, 920167782
        %v1385 = vsel %vm1377, %v1368, %v1384
        %v1386 = vsel %vm1376, %v1383, %v1385
        %v1387 = vsel %vm1375, %v1365, %v1368
        %v1388 = vsel %vm1378, %v1374, 1326507024
        %v1389 = vsel %vm1377, %v1371, %v1388
        %v1390 = vsel %vm1376, %v1387, %v1389
        %v1391 = vshll.u32 %v1351, 8
        %v1392 = vmul.u32.u64.compose %v1391, %v1390
        %v1393 = vextract.low.u32 %v1392
        %v1394 = vextract.high.u32 %v1392
        %v1395 = vmul.u32.u64.compose %v1391, %v1386
        %v1396 = vextract.low.u32 %v1395
        %v1397 = vextract.high.u32 %v1395
        %v1398 = vmul.u32 %v1391, %v1382
        %v1399 = vadd.s32 %v1394, %v1396
        %vm1400 = vc.u32 %v1394, %v1396
        %v1401 = vadd.s32 %v1397, 1
        %v1402 = vsel %vm1400, %v1401, %v1397
        %v1403 = vadd.s32 %v1398, %v1402
        %v1404 = vadd.s32 %v1403, 536870912
        %v1405 = vshrl.u32 %v1404, 30
        %v1406 = vshll.u32 %v1405, 30
        %v1407 = vsub.s32 %v1403, %v1406
        %vm1408 = vcmp.lt.s32.totalorder %v1407, 0
        %v1409 = vsub.s32 0, %v1407
        %v1410 = vsel %vm1408, %v1409, %v1407
        %v1411 = vclz %v1410
        %v1412 = vsub.s32 %v1411, 2
        %vm1413 = vcmp.gt.s32.totalorder 0, %v1412
        %v1414 = vsel %vm1413, 0, %v1412
        %v1415 = vsub.s32 32, %v1414
        %v1416 = vshll.u32 %v1407, %v1414
        %v1417 = vshrl.u32 %v1399, %v1415
        %v1418 = vor.u32 %v1416, %v1417
        %v1419 = vsub.s32 4294967266, %v1414
        %v1420 = vadd.s32 %v1419, 127
        %v1421 = vshll.u32 %v1420, 23
        %v1422 = vor.u32 4788187, %v1421
        %v1423 = vand.u32 2147483647, %v1422
        %v1425 = vcvt.s32.f32 %v1418
        %v1426 = vmul.f32 %v1425, %v1423
        %v1427 = vxor.u32 %v1426, 2147483648
        %v1428 = vsel %vm1345, %v1427, %v1426
        %v1429 = vsub.s32 4, %v1405
        %v1430 = vsel %vm1345, %v1429, %v1405
        %v1431 = vsel %vm1344, %v810, %v1428
        %v1432 = vsel %vm1344, 0, %v1430
        %v1433 = vcosq.f32.pop %v1431
        %v1434 = vsinq.f32.pop %v1431
        %vm1435 = vweird.f32 %v810
        %v1436 = vadd.s32 %v1432, 3
        %v1437 = vand.u32 %v1436, 3
        %vm1438 = vcmp.lt.s32.totalorder %v1437, 2
        %vm1439 = vcmp.eq.s32.totalorder %v1437, 0
        %v1440 = vxor.u32 %v1434, 2147483648
        %v1441 = vsel %vm1439, %v1433, %v1440
        %vm1442 = vcmp.eq.s32.totalorder %v1437, 2
        %v1443 = vxor.u32 %v1433, 2147483648
        %v1444 = vsel %vm1442, %v1443, %v1434
        %v1445 = vsel %vm1438, %v1441, %v1444
        %v1446 = vsel %vm1435, nan, %v1445
        %v1447 = vand.u32 2147483647, %v811
        %vm1448 = vcmp.le.f32.partialorder %v1447, 0.7853982
        %vm1449 = vcmp.lt.s32.totalorder %v811, 0
        %v1450 = vand.u32 %v811, 2139095040
        %v1451 = vshrl.u32 %v1450, 23
        %v1452 = vsub.s32 %v1451, 127
        %v1453 = vand.u32 2147483647, %v811
        %v1454 = vand.u32 %v1453, 8388607
        %v1455 = vor.u32 %v1454, 8388608
        %v1456 = vsub.s32 0, %v1455
        %v1457 = vadd.s32 %v1452, 1
        %vm1458 = vcmp.gt.s32.totalorder %v1457, 0
        %v1459 = vsel %vm1458, %v1457, 0
        %v1460 = vshrl.u32 %v1459, 5
        %v1461 = vand.u32 %v1459, 31
        %v1462 = vsub.s32 32, %v1461
        %v1463 = vshrl.u32 683565275, %v1462
        %v1464 = vshll.u32 683565275, %v1461
        %v1465 = vshrl.u32 2475754826, %v1462
        %v1466 = vor.u32 %v1464, %v1465
        %v1467 = vshll.u32 2475754826, %v1461
        %v1468 = vshrl.u32 2131351028, %v1462
        %v1469 = vor.u32 %v1467, %v1468
        %v1470 = vshll.u32 2131351028, %v1461
        %v1471 = vshrl.u32 2102212464, %v1462
        %v1472 = vor.u32 %v1470, %v1471
        %v1473 = vshll.u32 2102212464, %v1461
        %v1474 = vshrl.u32 920167782, %v1462
        %v1475 = vor.u32 %v1473, %v1474
        %v1476 = vshll.u32 920167782, %v1461
        %v1477 = vshrl.u32 1326507024, %v1462
        %v1478 = vor.u32 %v1476, %v1477
        %vm1479 = vcmp.lt.s32.totalorder %v1460, 1
        %vm1480 = vcmp.lt.s32.totalorder %v1460, 2
        %vm1481 = vcmp.lt.s32.totalorder %v1460, 3
        %vm1482 = vcmp.lt.s32.totalorder %v1460, 4
        %v1483 = vsel %vm1479, %v1463, %v1466
        %v1484 = vsel %vm1482, %v1472, 2102212464
        %v1485 = vsel %vm1481, %v1469, %v1484
        %v1486 = vsel %vm1480, %v1483, %v1485
        %v1487 = vsel %vm1479, %v1466, %v1469
        %v1488 = vsel %vm1482, %v1475, 920167782
        %v1489 = vsel %vm1481, %v1472, %v1488
        %v1490 = vsel %vm1480, %v1487, %v1489
        %v1491 = vsel %vm1479, %v1469, %v1472
        %v1492 = vsel %vm1482, %v1478, 1326507024
        %v1493 = vsel %vm1481, %v1475, %v1492
        %v1494 = vsel %vm1480, %v1491, %v1493
        %v1495 = vshll.u32 %v1455, 8
        %v1496 = vmul.u32.u64.compose %v1495, %v1494
        %v1497 = vextract.low.u32 %v1496
        %v1498 = vextract.high.u32 %v1496
        %v1499 = vmul.u32.u64.compose %v1495, %v1490
        %v1500 = vextract.low.u32 %v1499
        %v1501 = vextract.high.u32 %v1499
        %v1502 = vmul.u32 %v1495, %v1486
        %v1503 = vadd.s32 %v1498, %v1500
        %vm1504 = vc.u32 %v1498, %v1500
        %v1505 = vadd.s32 %v1501, 1
        %v1506 = vsel %vm1504, %v1505, %v1501
        %v1507 = vadd.s32 %v1502, %v1506
        %v1508 = vadd.s32 %v1507, 536870912
        %v1509 = vshrl.u32 %v1508, 30
        %v1510 = vshll.u32 %v1509, 30
        %v1511 = vsub.s32 %v1507, %v1510
        %vm1512 = vcmp.lt.s32.totalorder %v1511, 0
        %v1513 = vsub.s32 0, %v1511
        %v1514 = vsel %vm1512, %v1513, %v1511
        %v1515 = vclz %v1514
        %v1516 = vsub.s32 %v1515, 2
        %vm1517 = vcmp.gt.s32.totalorder 0, %v1516
        %v1518 = vsel %vm1517, 0, %v1516
        %v1519 = vsub.s32 32, %v1518
        %v1520 = vshll.u32 %v1511, %v1518
        %v1521 = vshrl.u32 %v1503, %v1519
        %v1522 = vor.u32 %v1520, %v1521
        %v1523 = vsub.s32 4294967266, %v1518
        %v1524 = vadd.s32 %v1523, 127
        %v1525 = vshll.u32 %v1524, 23
        %v1526 = vor.u32 4788187, %v1525
        %v1527 = vand.u32 2147483647, %v1526
        %v1529 = vcvt.s32.f32 %v1522
        %v1530 = vmul.f32 %v1529, %v1527
        %v1531 = vxor.u32 %v1530, 2147483648
        %v1532 = vsel %vm1449, %v1531, %v1530
        %v1533 = vsub.s32 4, %v1509
        %v1534 = vsel %vm1449, %v1533, %v1509
        %v1535 = vsel %vm1448, %v811, %v1532
        %v1536 = vsel %vm1448, 0, %v1534
        %v1537 = vcosq.f32.pop %v1535
        %v1538 = vsinq.f32.pop %v1535
        %vm1539 = vweird.f32 %v811
        %v1540 = vadd.s32 %v1536, 3
        %v1541 = vand.u32 %v1540, 3
        %vm1542 = vcmp.lt.s32.totalorder %v1541, 2
        %vm1543 = vcmp.eq.s32.totalorder %v1541, 0
        %v1544 = vxor.u32 %v1538, 2147483648
        %v1545 = vsel %vm1543, %v1537, %v1544
        %vm1546 = vcmp.eq.s32.totalorder %v1541, 2
        %v1547 = vxor.u32 %v1537, 2147483648
        %v1548 = vsel %vm1546, %v1547, %v1538
        %v1549 = vsel %vm1542, %v1545, %v1548
        %v1550 = vsel %vm1539, nan, %v1549
        %v1551 = vand.u32 2147483647, %v812
        %vm1552 = vcmp.le.f32.partialorder %v1551, 0.7853982
        %vm1553 = vcmp.lt.s32.totalorder %v812, 0
        %v1554 = vand.u32 %v812, 2139095040
        %v1555 = vshrl.u32 %v1554, 23
        %v1556 = vsub.s32 %v1555, 127
        %v1557 = vand.u32 2147483647, %v812
        %v1558 = vand.u32 %v1557, 8388607
        %v1559 = vor.u32 %v1558, 8388608
        %v1560 = vsub.s32 0, %v1559
        %v1561 = vadd.s32 %v1556, 1
        %vm1562 = vcmp.gt.s32.totalorder %v1561, 0
        %v1563 = vsel %vm1562, %v1561, 0
        %v1564 = vshrl.u32 %v1563, 5
        %v1565 = vand.u32 %v1563, 31
        %v1566 = vsub.s32 32, %v1565
        %v1567 = vshrl.u32 683565275, %v1566
        %v1568 = vshll.u32 683565275, %v1565
        %v1569 = vshrl.u32 2475754826, %v1566
        %v1570 = vor.u32 %v1568, %v1569
        %v1571 = vshll.u32 2475754826, %v1565
        %v1572 = vshrl.u32 2131351028, %v1566
        %v1573 = vor.u32 %v1571, %v1572
        %v1574 = vshll.u32 2131351028, %v1565
        %v1575 = vshrl.u32 2102212464, %v1566
        %v1576 = vor.u32 %v1574, %v1575
        %v1577 = vshll.u32 2102212464, %v1565
        %v1578 = vshrl.u32 920167782, %v1566
        %v1579 = vor.u32 %v1577, %v1578
        %v1580 = vshll.u32 920167782, %v1565
        %v1581 = vshrl.u32 1326507024, %v1566
        %v1582 = vor.u32 %v1580, %v1581
        %vm1583 = vcmp.lt.s32.totalorder %v1564, 1
        %vm1584 = vcmp.lt.s32.totalorder %v1564, 2
        %vm1585 = vcmp.lt.s32.totalorder %v1564, 3
        %vm1586 = vcmp.lt.s32.totalorder %v1564, 4
        %v1587 = vsel %vm1583, %v1567, %v1570
        %v1588 = vsel %vm1586, %v1576, 2102212464
        %v1589 = vsel %vm1585, %v1573, %v1588
        %v1590 = vsel %vm1584, %v1587, %v1589
        %v1591 = vsel %vm1583, %v1570, %v1573
        %v1592 = vsel %vm1586, %v1579, 920167782
        %v1593 = vsel %vm1585, %v1576, %v1592
        %v1594 = vsel %vm1584, %v1591, %v1593
        %v1595 = vsel %vm1583, %v1573, %v1576
        %v1596 = vsel %vm1586, %v1582, 1326507024
        %v1597 = vsel %vm1585, %v1579, %v1596
        %v1598 = vsel %vm1584, %v1595, %v1597
        %v1599 = vshll.u32 %v1559, 8
        %v1600 = vmul.u32.u64.compose %v1599, %v1598
        %v1601 = vextract.low.u32 %v1600
        %v1602 = vextract.high.u32 %v1600
        %v1603 = vmul.u32.u64.compose %v1599, %v1594
        %v1604 = vextract.low.u32 %v1603
        %v1605 = vextract.high.u32 %v1603
        %v1606 = vmul.u32 %v1599, %v1590
        %v1607 = vadd.s32 %v1602, %v1604
        %vm1608 = vc.u32 %v1602, %v1604
        %v1609 = vadd.s32 %v1605, 1
        %v1610 = vsel %vm1608, %v1609, %v1605
        %v1611 = vadd.s32 %v1606, %v1610
        %v1612 = vadd.s32 %v1611, 536870912
        %v1613 = vshrl.u32 %v1612, 30
        %v1614 = vshll.u32 %v1613, 30
        %v1615 = vsub.s32 %v1611, %v1614
        %vm1616 = vcmp.lt.s32.totalorder %v1615, 0
        %v1617 = vsub.s32 0, %v1615
        %v1618 = vsel %vm1616, %v1617, %v1615
        %v1619 = vclz %v1618
        %v1620 = vsub.s32 %v1619, 2
        %vm1621 = vcmp.gt.s32.totalorder 0, %v1620
        %v1622 = vsel %vm1621, 0, %v1620
        %v1623 = vsub.s32 32, %v1622
        %v1624 = vshll.u32 %v1615, %v1622
        %v1625 = vshrl.u32 %v1607, %v1623
        %v1626 = vor.u32 %v1624, %v1625
        %v1627 = vsub.s32 4294967266, %v1622
        %v1628 = vadd.s32 %v1627, 127
        %v1629 = vshll.u32 %v1628, 23
        %v1630 = vor.u32 4788187, %v1629
        %v1631 = vand.u32 2147483647, %v1630
        %v1633 = vcvt.s32.f32 %v1626
        %v1634 = vmul.f32 %v1633, %v1631
        %v1635 = vxor.u32 %v1634, 2147483648
        %v1636 = vsel %vm1553, %v1635, %v1634
        %v1637 = vsub.s32 4, %v1613
        %v1638 = vsel %vm1553, %v1637, %v1613
        %v1639 = vsel %vm1552, %v812, %v1636
        %v1640 = vsel %vm1552, 0, %v1638
        %v1641 = vcosq.f32.pop %v1639
        %v1642 = vsinq.f32.pop %v1639
        %vm1643 = vweird.f32 %v812
        %v1644 = vadd.s32 %v1640, 3
        %v1645 = vand.u32 %v1644, 3
        %vm1646 = vcmp.lt.s32.totalorder %v1645, 2
        %vm1647 = vcmp.eq.s32.totalorder %v1645, 0
        %v1648 = vxor.u32 %v1642, 2147483648
        %v1649 = vsel %vm1647, %v1641, %v1648
        %vm1650 = vcmp.eq.s32.totalorder %v1645, 2
        %v1651 = vxor.u32 %v1641, 2147483648
        %v1652 = vsel %vm1650, %v1651, %v1642
        %v1653 = vsel %vm1646, %v1649, %v1652
        %v1654 = vsel %vm1643, nan, %v1653
        %v1655 = vand.u32 2147483647, %v813
        %vm1656 = vcmp.le.f32.partialorder %v1655, 0.7853982
        %vm1657 = vcmp.lt.s32.totalorder %v813, 0
        %v1658 = vand.u32 %v813, 2139095040
        %v1659 = vshrl.u32 %v1658, 23
        %v1660 = vsub.s32 %v1659, 127
        %v1661 = vand.u32 2147483647, %v813
        %v1662 = vand.u32 %v1661, 8388607
        %v1663 = vor.u32 %v1662, 8388608
        %v1664 = vsub.s32 0, %v1663
        %v1665 = vadd.s32 %v1660, 1
        %vm1666 = vcmp.gt.s32.totalorder %v1665, 0
        %v1667 = vsel %vm1666, %v1665, 0
        %v1668 = vshrl.u32 %v1667, 5
        %v1669 = vand.u32 %v1667, 31
        %v1670 = vsub.s32 32, %v1669
        %v1671 = vshrl.u32 683565275, %v1670
        %v1672 = vshll.u32 683565275, %v1669
        %v1673 = vshrl.u32 2475754826, %v1670
        %v1674 = vor.u32 %v1672, %v1673
        %v1675 = vshll.u32 2475754826, %v1669
        %v1676 = vshrl.u32 2131351028, %v1670
        %v1677 = vor.u32 %v1675, %v1676
        %v1678 = vshll.u32 2131351028, %v1669
        %v1679 = vshrl.u32 2102212464, %v1670
        %v1680 = vor.u32 %v1678, %v1679
        %v1681 = vshll.u32 2102212464, %v1669
        %v1682 = vshrl.u32 920167782, %v1670
        %v1683 = vor.u32 %v1681, %v1682
        %v1684 = vshll.u32 920167782, %v1669
        %v1685 = vshrl.u32 1326507024, %v1670
        %v1686 = vor.u32 %v1684, %v1685
        %vm1687 = vcmp.lt.s32.totalorder %v1668, 1
        %vm1688 = vcmp.lt.s32.totalorder %v1668, 2
        %vm1689 = vcmp.lt.s32.totalorder %v1668, 3
        %vm1690 = vcmp.lt.s32.totalorder %v1668, 4
        %v1691 = vsel %vm1687, %v1671, %v1674
        %v1692 = vsel %vm1690, %v1680, 2102212464
        %v1693 = vsel %vm1689, %v1677, %v1692
        %v1694 = vsel %vm1688, %v1691, %v1693
        %v1695 = vsel %vm1687, %v1674, %v1677
        %v1696 = vsel %vm1690, %v1683, 920167782
        %v1697 = vsel %vm1689, %v1680, %v1696
        %v1698 = vsel %vm1688, %v1695, %v1697
        %v1699 = vsel %vm1687, %v1677, %v1680
        %v1700 = vsel %vm1690, %v1686, 1326507024
        %v1701 = vsel %vm1689, %v1683, %v1700
        %v1702 = vsel %vm1688, %v1699, %v1701
        %v1703 = vshll.u32 %v1663, 8
        %v1704 = vmul.u32.u64.compose %v1703, %v1702
        %v1705 = vextract.low.u32 %v1704
        %v1706 = vextract.high.u32 %v1704
        %v1707 = vmul.u32.u64.compose %v1703, %v1698
        %v1708 = vextract.low.u32 %v1707
        %v1709 = vextract.high.u32 %v1707
        %v1710 = vmul.u32 %v1703, %v1694
        %v1711 = vadd.s32 %v1706, %v1708
        %vm1712 = vc.u32 %v1706, %v1708
        %v1713 = vadd.s32 %v1709, 1
        %v1714 = vsel %vm1712, %v1713, %v1709
        %v1715 = vadd.s32 %v1710, %v1714
        %v1716 = vadd.s32 %v1715, 536870912
        %v1717 = vshrl.u32 %v1716, 30
        %v1718 = vshll.u32 %v1717, 30
        %v1719 = vsub.s32 %v1715, %v1718
        %vm1720 = vcmp.lt.s32.totalorder %v1719, 0
        %v1721 = vsub.s32 0, %v1719
        %v1722 = vsel %vm1720, %v1721, %v1719
        %v1723 = vclz %v1722
        %v1724 = vsub.s32 %v1723, 2
        %vm1725 = vcmp.gt.s32.totalorder 0, %v1724
        %v1726 = vsel %vm1725, 0, %v1724
        %v1727 = vsub.s32 32, %v1726
        %v1728 = vshll.u32 %v1719, %v1726
        %v1729 = vshrl.u32 %v1711, %v1727
        %v1730 = vor.u32 %v1728, %v1729
        %v1731 = vsub.s32 4294967266, %v1726
        %v1732 = vadd.s32 %v1731, 127
        %v1733 = vshll.u32 %v1732, 23
        %v1734 = vor.u32 4788187, %v1733
        %v1735 = vand.u32 2147483647, %v1734
        %v1737 = vcvt.s32.f32 %v1730
        %v1738 = vmul.f32 %v1737, %v1735
        %v1739 = vxor.u32 %v1738, 2147483648
        %v1740 = vsel %vm1657, %v1739, %v1738
        %v1741 = vsub.s32 4, %v1717
        %v1742 = vsel %vm1657, %v1741, %v1717
        %v1743 = vsel %vm1656, %v813, %v1740
        %v1744 = vsel %vm1656, 0, %v1742
        %v1745 = vcosq.f32.pop %v1743
        %v1746 = vsinq.f32.pop %v1743
        %vm1747 = vweird.f32 %v813
        %v1748 = vadd.s32 %v1744, 3
        %v1749 = vand.u32 %v1748, 3
        %vm1750 = vcmp.lt.s32.totalorder %v1749, 2
        %vm1751 = vcmp.eq.s32.totalorder %v1749, 0
        %v1752 = vxor.u32 %v1746, 2147483648
        %v1753 = vsel %vm1751, %v1745, %v1752
        %vm1754 = vcmp.eq.s32.totalorder %v1749, 2
        %v1755 = vxor.u32 %v1745, 2147483648
        %v1756 = vsel %vm1754, %v1755, %v1746
        %v1757 = vsel %vm1750, %v1753, %v1756
        %v1758 = vsel %vm1747, nan, %v1757
        %v1759 = vand.u32 2147483647, %v814
        %vm1760 = vcmp.le.f32.partialorder %v1759, 0.7853982
        %vm1761 = vcmp.lt.s32.totalorder %v814, 0
        %v1762 = vand.u32 %v814, 2139095040
        %v1763 = vshrl.u32 %v1762, 23
        %v1764 = vsub.s32 %v1763, 127
        %v1765 = vand.u32 2147483647, %v814
        %v1766 = vand.u32 %v1765, 8388607
        %v1767 = vor.u32 %v1766, 8388608
        %v1768 = vsub.s32 0, %v1767
        %v1769 = vadd.s32 %v1764, 1
        %vm1770 = vcmp.gt.s32.totalorder %v1769, 0
        %v1771 = vsel %vm1770, %v1769, 0
        %v1772 = vshrl.u32 %v1771, 5
        %v1773 = vand.u32 %v1771, 31
        %v1774 = vsub.s32 32, %v1773
        %v1775 = vshrl.u32 683565275, %v1774
        %v1776 = vshll.u32 683565275, %v1773
        %v1777 = vshrl.u32 2475754826, %v1774
        %v1778 = vor.u32 %v1776, %v1777
        %v1779 = vshll.u32 2475754826, %v1773
        %v1780 = vshrl.u32 2131351028, %v1774
        %v1781 = vor.u32 %v1779, %v1780
        %v1782 = vshll.u32 2131351028, %v1773
        %v1783 = vshrl.u32 2102212464, %v1774
        %v1784 = vor.u32 %v1782, %v1783
        %v1785 = vshll.u32 2102212464, %v1773
        %v1786 = vshrl.u32 920167782, %v1774
        %v1787 = vor.u32 %v1785, %v1786
        %v1788 = vshll.u32 920167782, %v1773
        %v1789 = vshrl.u32 1326507024, %v1774
        %v1790 = vor.u32 %v1788, %v1789
        %vm1791 = vcmp.lt.s32.totalorder %v1772, 1
        %vm1792 = vcmp.lt.s32.totalorder %v1772, 2
        %vm1793 = vcmp.lt.s32.totalorder %v1772, 3
        %vm1794 = vcmp.lt.s32.totalorder %v1772, 4
        %v1795 = vsel %vm1791, %v1775, %v1778
        %v1796 = vsel %vm1794, %v1784, 2102212464
        %v1797 = vsel %vm1793, %v1781, %v1796
        %v1798 = vsel %vm1792, %v1795, %v1797
        %v1799 = vsel %vm1791, %v1778, %v1781
        %v1800 = vsel %vm1794, %v1787, 920167782
        %v1801 = vsel %vm1793, %v1784, %v1800
        %v1802 = vsel %vm1792, %v1799, %v1801
        %v1803 = vsel %vm1791, %v1781, %v1784
        %v1804 = vsel %vm1794, %v1790, 1326507024
        %v1805 = vsel %vm1793, %v1787, %v1804
        %v1806 = vsel %vm1792, %v1803, %v1805
        %v1807 = vshll.u32 %v1767, 8
        %v1808 = vmul.u32.u64.compose %v1807, %v1806
        %v1809 = vextract.low.u32 %v1808
        %v1810 = vextract.high.u32 %v1808
        %v1811 = vmul.u32.u64.compose %v1807, %v1802
        %v1812 = vextract.low.u32 %v1811
        %v1813 = vextract.high.u32 %v1811
        %v1814 = vmul.u32 %v1807, %v1798
        %v1815 = vadd.s32 %v1810, %v1812
        %vm1816 = vc.u32 %v1810, %v1812
        %v1817 = vadd.s32 %v1813, 1
        %v1818 = vsel %vm1816, %v1817, %v1813
        %v1819 = vadd.s32 %v1814, %v1818
        %v1820 = vadd.s32 %v1819, 536870912
        %v1821 = vshrl.u32 %v1820, 30
        %v1822 = vshll.u32 %v1821, 30
        %v1823 = vsub.s32 %v1819, %v1822
        %vm1824 = vcmp.lt.s32.totalorder %v1823, 0
        %v1825 = vsub.s32 0, %v1823
        %v1826 = vsel %vm1824, %v1825, %v1823
        %v1827 = vclz %v1826
        %v1828 = vsub.s32 %v1827, 2
        %vm1829 = vcmp.gt.s32.totalorder 0, %v1828
        %v1830 = vsel %vm1829, 0, %v1828
        %v1831 = vsub.s32 32, %v1830
        %v1832 = vshll.u32 %v1823, %v1830
        %v1833 = vshrl.u32 %v1815, %v1831
        %v1834 = vor.u32 %v1832, %v1833
        %v1835 = vsub.s32 4294967266, %v1830
        %v1836 = vadd.s32 %v1835, 127
        %v1837 = vshll.u32 %v1836, 23
        %v1838 = vor.u32 4788187, %v1837
        %v1839 = vand.u32 2147483647, %v1838
        %v1841 = vcvt.s32.f32 %v1834
        %v1842 = vmul.f32 %v1841, %v1839
        %v1843 = vxor.u32 %v1842, 2147483648
        %v1844 = vsel %vm1761, %v1843, %v1842
        %v1845 = vsub.s32 4, %v1821
        %v1846 = vsel %vm1761, %v1845, %v1821
        %v1847 = vsel %vm1760, %v814, %v1844
        %v1848 = vsel %vm1760, 0, %v1846
        %v1849 = vcosq.f32.pop %v1847
        %v1850 = vsinq.f32.pop %v1847
        %vm1851 = vweird.f32 %v814
        %v1852 = vadd.s32 %v1848, 3
        %v1853 = vand.u32 %v1852, 3
        %vm1854 = vcmp.lt.s32.totalorder %v1853, 2
        %vm1855 = vcmp.eq.s32.totalorder %v1853, 0
        %v1856 = vxor.u32 %v1850, 2147483648
        %v1857 = vsel %vm1855, %v1849, %v1856
        %vm1858 = vcmp.eq.s32.totalorder %v1853, 2
        %v1859 = vxor.u32 %v1849, 2147483648
        %v1860 = vsel %vm1858, %v1859, %v1850
        %v1861 = vsel %vm1854, %v1857, %v1860
        %v1862 = vsel %vm1851, nan, %v1861
        %v1863 = vand.u32 2147483647, %v815
        %vm1864 = vcmp.le.f32.partialorder %v1863, 0.7853982
        %vm1865 = vcmp.lt.s32.totalorder %v815, 0
        %v1866 = vand.u32 %v815, 2139095040
        %v1867 = vshrl.u32 %v1866, 23
        %v1868 = vsub.s32 %v1867, 127
        %v1869 = vand.u32 2147483647, %v815
        %v1870 = vand.u32 %v1869, 8388607
        %v1871 = vor.u32 %v1870, 8388608
        %v1872 = vsub.s32 0, %v1871
        %v1873 = vadd.s32 %v1868, 1
        %vm1874 = vcmp.gt.s32.totalorder %v1873, 0
        %v1875 = vsel %vm1874, %v1873, 0
        %v1876 = vshrl.u32 %v1875, 5
        %v1877 = vand.u32 %v1875, 31
        %v1878 = vsub.s32 32, %v1877
        %v1879 = vshrl.u32 683565275, %v1878
        %v1880 = vshll.u32 683565275, %v1877
        %v1881 = vshrl.u32 2475754826, %v1878
        %v1882 = vor.u32 %v1880, %v1881
        %v1883 = vshll.u32 2475754826, %v1877
        %v1884 = vshrl.u32 2131351028, %v1878
        %v1885 = vor.u32 %v1883, %v1884
        %v1886 = vshll.u32 2131351028, %v1877
        %v1887 = vshrl.u32 2102212464, %v1878
        %v1888 = vor.u32 %v1886, %v1887
        %v1889 = vshll.u32 2102212464, %v1877
        %v1890 = vshrl.u32 920167782, %v1878
        %v1891 = vor.u32 %v1889, %v1890
        %v1892 = vshll.u32 920167782, %v1877
        %v1893 = vshrl.u32 1326507024, %v1878
        %v1894 = vor.u32 %v1892, %v1893
        %vm1895 = vcmp.lt.s32.totalorder %v1876, 1
        %vm1896 = vcmp.lt.s32.totalorder %v1876, 2
        %vm1897 = vcmp.lt.s32.totalorder %v1876, 3
        %vm1898 = vcmp.lt.s32.totalorder %v1876, 4
        %v1899 = vsel %vm1895, %v1879, %v1882
        %v1900 = vsel %vm1898, %v1888, 2102212464
        %v1901 = vsel %vm1897, %v1885, %v1900
        %v1902 = vsel %vm1896, %v1899, %v1901
        %v1903 = vsel %vm1895, %v1882, %v1885
        %v1904 = vsel %vm1898, %v1891, 920167782
        %v1905 = vsel %vm1897, %v1888, %v1904
        %v1906 = vsel %vm1896, %v1903, %v1905
        %v1907 = vsel %vm1895, %v1885, %v1888
        %v1908 = vsel %vm1898, %v1894, 1326507024
        %v1909 = vsel %vm1897, %v1891, %v1908
        %v1910 = vsel %vm1896, %v1907, %v1909
        %v1911 = vshll.u32 %v1871, 8
        %v1912 = vmul.u32.u64.compose %v1911, %v1910
        %v1913 = vextract.low.u32 %v1912
        %v1914 = vextract.high.u32 %v1912
        %v1915 = vmul.u32.u64.compose %v1911, %v1906
        %v1916 = vextract.low.u32 %v1915
        %v1917 = vextract.high.u32 %v1915
        %v1918 = vmul.u32 %v1911, %v1902
        %v1919 = vadd.s32 %v1914, %v1916
        %vm1920 = vc.u32 %v1914, %v1916
        %v1921 = vadd.s32 %v1917, 1
        %v1922 = vsel %vm1920, %v1921, %v1917
        %v1923 = vadd.s32 %v1918, %v1922
        %v1924 = vadd.s32 %v1923, 536870912
        %v1925 = vshrl.u32 %v1924, 30
        %v1926 = vshll.u32 %v1925, 30
        %v1927 = vsub.s32 %v1923, %v1926
        %vm1928 = vcmp.lt.s32.totalorder %v1927, 0
        %v1929 = vsub.s32 0, %v1927
        %v1930 = vsel %vm1928, %v1929, %v1927
        %v1931 = vclz %v1930
        %v1932 = vsub.s32 %v1931, 2
        %vm1933 = vcmp.gt.s32.totalorder 0, %v1932
        %v1934 = vsel %vm1933, 0, %v1932
        %v1935 = vsub.s32 32, %v1934
        %v1936 = vshll.u32 %v1927, %v1934
        %v1937 = vshrl.u32 %v1919, %v1935
        %v1938 = vor.u32 %v1936, %v1937
        %v1939 = vsub.s32 4294967266, %v1934
        %v1940 = vadd.s32 %v1939, 127
        %v1941 = vshll.u32 %v1940, 23
        %v1942 = vor.u32 4788187, %v1941
        %v1943 = vand.u32 2147483647, %v1942
        %v1945 = vcvt.s32.f32 %v1938
        %v1946 = vmul.f32 %v1945, %v1943
        %v1947 = vxor.u32 %v1946, 2147483648
        %v1948 = vsel %vm1865, %v1947, %v1946
        %v1949 = vsub.s32 4, %v1925
        %v1950 = vsel %vm1865, %v1949, %v1925
        %v1951 = vsel %vm1864, %v815, %v1948
        %v1952 = vsel %vm1864, 0, %v1950
        %v1953 = vcosq.f32.pop %v1951
        %v1954 = vsinq.f32.pop %v1951
        %vm1955 = vweird.f32 %v815
        %v1956 = vadd.s32 %v1952, 3
        %v1957 = vand.u32 %v1956, 3
        %vm1958 = vcmp.lt.s32.totalorder %v1957, 2
        %vm1959 = vcmp.eq.s32.totalorder %v1957, 0
        %v1960 = vxor.u32 %v1954, 2147483648
        %v1961 = vsel %vm1959, %v1953, %v1960
        %vm1962 = vcmp.eq.s32.totalorder %v1957, 2
        %v1963 = vxor.u32 %v1953, 2147483648
        %v1964 = vsel %vm1962, %v1963, %v1954
        %v1965 = vsel %vm1958, %v1961, %v1964
        %v1966 = vsel %vm1955, nan, %v1965
        %v1967 = vand.u32 2147483647, %v816
        %vm1968 = vcmp.le.f32.partialorder %v1967, 0.7853982
        %vm1969 = vcmp.lt.s32.totalorder %v816, 0
        %v1970 = vand.u32 %v816, 2139095040
        %v1971 = vshrl.u32 %v1970, 23
        %v1972 = vsub.s32 %v1971, 127
        %v1973 = vand.u32 2147483647, %v816
        %v1974 = vand.u32 %v1973, 8388607
        %v1975 = vor.u32 %v1974, 8388608
        %v1976 = vsub.s32 0, %v1975
        %v1977 = vadd.s32 %v1972, 1
        %vm1978 = vcmp.gt.s32.totalorder %v1977, 0
        %v1979 = vsel %vm1978, %v1977, 0
        %v1980 = vshrl.u32 %v1979, 5
        %v1981 = vand.u32 %v1979, 31
        %v1982 = vsub.s32 32, %v1981
        %v1983 = vshrl.u32 683565275, %v1982
        %v1984 = vshll.u32 683565275, %v1981
        %v1985 = vshrl.u32 2475754826, %v1982
        %v1986 = vor.u32 %v1984, %v1985
        %v1987 = vshll.u32 2475754826, %v1981
        %v1988 = vshrl.u32 2131351028, %v1982
        %v1989 = vor.u32 %v1987, %v1988
        %v1990 = vshll.u32 2131351028, %v1981
        %v1991 = vshrl.u32 2102212464, %v1982
        %v1992 = vor.u32 %v1990, %v1991
        %v1993 = vshll.u32 2102212464, %v1981
        %v1994 = vshrl.u32 920167782, %v1982
        %v1995 = vor.u32 %v1993, %v1994
        %v1996 = vshll.u32 920167782, %v1981
        %v1997 = vshrl.u32 1326507024, %v1982
        %v1998 = vor.u32 %v1996, %v1997
        %vm1999 = vcmp.lt.s32.totalorder %v1980, 1
        %vm2000 = vcmp.lt.s32.totalorder %v1980, 2
        %vm2001 = vcmp.lt.s32.totalorder %v1980, 3
        %vm2002 = vcmp.lt.s32.totalorder %v1980, 4
        %v2003 = vsel %vm1999, %v1983, %v1986
        %v2004 = vsel %vm2002, %v1992, 2102212464
        %v2005 = vsel %vm2001, %v1989, %v2004
        %v2006 = vsel %vm2000, %v2003, %v2005
        %v2007 = vsel %vm1999, %v1986, %v1989
        %v2008 = vsel %vm2002, %v1995, 920167782
        %v2009 = vsel %vm2001, %v1992, %v2008
        %v2010 = vsel %vm2000, %v2007, %v2009
        %v2011 = vsel %vm1999, %v1989, %v1992
        %v2012 = vsel %vm2002, %v1998, 1326507024
        %v2013 = vsel %vm2001, %v1995, %v2012
        %v2014 = vsel %vm2000, %v2011, %v2013
        %v2015 = vshll.u32 %v1975, 8
        %v2016 = vmul.u32.u64.compose %v2015, %v2014
        %v2017 = vextract.low.u32 %v2016
        %v2018 = vextract.high.u32 %v2016
        %v2019 = vmul.u32.u64.compose %v2015, %v2010
        %v2020 = vextract.low.u32 %v2019
        %v2021 = vextract.high.u32 %v2019
        %v2022 = vmul.u32 %v2015, %v2006
        %v2023 = vadd.s32 %v2018, %v2020
        %vm2024 = vc.u32 %v2018, %v2020
        %v2025 = vadd.s32 %v2021, 1
        %v2026 = vsel %vm2024, %v2025, %v2021
        %v2027 = vadd.s32 %v2022, %v2026
        %v2028 = vadd.s32 %v2027, 536870912
        %v2029 = vshrl.u32 %v2028, 30
        %v2030 = vshll.u32 %v2029, 30
        %v2031 = vsub.s32 %v2027, %v2030
        %vm2032 = vcmp.lt.s32.totalorder %v2031, 0
        %v2033 = vsub.s32 0, %v2031
        %v2034 = vsel %vm2032, %v2033, %v2031
        %v2035 = vclz %v2034
        %v2036 = vsub.s32 %v2035, 2
        %vm2037 = vcmp.gt.s32.totalorder 0, %v2036
        %v2038 = vsel %vm2037, 0, %v2036
        %v2039 = vsub.s32 32, %v2038
        %v2040 = vshll.u32 %v2031, %v2038
        %v2041 = vshrl.u32 %v2023, %v2039
        %v2042 = vor.u32 %v2040, %v2041
        %v2043 = vsub.s32 4294967266, %v2038
        %v2044 = vadd.s32 %v2043, 127
        %v2045 = vshll.u32 %v2044, 23
        %v2046 = vor.u32 4788187, %v2045
        %v2047 = vand.u32 2147483647, %v2046
        %v2049 = vcvt.s32.f32 %v2042
        %v2050 = vmul.f32 %v2049, %v2047
        %v2051 = vxor.u32 %v2050, 2147483648
        %v2052 = vsel %vm1969, %v2051, %v2050
        %v2053 = vsub.s32 4, %v2029
        %v2054 = vsel %vm1969, %v2053, %v2029
        %v2055 = vsel %vm1968, %v816, %v2052
        %v2056 = vsel %vm1968, 0, %v2054
        %v2057 = vcosq.f32.pop %v2055
        %v2058 = vsinq.f32.pop %v2055
        %vm2059 = vweird.f32 %v816
        %v2060 = vadd.s32 %v2056, 3
        %v2061 = vand.u32 %v2060, 3
        %vm2062 = vcmp.lt.s32.totalorder %v2061, 2
        %vm2063 = vcmp.eq.s32.totalorder %v2061, 0
        %v2064 = vxor.u32 %v2058, 2147483648
        %v2065 = vsel %vm2063, %v2057, %v2064
        %vm2066 = vcmp.eq.s32.totalorder %v2061, 2
        %v2067 = vxor.u32 %v2057, 2147483648
        %v2068 = vsel %vm2066, %v2067, %v2058
        %v2069 = vsel %vm2062, %v2065, %v2068
        %v2070 = vsel %vm2059, nan, %v2069
        %v2071 = vand.u32 2147483647, %v817
        %vm2072 = vcmp.le.f32.partialorder %v2071, 0.7853982
        %vm2073 = vcmp.lt.s32.totalorder %v817, 0
        %v2074 = vand.u32 %v817, 2139095040
        %v2075 = vshrl.u32 %v2074, 23
        %v2076 = vsub.s32 %v2075, 127
        %v2077 = vand.u32 2147483647, %v817
        %v2078 = vand.u32 %v2077, 8388607
        %v2079 = vor.u32 %v2078, 8388608
        %v2080 = vsub.s32 0, %v2079
        %v2081 = vadd.s32 %v2076, 1
        %vm2082 = vcmp.gt.s32.totalorder %v2081, 0
        %v2083 = vsel %vm2082, %v2081, 0
        %v2084 = vshrl.u32 %v2083, 5
        %v2085 = vand.u32 %v2083, 31
        %v2086 = vsub.s32 32, %v2085
        %v2087 = vshrl.u32 683565275, %v2086
        %v2088 = vshll.u32 683565275, %v2085
        %v2089 = vshrl.u32 2475754826, %v2086
        %v2090 = vor.u32 %v2088, %v2089
        %v2091 = vshll.u32 2475754826, %v2085
        %v2092 = vshrl.u32 2131351028, %v2086
        %v2093 = vor.u32 %v2091, %v2092
        %v2094 = vshll.u32 2131351028, %v2085
        %v2095 = vshrl.u32 2102212464, %v2086
        %v2096 = vor.u32 %v2094, %v2095
        %v2097 = vshll.u32 2102212464, %v2085
        %v2098 = vshrl.u32 920167782, %v2086
        %v2099 = vor.u32 %v2097, %v2098
        %v2100 = vshll.u32 920167782, %v2085
        %v2101 = vshrl.u32 1326507024, %v2086
        %v2102 = vor.u32 %v2100, %v2101
        %vm2103 = vcmp.lt.s32.totalorder %v2084, 1
        %vm2104 = vcmp.lt.s32.totalorder %v2084, 2
        %vm2105 = vcmp.lt.s32.totalorder %v2084, 3
        %vm2106 = vcmp.lt.s32.totalorder %v2084, 4
        %v2107 = vsel %vm2103, %v2087, %v2090
        %v2108 = vsel %vm2106, %v2096, 2102212464
        %v2109 = vsel %vm2105, %v2093, %v2108
        %v2110 = vsel %vm2104, %v2107, %v2109
        %v2111 = vsel %vm2103, %v2090, %v2093
        %v2112 = vsel %vm2106, %v2099, 920167782
        %v2113 = vsel %vm2105, %v2096, %v2112
        %v2114 = vsel %vm2104, %v2111, %v2113
        %v2115 = vsel %vm2103, %v2093, %v2096
        %v2116 = vsel %vm2106, %v2102, 1326507024
        %v2117 = vsel %vm2105, %v2099, %v2116
        %v2118 = vsel %vm2104, %v2115, %v2117
        %v2119 = vshll.u32 %v2079, 8
        %v2120 = vmul.u32.u64.compose %v2119, %v2118
        %v2121 = vextract.low.u32 %v2120
        %v2122 = vextract.high.u32 %v2120
        %v2123 = vmul.u32.u64.compose %v2119, %v2114
        %v2124 = vextract.low.u32 %v2123
        %v2125 = vextract.high.u32 %v2123
        %v2126 = vmul.u32 %v2119, %v2110
        %v2127 = vadd.s32 %v2122, %v2124
        %vm2128 = vc.u32 %v2122, %v2124
        %v2129 = vadd.s32 %v2125, 1
        %v2130 = vsel %vm2128, %v2129, %v2125
        %v2131 = vadd.s32 %v2126, %v2130
        %v2132 = vadd.s32 %v2131, 536870912
        %v2133 = vshrl.u32 %v2132, 30
        %v2134 = vshll.u32 %v2133, 30
        %v2135 = vsub.s32 %v2131, %v2134
        %vm2136 = vcmp.lt.s32.totalorder %v2135, 0
        %v2137 = vsub.s32 0, %v2135
        %v2138 = vsel %vm2136, %v2137, %v2135
        %v2139 = vclz %v2138
        %v2140 = vsub.s32 %v2139, 2
        %vm2141 = vcmp.gt.s32.totalorder 0, %v2140
        %v2142 = vsel %vm2141, 0, %v2140
        %v2143 = vsub.s32 32, %v2142
        %v2144 = vshll.u32 %v2135, %v2142
        %v2145 = vshrl.u32 %v2127, %v2143
        %v2146 = vor.u32 %v2144, %v2145
        %v2147 = vsub.s32 4294967266, %v2142
        %v2148 = vadd.s32 %v2147, 127
        %v2149 = vshll.u32 %v2148, 23
        %v2150 = vor.u32 4788187, %v2149
        %v2151 = vand.u32 2147483647, %v2150
        %v2153 = vcvt.s32.f32 %v2146
        %v2154 = vmul.f32 %v2153, %v2151
        %v2155 = vxor.u32 %v2154, 2147483648
        %v2156 = vsel %vm2073, %v2155, %v2154
        %v2157 = vsub.s32 4, %v2133
        %v2158 = vsel %vm2073, %v2157, %v2133
        %v2159 = vsel %vm2072, %v817, %v2156
        %v2160 = vsel %vm2072, 0, %v2158
        %v2161 = vcosq.f32.pop %v2159
        %v2162 = vsinq.f32.pop %v2159
        %vm2163 = vweird.f32 %v817
        %v2164 = vadd.s32 %v2160, 3
        %v2165 = vand.u32 %v2164, 3
        %vm2166 = vcmp.lt.s32.totalorder %v2165, 2
        %vm2167 = vcmp.eq.s32.totalorder %v2165, 0
        %v2168 = vxor.u32 %v2162, 2147483648
        %v2169 = vsel %vm2167, %v2161, %v2168
        %vm2170 = vcmp.eq.s32.totalorder %v2165, 2
        %v2171 = vxor.u32 %v2161, 2147483648
        %v2172 = vsel %vm2170, %v2171, %v2162
        %v2173 = vsel %vm2166, %v2169, %v2172
        %v2174 = vsel %vm2163, nan, %v2173
        %v2175 = vand.u32 2147483647, %v818
        %vm2176 = vcmp.le.f32.partialorder %v2175, 0.7853982
        %vm2177 = vcmp.lt.s32.totalorder %v818, 0
        %v2178 = vand.u32 %v818, 2139095040
        %v2179 = vshrl.u32 %v2178, 23
        %v2180 = vsub.s32 %v2179, 127
        %v2181 = vand.u32 2147483647, %v818
        %v2182 = vand.u32 %v2181, 8388607
        %v2183 = vor.u32 %v2182, 8388608
        %v2184 = vsub.s32 0, %v2183
        %v2185 = vadd.s32 %v2180, 1
        %vm2186 = vcmp.gt.s32.totalorder %v2185, 0
        %v2187 = vsel %vm2186, %v2185, 0
        %v2188 = vshrl.u32 %v2187, 5
        %v2189 = vand.u32 %v2187, 31
        %v2190 = vsub.s32 32, %v2189
        %v2191 = vshrl.u32 683565275, %v2190
        %v2192 = vshll.u32 683565275, %v2189
        %v2193 = vshrl.u32 2475754826, %v2190
        %v2194 = vor.u32 %v2192, %v2193
        %v2195 = vshll.u32 2475754826, %v2189
        %v2196 = vshrl.u32 2131351028, %v2190
        %v2197 = vor.u32 %v2195, %v2196
        %v2198 = vshll.u32 2131351028, %v2189
        %v2199 = vshrl.u32 2102212464, %v2190
        %v2200 = vor.u32 %v2198, %v2199
        %v2201 = vshll.u32 2102212464, %v2189
        %v2202 = vshrl.u32 920167782, %v2190
        %v2203 = vor.u32 %v2201, %v2202
        %v2204 = vshll.u32 920167782, %v2189
        %v2205 = vshrl.u32 1326507024, %v2190
        %v2206 = vor.u32 %v2204, %v2205
        %vm2207 = vcmp.lt.s32.totalorder %v2188, 1
        %vm2208 = vcmp.lt.s32.totalorder %v2188, 2
        %vm2209 = vcmp.lt.s32.totalorder %v2188, 3
        %vm2210 = vcmp.lt.s32.totalorder %v2188, 4
        %v2211 = vsel %vm2207, %v2191, %v2194
        %v2212 = vsel %vm2210, %v2200, 2102212464
        %v2213 = vsel %vm2209, %v2197, %v2212
        %v2214 = vsel %vm2208, %v2211, %v2213
        %v2215 = vsel %vm2207, %v2194, %v2197
        %v2216 = vsel %vm2210, %v2203, 920167782
        %v2217 = vsel %vm2209, %v2200, %v2216
        %v2218 = vsel %vm2208, %v2215, %v2217
        %v2219 = vsel %vm2207, %v2197, %v2200
        %v2220 = vsel %vm2210, %v2206, 1326507024
        %v2221 = vsel %vm2209, %v2203, %v2220
        %v2222 = vsel %vm2208, %v2219, %v2221
        %v2223 = vshll.u32 %v2183, 8
        %v2224 = vmul.u32.u64.compose %v2223, %v2222
        %v2225 = vextract.low.u32 %v2224
        %v2226 = vextract.high.u32 %v2224
        %v2227 = vmul.u32.u64.compose %v2223, %v2218
        %v2228 = vextract.low.u32 %v2227
        %v2229 = vextract.high.u32 %v2227
        %v2230 = vmul.u32 %v2223, %v2214
        %v2231 = vadd.s32 %v2226, %v2228
        %vm2232 = vc.u32 %v2226, %v2228
        %v2233 = vadd.s32 %v2229, 1
        %v2234 = vsel %vm2232, %v2233, %v2229
        %v2235 = vadd.s32 %v2230, %v2234
        %v2236 = vadd.s32 %v2235, 536870912
        %v2237 = vshrl.u32 %v2236, 30
        %v2238 = vshll.u32 %v2237, 30
        %v2239 = vsub.s32 %v2235, %v2238
        %vm2240 = vcmp.lt.s32.totalorder %v2239, 0
        %v2241 = vsub.s32 0, %v2239
        %v2242 = vsel %vm2240, %v2241, %v2239
        %v2243 = vclz %v2242
        %v2244 = vsub.s32 %v2243, 2
        %vm2245 = vcmp.gt.s32.totalorder 0, %v2244
        %v2246 = vsel %vm2245, 0, %v2244
        %v2247 = vsub.s32 32, %v2246
        %v2248 = vshll.u32 %v2239, %v2246
        %v2249 = vshrl.u32 %v2231, %v2247
        %v2250 = vor.u32 %v2248, %v2249
        %v2251 = vsub.s32 4294967266, %v2246
        %v2252 = vadd.s32 %v2251, 127
        %v2253 = vshll.u32 %v2252, 23
        %v2254 = vor.u32 4788187, %v2253
        %v2255 = vand.u32 2147483647, %v2254
        %v2257 = vcvt.s32.f32 %v2250
        %v2258 = vmul.f32 %v2257, %v2255
        %v2259 = vxor.u32 %v2258, 2147483648
        %v2260 = vsel %vm2177, %v2259, %v2258
        %v2261 = vsub.s32 4, %v2237
        %v2262 = vsel %vm2177, %v2261, %v2237
        %v2263 = vsel %vm2176, %v818, %v2260
        %v2264 = vsel %vm2176, 0, %v2262
        %v2265 = vcosq.f32.pop %v2263
        %v2266 = vsinq.f32.pop %v2263
        %vm2267 = vweird.f32 %v818
        %v2268 = vadd.s32 %v2264, 3
        %v2269 = vand.u32 %v2268, 3
        %vm2270 = vcmp.lt.s32.totalorder %v2269, 2
        %vm2271 = vcmp.eq.s32.totalorder %v2269, 0
        %v2272 = vxor.u32 %v2266, 2147483648
        %v2273 = vsel %vm2271, %v2265, %v2272
        %vm2274 = vcmp.eq.s32.totalorder %v2269, 2
        %v2275 = vxor.u32 %v2265, 2147483648
        %v2276 = vsel %vm2274, %v2275, %v2266
        %v2277 = vsel %vm2270, %v2273, %v2276
        %v2278 = vsel %vm2267, nan, %v2277
        %v2279 = vand.u32 2147483647, %v819
        %vm2280 = vcmp.le.f32.partialorder %v2279, 0.7853982
        %vm2281 = vcmp.lt.s32.totalorder %v819, 0
        %v2282 = vand.u32 %v819, 2139095040
        %v2283 = vshrl.u32 %v2282, 23
        %v2284 = vsub.s32 %v2283, 127
        %v2285 = vand.u32 2147483647, %v819
        %v2286 = vand.u32 %v2285, 8388607
        %v2287 = vor.u32 %v2286, 8388608
        %v2288 = vsub.s32 0, %v2287
        %v2289 = vadd.s32 %v2284, 1
        %vm2290 = vcmp.gt.s32.totalorder %v2289, 0
        %v2291 = vsel %vm2290, %v2289, 0
        %v2292 = vshrl.u32 %v2291, 5
        %v2293 = vand.u32 %v2291, 31
        %v2294 = vsub.s32 32, %v2293
        %v2295 = vshrl.u32 683565275, %v2294
        %v2296 = vshll.u32 683565275, %v2293
        %v2297 = vshrl.u32 2475754826, %v2294
        %v2298 = vor.u32 %v2296, %v2297
        %v2299 = vshll.u32 2475754826, %v2293
        %v2300 = vshrl.u32 2131351028, %v2294
        %v2301 = vor.u32 %v2299, %v2300
        %v2302 = vshll.u32 2131351028, %v2293
        %v2303 = vshrl.u32 2102212464, %v2294
        %v2304 = vor.u32 %v2302, %v2303
        %v2305 = vshll.u32 2102212464, %v2293
        %v2306 = vshrl.u32 920167782, %v2294
        %v2307 = vor.u32 %v2305, %v2306
        %v2308 = vshll.u32 920167782, %v2293
        %v2309 = vshrl.u32 1326507024, %v2294
        %v2310 = vor.u32 %v2308, %v2309
        %vm2311 = vcmp.lt.s32.totalorder %v2292, 1
        %vm2312 = vcmp.lt.s32.totalorder %v2292, 2
        %vm2313 = vcmp.lt.s32.totalorder %v2292, 3
        %vm2314 = vcmp.lt.s32.totalorder %v2292, 4
        %v2315 = vsel %vm2311, %v2295, %v2298
        %v2316 = vsel %vm2314, %v2304, 2102212464
        %v2317 = vsel %vm2313, %v2301, %v2316
        %v2318 = vsel %vm2312, %v2315, %v2317
        %v2319 = vsel %vm2311, %v2298, %v2301
        %v2320 = vsel %vm2314, %v2307, 920167782
        %v2321 = vsel %vm2313, %v2304, %v2320
        %v2322 = vsel %vm2312, %v2319, %v2321
        %v2323 = vsel %vm2311, %v2301, %v2304
        %v2324 = vsel %vm2314, %v2310, 1326507024
        %v2325 = vsel %vm2313, %v2307, %v2324
        %v2326 = vsel %vm2312, %v2323, %v2325
        %v2327 = vshll.u32 %v2287, 8
        %v2328 = vmul.u32.u64.compose %v2327, %v2326
        %v2329 = vextract.low.u32 %v2328
        %v2330 = vextract.high.u32 %v2328
        %v2331 = vmul.u32.u64.compose %v2327, %v2322
        %v2332 = vextract.low.u32 %v2331
        %v2333 = vextract.high.u32 %v2331
        %v2334 = vmul.u32 %v2327, %v2318
        %v2335 = vadd.s32 %v2330, %v2332
        %vm2336 = vc.u32 %v2330, %v2332
        %v2337 = vadd.s32 %v2333, 1
        %v2338 = vsel %vm2336, %v2337, %v2333
        %v2339 = vadd.s32 %v2334, %v2338
        %v2340 = vadd.s32 %v2339, 536870912
        %v2341 = vshrl.u32 %v2340, 30
        %v2342 = vshll.u32 %v2341, 30
        %v2343 = vsub.s32 %v2339, %v2342
        %vm2344 = vcmp.lt.s32.totalorder %v2343, 0
        %v2345 = vsub.s32 0, %v2343
        %v2346 = vsel %vm2344, %v2345, %v2343
        %v2347 = vclz %v2346
        %v2348 = vsub.s32 %v2347, 2
        %vm2349 = vcmp.gt.s32.totalorder 0, %v2348
        %v2350 = vsel %vm2349, 0, %v2348
        %v2351 = vsub.s32 32, %v2350
        %v2352 = vshll.u32 %v2343, %v2350
        %v2353 = vshrl.u32 %v2335, %v2351
        %v2354 = vor.u32 %v2352, %v2353
        %v2355 = vsub.s32 4294967266, %v2350
        %v2356 = vadd.s32 %v2355, 127
        %v2357 = vshll.u32 %v2356, 23
        %v2358 = vor.u32 4788187, %v2357
        %v2359 = vand.u32 2147483647, %v2358
        %v2361 = vcvt.s32.f32 %v2354
        %v2362 = vmul.f32 %v2361, %v2359
        %v2363 = vxor.u32 %v2362, 2147483648
        %v2364 = vsel %vm2281, %v2363, %v2362
        %v2365 = vsub.s32 4, %v2341
        %v2366 = vsel %vm2281, %v2365, %v2341
        %v2367 = vsel %vm2280, %v819, %v2364
        %v2368 = vsel %vm2280, 0, %v2366
        %v2369 = vcosq.f32.pop %v2367
        %v2370 = vsinq.f32.pop %v2367
        %vm2371 = vweird.f32 %v819
        %v2372 = vadd.s32 %v2368, 3
        %v2373 = vand.u32 %v2372, 3
        %vm2374 = vcmp.lt.s32.totalorder %v2373, 2
        %vm2375 = vcmp.eq.s32.totalorder %v2373, 0
        %v2376 = vxor.u32 %v2370, 2147483648
        %v2377 = vsel %vm2375, %v2369, %v2376
        %vm2378 = vcmp.eq.s32.totalorder %v2373, 2
        %v2379 = vxor.u32 %v2369, 2147483648
        %v2380 = vsel %vm2378, %v2379, %v2370
        %v2381 = vsel %vm2374, %v2377, %v2380
        %v2382 = vsel %vm2371, nan, %v2381
        %v2383 = vand.u32 2147483647, %v820
        %vm2384 = vcmp.le.f32.partialorder %v2383, 0.7853982
        %vm2385 = vcmp.lt.s32.totalorder %v820, 0
        %v2386 = vand.u32 %v820, 2139095040
        %v2387 = vshrl.u32 %v2386, 23
        %v2388 = vsub.s32 %v2387, 127
        %v2389 = vand.u32 2147483647, %v820
        %v2390 = vand.u32 %v2389, 8388607
        %v2391 = vor.u32 %v2390, 8388608
        %v2392 = vsub.s32 0, %v2391
        %v2393 = vadd.s32 %v2388, 1
        %vm2394 = vcmp.gt.s32.totalorder %v2393, 0
        %v2395 = vsel %vm2394, %v2393, 0
        %v2396 = vshrl.u32 %v2395, 5
        %v2397 = vand.u32 %v2395, 31
        %v2398 = vsub.s32 32, %v2397
        %v2399 = vshrl.u32 683565275, %v2398
        %v2400 = vshll.u32 683565275, %v2397
        %v2401 = vshrl.u32 2475754826, %v2398
        %v2402 = vor.u32 %v2400, %v2401
        %v2403 = vshll.u32 2475754826, %v2397
        %v2404 = vshrl.u32 2131351028, %v2398
        %v2405 = vor.u32 %v2403, %v2404
        %v2406 = vshll.u32 2131351028, %v2397
        %v2407 = vshrl.u32 2102212464, %v2398
        %v2408 = vor.u32 %v2406, %v2407
        %v2409 = vshll.u32 2102212464, %v2397
        %v2410 = vshrl.u32 920167782, %v2398
        %v2411 = vor.u32 %v2409, %v2410
        %v2412 = vshll.u32 920167782, %v2397
        %v2413 = vshrl.u32 1326507024, %v2398
        %v2414 = vor.u32 %v2412, %v2413
        %vm2415 = vcmp.lt.s32.totalorder %v2396, 1
        %vm2416 = vcmp.lt.s32.totalorder %v2396, 2
        %vm2417 = vcmp.lt.s32.totalorder %v2396, 3
        %vm2418 = vcmp.lt.s32.totalorder %v2396, 4
        %v2419 = vsel %vm2415, %v2399, %v2402
        %v2420 = vsel %vm2418, %v2408, 2102212464
        %v2421 = vsel %vm2417, %v2405, %v2420
        %v2422 = vsel %vm2416, %v2419, %v2421
        %v2423 = vsel %vm2415, %v2402, %v2405
        %v2424 = vsel %vm2418, %v2411, 920167782
        %v2425 = vsel %vm2417, %v2408, %v2424
        %v2426 = vsel %vm2416, %v2423, %v2425
        %v2427 = vsel %vm2415, %v2405, %v2408
        %v2428 = vsel %vm2418, %v2414, 1326507024
        %v2429 = vsel %vm2417, %v2411, %v2428
        %v2430 = vsel %vm2416, %v2427, %v2429
        %v2431 = vshll.u32 %v2391, 8
        %v2432 = vmul.u32.u64.compose %v2431, %v2430
        %v2433 = vextract.low.u32 %v2432
        %v2434 = vextract.high.u32 %v2432
        %v2435 = vmul.u32.u64.compose %v2431, %v2426
        %v2436 = vextract.low.u32 %v2435
        %v2437 = vextract.high.u32 %v2435
        %v2438 = vmul.u32 %v2431, %v2422
        %v2439 = vadd.s32 %v2434, %v2436
        %vm2440 = vc.u32 %v2434, %v2436
        %v2441 = vadd.s32 %v2437, 1
        %v2442 = vsel %vm2440, %v2441, %v2437
        %v2443 = vadd.s32 %v2438, %v2442
        %v2444 = vadd.s32 %v2443, 536870912
        %v2445 = vshrl.u32 %v2444, 30
        %v2446 = vshll.u32 %v2445, 30
        %v2447 = vsub.s32 %v2443, %v2446
        %vm2448 = vcmp.lt.s32.totalorder %v2447, 0
        %v2449 = vsub.s32 0, %v2447
        %v2450 = vsel %vm2448, %v2449, %v2447
        %v2451 = vclz %v2450
        %v2452 = vsub.s32 %v2451, 2
        %vm2453 = vcmp.gt.s32.totalorder 0, %v2452
        %v2454 = vsel %vm2453, 0, %v2452
        %v2455 = vsub.s32 32, %v2454
        %v2456 = vshll.u32 %v2447, %v2454
        %v2457 = vshrl.u32 %v2439, %v2455
        %v2458 = vor.u32 %v2456, %v2457
        %v2459 = vsub.s32 4294967266, %v2454
        %v2460 = vadd.s32 %v2459, 127
        %v2461 = vshll.u32 %v2460, 23
        %v2462 = vor.u32 4788187, %v2461
        %v2463 = vand.u32 2147483647, %v2462
        %v2465 = vcvt.s32.f32 %v2458
        %v2466 = vmul.f32 %v2465, %v2463
        %v2467 = vxor.u32 %v2466, 2147483648
        %v2468 = vsel %vm2385, %v2467, %v2466
        %v2469 = vsub.s32 4, %v2445
        %v2470 = vsel %vm2385, %v2469, %v2445
        %v2471 = vsel %vm2384, %v820, %v2468
        %v2472 = vsel %vm2384, 0, %v2470
        %v2473 = vcosq.f32.pop %v2471
        %v2474 = vsinq.f32.pop %v2471
        %vm2475 = vweird.f32 %v820
        %v2476 = vadd.s32 %v2472, 3
        %v2477 = vand.u32 %v2476, 3
        %vm2478 = vcmp.lt.s32.totalorder %v2477, 2
        %vm2479 = vcmp.eq.s32.totalorder %v2477, 0
        %v2480 = vxor.u32 %v2474, 2147483648
        %v2481 = vsel %vm2479, %v2473, %v2480
        %vm2482 = vcmp.eq.s32.totalorder %v2477, 2
        %v2483 = vxor.u32 %v2473, 2147483648
        %v2484 = vsel %vm2482, %v2483, %v2474
        %v2485 = vsel %vm2478, %v2481, %v2484
        %v2486 = vsel %vm2475, nan, %v2485
        %v2487 = vand.u32 2147483647, %v821
        %vm2488 = vcmp.le.f32.partialorder %v2487, 0.7853982
        %vm2489 = vcmp.lt.s32.totalorder %v821, 0
        %v2490 = vand.u32 %v821, 2139095040
        %v2491 = vshrl.u32 %v2490, 23
        %v2492 = vsub.s32 %v2491, 127
        %v2493 = vand.u32 2147483647, %v821
        %v2494 = vand.u32 %v2493, 8388607
        %v2495 = vor.u32 %v2494, 8388608
        %v2496 = vsub.s32 0, %v2495
        %v2497 = vadd.s32 %v2492, 1
        %vm2498 = vcmp.gt.s32.totalorder %v2497, 0
        %v2499 = vsel %vm2498, %v2497, 0
        %v2500 = vshrl.u32 %v2499, 5
        %v2501 = vand.u32 %v2499, 31
        %v2502 = vsub.s32 32, %v2501
        %v2503 = vshrl.u32 683565275, %v2502
        %v2504 = vshll.u32 683565275, %v2501
        %v2505 = vshrl.u32 2475754826, %v2502
        %v2506 = vor.u32 %v2504, %v2505
        %v2507 = vshll.u32 2475754826, %v2501
        %v2508 = vshrl.u32 2131351028, %v2502
        %v2509 = vor.u32 %v2507, %v2508
        %v2510 = vshll.u32 2131351028, %v2501
        %v2511 = vshrl.u32 2102212464, %v2502
        %v2512 = vor.u32 %v2510, %v2511
        %v2513 = vshll.u32 2102212464, %v2501
        %v2514 = vshrl.u32 920167782, %v2502
        %v2515 = vor.u32 %v2513, %v2514
        %v2516 = vshll.u32 920167782, %v2501
        %v2517 = vshrl.u32 1326507024, %v2502
        %v2518 = vor.u32 %v2516, %v2517
        %vm2519 = vcmp.lt.s32.totalorder %v2500, 1
        %vm2520 = vcmp.lt.s32.totalorder %v2500, 2
        %vm2521 = vcmp.lt.s32.totalorder %v2500, 3
        %vm2522 = vcmp.lt.s32.totalorder %v2500, 4
        %v2523 = vsel %vm2519, %v2503, %v2506
        %v2524 = vsel %vm2522, %v2512, 2102212464
        %v2525 = vsel %vm2521, %v2509, %v2524
        %v2526 = vsel %vm2520, %v2523, %v2525
        %v2527 = vsel %vm2519, %v2506, %v2509
        %v2528 = vsel %vm2522, %v2515, 920167782
        %v2529 = vsel %vm2521, %v2512, %v2528
        %v2530 = vsel %vm2520, %v2527, %v2529
        %v2531 = vsel %vm2519, %v2509, %v2512
        %v2532 = vsel %vm2522, %v2518, 1326507024
        %v2533 = vsel %vm2521, %v2515, %v2532
        %v2534 = vsel %vm2520, %v2531, %v2533
        %v2535 = vshll.u32 %v2495, 8
        %v2536 = vmul.u32.u64.compose %v2535, %v2534
        %v2537 = vextract.low.u32 %v2536
        %v2538 = vextract.high.u32 %v2536
        %v2539 = vmul.u32.u64.compose %v2535, %v2530
        %v2540 = vextract.low.u32 %v2539
        %v2541 = vextract.high.u32 %v2539
        %v2542 = vmul.u32 %v2535, %v2526
        %v2543 = vadd.s32 %v2538, %v2540
        %vm2544 = vc.u32 %v2538, %v2540
        %v2545 = vadd.s32 %v2541, 1
        %v2546 = vsel %vm2544, %v2545, %v2541
        %v2547 = vadd.s32 %v2542, %v2546
        %v2548 = vadd.s32 %v2547, 536870912
        %v2549 = vshrl.u32 %v2548, 30
        %v2550 = vshll.u32 %v2549, 30
        %v2551 = vsub.s32 %v2547, %v2550
        %vm2552 = vcmp.lt.s32.totalorder %v2551, 0
        %v2553 = vsub.s32 0, %v2551
        %v2554 = vsel %vm2552, %v2553, %v2551
        %v2555 = vclz %v2554
        %v2556 = vsub.s32 %v2555, 2
        %vm2557 = vcmp.gt.s32.totalorder 0, %v2556
        %v2558 = vsel %vm2557, 0, %v2556
        %v2559 = vsub.s32 32, %v2558
        %v2560 = vshll.u32 %v2551, %v2558
        %v2561 = vshrl.u32 %v2543, %v2559
        %v2562 = vor.u32 %v2560, %v2561
        %v2563 = vsub.s32 4294967266, %v2558
        %v2564 = vadd.s32 %v2563, 127
        %v2565 = vshll.u32 %v2564, 23
        %v2566 = vor.u32 4788187, %v2565
        %v2567 = vand.u32 2147483647, %v2566
        %v2569 = vcvt.s32.f32 %v2562
        %v2570 = vmul.f32 %v2569, %v2567
        %v2571 = vxor.u32 %v2570, 2147483648
        %v2572 = vsel %vm2489, %v2571, %v2570
        %v2573 = vsub.s32 4, %v2549
        %v2574 = vsel %vm2489, %v2573, %v2549
        %v2575 = vsel %vm2488, %v821, %v2572
        %v2576 = vsel %vm2488, 0, %v2574
        %v2577 = vcosq.f32.pop %v2575
        %v2578 = vsinq.f32.pop %v2575
        %vm2579 = vweird.f32 %v821
        %v2580 = vadd.s32 %v2576, 3
        %v2581 = vand.u32 %v2580, 3
        %vm2582 = vcmp.lt.s32.totalorder %v2581, 2
        %vm2583 = vcmp.eq.s32.totalorder %v2581, 0
        %v2584 = vxor.u32 %v2578, 2147483648
        %v2585 = vsel %vm2583, %v2577, %v2584
        %vm2586 = vcmp.eq.s32.totalorder %v2581, 2
        %v2587 = vxor.u32 %v2577, 2147483648
        %v2588 = vsel %vm2586, %v2587, %v2578
        %v2589 = vsel %vm2582, %v2585, %v2588
        %v2590 = vsel %vm2579, nan, %v2589
        %v2591 = vand.u32 2147483647, %v822
        %vm2592 = vcmp.le.f32.partialorder %v2591, 0.7853982
        %vm2593 = vcmp.lt.s32.totalorder %v822, 0
        %v2594 = vand.u32 %v822, 2139095040
        %v2595 = vshrl.u32 %v2594, 23
        %v2596 = vsub.s32 %v2595, 127
        %v2597 = vand.u32 2147483647, %v822
        %v2598 = vand.u32 %v2597, 8388607
        %v2599 = vor.u32 %v2598, 8388608
        %v2600 = vsub.s32 0, %v2599
        %v2601 = vadd.s32 %v2596, 1
        %vm2602 = vcmp.gt.s32.totalorder %v2601, 0
        %v2603 = vsel %vm2602, %v2601, 0
        %v2604 = vshrl.u32 %v2603, 5
        %v2605 = vand.u32 %v2603, 31
        %v2606 = vsub.s32 32, %v2605
        %v2607 = vshrl.u32 683565275, %v2606
        %v2608 = vshll.u32 683565275, %v2605
        %v2609 = vshrl.u32 2475754826, %v2606
        %v2610 = vor.u32 %v2608, %v2609
        %v2611 = vshll.u32 2475754826, %v2605
        %v2612 = vshrl.u32 2131351028, %v2606
        %v2613 = vor.u32 %v2611, %v2612
        %v2614 = vshll.u32 2131351028, %v2605
        %v2615 = vshrl.u32 2102212464, %v2606
        %v2616 = vor.u32 %v2614, %v2615
        %v2617 = vshll.u32 2102212464, %v2605
        %v2618 = vshrl.u32 920167782, %v2606
        %v2619 = vor.u32 %v2617, %v2618
        %v2620 = vshll.u32 920167782, %v2605
        %v2621 = vshrl.u32 1326507024, %v2606
        %v2622 = vor.u32 %v2620, %v2621
        %vm2623 = vcmp.lt.s32.totalorder %v2604, 1
        %vm2624 = vcmp.lt.s32.totalorder %v2604, 2
        %vm2625 = vcmp.lt.s32.totalorder %v2604, 3
        %vm2626 = vcmp.lt.s32.totalorder %v2604, 4
        %v2627 = vsel %vm2623, %v2607, %v2610
        %v2628 = vsel %vm2626, %v2616, 2102212464
        %v2629 = vsel %vm2625, %v2613, %v2628
        %v2630 = vsel %vm2624, %v2627, %v2629
        %v2631 = vsel %vm2623, %v2610, %v2613
        %v2632 = vsel %vm2626, %v2619, 920167782
        %v2633 = vsel %vm2625, %v2616, %v2632
        %v2634 = vsel %vm2624, %v2631, %v2633
        %v2635 = vsel %vm2623, %v2613, %v2616
        %v2636 = vsel %vm2626, %v2622, 1326507024
        %v2637 = vsel %vm2625, %v2619, %v2636
        %v2638 = vsel %vm2624, %v2635, %v2637
        %v2639 = vshll.u32 %v2599, 8
        %v2640 = vmul.u32.u64.compose %v2639, %v2638
        %v2641 = vextract.low.u32 %v2640
        %v2642 = vextract.high.u32 %v2640
        %v2643 = vmul.u32.u64.compose %v2639, %v2634
        %v2644 = vextract.low.u32 %v2643
        %v2645 = vextract.high.u32 %v2643
        %v2646 = vmul.u32 %v2639, %v2630
        %v2647 = vadd.s32 %v2642, %v2644
        %vm2648 = vc.u32 %v2642, %v2644
        %v2649 = vadd.s32 %v2645, 1
        %v2650 = vsel %vm2648, %v2649, %v2645
        %v2651 = vadd.s32 %v2646, %v2650
        %v2652 = vadd.s32 %v2651, 536870912
        %v2653 = vshrl.u32 %v2652, 30
        %v2654 = vshll.u32 %v2653, 30
        %v2655 = vsub.s32 %v2651, %v2654
        %vm2656 = vcmp.lt.s32.totalorder %v2655, 0
        %v2657 = vsub.s32 0, %v2655
        %v2658 = vsel %vm2656, %v2657, %v2655
        %v2659 = vclz %v2658
        %v2660 = vsub.s32 %v2659, 2
        %vm2661 = vcmp.gt.s32.totalorder 0, %v2660
        %v2662 = vsel %vm2661, 0, %v2660
        %v2663 = vsub.s32 32, %v2662
        %v2664 = vshll.u32 %v2655, %v2662
        %v2665 = vshrl.u32 %v2647, %v2663
        %v2666 = vor.u32 %v2664, %v2665
        %v2667 = vsub.s32 4294967266, %v2662
        %v2668 = vadd.s32 %v2667, 127
        %v2669 = vshll.u32 %v2668, 23
        %v2670 = vor.u32 4788187, %v2669
        %v2671 = vand.u32 2147483647, %v2670
        %v2673 = vcvt.s32.f32 %v2666
        %v2674 = vmul.f32 %v2673, %v2671
        %v2675 = vxor.u32 %v2674, 2147483648
        %v2676 = vsel %vm2593, %v2675, %v2674
        %v2677 = vsub.s32 4, %v2653
        %v2678 = vsel %vm2593, %v2677, %v2653
        %v2679 = vsel %vm2592, %v822, %v2676
        %v2680 = vsel %vm2592, 0, %v2678
        %v2681 = vcosq.f32.pop %v2679
        %v2682 = vsinq.f32.pop %v2679
        %vm2683 = vweird.f32 %v822
        %v2684 = vadd.s32 %v2680, 3
        %v2685 = vand.u32 %v2684, 3
        %vm2686 = vcmp.lt.s32.totalorder %v2685, 2
        %vm2687 = vcmp.eq.s32.totalorder %v2685, 0
        %v2688 = vxor.u32 %v2682, 2147483648
        %v2689 = vsel %vm2687, %v2681, %v2688
        %vm2690 = vcmp.eq.s32.totalorder %v2685, 2
        %v2691 = vxor.u32 %v2681, 2147483648
        %v2692 = vsel %vm2690, %v2691, %v2682
        %v2693 = vsel %vm2686, %v2689, %v2692
        %v2694 = vsel %vm2683, nan, %v2693
        %v2695 = vpack.c.bf16 %v1134, %v926
        %v2696 = vpack.c.bf16 %v1238, %v1030
        %v2697 = vpack.c.bf16 %v1550, %v1342
        %v2698 = vpack.c.bf16 %v1654, %v1446
        %v2699 = vpack.c.bf16 %v1966, %v1758
        %v2700 = vpack.c.bf16 %v2070, %v1862
        %v2701 = vpack.c.bf16 %v2382, %v2174
        %v2702 = vpack.c.bf16 %v2486, %v2278
        %v2703 = vpack.c.bf16 %v2590, %v2590
        %v2704 = vpack.c.bf16 %v2694, %v2694
        %v2705 = vand.u32 2147483647, %v805
        %vm2706 = vcmp.le.f32.partialorder %v2705, 0.7853982
        %vm2707 = vcmp.lt.s32.totalorder %v805, 0
        %v2708 = vand.u32 %v805, 2139095040
        %v2709 = vshrl.u32 %v2708, 23
        %v2710 = vsub.s32 %v2709, 127
        %v2711 = vand.u32 2147483647, %v805
        %v2712 = vand.u32 %v2711, 8388607
        %v2713 = vor.u32 %v2712, 8388608
        %v2714 = vsub.s32 0, %v2713
        %v2715 = vadd.s32 %v2710, 1
        %vm2716 = vcmp.gt.s32.totalorder %v2715, 0
        %v2717 = vsel %vm2716, %v2715, 0
        %v2718 = vshrl.u32 %v2717, 5
        %v2719 = vand.u32 %v2717, 31
        %v2720 = vsub.s32 32, %v2719
        %v2721 = vshrl.u32 683565275, %v2720
        %v2722 = vshll.u32 683565275, %v2719
        %v2723 = vshrl.u32 2475754826, %v2720
        %v2724 = vor.u32 %v2722, %v2723
        %v2725 = vshll.u32 2475754826, %v2719
        %v2726 = vshrl.u32 2131351028, %v2720
        %v2727 = vor.u32 %v2725, %v2726
        %v2728 = vshll.u32 2131351028, %v2719
        %v2729 = vshrl.u32 2102212464, %v2720
        %v2730 = vor.u32 %v2728, %v2729
        %v2731 = vshll.u32 2102212464, %v2719
        %v2732 = vshrl.u32 920167782, %v2720
        %v2733 = vor.u32 %v2731, %v2732
        %v2734 = vshll.u32 920167782, %v2719
        %v2735 = vshrl.u32 1326507024, %v2720
        %v2736 = vor.u32 %v2734, %v2735
        %vm2737 = vcmp.lt.s32.totalorder %v2718, 1
        %vm2738 = vcmp.lt.s32.totalorder %v2718, 2
        %vm2739 = vcmp.lt.s32.totalorder %v2718, 3
        %vm2740 = vcmp.lt.s32.totalorder %v2718, 4
        %v2741 = vsel %vm2737, %v2721, %v2724
        %v2742 = vsel %vm2740, %v2730, 2102212464
        %v2743 = vsel %vm2739, %v2727, %v2742
        %v2744 = vsel %vm2738, %v2741, %v2743
        %v2745 = vsel %vm2737, %v2724, %v2727
        %v2746 = vsel %vm2740, %v2733, 920167782
        %v2747 = vsel %vm2739, %v2730, %v2746
        %v2748 = vsel %vm2738, %v2745, %v2747
        %v2749 = vsel %vm2737, %v2727, %v2730
        %v2750 = vsel %vm2740, %v2736, 1326507024
        %v2751 = vsel %vm2739, %v2733, %v2750
        %v2752 = vsel %vm2738, %v2749, %v2751
        %v2753 = vshll.u32 %v2713, 8
        %v2754 = vmul.u32.u64.compose %v2753, %v2752
        %v2755 = vextract.low.u32 %v2754
        %v2756 = vextract.high.u32 %v2754
        %v2757 = vmul.u32.u64.compose %v2753, %v2748
        %v2758 = vextract.low.u32 %v2757
        %v2759 = vextract.high.u32 %v2757
        %v2760 = vmul.u32 %v2753, %v2744
        %v2761 = vadd.s32 %v2756, %v2758
        %vm2762 = vc.u32 %v2756, %v2758
        %v2763 = vadd.s32 %v2759, 1
        %v2764 = vsel %vm2762, %v2763, %v2759
        %v2765 = vadd.s32 %v2760, %v2764
        %v2766 = vadd.s32 %v2765, 536870912
        %v2767 = vshrl.u32 %v2766, 30
        %v2768 = vshll.u32 %v2767, 30
        %v2769 = vsub.s32 %v2765, %v2768
        %vm2770 = vcmp.lt.s32.totalorder %v2769, 0
        %v2771 = vsub.s32 0, %v2769
        %v2772 = vsel %vm2770, %v2771, %v2769
        %v2773 = vclz %v2772
        %v2774 = vsub.s32 %v2773, 2
        %vm2775 = vcmp.gt.s32.totalorder 0, %v2774
        %v2776 = vsel %vm2775, 0, %v2774
        %v2777 = vsub.s32 32, %v2776
        %v2778 = vshll.u32 %v2769, %v2776
        %v2779 = vshrl.u32 %v2761, %v2777
        %v2780 = vor.u32 %v2778, %v2779
        %v2781 = vsub.s32 4294967266, %v2776
        %v2782 = vadd.s32 %v2781, 127
        %v2783 = vshll.u32 %v2782, 23
        %v2784 = vor.u32 4788187, %v2783
        %v2785 = vand.u32 2147483647, %v2784
        %v2787 = vcvt.s32.f32 %v2780
        %v2788 = vmul.f32 %v2787, %v2785
        %v2789 = vxor.u32 %v2788, 2147483648
        %v2790 = vsel %vm2707, %v2789, %v2788
        %v2791 = vsub.s32 4, %v2767
        %v2792 = vsel %vm2707, %v2791, %v2767
        %v2793 = vsel %vm2706, %v805, %v2790
        %v2794 = vsel %vm2706, 0, %v2792
        %v2795 = vcosq.f32.pop %v2793
        %v2796 = vsinq.f32.pop %v2793
        %vm2797 = vweird.f32 %v805
        %v2798 = vand.u32 %v2794, 3
        %vm2799 = vcmp.lt.s32.totalorder %v2798, 2
        %vm2800 = vcmp.eq.s32.totalorder %v2798, 0
        %v2801 = vxor.u32 %v2796, 2147483648
        %v2802 = vsel %vm2800, %v2795, %v2801
        %vm2803 = vcmp.eq.s32.totalorder %v2798, 2
        %v2804 = vxor.u32 %v2795, 2147483648
        %v2805 = vsel %vm2803, %v2804, %v2796
        %v2806 = vsel %vm2799, %v2802, %v2805
        %v2807 = vsel %vm2797, nan, %v2806
        %v2808 = vand.u32 2147483647, %v806
        %vm2809 = vcmp.le.f32.partialorder %v2808, 0.7853982
        %vm2810 = vcmp.lt.s32.totalorder %v806, 0
        %v2811 = vand.u32 %v806, 2139095040
        %v2812 = vshrl.u32 %v2811, 23
        %v2813 = vsub.s32 %v2812, 127
        %v2814 = vand.u32 2147483647, %v806
        %v2815 = vand.u32 %v2814, 8388607
        %v2816 = vor.u32 %v2815, 8388608
        %v2817 = vsub.s32 0, %v2816
        %v2818 = vadd.s32 %v2813, 1
        %vm2819 = vcmp.gt.s32.totalorder %v2818, 0
        %v2820 = vsel %vm2819, %v2818, 0
        %v2821 = vshrl.u32 %v2820, 5
        %v2822 = vand.u32 %v2820, 31
        %v2823 = vsub.s32 32, %v2822
        %v2824 = vshrl.u32 683565275, %v2823
        %v2825 = vshll.u32 683565275, %v2822
        %v2826 = vshrl.u32 2475754826, %v2823
        %v2827 = vor.u32 %v2825, %v2826
        %v2828 = vshll.u32 2475754826, %v2822
        %v2829 = vshrl.u32 2131351028, %v2823
        %v2830 = vor.u32 %v2828, %v2829
        %v2831 = vshll.u32 2131351028, %v2822
        %v2832 = vshrl.u32 2102212464, %v2823
        %v2833 = vor.u32 %v2831, %v2832
        %v2834 = vshll.u32 2102212464, %v2822
        %v2835 = vshrl.u32 920167782, %v2823
        %v2836 = vor.u32 %v2834, %v2835
        %v2837 = vshll.u32 920167782, %v2822
        %v2838 = vshrl.u32 1326507024, %v2823
        %v2839 = vor.u32 %v2837, %v2838
        %vm2840 = vcmp.lt.s32.totalorder %v2821, 1
        %vm2841 = vcmp.lt.s32.totalorder %v2821, 2
        %vm2842 = vcmp.lt.s32.totalorder %v2821, 3
        %vm2843 = vcmp.lt.s32.totalorder %v2821, 4
        %v2844 = vsel %vm2840, %v2824, %v2827
        %v2845 = vsel %vm2843, %v2833, 2102212464
        %v2846 = vsel %vm2842, %v2830, %v2845
        %v2847 = vsel %vm2841, %v2844, %v2846
        %v2848 = vsel %vm2840, %v2827, %v2830
        %v2849 = vsel %vm2843, %v2836, 920167782
        %v2850 = vsel %vm2842, %v2833, %v2849
        %v2851 = vsel %vm2841, %v2848, %v2850
        %v2852 = vsel %vm2840, %v2830, %v2833
        %v2853 = vsel %vm2843, %v2839, 1326507024
        %v2854 = vsel %vm2842, %v2836, %v2853
        %v2855 = vsel %vm2841, %v2852, %v2854
        %v2856 = vshll.u32 %v2816, 8
        %v2857 = vmul.u32.u64.compose %v2856, %v2855
        %v2858 = vextract.low.u32 %v2857
        %v2859 = vextract.high.u32 %v2857
        %v2860 = vmul.u32.u64.compose %v2856, %v2851
        %v2861 = vextract.low.u32 %v2860
        %v2862 = vextract.high.u32 %v2860
        %v2863 = vmul.u32 %v2856, %v2847
        %v2864 = vadd.s32 %v2859, %v2861
        %vm2865 = vc.u32 %v2859, %v2861
        %v2866 = vadd.s32 %v2862, 1
        %v2867 = vsel %vm2865, %v2866, %v2862
        %v2868 = vadd.s32 %v2863, %v2867
        %v2869 = vadd.s32 %v2868, 536870912
        %v2870 = vshrl.u32 %v2869, 30
        %v2871 = vshll.u32 %v2870, 30
        %v2872 = vsub.s32 %v2868, %v2871
        %vm2873 = vcmp.lt.s32.totalorder %v2872, 0
        %v2874 = vsub.s32 0, %v2872
        %v2875 = vsel %vm2873, %v2874, %v2872
        %v2876 = vclz %v2875
        %v2877 = vsub.s32 %v2876, 2
        %vm2878 = vcmp.gt.s32.totalorder 0, %v2877
        %v2879 = vsel %vm2878, 0, %v2877
        %v2880 = vsub.s32 32, %v2879
        %v2881 = vshll.u32 %v2872, %v2879
        %v2882 = vshrl.u32 %v2864, %v2880
        %v2883 = vor.u32 %v2881, %v2882
        %v2884 = vsub.s32 4294967266, %v2879
        %v2885 = vadd.s32 %v2884, 127
        %v2886 = vshll.u32 %v2885, 23
        %v2887 = vor.u32 4788187, %v2886
        %v2888 = vand.u32 2147483647, %v2887
        %v2890 = vcvt.s32.f32 %v2883
        %v2891 = vmul.f32 %v2890, %v2888
        %v2892 = vxor.u32 %v2891, 2147483648
        %v2893 = vsel %vm2810, %v2892, %v2891
        %v2894 = vsub.s32 4, %v2870
        %v2895 = vsel %vm2810, %v2894, %v2870
        %v2896 = vsel %vm2809, %v806, %v2893
        %v2897 = vsel %vm2809, 0, %v2895
        %v2898 = vcosq.f32.pop %v2896
        %v2899 = vsinq.f32.pop %v2896
        %vm2900 = vweird.f32 %v806
        %v2901 = vand.u32 %v2897, 3
        %vm2902 = vcmp.lt.s32.totalorder %v2901, 2
        %vm2903 = vcmp.eq.s32.totalorder %v2901, 0
        %v2904 = vxor.u32 %v2899, 2147483648
        %v2905 = vsel %vm2903, %v2898, %v2904
        %vm2906 = vcmp.eq.s32.totalorder %v2901, 2
        %v2907 = vxor.u32 %v2898, 2147483648
        %v2908 = vsel %vm2906, %v2907, %v2899
        %v2909 = vsel %vm2902, %v2905, %v2908
        %v2910 = vsel %vm2900, nan, %v2909
        %v2911 = vand.u32 2147483647, %v807
        %vm2912 = vcmp.le.f32.partialorder %v2911, 0.7853982
        %vm2913 = vcmp.lt.s32.totalorder %v807, 0
        %v2914 = vand.u32 %v807, 2139095040
        %v2915 = vshrl.u32 %v2914, 23
        %v2916 = vsub.s32 %v2915, 127
        %v2917 = vand.u32 2147483647, %v807
        %v2918 = vand.u32 %v2917, 8388607
        %v2919 = vor.u32 %v2918, 8388608
        %v2920 = vsub.s32 0, %v2919
        %v2921 = vadd.s32 %v2916, 1
        %vm2922 = vcmp.gt.s32.totalorder %v2921, 0
        %v2923 = vsel %vm2922, %v2921, 0
        %v2924 = vshrl.u32 %v2923, 5
        %v2925 = vand.u32 %v2923, 31
        %v2926 = vsub.s32 32, %v2925
        %v2927 = vshrl.u32 683565275, %v2926
        %v2928 = vshll.u32 683565275, %v2925
        %v2929 = vshrl.u32 2475754826, %v2926
        %v2930 = vor.u32 %v2928, %v2929
        %v2931 = vshll.u32 2475754826, %v2925
        %v2932 = vshrl.u32 2131351028, %v2926
        %v2933 = vor.u32 %v2931, %v2932
        %v2934 = vshll.u32 2131351028, %v2925
        %v2935 = vshrl.u32 2102212464, %v2926
        %v2936 = vor.u32 %v2934, %v2935
        %v2937 = vshll.u32 2102212464, %v2925
        %v2938 = vshrl.u32 920167782, %v2926
        %v2939 = vor.u32 %v2937, %v2938
        %v2940 = vshll.u32 920167782, %v2925
        %v2941 = vshrl.u32 1326507024, %v2926
        %v2942 = vor.u32 %v2940, %v2941
        %vm2943 = vcmp.lt.s32.totalorder %v2924, 1
        %vm2944 = vcmp.lt.s32.totalorder %v2924, 2
        %vm2945 = vcmp.lt.s32.totalorder %v2924, 3
        %vm2946 = vcmp.lt.s32.totalorder %v2924, 4
        %v2947 = vsel %vm2943, %v2927, %v2930
        %v2948 = vsel %vm2946, %v2936, 2102212464
        %v2949 = vsel %vm2945, %v2933, %v2948
        %v2950 = vsel %vm2944, %v2947, %v2949
        %v2951 = vsel %vm2943, %v2930, %v2933
        %v2952 = vsel %vm2946, %v2939, 920167782
        %v2953 = vsel %vm2945, %v2936, %v2952
        %v2954 = vsel %vm2944, %v2951, %v2953
        %v2955 = vsel %vm2943, %v2933, %v2936
        %v2956 = vsel %vm2946, %v2942, 1326507024
        %v2957 = vsel %vm2945, %v2939, %v2956
        %v2958 = vsel %vm2944, %v2955, %v2957
        %v2959 = vshll.u32 %v2919, 8
        %v2960 = vmul.u32.u64.compose %v2959, %v2958
        %v2961 = vextract.low.u32 %v2960
        %v2962 = vextract.high.u32 %v2960
        %v2963 = vmul.u32.u64.compose %v2959, %v2954
        %v2964 = vextract.low.u32 %v2963
        %v2965 = vextract.high.u32 %v2963
        %v2966 = vmul.u32 %v2959, %v2950
        %v2967 = vadd.s32 %v2962, %v2964
        %vm2968 = vc.u32 %v2962, %v2964
        %v2969 = vadd.s32 %v2965, 1
        %v2970 = vsel %vm2968, %v2969, %v2965
        %v2971 = vadd.s32 %v2966, %v2970
        %v2972 = vadd.s32 %v2971, 536870912
        %v2973 = vshrl.u32 %v2972, 30
        %v2974 = vshll.u32 %v2973, 30
        %v2975 = vsub.s32 %v2971, %v2974
        %vm2976 = vcmp.lt.s32.totalorder %v2975, 0
        %v2977 = vsub.s32 0, %v2975
        %v2978 = vsel %vm2976, %v2977, %v2975
        %v2979 = vclz %v2978
        %v2980 = vsub.s32 %v2979, 2
        %vm2981 = vcmp.gt.s32.totalorder 0, %v2980
        %v2982 = vsel %vm2981, 0, %v2980
        %v2983 = vsub.s32 32, %v2982
        %v2984 = vshll.u32 %v2975, %v2982
        %v2985 = vshrl.u32 %v2967, %v2983
        %v2986 = vor.u32 %v2984, %v2985
        %v2987 = vsub.s32 4294967266, %v2982
        %v2988 = vadd.s32 %v2987, 127
        %v2989 = vshll.u32 %v2988, 23
        %v2990 = vor.u32 4788187, %v2989
        %v2991 = vand.u32 2147483647, %v2990
        %v2993 = vcvt.s32.f32 %v2986
        %v2994 = vmul.f32 %v2993, %v2991
        %v2995 = vxor.u32 %v2994, 2147483648
        %v2996 = vsel %vm2913, %v2995, %v2994
        %v2997 = vsub.s32 4, %v2973
        %v2998 = vsel %vm2913, %v2997, %v2973
        %v2999 = vsel %vm2912, %v807, %v2996
        %v3000 = vsel %vm2912, 0, %v2998
        %v3001 = vcosq.f32.pop %v2999
        %v3002 = vsinq.f32.pop %v2999
        %vm3003 = vweird.f32 %v807
        %v3004 = vand.u32 %v3000, 3
        %vm3005 = vcmp.lt.s32.totalorder %v3004, 2
        %vm3006 = vcmp.eq.s32.totalorder %v3004, 0
        %v3007 = vxor.u32 %v3002, 2147483648
        %v3008 = vsel %vm3006, %v3001, %v3007
        %vm3009 = vcmp.eq.s32.totalorder %v3004, 2
        %v3010 = vxor.u32 %v3001, 2147483648
        %v3011 = vsel %vm3009, %v3010, %v3002
        %v3012 = vsel %vm3005, %v3008, %v3011
        %v3013 = vsel %vm3003, nan, %v3012
        %v3014 = vand.u32 2147483647, %v808
        %vm3015 = vcmp.le.f32.partialorder %v3014, 0.7853982
        %vm3016 = vcmp.lt.s32.totalorder %v808, 0
        %v3017 = vand.u32 %v808, 2139095040
        %v3018 = vshrl.u32 %v3017, 23
        %v3019 = vsub.s32 %v3018, 127
        %v3020 = vand.u32 2147483647, %v808
        %v3021 = vand.u32 %v3020, 8388607
        %v3022 = vor.u32 %v3021, 8388608
        %v3023 = vsub.s32 0, %v3022
        %v3024 = vadd.s32 %v3019, 1
        %vm3025 = vcmp.gt.s32.totalorder %v3024, 0
        %v3026 = vsel %vm3025, %v3024, 0
        %v3027 = vshrl.u32 %v3026, 5
        %v3028 = vand.u32 %v3026, 31
        %v3029 = vsub.s32 32, %v3028
        %v3030 = vshrl.u32 683565275, %v3029
        %v3031 = vshll.u32 683565275, %v3028
        %v3032 = vshrl.u32 2475754826, %v3029
        %v3033 = vor.u32 %v3031, %v3032
        %v3034 = vshll.u32 2475754826, %v3028
        %v3035 = vshrl.u32 2131351028, %v3029
        %v3036 = vor.u32 %v3034, %v3035
        %v3037 = vshll.u32 2131351028, %v3028
        %v3038 = vshrl.u32 2102212464, %v3029
        %v3039 = vor.u32 %v3037, %v3038
        %v3040 = vshll.u32 2102212464, %v3028
        %v3041 = vshrl.u32 920167782, %v3029
        %v3042 = vor.u32 %v3040, %v3041
        %v3043 = vshll.u32 920167782, %v3028
        %v3044 = vshrl.u32 1326507024, %v3029
        %v3045 = vor.u32 %v3043, %v3044
        %vm3046 = vcmp.lt.s32.totalorder %v3027, 1
        %vm3047 = vcmp.lt.s32.totalorder %v3027, 2
        %vm3048 = vcmp.lt.s32.totalorder %v3027, 3
        %vm3049 = vcmp.lt.s32.totalorder %v3027, 4
        %v3050 = vsel %vm3046, %v3030, %v3033
        %v3051 = vsel %vm3049, %v3039, 2102212464
        %v3052 = vsel %vm3048, %v3036, %v3051
        %v3053 = vsel %vm3047, %v3050, %v3052
        %v3054 = vsel %vm3046, %v3033, %v3036
        %v3055 = vsel %vm3049, %v3042, 920167782
        %v3056 = vsel %vm3048, %v3039, %v3055
        %v3057 = vsel %vm3047, %v3054, %v3056
        %v3058 = vsel %vm3046, %v3036, %v3039
        %v3059 = vsel %vm3049, %v3045, 1326507024
        %v3060 = vsel %vm3048, %v3042, %v3059
        %v3061 = vsel %vm3047, %v3058, %v3060
        %v3062 = vshll.u32 %v3022, 8
        %v3063 = vmul.u32.u64.compose %v3062, %v3061
        %v3064 = vextract.low.u32 %v3063
        %v3065 = vextract.high.u32 %v3063
        %v3066 = vmul.u32.u64.compose %v3062, %v3057
        %v3067 = vextract.low.u32 %v3066
        %v3068 = vextract.high.u32 %v3066
        %v3069 = vmul.u32 %v3062, %v3053
        %v3070 = vadd.s32 %v3065, %v3067
        %vm3071 = vc.u32 %v3065, %v3067
        %v3072 = vadd.s32 %v3068, 1
        %v3073 = vsel %vm3071, %v3072, %v3068
        %v3074 = vadd.s32 %v3069, %v3073
        %v3075 = vadd.s32 %v3074, 536870912
        %v3076 = vshrl.u32 %v3075, 30
        %v3077 = vshll.u32 %v3076, 30
        %v3078 = vsub.s32 %v3074, %v3077
        %vm3079 = vcmp.lt.s32.totalorder %v3078, 0
        %v3080 = vsub.s32 0, %v3078
        %v3081 = vsel %vm3079, %v3080, %v3078
        %v3082 = vclz %v3081
        %v3083 = vsub.s32 %v3082, 2
        %vm3084 = vcmp.gt.s32.totalorder 0, %v3083
        %v3085 = vsel %vm3084, 0, %v3083
        %v3086 = vsub.s32 32, %v3085
        %v3087 = vshll.u32 %v3078, %v3085
        %v3088 = vshrl.u32 %v3070, %v3086
        %v3089 = vor.u32 %v3087, %v3088
        %v3090 = vsub.s32 4294967266, %v3085
        %v3091 = vadd.s32 %v3090, 127
        %v3092 = vshll.u32 %v3091, 23
        %v3093 = vor.u32 4788187, %v3092
        %v3094 = vand.u32 2147483647, %v3093
        %v3096 = vcvt.s32.f32 %v3089
        %v3097 = vmul.f32 %v3096, %v3094
        %v3098 = vxor.u32 %v3097, 2147483648
        %v3099 = vsel %vm3016, %v3098, %v3097
        %v3100 = vsub.s32 4, %v3076
        %v3101 = vsel %vm3016, %v3100, %v3076
        %v3102 = vsel %vm3015, %v808, %v3099
        %v3103 = vsel %vm3015, 0, %v3101
        %v3104 = vcosq.f32.pop %v3102
        %v3105 = vsinq.f32.pop %v3102
        %vm3106 = vweird.f32 %v808
        %v3107 = vand.u32 %v3103, 3
        %vm3108 = vcmp.lt.s32.totalorder %v3107, 2
        %vm3109 = vcmp.eq.s32.totalorder %v3107, 0
        %v3110 = vxor.u32 %v3105, 2147483648
        %v3111 = vsel %vm3109, %v3104, %v3110
        %vm3112 = vcmp.eq.s32.totalorder %v3107, 2
        %v3113 = vxor.u32 %v3104, 2147483648
        %v3114 = vsel %vm3112, %v3113, %v3105
        %v3115 = vsel %vm3108, %v3111, %v3114
        %v3116 = vsel %vm3106, nan, %v3115
        %v3117 = vand.u32 2147483647, %v809
        %vm3118 = vcmp.le.f32.partialorder %v3117, 0.7853982
        %vm3119 = vcmp.lt.s32.totalorder %v809, 0
        %v3120 = vand.u32 %v809, 2139095040
        %v3121 = vshrl.u32 %v3120, 23
        %v3122 = vsub.s32 %v3121, 127
        %v3123 = vand.u32 2147483647, %v809
        %v3124 = vand.u32 %v3123, 8388607
        %v3125 = vor.u32 %v3124, 8388608
        %v3126 = vsub.s32 0, %v3125
        %v3127 = vadd.s32 %v3122, 1
        %vm3128 = vcmp.gt.s32.totalorder %v3127, 0
        %v3129 = vsel %vm3128, %v3127, 0
        %v3130 = vshrl.u32 %v3129, 5
        %v3131 = vand.u32 %v3129, 31
        %v3132 = vsub.s32 32, %v3131
        %v3133 = vshrl.u32 683565275, %v3132
        %v3134 = vshll.u32 683565275, %v3131
        %v3135 = vshrl.u32 2475754826, %v3132
        %v3136 = vor.u32 %v3134, %v3135
        %v3137 = vshll.u32 2475754826, %v3131
        %v3138 = vshrl.u32 2131351028, %v3132
        %v3139 = vor.u32 %v3137, %v3138
        %v3140 = vshll.u32 2131351028, %v3131
        %v3141 = vshrl.u32 2102212464, %v3132
        %v3142 = vor.u32 %v3140, %v3141
        %v3143 = vshll.u32 2102212464, %v3131
        %v3144 = vshrl.u32 920167782, %v3132
        %v3145 = vor.u32 %v3143, %v3144
        %v3146 = vshll.u32 920167782, %v3131
        %v3147 = vshrl.u32 1326507024, %v3132
        %v3148 = vor.u32 %v3146, %v3147
        %vm3149 = vcmp.lt.s32.totalorder %v3130, 1
        %vm3150 = vcmp.lt.s32.totalorder %v3130, 2
        %vm3151 = vcmp.lt.s32.totalorder %v3130, 3
        %vm3152 = vcmp.lt.s32.totalorder %v3130, 4
        %v3153 = vsel %vm3149, %v3133, %v3136
        %v3154 = vsel %vm3152, %v3142, 2102212464
        %v3155 = vsel %vm3151, %v3139, %v3154
        %v3156 = vsel %vm3150, %v3153, %v3155
        %v3157 = vsel %vm3149, %v3136, %v3139
        %v3158 = vsel %vm3152, %v3145, 920167782
        %v3159 = vsel %vm3151, %v3142, %v3158
        %v3160 = vsel %vm3150, %v3157, %v3159
        %v3161 = vsel %vm3149, %v3139, %v3142
        %v3162 = vsel %vm3152, %v3148, 1326507024
        %v3163 = vsel %vm3151, %v3145, %v3162
        %v3164 = vsel %vm3150, %v3161, %v3163
        %v3165 = vshll.u32 %v3125, 8
        %v3166 = vmul.u32.u64.compose %v3165, %v3164
        %v3167 = vextract.low.u32 %v3166
        %v3168 = vextract.high.u32 %v3166
        %v3169 = vmul.u32.u64.compose %v3165, %v3160
        %v3170 = vextract.low.u32 %v3169
        %v3171 = vextract.high.u32 %v3169
        %v3172 = vmul.u32 %v3165, %v3156
        %v3173 = vadd.s32 %v3168, %v3170
        %vm3174 = vc.u32 %v3168, %v3170
        %v3175 = vadd.s32 %v3171, 1
        %v3176 = vsel %vm3174, %v3175, %v3171
        %v3177 = vadd.s32 %v3172, %v3176
        %v3178 = vadd.s32 %v3177, 536870912
        %v3179 = vshrl.u32 %v3178, 30
        %v3180 = vshll.u32 %v3179, 30
        %v3181 = vsub.s32 %v3177, %v3180
        %vm3182 = vcmp.lt.s32.totalorder %v3181, 0
        %v3183 = vsub.s32 0, %v3181
        %v3184 = vsel %vm3182, %v3183, %v3181
        %v3185 = vclz %v3184
        %v3186 = vsub.s32 %v3185, 2
        %vm3187 = vcmp.gt.s32.totalorder 0, %v3186
        %v3188 = vsel %vm3187, 0, %v3186
        %v3189 = vsub.s32 32, %v3188
        %v3190 = vshll.u32 %v3181, %v3188
        %v3191 = vshrl.u32 %v3173, %v3189
        %v3192 = vor.u32 %v3190, %v3191
        %v3193 = vsub.s32 4294967266, %v3188
        %v3194 = vadd.s32 %v3193, 127
        %v3195 = vshll.u32 %v3194, 23
        %v3196 = vor.u32 4788187, %v3195
        %v3197 = vand.u32 2147483647, %v3196
        %v3199 = vcvt.s32.f32 %v3192
        %v3200 = vmul.f32 %v3199, %v3197
        %v3201 = vxor.u32 %v3200, 2147483648
        %v3202 = vsel %vm3119, %v3201, %v3200
        %v3203 = vsub.s32 4, %v3179
        %v3204 = vsel %vm3119, %v3203, %v3179
        %v3205 = vsel %vm3118, %v809, %v3202
        %v3206 = vsel %vm3118, 0, %v3204
        %v3207 = vcosq.f32.pop %v3205
        %v3208 = vsinq.f32.pop %v3205
        %vm3209 = vweird.f32 %v809
        %v3210 = vand.u32 %v3206, 3
        %vm3211 = vcmp.lt.s32.totalorder %v3210, 2
        %vm3212 = vcmp.eq.s32.totalorder %v3210, 0
        %v3213 = vxor.u32 %v3208, 2147483648
        %v3214 = vsel %vm3212, %v3207, %v3213
        %vm3215 = vcmp.eq.s32.totalorder %v3210, 2
        %v3216 = vxor.u32 %v3207, 2147483648
        %v3217 = vsel %vm3215, %v3216, %v3208
        %v3218 = vsel %vm3211, %v3214, %v3217
        %v3219 = vsel %vm3209, nan, %v3218
        %v3220 = vand.u32 2147483647, %v810
        %vm3221 = vcmp.le.f32.partialorder %v3220, 0.7853982
        %vm3222 = vcmp.lt.s32.totalorder %v810, 0
        %v3223 = vand.u32 %v810, 2139095040
        %v3224 = vshrl.u32 %v3223, 23
        %v3225 = vsub.s32 %v3224, 127
        %v3226 = vand.u32 2147483647, %v810
        %v3227 = vand.u32 %v3226, 8388607
        %v3228 = vor.u32 %v3227, 8388608
        %v3229 = vsub.s32 0, %v3228
        %v3230 = vadd.s32 %v3225, 1
        %vm3231 = vcmp.gt.s32.totalorder %v3230, 0
        %v3232 = vsel %vm3231, %v3230, 0
        %v3233 = vshrl.u32 %v3232, 5
        %v3234 = vand.u32 %v3232, 31
        %v3235 = vsub.s32 32, %v3234
        %v3236 = vshrl.u32 683565275, %v3235
        %v3237 = vshll.u32 683565275, %v3234
        %v3238 = vshrl.u32 2475754826, %v3235
        %v3239 = vor.u32 %v3237, %v3238
        %v3240 = vshll.u32 2475754826, %v3234
        %v3241 = vshrl.u32 2131351028, %v3235
        %v3242 = vor.u32 %v3240, %v3241
        %v3243 = vshll.u32 2131351028, %v3234
        %v3244 = vshrl.u32 2102212464, %v3235
        %v3245 = vor.u32 %v3243, %v3244
        %v3246 = vshll.u32 2102212464, %v3234
        %v3247 = vshrl.u32 920167782, %v3235
        %v3248 = vor.u32 %v3246, %v3247
        %v3249 = vshll.u32 920167782, %v3234
        %v3250 = vshrl.u32 1326507024, %v3235
        %v3251 = vor.u32 %v3249, %v3250
        %vm3252 = vcmp.lt.s32.totalorder %v3233, 1
        %vm3253 = vcmp.lt.s32.totalorder %v3233, 2
        %vm3254 = vcmp.lt.s32.totalorder %v3233, 3
        %vm3255 = vcmp.lt.s32.totalorder %v3233, 4
        %v3256 = vsel %vm3252, %v3236, %v3239
        %v3257 = vsel %vm3255, %v3245, 2102212464
        %v3258 = vsel %vm3254, %v3242, %v3257
        %v3259 = vsel %vm3253, %v3256, %v3258
        %v3260 = vsel %vm3252, %v3239, %v3242
        %v3261 = vsel %vm3255, %v3248, 920167782
        %v3262 = vsel %vm3254, %v3245, %v3261
        %v3263 = vsel %vm3253, %v3260, %v3262
        %v3264 = vsel %vm3252, %v3242, %v3245
        %v3265 = vsel %vm3255, %v3251, 1326507024
        %v3266 = vsel %vm3254, %v3248, %v3265
        %v3267 = vsel %vm3253, %v3264, %v3266
        %v3268 = vshll.u32 %v3228, 8
        %v3269 = vmul.u32.u64.compose %v3268, %v3267
        %v3270 = vextract.low.u32 %v3269
        %v3271 = vextract.high.u32 %v3269
        %v3272 = vmul.u32.u64.compose %v3268, %v3263
        %v3273 = vextract.low.u32 %v3272
        %v3274 = vextract.high.u32 %v3272
        %v3275 = vmul.u32 %v3268, %v3259
        %v3276 = vadd.s32 %v3271, %v3273
        %vm3277 = vc.u32 %v3271, %v3273
        %v3278 = vadd.s32 %v3274, 1
        %v3279 = vsel %vm3277, %v3278, %v3274
        %v3280 = vadd.s32 %v3275, %v3279
        %v3281 = vadd.s32 %v3280, 536870912
        %v3282 = vshrl.u32 %v3281, 30
        %v3283 = vshll.u32 %v3282, 30
        %v3284 = vsub.s32 %v3280, %v3283
        %vm3285 = vcmp.lt.s32.totalorder %v3284, 0
        %v3286 = vsub.s32 0, %v3284
        %v3287 = vsel %vm3285, %v3286, %v3284
        %v3288 = vclz %v3287
        %v3289 = vsub.s32 %v3288, 2
        %vm3290 = vcmp.gt.s32.totalorder 0, %v3289
        %v3291 = vsel %vm3290, 0, %v3289
        %v3292 = vsub.s32 32, %v3291
        %v3293 = vshll.u32 %v3284, %v3291
        %v3294 = vshrl.u32 %v3276, %v3292
        %v3295 = vor.u32 %v3293, %v3294
        %v3296 = vsub.s32 4294967266, %v3291
        %v3297 = vadd.s32 %v3296, 127
        %v3298 = vshll.u32 %v3297, 23
        %v3299 = vor.u32 4788187, %v3298
        %v3300 = vand.u32 2147483647, %v3299
        %v3302 = vcvt.s32.f32 %v3295
        %v3303 = vmul.f32 %v3302, %v3300
        %v3304 = vxor.u32 %v3303, 2147483648
        %v3305 = vsel %vm3222, %v3304, %v3303
        %v3306 = vsub.s32 4, %v3282
        %v3307 = vsel %vm3222, %v3306, %v3282
        %v3308 = vsel %vm3221, %v810, %v3305
        %v3309 = vsel %vm3221, 0, %v3307
        %v3310 = vcosq.f32.pop %v3308
        %v3311 = vsinq.f32.pop %v3308
        %vm3312 = vweird.f32 %v810
        %v3313 = vand.u32 %v3309, 3
        %vm3314 = vcmp.lt.s32.totalorder %v3313, 2
        %vm3315 = vcmp.eq.s32.totalorder %v3313, 0
        %v3316 = vxor.u32 %v3311, 2147483648
        %v3317 = vsel %vm3315, %v3310, %v3316
        %vm3318 = vcmp.eq.s32.totalorder %v3313, 2
        %v3319 = vxor.u32 %v3310, 2147483648
        %v3320 = vsel %vm3318, %v3319, %v3311
        %v3321 = vsel %vm3314, %v3317, %v3320
        %v3322 = vsel %vm3312, nan, %v3321
        %v3323 = vand.u32 2147483647, %v811
        %vm3324 = vcmp.le.f32.partialorder %v3323, 0.7853982
        %vm3325 = vcmp.lt.s32.totalorder %v811, 0
        %v3326 = vand.u32 %v811, 2139095040
        %v3327 = vshrl.u32 %v3326, 23
        %v3328 = vsub.s32 %v3327, 127
        %v3329 = vand.u32 2147483647, %v811
        %v3330 = vand.u32 %v3329, 8388607
        %v3331 = vor.u32 %v3330, 8388608
        %v3332 = vsub.s32 0, %v3331
        %v3333 = vadd.s32 %v3328, 1
        %vm3334 = vcmp.gt.s32.totalorder %v3333, 0
        %v3335 = vsel %vm3334, %v3333, 0
        %v3336 = vshrl.u32 %v3335, 5
        %v3337 = vand.u32 %v3335, 31
        %v3338 = vsub.s32 32, %v3337
        %v3339 = vshrl.u32 683565275, %v3338
        %v3340 = vshll.u32 683565275, %v3337
        %v3341 = vshrl.u32 2475754826, %v3338
        %v3342 = vor.u32 %v3340, %v3341
        %v3343 = vshll.u32 2475754826, %v3337
        %v3344 = vshrl.u32 2131351028, %v3338
        %v3345 = vor.u32 %v3343, %v3344
        %v3346 = vshll.u32 2131351028, %v3337
        %v3347 = vshrl.u32 2102212464, %v3338
        %v3348 = vor.u32 %v3346, %v3347
        %v3349 = vshll.u32 2102212464, %v3337
        %v3350 = vshrl.u32 920167782, %v3338
        %v3351 = vor.u32 %v3349, %v3350
        %v3352 = vshll.u32 920167782, %v3337
        %v3353 = vshrl.u32 1326507024, %v3338
        %v3354 = vor.u32 %v3352, %v3353
        %vm3355 = vcmp.lt.s32.totalorder %v3336, 1
        %vm3356 = vcmp.lt.s32.totalorder %v3336, 2
        %vm3357 = vcmp.lt.s32.totalorder %v3336, 3
        %vm3358 = vcmp.lt.s32.totalorder %v3336, 4
        %v3359 = vsel %vm3355, %v3339, %v3342
        %v3360 = vsel %vm3358, %v3348, 2102212464
        %v3361 = vsel %vm3357, %v3345, %v3360
        %v3362 = vsel %vm3356, %v3359, %v3361
        %v3363 = vsel %vm3355, %v3342, %v3345
        %v3364 = vsel %vm3358, %v3351, 920167782
        %v3365 = vsel %vm3357, %v3348, %v3364
        %v3366 = vsel %vm3356, %v3363, %v3365
        %v3367 = vsel %vm3355, %v3345, %v3348
        %v3368 = vsel %vm3358, %v3354, 1326507024
        %v3369 = vsel %vm3357, %v3351, %v3368
        %v3370 = vsel %vm3356, %v3367, %v3369
        %v3371 = vshll.u32 %v3331, 8
        %v3372 = vmul.u32.u64.compose %v3371, %v3370
        %v3373 = vextract.low.u32 %v3372
        %v3374 = vextract.high.u32 %v3372
        %v3375 = vmul.u32.u64.compose %v3371, %v3366
        %v3376 = vextract.low.u32 %v3375
        %v3377 = vextract.high.u32 %v3375
        %v3378 = vmul.u32 %v3371, %v3362
        %v3379 = vadd.s32 %v3374, %v3376
        %vm3380 = vc.u32 %v3374, %v3376
        %v3381 = vadd.s32 %v3377, 1
        %v3382 = vsel %vm3380, %v3381, %v3377
        %v3383 = vadd.s32 %v3378, %v3382
        %v3384 = vadd.s32 %v3383, 536870912
        %v3385 = vshrl.u32 %v3384, 30
        %v3386 = vshll.u32 %v3385, 30
        %v3387 = vsub.s32 %v3383, %v3386
        %vm3388 = vcmp.lt.s32.totalorder %v3387, 0
        %v3389 = vsub.s32 0, %v3387
        %v3390 = vsel %vm3388, %v3389, %v3387
        %v3391 = vclz %v3390
        %v3392 = vsub.s32 %v3391, 2
        %vm3393 = vcmp.gt.s32.totalorder 0, %v3392
        %v3394 = vsel %vm3393, 0, %v3392
        %v3395 = vsub.s32 32, %v3394
        %v3396 = vshll.u32 %v3387, %v3394
        %v3397 = vshrl.u32 %v3379, %v3395
        %v3398 = vor.u32 %v3396, %v3397
        %v3399 = vsub.s32 4294967266, %v3394
        %v3400 = vadd.s32 %v3399, 127
        %v3401 = vshll.u32 %v3400, 23
        %v3402 = vor.u32 4788187, %v3401
        %v3403 = vand.u32 2147483647, %v3402
        %v3405 = vcvt.s32.f32 %v3398
        %v3406 = vmul.f32 %v3405, %v3403
        %v3407 = vxor.u32 %v3406, 2147483648
        %v3408 = vsel %vm3325, %v3407, %v3406
        %v3409 = vsub.s32 4, %v3385
        %v3410 = vsel %vm3325, %v3409, %v3385
        %v3411 = vsel %vm3324, %v811, %v3408
        %v3412 = vsel %vm3324, 0, %v3410
        %v3413 = vcosq.f32.pop %v3411
        %v3414 = vsinq.f32.pop %v3411
        %vm3415 = vweird.f32 %v811
        %v3416 = vand.u32 %v3412, 3
        %vm3417 = vcmp.lt.s32.totalorder %v3416, 2
        %vm3418 = vcmp.eq.s32.totalorder %v3416, 0
        %v3419 = vxor.u32 %v3414, 2147483648
        %v3420 = vsel %vm3418, %v3413, %v3419
        %vm3421 = vcmp.eq.s32.totalorder %v3416, 2
        %v3422 = vxor.u32 %v3413, 2147483648
        %v3423 = vsel %vm3421, %v3422, %v3414
        %v3424 = vsel %vm3417, %v3420, %v3423
        %v3425 = vsel %vm3415, nan, %v3424
        %v3426 = vand.u32 2147483647, %v812
        %vm3427 = vcmp.le.f32.partialorder %v3426, 0.7853982
        %vm3428 = vcmp.lt.s32.totalorder %v812, 0
        %v3429 = vand.u32 %v812, 2139095040
        %v3430 = vshrl.u32 %v3429, 23
        %v3431 = vsub.s32 %v3430, 127
        %v3432 = vand.u32 2147483647, %v812
        %v3433 = vand.u32 %v3432, 8388607
        %v3434 = vor.u32 %v3433, 8388608
        %v3435 = vsub.s32 0, %v3434
        %v3436 = vadd.s32 %v3431, 1
        %vm3437 = vcmp.gt.s32.totalorder %v3436, 0
        %v3438 = vsel %vm3437, %v3436, 0
        %v3439 = vshrl.u32 %v3438, 5
        %v3440 = vand.u32 %v3438, 31
        %v3441 = vsub.s32 32, %v3440
        %v3442 = vshrl.u32 683565275, %v3441
        %v3443 = vshll.u32 683565275, %v3440
        %v3444 = vshrl.u32 2475754826, %v3441
        %v3445 = vor.u32 %v3443, %v3444
        %v3446 = vshll.u32 2475754826, %v3440
        %v3447 = vshrl.u32 2131351028, %v3441
        %v3448 = vor.u32 %v3446, %v3447
        %v3449 = vshll.u32 2131351028, %v3440
        %v3450 = vshrl.u32 2102212464, %v3441
        %v3451 = vor.u32 %v3449, %v3450
        %v3452 = vshll.u32 2102212464, %v3440
        %v3453 = vshrl.u32 920167782, %v3441
        %v3454 = vor.u32 %v3452, %v3453
        %v3455 = vshll.u32 920167782, %v3440
        %v3456 = vshrl.u32 1326507024, %v3441
        %v3457 = vor.u32 %v3455, %v3456
        %vm3458 = vcmp.lt.s32.totalorder %v3439, 1
        %vm3459 = vcmp.lt.s32.totalorder %v3439, 2
        %vm3460 = vcmp.lt.s32.totalorder %v3439, 3
        %vm3461 = vcmp.lt.s32.totalorder %v3439, 4
        %v3462 = vsel %vm3458, %v3442, %v3445
        %v3463 = vsel %vm3461, %v3451, 2102212464
        %v3464 = vsel %vm3460, %v3448, %v3463
        %v3465 = vsel %vm3459, %v3462, %v3464
        %v3466 = vsel %vm3458, %v3445, %v3448
        %v3467 = vsel %vm3461, %v3454, 920167782
        %v3468 = vsel %vm3460, %v3451, %v3467
        %v3469 = vsel %vm3459, %v3466, %v3468
        %v3470 = vsel %vm3458, %v3448, %v3451
        %v3471 = vsel %vm3461, %v3457, 1326507024
        %v3472 = vsel %vm3460, %v3454, %v3471
        %v3473 = vsel %vm3459, %v3470, %v3472
        %v3474 = vshll.u32 %v3434, 8
        %v3475 = vmul.u32.u64.compose %v3474, %v3473
        %v3476 = vextract.low.u32 %v3475
        %v3477 = vextract.high.u32 %v3475
        %v3478 = vmul.u32.u64.compose %v3474, %v3469
        %v3479 = vextract.low.u32 %v3478
        %v3480 = vextract.high.u32 %v3478
        %v3481 = vmul.u32 %v3474, %v3465
        %v3482 = vadd.s32 %v3477, %v3479
        %vm3483 = vc.u32 %v3477, %v3479
        %v3484 = vadd.s32 %v3480, 1
        %v3485 = vsel %vm3483, %v3484, %v3480
        %v3486 = vadd.s32 %v3481, %v3485
        %v3487 = vadd.s32 %v3486, 536870912
        %v3488 = vshrl.u32 %v3487, 30
        %v3489 = vshll.u32 %v3488, 30
        %v3490 = vsub.s32 %v3486, %v3489
        %vm3491 = vcmp.lt.s32.totalorder %v3490, 0
        %v3492 = vsub.s32 0, %v3490
        %v3493 = vsel %vm3491, %v3492, %v3490
        %v3494 = vclz %v3493
        %v3495 = vsub.s32 %v3494, 2
        %vm3496 = vcmp.gt.s32.totalorder 0, %v3495
        %v3497 = vsel %vm3496, 0, %v3495
        %v3498 = vsub.s32 32, %v3497
        %v3499 = vshll.u32 %v3490, %v3497
        %v3500 = vshrl.u32 %v3482, %v3498
        %v3501 = vor.u32 %v3499, %v3500
        %v3502 = vsub.s32 4294967266, %v3497
        %v3503 = vadd.s32 %v3502, 127
        %v3504 = vshll.u32 %v3503, 23
        %v3505 = vor.u32 4788187, %v3504
        %v3506 = vand.u32 2147483647, %v3505
        %v3508 = vcvt.s32.f32 %v3501
        %v3509 = vmul.f32 %v3508, %v3506
        %v3510 = vxor.u32 %v3509, 2147483648
        %v3511 = vsel %vm3428, %v3510, %v3509
        %v3512 = vsub.s32 4, %v3488
        %v3513 = vsel %vm3428, %v3512, %v3488
        %v3514 = vsel %vm3427, %v812, %v3511
        %v3515 = vsel %vm3427, 0, %v3513
        %v3516 = vcosq.f32.pop %v3514
        %v3517 = vsinq.f32.pop %v3514
        %vm3518 = vweird.f32 %v812
        %v3519 = vand.u32 %v3515, 3
        %vm3520 = vcmp.lt.s32.totalorder %v3519, 2
        %vm3521 = vcmp.eq.s32.totalorder %v3519, 0
        %v3522 = vxor.u32 %v3517, 2147483648
        %v3523 = vsel %vm3521, %v3516, %v3522
        %vm3524 = vcmp.eq.s32.totalorder %v3519, 2
        %v3525 = vxor.u32 %v3516, 2147483648
        %v3526 = vsel %vm3524, %v3525, %v3517
        %v3527 = vsel %vm3520, %v3523, %v3526
        %v3528 = vsel %vm3518, nan, %v3527
        %v3529 = vand.u32 2147483647, %v813
        %vm3530 = vcmp.le.f32.partialorder %v3529, 0.7853982
        %vm3531 = vcmp.lt.s32.totalorder %v813, 0
        %v3532 = vand.u32 %v813, 2139095040
        %v3533 = vshrl.u32 %v3532, 23
        %v3534 = vsub.s32 %v3533, 127
        %v3535 = vand.u32 2147483647, %v813
        %v3536 = vand.u32 %v3535, 8388607
        %v3537 = vor.u32 %v3536, 8388608
        %v3538 = vsub.s32 0, %v3537
        %v3539 = vadd.s32 %v3534, 1
        %vm3540 = vcmp.gt.s32.totalorder %v3539, 0
        %v3541 = vsel %vm3540, %v3539, 0
        %v3542 = vshrl.u32 %v3541, 5
        %v3543 = vand.u32 %v3541, 31
        %v3544 = vsub.s32 32, %v3543
        %v3545 = vshrl.u32 683565275, %v3544
        %v3546 = vshll.u32 683565275, %v3543
        %v3547 = vshrl.u32 2475754826, %v3544
        %v3548 = vor.u32 %v3546, %v3547
        %v3549 = vshll.u32 2475754826, %v3543
        %v3550 = vshrl.u32 2131351028, %v3544
        %v3551 = vor.u32 %v3549, %v3550
        %v3552 = vshll.u32 2131351028, %v3543
        %v3553 = vshrl.u32 2102212464, %v3544
        %v3554 = vor.u32 %v3552, %v3553
        %v3555 = vshll.u32 2102212464, %v3543
        %v3556 = vshrl.u32 920167782, %v3544
        %v3557 = vor.u32 %v3555, %v3556
        %v3558 = vshll.u32 920167782, %v3543
        %v3559 = vshrl.u32 1326507024, %v3544
        %v3560 = vor.u32 %v3558, %v3559
        %vm3561 = vcmp.lt.s32.totalorder %v3542, 1
        %vm3562 = vcmp.lt.s32.totalorder %v3542, 2
        %vm3563 = vcmp.lt.s32.totalorder %v3542, 3
        %vm3564 = vcmp.lt.s32.totalorder %v3542, 4
        %v3565 = vsel %vm3561, %v3545, %v3548
        %v3566 = vsel %vm3564, %v3554, 2102212464
        %v3567 = vsel %vm3563, %v3551, %v3566
        %v3568 = vsel %vm3562, %v3565, %v3567
        %v3569 = vsel %vm3561, %v3548, %v3551
        %v3570 = vsel %vm3564, %v3557, 920167782
        %v3571 = vsel %vm3563, %v3554, %v3570
        %v3572 = vsel %vm3562, %v3569, %v3571
        %v3573 = vsel %vm3561, %v3551, %v3554
        %v3574 = vsel %vm3564, %v3560, 1326507024
        %v3575 = vsel %vm3563, %v3557, %v3574
        %v3576 = vsel %vm3562, %v3573, %v3575
        %v3577 = vshll.u32 %v3537, 8
        %v3578 = vmul.u32.u64.compose %v3577, %v3576
        %v3579 = vextract.low.u32 %v3578
        %v3580 = vextract.high.u32 %v3578
        %v3581 = vmul.u32.u64.compose %v3577, %v3572
        %v3582 = vextract.low.u32 %v3581
        %v3583 = vextract.high.u32 %v3581
        %v3584 = vmul.u32 %v3577, %v3568
        %v3585 = vadd.s32 %v3580, %v3582
        %vm3586 = vc.u32 %v3580, %v3582
        %v3587 = vadd.s32 %v3583, 1
        %v3588 = vsel %vm3586, %v3587, %v3583
        %v3589 = vadd.s32 %v3584, %v3588
        %v3590 = vadd.s32 %v3589, 536870912
        %v3591 = vshrl.u32 %v3590, 30
        %v3592 = vshll.u32 %v3591, 30
        %v3593 = vsub.s32 %v3589, %v3592
        %vm3594 = vcmp.lt.s32.totalorder %v3593, 0
        %v3595 = vsub.s32 0, %v3593
        %v3596 = vsel %vm3594, %v3595, %v3593
        %v3597 = vclz %v3596
        %v3598 = vsub.s32 %v3597, 2
        %vm3599 = vcmp.gt.s32.totalorder 0, %v3598
        %v3600 = vsel %vm3599, 0, %v3598
        %v3601 = vsub.s32 32, %v3600
        %v3602 = vshll.u32 %v3593, %v3600
        %v3603 = vshrl.u32 %v3585, %v3601
        %v3604 = vor.u32 %v3602, %v3603
        %v3605 = vsub.s32 4294967266, %v3600
        %v3606 = vadd.s32 %v3605, 127
        %v3607 = vshll.u32 %v3606, 23
        %v3608 = vor.u32 4788187, %v3607
        %v3609 = vand.u32 2147483647, %v3608
        %v3611 = vcvt.s32.f32 %v3604
        %v3612 = vmul.f32 %v3611, %v3609
        %v3613 = vxor.u32 %v3612, 2147483648
        %v3614 = vsel %vm3531, %v3613, %v3612
        %v3615 = vsub.s32 4, %v3591
        %v3616 = vsel %vm3531, %v3615, %v3591
        %v3617 = vsel %vm3530, %v813, %v3614
        %v3618 = vsel %vm3530, 0, %v3616
        %v3619 = vcosq.f32.pop %v3617
        %v3620 = vsinq.f32.pop %v3617
        %vm3621 = vweird.f32 %v813
        %v3622 = vand.u32 %v3618, 3
        %vm3623 = vcmp.lt.s32.totalorder %v3622, 2
        %vm3624 = vcmp.eq.s32.totalorder %v3622, 0
        %v3625 = vxor.u32 %v3620, 2147483648
        %v3626 = vsel %vm3624, %v3619, %v3625
        %vm3627 = vcmp.eq.s32.totalorder %v3622, 2
        %v3628 = vxor.u32 %v3619, 2147483648
        %v3629 = vsel %vm3627, %v3628, %v3620
        %v3630 = vsel %vm3623, %v3626, %v3629
        %v3631 = vsel %vm3621, nan, %v3630
        %v3632 = vand.u32 2147483647, %v814
        %vm3633 = vcmp.le.f32.partialorder %v3632, 0.7853982
        %vm3634 = vcmp.lt.s32.totalorder %v814, 0
        %v3635 = vand.u32 %v814, 2139095040
        %v3636 = vshrl.u32 %v3635, 23
        %v3637 = vsub.s32 %v3636, 127
        %v3638 = vand.u32 2147483647, %v814
        %v3639 = vand.u32 %v3638, 8388607
        %v3640 = vor.u32 %v3639, 8388608
        %v3641 = vsub.s32 0, %v3640
        %v3642 = vadd.s32 %v3637, 1
        %vm3643 = vcmp.gt.s32.totalorder %v3642, 0
        %v3644 = vsel %vm3643, %v3642, 0
        %v3645 = vshrl.u32 %v3644, 5
        %v3646 = vand.u32 %v3644, 31
        %v3647 = vsub.s32 32, %v3646
        %v3648 = vshrl.u32 683565275, %v3647
        %v3649 = vshll.u32 683565275, %v3646
        %v3650 = vshrl.u32 2475754826, %v3647
        %v3651 = vor.u32 %v3649, %v3650
        %v3652 = vshll.u32 2475754826, %v3646
        %v3653 = vshrl.u32 2131351028, %v3647
        %v3654 = vor.u32 %v3652, %v3653
        %v3655 = vshll.u32 2131351028, %v3646
        %v3656 = vshrl.u32 2102212464, %v3647
        %v3657 = vor.u32 %v3655, %v3656
        %v3658 = vshll.u32 2102212464, %v3646
        %v3659 = vshrl.u32 920167782, %v3647
        %v3660 = vor.u32 %v3658, %v3659
        %v3661 = vshll.u32 920167782, %v3646
        %v3662 = vshrl.u32 1326507024, %v3647
        %v3663 = vor.u32 %v3661, %v3662
        %vm3664 = vcmp.lt.s32.totalorder %v3645, 1
        %vm3665 = vcmp.lt.s32.totalorder %v3645, 2
        %vm3666 = vcmp.lt.s32.totalorder %v3645, 3
        %vm3667 = vcmp.lt.s32.totalorder %v3645, 4
        %v3668 = vsel %vm3664, %v3648, %v3651
        %v3669 = vsel %vm3667, %v3657, 2102212464
        %v3670 = vsel %vm3666, %v3654, %v3669
        %v3671 = vsel %vm3665, %v3668, %v3670
        %v3672 = vsel %vm3664, %v3651, %v3654
        %v3673 = vsel %vm3667, %v3660, 920167782
        %v3674 = vsel %vm3666, %v3657, %v3673
        %v3675 = vsel %vm3665, %v3672, %v3674
        %v3676 = vsel %vm3664, %v3654, %v3657
        %v3677 = vsel %vm3667, %v3663, 1326507024
        %v3678 = vsel %vm3666, %v3660, %v3677
        %v3679 = vsel %vm3665, %v3676, %v3678
        %v3680 = vshll.u32 %v3640, 8
        %v3681 = vmul.u32.u64.compose %v3680, %v3679
        %v3682 = vextract.low.u32 %v3681
        %v3683 = vextract.high.u32 %v3681
        %v3684 = vmul.u32.u64.compose %v3680, %v3675
        %v3685 = vextract.low.u32 %v3684
        %v3686 = vextract.high.u32 %v3684
        %v3687 = vmul.u32 %v3680, %v3671
        %v3688 = vadd.s32 %v3683, %v3685
        %vm3689 = vc.u32 %v3683, %v3685
        %v3690 = vadd.s32 %v3686, 1
        %v3691 = vsel %vm3689, %v3690, %v3686
        %v3692 = vadd.s32 %v3687, %v3691
        %v3693 = vadd.s32 %v3692, 536870912
        %v3694 = vshrl.u32 %v3693, 30
        %v3695 = vshll.u32 %v3694, 30
        %v3696 = vsub.s32 %v3692, %v3695
        %vm3697 = vcmp.lt.s32.totalorder %v3696, 0
        %v3698 = vsub.s32 0, %v3696
        %v3699 = vsel %vm3697, %v3698, %v3696
        %v3700 = vclz %v3699
        %v3701 = vsub.s32 %v3700, 2
        %vm3702 = vcmp.gt.s32.totalorder 0, %v3701
        %v3703 = vsel %vm3702, 0, %v3701
        %v3704 = vsub.s32 32, %v3703
        %v3705 = vshll.u32 %v3696, %v3703
        %v3706 = vshrl.u32 %v3688, %v3704
        %v3707 = vor.u32 %v3705, %v3706
        %v3708 = vsub.s32 4294967266, %v3703
        %v3709 = vadd.s32 %v3708, 127
        %v3710 = vshll.u32 %v3709, 23
        %v3711 = vor.u32 4788187, %v3710
        %v3712 = vand.u32 2147483647, %v3711
        %v3714 = vcvt.s32.f32 %v3707
        %v3715 = vmul.f32 %v3714, %v3712
        %v3716 = vxor.u32 %v3715, 2147483648
        %v3717 = vsel %vm3634, %v3716, %v3715
        %v3718 = vsub.s32 4, %v3694
        %v3719 = vsel %vm3634, %v3718, %v3694
        %v3720 = vsel %vm3633, %v814, %v3717
        %v3721 = vsel %vm3633, 0, %v3719
        %v3722 = vcosq.f32.pop %v3720
        %v3723 = vsinq.f32.pop %v3720
        %vm3724 = vweird.f32 %v814
        %v3725 = vand.u32 %v3721, 3
        %vm3726 = vcmp.lt.s32.totalorder %v3725, 2
        %vm3727 = vcmp.eq.s32.totalorder %v3725, 0
        %v3728 = vxor.u32 %v3723, 2147483648
        %v3729 = vsel %vm3727, %v3722, %v3728
        %vm3730 = vcmp.eq.s32.totalorder %v3725, 2
        %v3731 = vxor.u32 %v3722, 2147483648
        %v3732 = vsel %vm3730, %v3731, %v3723
        %v3733 = vsel %vm3726, %v3729, %v3732
        %v3734 = vsel %vm3724, nan, %v3733
        %v3735 = vand.u32 2147483647, %v815
        %vm3736 = vcmp.le.f32.partialorder %v3735, 0.7853982
        %vm3737 = vcmp.lt.s32.totalorder %v815, 0
        %v3738 = vand.u32 %v815, 2139095040
        %v3739 = vshrl.u32 %v3738, 23
        %v3740 = vsub.s32 %v3739, 127
        %v3741 = vand.u32 2147483647, %v815
        %v3742 = vand.u32 %v3741, 8388607
        %v3743 = vor.u32 %v3742, 8388608
        %v3744 = vsub.s32 0, %v3743
        %v3745 = vadd.s32 %v3740, 1
        %vm3746 = vcmp.gt.s32.totalorder %v3745, 0
        %v3747 = vsel %vm3746, %v3745, 0
        %v3748 = vshrl.u32 %v3747, 5
        %v3749 = vand.u32 %v3747, 31
        %v3750 = vsub.s32 32, %v3749
        %v3751 = vshrl.u32 683565275, %v3750
        %v3752 = vshll.u32 683565275, %v3749
        %v3753 = vshrl.u32 2475754826, %v3750
        %v3754 = vor.u32 %v3752, %v3753
        %v3755 = vshll.u32 2475754826, %v3749
        %v3756 = vshrl.u32 2131351028, %v3750
        %v3757 = vor.u32 %v3755, %v3756
        %v3758 = vshll.u32 2131351028, %v3749
        %v3759 = vshrl.u32 2102212464, %v3750
        %v3760 = vor.u32 %v3758, %v3759
        %v3761 = vshll.u32 2102212464, %v3749
        %v3762 = vshrl.u32 920167782, %v3750
        %v3763 = vor.u32 %v3761, %v3762
        %v3764 = vshll.u32 920167782, %v3749
        %v3765 = vshrl.u32 1326507024, %v3750
        %v3766 = vor.u32 %v3764, %v3765
        %vm3767 = vcmp.lt.s32.totalorder %v3748, 1
        %vm3768 = vcmp.lt.s32.totalorder %v3748, 2
        %vm3769 = vcmp.lt.s32.totalorder %v3748, 3
        %vm3770 = vcmp.lt.s32.totalorder %v3748, 4
        %v3771 = vsel %vm3767, %v3751, %v3754
        %v3772 = vsel %vm3770, %v3760, 2102212464
        %v3773 = vsel %vm3769, %v3757, %v3772
        %v3774 = vsel %vm3768, %v3771, %v3773
        %v3775 = vsel %vm3767, %v3754, %v3757
        %v3776 = vsel %vm3770, %v3763, 920167782
        %v3777 = vsel %vm3769, %v3760, %v3776
        %v3778 = vsel %vm3768, %v3775, %v3777
        %v3779 = vsel %vm3767, %v3757, %v3760
        %v3780 = vsel %vm3770, %v3766, 1326507024
        %v3781 = vsel %vm3769, %v3763, %v3780
        %v3782 = vsel %vm3768, %v3779, %v3781
        %v3783 = vshll.u32 %v3743, 8
        %v3784 = vmul.u32.u64.compose %v3783, %v3782
        %v3785 = vextract.low.u32 %v3784
        %v3786 = vextract.high.u32 %v3784
        %v3787 = vmul.u32.u64.compose %v3783, %v3778
        %v3788 = vextract.low.u32 %v3787
        %v3789 = vextract.high.u32 %v3787
        %v3790 = vmul.u32 %v3783, %v3774
        %v3791 = vadd.s32 %v3786, %v3788
        %vm3792 = vc.u32 %v3786, %v3788
        %v3793 = vadd.s32 %v3789, 1
        %v3794 = vsel %vm3792, %v3793, %v3789
        %v3795 = vadd.s32 %v3790, %v3794
        %v3796 = vadd.s32 %v3795, 536870912
        %v3797 = vshrl.u32 %v3796, 30
        %v3798 = vshll.u32 %v3797, 30
        %v3799 = vsub.s32 %v3795, %v3798
        %vm3800 = vcmp.lt.s32.totalorder %v3799, 0
        %v3801 = vsub.s32 0, %v3799
        %v3802 = vsel %vm3800, %v3801, %v3799
        %v3803 = vclz %v3802
        %v3804 = vsub.s32 %v3803, 2
        %vm3805 = vcmp.gt.s32.totalorder 0, %v3804
        %v3806 = vsel %vm3805, 0, %v3804
        %v3807 = vsub.s32 32, %v3806
        %v3808 = vshll.u32 %v3799, %v3806
        %v3809 = vshrl.u32 %v3791, %v3807
        %v3810 = vor.u32 %v3808, %v3809
        %v3811 = vsub.s32 4294967266, %v3806
        %v3812 = vadd.s32 %v3811, 127
        %v3813 = vshll.u32 %v3812, 23
        %v3814 = vor.u32 4788187, %v3813
        %v3815 = vand.u32 2147483647, %v3814
        %v3817 = vcvt.s32.f32 %v3810
        %v3818 = vmul.f32 %v3817, %v3815
        %v3819 = vxor.u32 %v3818, 2147483648
        %v3820 = vsel %vm3737, %v3819, %v3818
        %v3821 = vsub.s32 4, %v3797
        %v3822 = vsel %vm3737, %v3821, %v3797
        %v3823 = vsel %vm3736, %v815, %v3820
        %v3824 = vsel %vm3736, 0, %v3822
        %v3825 = vcosq.f32.pop %v3823
        %v3826 = vsinq.f32.pop %v3823
        %vm3827 = vweird.f32 %v815
        %v3828 = vand.u32 %v3824, 3
        %vm3829 = vcmp.lt.s32.totalorder %v3828, 2
        %vm3830 = vcmp.eq.s32.totalorder %v3828, 0
        %v3831 = vxor.u32 %v3826, 2147483648
        %v3832 = vsel %vm3830, %v3825, %v3831
        %vm3833 = vcmp.eq.s32.totalorder %v3828, 2
        %v3834 = vxor.u32 %v3825, 2147483648
        %v3835 = vsel %vm3833, %v3834, %v3826
        %v3836 = vsel %vm3829, %v3832, %v3835
        %v3837 = vsel %vm3827, nan, %v3836
        %v3838 = vand.u32 2147483647, %v816
        %vm3839 = vcmp.le.f32.partialorder %v3838, 0.7853982
        %vm3840 = vcmp.lt.s32.totalorder %v816, 0
        %v3841 = vand.u32 %v816, 2139095040
        %v3842 = vshrl.u32 %v3841, 23
        %v3843 = vsub.s32 %v3842, 127
        %v3844 = vand.u32 2147483647, %v816
        %v3845 = vand.u32 %v3844, 8388607
        %v3846 = vor.u32 %v3845, 8388608
        %v3847 = vsub.s32 0, %v3846
        %v3848 = vadd.s32 %v3843, 1
        %vm3849 = vcmp.gt.s32.totalorder %v3848, 0
        %v3850 = vsel %vm3849, %v3848, 0
        %v3851 = vshrl.u32 %v3850, 5
        %v3852 = vand.u32 %v3850, 31
        %v3853 = vsub.s32 32, %v3852
        %v3854 = vshrl.u32 683565275, %v3853
        %v3855 = vshll.u32 683565275, %v3852
        %v3856 = vshrl.u32 2475754826, %v3853
        %v3857 = vor.u32 %v3855, %v3856
        %v3858 = vshll.u32 2475754826, %v3852
        %v3859 = vshrl.u32 2131351028, %v3853
        %v3860 = vor.u32 %v3858, %v3859
        %v3861 = vshll.u32 2131351028, %v3852
        %v3862 = vshrl.u32 2102212464, %v3853
        %v3863 = vor.u32 %v3861, %v3862
        %v3864 = vshll.u32 2102212464, %v3852
        %v3865 = vshrl.u32 920167782, %v3853
        %v3866 = vor.u32 %v3864, %v3865
        %v3867 = vshll.u32 920167782, %v3852
        %v3868 = vshrl.u32 1326507024, %v3853
        %v3869 = vor.u32 %v3867, %v3868
        %vm3870 = vcmp.lt.s32.totalorder %v3851, 1
        %vm3871 = vcmp.lt.s32.totalorder %v3851, 2
        %vm3872 = vcmp.lt.s32.totalorder %v3851, 3
        %vm3873 = vcmp.lt.s32.totalorder %v3851, 4
        %v3874 = vsel %vm3870, %v3854, %v3857
        %v3875 = vsel %vm3873, %v3863, 2102212464
        %v3876 = vsel %vm3872, %v3860, %v3875
        %v3877 = vsel %vm3871, %v3874, %v3876
        %v3878 = vsel %vm3870, %v3857, %v3860
        %v3879 = vsel %vm3873, %v3866, 920167782
        %v3880 = vsel %vm3872, %v3863, %v3879
        %v3881 = vsel %vm3871, %v3878, %v3880
        %v3882 = vsel %vm3870, %v3860, %v3863
        %v3883 = vsel %vm3873, %v3869, 1326507024
        %v3884 = vsel %vm3872, %v3866, %v3883
        %v3885 = vsel %vm3871, %v3882, %v3884
        %v3886 = vshll.u32 %v3846, 8
        %v3887 = vmul.u32.u64.compose %v3886, %v3885
        %v3888 = vextract.low.u32 %v3887
        %v3889 = vextract.high.u32 %v3887
        %v3890 = vmul.u32.u64.compose %v3886, %v3881
        %v3891 = vextract.low.u32 %v3890
        %v3892 = vextract.high.u32 %v3890
        %v3893 = vmul.u32 %v3886, %v3877
        %v3894 = vadd.s32 %v3889, %v3891
        %vm3895 = vc.u32 %v3889, %v3891
        %v3896 = vadd.s32 %v3892, 1
        %v3897 = vsel %vm3895, %v3896, %v3892
        %v3898 = vadd.s32 %v3893, %v3897
        %v3899 = vadd.s32 %v3898, 536870912
        %v3900 = vshrl.u32 %v3899, 30
        %v3901 = vshll.u32 %v3900, 30
        %v3902 = vsub.s32 %v3898, %v3901
        %vm3903 = vcmp.lt.s32.totalorder %v3902, 0
        %v3904 = vsub.s32 0, %v3902
        %v3905 = vsel %vm3903, %v3904, %v3902
        %v3906 = vclz %v3905
        %v3907 = vsub.s32 %v3906, 2
        %vm3908 = vcmp.gt.s32.totalorder 0, %v3907
        %v3909 = vsel %vm3908, 0, %v3907
        %v3910 = vsub.s32 32, %v3909
        %v3911 = vshll.u32 %v3902, %v3909
        %v3912 = vshrl.u32 %v3894, %v3910
        %v3913 = vor.u32 %v3911, %v3912
        %v3914 = vsub.s32 4294967266, %v3909
        %v3915 = vadd.s32 %v3914, 127
        %v3916 = vshll.u32 %v3915, 23
        %v3917 = vor.u32 4788187, %v3916
        %v3918 = vand.u32 2147483647, %v3917
        %v3920 = vcvt.s32.f32 %v3913
        %v3921 = vmul.f32 %v3920, %v3918
        %v3922 = vxor.u32 %v3921, 2147483648
        %v3923 = vsel %vm3840, %v3922, %v3921
        %v3924 = vsub.s32 4, %v3900
        %v3925 = vsel %vm3840, %v3924, %v3900
        %v3926 = vsel %vm3839, %v816, %v3923
        %v3927 = vsel %vm3839, 0, %v3925
        %v3928 = vcosq.f32.pop %v3926
        %v3929 = vsinq.f32.pop %v3926
        %vm3930 = vweird.f32 %v816
        %v3931 = vand.u32 %v3927, 3
        %vm3932 = vcmp.lt.s32.totalorder %v3931, 2
        %vm3933 = vcmp.eq.s32.totalorder %v3931, 0
        %v3934 = vxor.u32 %v3929, 2147483648
        %v3935 = vsel %vm3933, %v3928, %v3934
        %vm3936 = vcmp.eq.s32.totalorder %v3931, 2
        %v3937 = vxor.u32 %v3928, 2147483648
        %v3938 = vsel %vm3936, %v3937, %v3929
        %v3939 = vsel %vm3932, %v3935, %v3938
        %v3940 = vsel %vm3930, nan, %v3939
        %v3941 = vand.u32 2147483647, %v817
        %vm3942 = vcmp.le.f32.partialorder %v3941, 0.7853982
        %vm3943 = vcmp.lt.s32.totalorder %v817, 0
        %v3944 = vand.u32 %v817, 2139095040
        %v3945 = vshrl.u32 %v3944, 23
        %v3946 = vsub.s32 %v3945, 127
        %v3947 = vand.u32 2147483647, %v817
        %v3948 = vand.u32 %v3947, 8388607
        %v3949 = vor.u32 %v3948, 8388608
        %v3950 = vsub.s32 0, %v3949
        %v3951 = vadd.s32 %v3946, 1
        %vm3952 = vcmp.gt.s32.totalorder %v3951, 0
        %v3953 = vsel %vm3952, %v3951, 0
        %v3954 = vshrl.u32 %v3953, 5
        %v3955 = vand.u32 %v3953, 31
        %v3956 = vsub.s32 32, %v3955
        %v3957 = vshrl.u32 683565275, %v3956
        %v3958 = vshll.u32 683565275, %v3955
        %v3959 = vshrl.u32 2475754826, %v3956
        %v3960 = vor.u32 %v3958, %v3959
        %v3961 = vshll.u32 2475754826, %v3955
        %v3962 = vshrl.u32 2131351028, %v3956
        %v3963 = vor.u32 %v3961, %v3962
        %v3964 = vshll.u32 2131351028, %v3955
        %v3965 = vshrl.u32 2102212464, %v3956
        %v3966 = vor.u32 %v3964, %v3965
        %v3967 = vshll.u32 2102212464, %v3955
        %v3968 = vshrl.u32 920167782, %v3956
        %v3969 = vor.u32 %v3967, %v3968
        %v3970 = vshll.u32 920167782, %v3955
        %v3971 = vshrl.u32 1326507024, %v3956
        %v3972 = vor.u32 %v3970, %v3971
        %vm3973 = vcmp.lt.s32.totalorder %v3954, 1
        %vm3974 = vcmp.lt.s32.totalorder %v3954, 2
        %vm3975 = vcmp.lt.s32.totalorder %v3954, 3
        %vm3976 = vcmp.lt.s32.totalorder %v3954, 4
        %v3977 = vsel %vm3973, %v3957, %v3960
        %v3978 = vsel %vm3976, %v3966, 2102212464
        %v3979 = vsel %vm3975, %v3963, %v3978
        %v3980 = vsel %vm3974, %v3977, %v3979
        %v3981 = vsel %vm3973, %v3960, %v3963
        %v3982 = vsel %vm3976, %v3969, 920167782
        %v3983 = vsel %vm3975, %v3966, %v3982
        %v3984 = vsel %vm3974, %v3981, %v3983
        %v3985 = vsel %vm3973, %v3963, %v3966
        %v3986 = vsel %vm3976, %v3972, 1326507024
        %v3987 = vsel %vm3975, %v3969, %v3986
        %v3988 = vsel %vm3974, %v3985, %v3987
        %v3989 = vshll.u32 %v3949, 8
        %v3990 = vmul.u32.u64.compose %v3989, %v3988
        %v3991 = vextract.low.u32 %v3990
        %v3992 = vextract.high.u32 %v3990
        %v3993 = vmul.u32.u64.compose %v3989, %v3984
        %v3994 = vextract.low.u32 %v3993
        %v3995 = vextract.high.u32 %v3993
        %v3996 = vmul.u32 %v3989, %v3980
        %v3997 = vadd.s32 %v3992, %v3994
        %vm3998 = vc.u32 %v3992, %v3994
        %v3999 = vadd.s32 %v3995, 1
        %v4000 = vsel %vm3998, %v3999, %v3995
        %v4001 = vadd.s32 %v3996, %v4000
        %v4002 = vadd.s32 %v4001, 536870912
        %v4003 = vshrl.u32 %v4002, 30
        %v4004 = vshll.u32 %v4003, 30
        %v4005 = vsub.s32 %v4001, %v4004
        %vm4006 = vcmp.lt.s32.totalorder %v4005, 0
        %v4007 = vsub.s32 0, %v4005
        %v4008 = vsel %vm4006, %v4007, %v4005
        %v4009 = vclz %v4008
        %v4010 = vsub.s32 %v4009, 2
        %vm4011 = vcmp.gt.s32.totalorder 0, %v4010
        %v4012 = vsel %vm4011, 0, %v4010
        %v4013 = vsub.s32 32, %v4012
        %v4014 = vshll.u32 %v4005, %v4012
        %v4015 = vshrl.u32 %v3997, %v4013
        %v4016 = vor.u32 %v4014, %v4015
        %v4017 = vsub.s32 4294967266, %v4012
        %v4018 = vadd.s32 %v4017, 127
        %v4019 = vshll.u32 %v4018, 23
        %v4020 = vor.u32 4788187, %v4019
        %v4021 = vand.u32 2147483647, %v4020
        %v4023 = vcvt.s32.f32 %v4016
        %v4024 = vmul.f32 %v4023, %v4021
        %v4025 = vxor.u32 %v4024, 2147483648
        %v4026 = vsel %vm3943, %v4025, %v4024
        %v4027 = vsub.s32 4, %v4003
        %v4028 = vsel %vm3943, %v4027, %v4003
        %v4029 = vsel %vm3942, %v817, %v4026
        %v4030 = vsel %vm3942, 0, %v4028
        %v4031 = vcosq.f32.pop %v4029
        %v4032 = vsinq.f32.pop %v4029
        %vm4033 = vweird.f32 %v817
        %v4034 = vand.u32 %v4030, 3
        %vm4035 = vcmp.lt.s32.totalorder %v4034, 2
        %vm4036 = vcmp.eq.s32.totalorder %v4034, 0
        %v4037 = vxor.u32 %v4032, 2147483648
        %v4038 = vsel %vm4036, %v4031, %v4037
        %vm4039 = vcmp.eq.s32.totalorder %v4034, 2
        %v4040 = vxor.u32 %v4031, 2147483648
        %v4041 = vsel %vm4039, %v4040, %v4032
        %v4042 = vsel %vm4035, %v4038, %v4041
        %v4043 = vsel %vm4033, nan, %v4042
        %v4044 = vand.u32 2147483647, %v818
        %vm4045 = vcmp.le.f32.partialorder %v4044, 0.7853982
        %vm4046 = vcmp.lt.s32.totalorder %v818, 0
        %v4047 = vand.u32 %v818, 2139095040
        %v4048 = vshrl.u32 %v4047, 23
        %v4049 = vsub.s32 %v4048, 127
        %v4050 = vand.u32 2147483647, %v818
        %v4051 = vand.u32 %v4050, 8388607
        %v4052 = vor.u32 %v4051, 8388608
        %v4053 = vsub.s32 0, %v4052
        %v4054 = vadd.s32 %v4049, 1
        %vm4055 = vcmp.gt.s32.totalorder %v4054, 0
        %v4056 = vsel %vm4055, %v4054, 0
        %v4057 = vshrl.u32 %v4056, 5
        %v4058 = vand.u32 %v4056, 31
        %v4059 = vsub.s32 32, %v4058
        %v4060 = vshrl.u32 683565275, %v4059
        %v4061 = vshll.u32 683565275, %v4058
        %v4062 = vshrl.u32 2475754826, %v4059
        %v4063 = vor.u32 %v4061, %v4062
        %v4064 = vshll.u32 2475754826, %v4058
        %v4065 = vshrl.u32 2131351028, %v4059
        %v4066 = vor.u32 %v4064, %v4065
        %v4067 = vshll.u32 2131351028, %v4058
        %v4068 = vshrl.u32 2102212464, %v4059
        %v4069 = vor.u32 %v4067, %v4068
        %v4070 = vshll.u32 2102212464, %v4058
        %v4071 = vshrl.u32 920167782, %v4059
        %v4072 = vor.u32 %v4070, %v4071
        %v4073 = vshll.u32 920167782, %v4058
        %v4074 = vshrl.u32 1326507024, %v4059
        %v4075 = vor.u32 %v4073, %v4074
        %vm4076 = vcmp.lt.s32.totalorder %v4057, 1
        %vm4077 = vcmp.lt.s32.totalorder %v4057, 2
        %vm4078 = vcmp.lt.s32.totalorder %v4057, 3
        %vm4079 = vcmp.lt.s32.totalorder %v4057, 4
        %v4080 = vsel %vm4076, %v4060, %v4063
        %v4081 = vsel %vm4079, %v4069, 2102212464
        %v4082 = vsel %vm4078, %v4066, %v4081
        %v4083 = vsel %vm4077, %v4080, %v4082
        %v4084 = vsel %vm4076, %v4063, %v4066
        %v4085 = vsel %vm4079, %v4072, 920167782
        %v4086 = vsel %vm4078, %v4069, %v4085
        %v4087 = vsel %vm4077, %v4084, %v4086
        %v4088 = vsel %vm4076, %v4066, %v4069
        %v4089 = vsel %vm4079, %v4075, 1326507024
        %v4090 = vsel %vm4078, %v4072, %v4089
        %v4091 = vsel %vm4077, %v4088, %v4090
        %v4092 = vshll.u32 %v4052, 8
        %v4093 = vmul.u32.u64.compose %v4092, %v4091
        %v4094 = vextract.low.u32 %v4093
        %v4095 = vextract.high.u32 %v4093
        %v4096 = vmul.u32.u64.compose %v4092, %v4087
        %v4097 = vextract.low.u32 %v4096
        %v4098 = vextract.high.u32 %v4096
        %v4099 = vmul.u32 %v4092, %v4083
        %v4100 = vadd.s32 %v4095, %v4097
        %vm4101 = vc.u32 %v4095, %v4097
        %v4102 = vadd.s32 %v4098, 1
        %v4103 = vsel %vm4101, %v4102, %v4098
        %v4104 = vadd.s32 %v4099, %v4103
        %v4105 = vadd.s32 %v4104, 536870912
        %v4106 = vshrl.u32 %v4105, 30
        %v4107 = vshll.u32 %v4106, 30
        %v4108 = vsub.s32 %v4104, %v4107
        %vm4109 = vcmp.lt.s32.totalorder %v4108, 0
        %v4110 = vsub.s32 0, %v4108
        %v4111 = vsel %vm4109, %v4110, %v4108
        %v4112 = vclz %v4111
        %v4113 = vsub.s32 %v4112, 2
        %vm4114 = vcmp.gt.s32.totalorder 0, %v4113
        %v4115 = vsel %vm4114, 0, %v4113
        %v4116 = vsub.s32 32, %v4115
        %v4117 = vshll.u32 %v4108, %v4115
        %v4118 = vshrl.u32 %v4100, %v4116
        %v4119 = vor.u32 %v4117, %v4118
        %v4120 = vsub.s32 4294967266, %v4115
        %v4121 = vadd.s32 %v4120, 127
        %v4122 = vshll.u32 %v4121, 23
        %v4123 = vor.u32 4788187, %v4122
        %v4124 = vand.u32 2147483647, %v4123
        %v4126 = vcvt.s32.f32 %v4119
        %v4127 = vmul.f32 %v4126, %v4124
        %v4128 = vxor.u32 %v4127, 2147483648
        %v4129 = vsel %vm4046, %v4128, %v4127
        %v4130 = vsub.s32 4, %v4106
        %v4131 = vsel %vm4046, %v4130, %v4106
        %v4132 = vsel %vm4045, %v818, %v4129
        %v4133 = vsel %vm4045, 0, %v4131
        %v4134 = vcosq.f32.pop %v4132
        %v4135 = vsinq.f32.pop %v4132
        %vm4136 = vweird.f32 %v818
        %v4137 = vand.u32 %v4133, 3
        %vm4138 = vcmp.lt.s32.totalorder %v4137, 2
        %vm4139 = vcmp.eq.s32.totalorder %v4137, 0
        %v4140 = vxor.u32 %v4135, 2147483648
        %v4141 = vsel %vm4139, %v4134, %v4140
        %vm4142 = vcmp.eq.s32.totalorder %v4137, 2
        %v4143 = vxor.u32 %v4134, 2147483648
        %v4144 = vsel %vm4142, %v4143, %v4135
        %v4145 = vsel %vm4138, %v4141, %v4144
        %v4146 = vsel %vm4136, nan, %v4145
        %v4147 = vand.u32 2147483647, %v819
        %vm4148 = vcmp.le.f32.partialorder %v4147, 0.7853982
        %vm4149 = vcmp.lt.s32.totalorder %v819, 0
        %v4150 = vand.u32 %v819, 2139095040
        %v4151 = vshrl.u32 %v4150, 23
        %v4152 = vsub.s32 %v4151, 127
        %v4153 = vand.u32 2147483647, %v819
        %v4154 = vand.u32 %v4153, 8388607
        %v4155 = vor.u32 %v4154, 8388608
        %v4156 = vsub.s32 0, %v4155
        %v4157 = vadd.s32 %v4152, 1
        %vm4158 = vcmp.gt.s32.totalorder %v4157, 0
        %v4159 = vsel %vm4158, %v4157, 0
        %v4160 = vshrl.u32 %v4159, 5
        %v4161 = vand.u32 %v4159, 31
        %v4162 = vsub.s32 32, %v4161
        %v4163 = vshrl.u32 683565275, %v4162
        %v4164 = vshll.u32 683565275, %v4161
        %v4165 = vshrl.u32 2475754826, %v4162
        %v4166 = vor.u32 %v4164, %v4165
        %v4167 = vshll.u32 2475754826, %v4161
        %v4168 = vshrl.u32 2131351028, %v4162
        %v4169 = vor.u32 %v4167, %v4168
        %v4170 = vshll.u32 2131351028, %v4161
        %v4171 = vshrl.u32 2102212464, %v4162
        %v4172 = vor.u32 %v4170, %v4171
        %v4173 = vshll.u32 2102212464, %v4161
        %v4174 = vshrl.u32 920167782, %v4162
        %v4175 = vor.u32 %v4173, %v4174
        %v4176 = vshll.u32 920167782, %v4161
        %v4177 = vshrl.u32 1326507024, %v4162
        %v4178 = vor.u32 %v4176, %v4177
        %vm4179 = vcmp.lt.s32.totalorder %v4160, 1
        %vm4180 = vcmp.lt.s32.totalorder %v4160, 2
        %vm4181 = vcmp.lt.s32.totalorder %v4160, 3
        %vm4182 = vcmp.lt.s32.totalorder %v4160, 4
        %v4183 = vsel %vm4179, %v4163, %v4166
        %v4184 = vsel %vm4182, %v4172, 2102212464
        %v4185 = vsel %vm4181, %v4169, %v4184
        %v4186 = vsel %vm4180, %v4183, %v4185
        %v4187 = vsel %vm4179, %v4166, %v4169
        %v4188 = vsel %vm4182, %v4175, 920167782
        %v4189 = vsel %vm4181, %v4172, %v4188
        %v4190 = vsel %vm4180, %v4187, %v4189
        %v4191 = vsel %vm4179, %v4169, %v4172
        %v4192 = vsel %vm4182, %v4178, 1326507024
        %v4193 = vsel %vm4181, %v4175, %v4192
        %v4194 = vsel %vm4180, %v4191, %v4193
        %v4195 = vshll.u32 %v4155, 8
        %v4196 = vmul.u32.u64.compose %v4195, %v4194
        %v4197 = vextract.low.u32 %v4196
        %v4198 = vextract.high.u32 %v4196
        %v4199 = vmul.u32.u64.compose %v4195, %v4190
        %v4200 = vextract.low.u32 %v4199
        %v4201 = vextract.high.u32 %v4199
        %v4202 = vmul.u32 %v4195, %v4186
        %v4203 = vadd.s32 %v4198, %v4200
        %vm4204 = vc.u32 %v4198, %v4200
        %v4205 = vadd.s32 %v4201, 1
        %v4206 = vsel %vm4204, %v4205, %v4201
        %v4207 = vadd.s32 %v4202, %v4206
        %v4208 = vadd.s32 %v4207, 536870912
        %v4209 = vshrl.u32 %v4208, 30
        %v4210 = vshll.u32 %v4209, 30
        %v4211 = vsub.s32 %v4207, %v4210
        %vm4212 = vcmp.lt.s32.totalorder %v4211, 0
        %v4213 = vsub.s32 0, %v4211
        %v4214 = vsel %vm4212, %v4213, %v4211
        %v4215 = vclz %v4214
        %v4216 = vsub.s32 %v4215, 2
        %vm4217 = vcmp.gt.s32.totalorder 0, %v4216
        %v4218 = vsel %vm4217, 0, %v4216
        %v4219 = vsub.s32 32, %v4218
        %v4220 = vshll.u32 %v4211, %v4218
        %v4221 = vshrl.u32 %v4203, %v4219
        %v4222 = vor.u32 %v4220, %v4221
        %v4223 = vsub.s32 4294967266, %v4218
        %v4224 = vadd.s32 %v4223, 127
        %v4225 = vshll.u32 %v4224, 23
        %v4226 = vor.u32 4788187, %v4225
        %v4227 = vand.u32 2147483647, %v4226
        %v4229 = vcvt.s32.f32 %v4222
        %v4230 = vmul.f32 %v4229, %v4227
        %v4231 = vxor.u32 %v4230, 2147483648
        %v4232 = vsel %vm4149, %v4231, %v4230
        %v4233 = vsub.s32 4, %v4209
        %v4234 = vsel %vm4149, %v4233, %v4209
        %v4235 = vsel %vm4148, %v819, %v4232
        %v4236 = vsel %vm4148, 0, %v4234
        %v4237 = vcosq.f32.pop %v4235
        %v4238 = vsinq.f32.pop %v4235
        %vm4239 = vweird.f32 %v819
        %v4240 = vand.u32 %v4236, 3
        %vm4241 = vcmp.lt.s32.totalorder %v4240, 2
        %vm4242 = vcmp.eq.s32.totalorder %v4240, 0
        %v4243 = vxor.u32 %v4238, 2147483648
        %v4244 = vsel %vm4242, %v4237, %v4243
        %vm4245 = vcmp.eq.s32.totalorder %v4240, 2
        %v4246 = vxor.u32 %v4237, 2147483648
        %v4247 = vsel %vm4245, %v4246, %v4238
        %v4248 = vsel %vm4241, %v4244, %v4247
        %v4249 = vsel %vm4239, nan, %v4248
        %v4250 = vand.u32 2147483647, %v820
        %vm4251 = vcmp.le.f32.partialorder %v4250, 0.7853982
        %vm4252 = vcmp.lt.s32.totalorder %v820, 0
        %v4253 = vand.u32 %v820, 2139095040
        %v4254 = vshrl.u32 %v4253, 23
        %v4255 = vsub.s32 %v4254, 127
        %v4256 = vand.u32 2147483647, %v820
        %v4257 = vand.u32 %v4256, 8388607
        %v4258 = vor.u32 %v4257, 8388608
        %v4259 = vsub.s32 0, %v4258
        %v4260 = vadd.s32 %v4255, 1
        %vm4261 = vcmp.gt.s32.totalorder %v4260, 0
        %v4262 = vsel %vm4261, %v4260, 0
        %v4263 = vshrl.u32 %v4262, 5
        %v4264 = vand.u32 %v4262, 31
        %v4265 = vsub.s32 32, %v4264
        %v4266 = vshrl.u32 683565275, %v4265
        %v4267 = vshll.u32 683565275, %v4264
        %v4268 = vshrl.u32 2475754826, %v4265
        %v4269 = vor.u32 %v4267, %v4268
        %v4270 = vshll.u32 2475754826, %v4264
        %v4271 = vshrl.u32 2131351028, %v4265
        %v4272 = vor.u32 %v4270, %v4271
        %v4273 = vshll.u32 2131351028, %v4264
        %v4274 = vshrl.u32 2102212464, %v4265
        %v4275 = vor.u32 %v4273, %v4274
        %v4276 = vshll.u32 2102212464, %v4264
        %v4277 = vshrl.u32 920167782, %v4265
        %v4278 = vor.u32 %v4276, %v4277
        %v4279 = vshll.u32 920167782, %v4264
        %v4280 = vshrl.u32 1326507024, %v4265
        %v4281 = vor.u32 %v4279, %v4280
        %vm4282 = vcmp.lt.s32.totalorder %v4263, 1
        %vm4283 = vcmp.lt.s32.totalorder %v4263, 2
        %vm4284 = vcmp.lt.s32.totalorder %v4263, 3
        %vm4285 = vcmp.lt.s32.totalorder %v4263, 4
        %v4286 = vsel %vm4282, %v4266, %v4269
        %v4287 = vsel %vm4285, %v4275, 2102212464
        %v4288 = vsel %vm4284, %v4272, %v4287
        %v4289 = vsel %vm4283, %v4286, %v4288
        %v4290 = vsel %vm4282, %v4269, %v4272
        %v4291 = vsel %vm4285, %v4278, 920167782
        %v4292 = vsel %vm4284, %v4275, %v4291
        %v4293 = vsel %vm4283, %v4290, %v4292
        %v4294 = vsel %vm4282, %v4272, %v4275
        %v4295 = vsel %vm4285, %v4281, 1326507024
        %v4296 = vsel %vm4284, %v4278, %v4295
        %v4297 = vsel %vm4283, %v4294, %v4296
        %v4298 = vshll.u32 %v4258, 8
        %v4299 = vmul.u32.u64.compose %v4298, %v4297
        %v4300 = vextract.low.u32 %v4299
        %v4301 = vextract.high.u32 %v4299
        %v4302 = vmul.u32.u64.compose %v4298, %v4293
        %v4303 = vextract.low.u32 %v4302
        %v4304 = vextract.high.u32 %v4302
        %v4305 = vmul.u32 %v4298, %v4289
        %v4306 = vadd.s32 %v4301, %v4303
        %vm4307 = vc.u32 %v4301, %v4303
        %v4308 = vadd.s32 %v4304, 1
        %v4309 = vsel %vm4307, %v4308, %v4304
        %v4310 = vadd.s32 %v4305, %v4309
        %v4311 = vadd.s32 %v4310, 536870912
        %v4312 = vshrl.u32 %v4311, 30
        %v4313 = vshll.u32 %v4312, 30
        %v4314 = vsub.s32 %v4310, %v4313
        %vm4315 = vcmp.lt.s32.totalorder %v4314, 0
        %v4316 = vsub.s32 0, %v4314
        %v4317 = vsel %vm4315, %v4316, %v4314
        %v4318 = vclz %v4317
        %v4319 = vsub.s32 %v4318, 2
        %vm4320 = vcmp.gt.s32.totalorder 0, %v4319
        %v4321 = vsel %vm4320, 0, %v4319
        %v4322 = vsub.s32 32, %v4321
        %v4323 = vshll.u32 %v4314, %v4321
        %v4324 = vshrl.u32 %v4306, %v4322
        %v4325 = vor.u32 %v4323, %v4324
        %v4326 = vsub.s32 4294967266, %v4321
        %v4327 = vadd.s32 %v4326, 127
        %v4328 = vshll.u32 %v4327, 23
        %v4329 = vor.u32 4788187, %v4328
        %v4330 = vand.u32 2147483647, %v4329
        %v4332 = vcvt.s32.f32 %v4325
        %v4333 = vmul.f32 %v4332, %v4330
        %v4334 = vxor.u32 %v4333, 2147483648
        %v4335 = vsel %vm4252, %v4334, %v4333
        %v4336 = vsub.s32 4, %v4312
        %v4337 = vsel %vm4252, %v4336, %v4312
        %v4338 = vsel %vm4251, %v820, %v4335
        %v4339 = vsel %vm4251, 0, %v4337
        %v4340 = vcosq.f32.pop %v4338
        %v4341 = vsinq.f32.pop %v4338
        %vm4342 = vweird.f32 %v820
        %v4343 = vand.u32 %v4339, 3
        %vm4344 = vcmp.lt.s32.totalorder %v4343, 2
        %vm4345 = vcmp.eq.s32.totalorder %v4343, 0
        %v4346 = vxor.u32 %v4341, 2147483648
        %v4347 = vsel %vm4345, %v4340, %v4346
        %vm4348 = vcmp.eq.s32.totalorder %v4343, 2
        %v4349 = vxor.u32 %v4340, 2147483648
        %v4350 = vsel %vm4348, %v4349, %v4341
        %v4351 = vsel %vm4344, %v4347, %v4350
        %v4352 = vsel %vm4342, nan, %v4351
        %v4353 = vand.u32 2147483647, %v821
        %vm4354 = vcmp.le.f32.partialorder %v4353, 0.7853982
        %vm4355 = vcmp.lt.s32.totalorder %v821, 0
        %v4356 = vand.u32 %v821, 2139095040
        %v4357 = vshrl.u32 %v4356, 23
        %v4358 = vsub.s32 %v4357, 127
        %v4359 = vand.u32 2147483647, %v821
        %v4360 = vand.u32 %v4359, 8388607
        %v4361 = vor.u32 %v4360, 8388608
        %v4362 = vsub.s32 0, %v4361
        %v4363 = vadd.s32 %v4358, 1
        %vm4364 = vcmp.gt.s32.totalorder %v4363, 0
        %v4365 = vsel %vm4364, %v4363, 0
        %v4366 = vshrl.u32 %v4365, 5
        %v4367 = vand.u32 %v4365, 31
        %v4368 = vsub.s32 32, %v4367
        %v4369 = vshrl.u32 683565275, %v4368
        %v4370 = vshll.u32 683565275, %v4367
        %v4371 = vshrl.u32 2475754826, %v4368
        %v4372 = vor.u32 %v4370, %v4371
        %v4373 = vshll.u32 2475754826, %v4367
        %v4374 = vshrl.u32 2131351028, %v4368
        %v4375 = vor.u32 %v4373, %v4374
        %v4376 = vshll.u32 2131351028, %v4367
        %v4377 = vshrl.u32 2102212464, %v4368
        %v4378 = vor.u32 %v4376, %v4377
        %v4379 = vshll.u32 2102212464, %v4367
        %v4380 = vshrl.u32 920167782, %v4368
        %v4381 = vor.u32 %v4379, %v4380
        %v4382 = vshll.u32 920167782, %v4367
        %v4383 = vshrl.u32 1326507024, %v4368
        %v4384 = vor.u32 %v4382, %v4383
        %vm4385 = vcmp.lt.s32.totalorder %v4366, 1
        %vm4386 = vcmp.lt.s32.totalorder %v4366, 2
        %vm4387 = vcmp.lt.s32.totalorder %v4366, 3
        %vm4388 = vcmp.lt.s32.totalorder %v4366, 4
        %v4389 = vsel %vm4385, %v4369, %v4372
        %v4390 = vsel %vm4388, %v4378, 2102212464
        %v4391 = vsel %vm4387, %v4375, %v4390
        %v4392 = vsel %vm4386, %v4389, %v4391
        %v4393 = vsel %vm4385, %v4372, %v4375
        %v4394 = vsel %vm4388, %v4381, 920167782
        %v4395 = vsel %vm4387, %v4378, %v4394
        %v4396 = vsel %vm4386, %v4393, %v4395
        %v4397 = vsel %vm4385, %v4375, %v4378
        %v4398 = vsel %vm4388, %v4384, 1326507024
        %v4399 = vsel %vm4387, %v4381, %v4398
        %v4400 = vsel %vm4386, %v4397, %v4399
        %v4401 = vshll.u32 %v4361, 8
        %v4402 = vmul.u32.u64.compose %v4401, %v4400
        %v4403 = vextract.low.u32 %v4402
        %v4404 = vextract.high.u32 %v4402
        %v4405 = vmul.u32.u64.compose %v4401, %v4396
        %v4406 = vextract.low.u32 %v4405
        %v4407 = vextract.high.u32 %v4405
        %v4408 = vmul.u32 %v4401, %v4392
        %v4409 = vadd.s32 %v4404, %v4406
        %vm4410 = vc.u32 %v4404, %v4406
        %v4411 = vadd.s32 %v4407, 1
        %v4412 = vsel %vm4410, %v4411, %v4407
        %v4413 = vadd.s32 %v4408, %v4412
        %v4414 = vadd.s32 %v4413, 536870912
        %v4415 = vshrl.u32 %v4414, 30
        %v4416 = vshll.u32 %v4415, 30
        %v4417 = vsub.s32 %v4413, %v4416
        %vm4418 = vcmp.lt.s32.totalorder %v4417, 0
        %v4419 = vsub.s32 0, %v4417
        %v4420 = vsel %vm4418, %v4419, %v4417
        %v4421 = vclz %v4420
        %v4422 = vsub.s32 %v4421, 2
        %vm4423 = vcmp.gt.s32.totalorder 0, %v4422
        %v4424 = vsel %vm4423, 0, %v4422
        %v4425 = vsub.s32 32, %v4424
        %v4426 = vshll.u32 %v4417, %v4424
        %v4427 = vshrl.u32 %v4409, %v4425
        %v4428 = vor.u32 %v4426, %v4427
        %v4429 = vsub.s32 4294967266, %v4424
        %v4430 = vadd.s32 %v4429, 127
        %v4431 = vshll.u32 %v4430, 23
        %v4432 = vor.u32 4788187, %v4431
        %v4433 = vand.u32 2147483647, %v4432
        %v4435 = vcvt.s32.f32 %v4428
        %v4436 = vmul.f32 %v4435, %v4433
        %v4437 = vxor.u32 %v4436, 2147483648
        %v4438 = vsel %vm4355, %v4437, %v4436
        %v4439 = vsub.s32 4, %v4415
        %v4440 = vsel %vm4355, %v4439, %v4415
        %v4441 = vsel %vm4354, %v821, %v4438
        %v4442 = vsel %vm4354, 0, %v4440
        %v4443 = vcosq.f32.pop %v4441
        %v4444 = vsinq.f32.pop %v4441
        %vm4445 = vweird.f32 %v821
        %v4446 = vand.u32 %v4442, 3
        %vm4447 = vcmp.lt.s32.totalorder %v4446, 2
        %vm4448 = vcmp.eq.s32.totalorder %v4446, 0
        %v4449 = vxor.u32 %v4444, 2147483648
        %v4450 = vsel %vm4448, %v4443, %v4449
        %vm4451 = vcmp.eq.s32.totalorder %v4446, 2
        %v4452 = vxor.u32 %v4443, 2147483648
        %v4453 = vsel %vm4451, %v4452, %v4444
        %v4454 = vsel %vm4447, %v4450, %v4453
        %v4455 = vsel %vm4445, nan, %v4454
        %v4456 = vand.u32 2147483647, %v822
        %vm4457 = vcmp.le.f32.partialorder %v4456, 0.7853982
        %vm4458 = vcmp.lt.s32.totalorder %v822, 0
        %v4459 = vand.u32 %v822, 2139095040
        %v4460 = vshrl.u32 %v4459, 23
        %v4461 = vsub.s32 %v4460, 127
        %v4462 = vand.u32 2147483647, %v822
        %v4463 = vand.u32 %v4462, 8388607
        %v4464 = vor.u32 %v4463, 8388608
        %v4465 = vsub.s32 0, %v4464
        %v4466 = vadd.s32 %v4461, 1
        %vm4467 = vcmp.gt.s32.totalorder %v4466, 0
        %v4468 = vsel %vm4467, %v4466, 0
        %v4469 = vshrl.u32 %v4468, 5
        %v4470 = vand.u32 %v4468, 31
        %v4471 = vsub.s32 32, %v4470
        %v4472 = vshrl.u32 683565275, %v4471
        %v4473 = vshll.u32 683565275, %v4470
        %v4474 = vshrl.u32 2475754826, %v4471
        %v4475 = vor.u32 %v4473, %v4474
        %v4476 = vshll.u32 2475754826, %v4470
        %v4477 = vshrl.u32 2131351028, %v4471
        %v4478 = vor.u32 %v4476, %v4477
        %v4479 = vshll.u32 2131351028, %v4470
        %v4480 = vshrl.u32 2102212464, %v4471
        %v4481 = vor.u32 %v4479, %v4480
        %v4482 = vshll.u32 2102212464, %v4470
        %v4483 = vshrl.u32 920167782, %v4471
        %v4484 = vor.u32 %v4482, %v4483
        %v4485 = vshll.u32 920167782, %v4470
        %v4486 = vshrl.u32 1326507024, %v4471
        %v4487 = vor.u32 %v4485, %v4486
        %vm4488 = vcmp.lt.s32.totalorder %v4469, 1
        %vm4489 = vcmp.lt.s32.totalorder %v4469, 2
        %vm4490 = vcmp.lt.s32.totalorder %v4469, 3
        %vm4491 = vcmp.lt.s32.totalorder %v4469, 4
        %v4492 = vsel %vm4488, %v4472, %v4475
        %v4493 = vsel %vm4491, %v4481, 2102212464
        %v4494 = vsel %vm4490, %v4478, %v4493
        %v4495 = vsel %vm4489, %v4492, %v4494
        %v4496 = vsel %vm4488, %v4475, %v4478
        %v4497 = vsel %vm4491, %v4484, 920167782
        %v4498 = vsel %vm4490, %v4481, %v4497
        %v4499 = vsel %vm4489, %v4496, %v4498
        %v4500 = vsel %vm4488, %v4478, %v4481
        %v4501 = vsel %vm4491, %v4487, 1326507024
        %v4502 = vsel %vm4490, %v4484, %v4501
        %v4503 = vsel %vm4489, %v4500, %v4502
        %v4504 = vshll.u32 %v4464, 8
        %v4505 = vmul.u32.u64.compose %v4504, %v4503
        %v4506 = vextract.low.u32 %v4505
        %v4507 = vextract.high.u32 %v4505
        %v4508 = vmul.u32.u64.compose %v4504, %v4499
        %v4509 = vextract.low.u32 %v4508
        %v4510 = vextract.high.u32 %v4508
        %v4511 = vmul.u32 %v4504, %v4495
        %v4512 = vadd.s32 %v4507, %v4509
        %vm4513 = vc.u32 %v4507, %v4509
        %v4514 = vadd.s32 %v4510, 1
        %v4515 = vsel %vm4513, %v4514, %v4510
        %v4516 = vadd.s32 %v4511, %v4515
        %v4517 = vadd.s32 %v4516, 536870912
        %v4518 = vshrl.u32 %v4517, 30
        %v4519 = vshll.u32 %v4518, 30
        %v4520 = vsub.s32 %v4516, %v4519
        %vm4521 = vcmp.lt.s32.totalorder %v4520, 0
        %v4522 = vsub.s32 0, %v4520
        %v4523 = vsel %vm4521, %v4522, %v4520
        %v4524 = vclz %v4523
        %v4525 = vsub.s32 %v4524, 2
        %vm4526 = vcmp.gt.s32.totalorder 0, %v4525
        %v4527 = vsel %vm4526, 0, %v4525
        %v4528 = vsub.s32 32, %v4527
        %v4529 = vshll.u32 %v4520, %v4527
        %v4530 = vshrl.u32 %v4512, %v4528
        %v4531 = vor.u32 %v4529, %v4530
        %v4532 = vsub.s32 4294967266, %v4527
        %v4533 = vadd.s32 %v4532, 127
        %v4534 = vshll.u32 %v4533, 23
        %v4535 = vor.u32 4788187, %v4534
        %v4536 = vand.u32 2147483647, %v4535
        %v4538 = vcvt.s32.f32 %v4531
        %v4539 = vmul.f32 %v4538, %v4536
        %v4540 = vxor.u32 %v4539, 2147483648
        %v4541 = vsel %vm4458, %v4540, %v4539
        %v4542 = vsub.s32 4, %v4518
        %v4543 = vsel %vm4458, %v4542, %v4518
        %v4544 = vsel %vm4457, %v822, %v4541
        %v4545 = vsel %vm4457, 0, %v4543
        %v4546 = vcosq.f32.pop %v4544
        %v4547 = vsinq.f32.pop %v4544
        %vm4548 = vweird.f32 %v822
        %v4549 = vand.u32 %v4545, 3
        %vm4550 = vcmp.lt.s32.totalorder %v4549, 2
        %vm4551 = vcmp.eq.s32.totalorder %v4549, 0
        %v4552 = vxor.u32 %v4547, 2147483648
        %v4553 = vsel %vm4551, %v4546, %v4552
        %vm4554 = vcmp.eq.s32.totalorder %v4549, 2
        %v4555 = vxor.u32 %v4546, 2147483648
        %v4556 = vsel %vm4554, %v4555, %v4547
        %v4557 = vsel %vm4550, %v4553, %v4556
        %v4558 = vsel %vm4548, nan, %v4557
        %v4559 = vpack.c.bf16 %v3013, %v2807
        %v4560 = vpack.c.bf16 %v3116, %v2910
        %v4561 = vpack.c.bf16 %v3425, %v3219
        %v4562 = vpack.c.bf16 %v3528, %v3322
        %v4563 = vpack.c.bf16 %v3837, %v3631
        %v4564 = vpack.c.bf16 %v3940, %v3734
        %v4565 = vpack.c.bf16 %v4249, %v4043
        %v4566 = vpack.c.bf16 %v4352, %v4146
        %v4567 = vpack.c.bf16 %v4455, %v4455
        %v4568 = vpack.c.bf16 %v4558, %v4558
        %v4569 = vld [vmem:[%s623] sm:$0xff]
        %v4570 = vld [vmem:[%s623 + $0x8] sm:$0xff]
        %v4571 = vld [vmem:[%s623 + $0x10] sm:$0xff]
        %v4572 = vld [vmem:[%s623 + $0x18] sm:$0xff]
        %v4573 = vld [vmem:[%s623 + $0x20] sm:$0xff]
        %v4574 = vld [vmem:[%s623 + $0x28] sm:$0xff]
        %v4575 = vld [vmem:[%s623 + $0x30] sm:$0xff]
        %v4576 = vld [vmem:[%s623 + $0x38] sm:$0xff]
        %v4577 = vld [vmem:[%s623 + $0x40] sm:$0xff]
        %v4578 = vld [vmem:[%s623 + $0x48] sm:$0xff]
        %v4579 = vld [vmem:[%s623 + $0x50] sm:$0xff]
        %v4580 = vld [vmem:[%s623 + $0x58] sm:$0xff]
        %v4581 = vld [vmem:[%s623 + $0x60] sm:$0xff]
        %v4582 = vld [vmem:[%s623 + $0x68] sm:$0xff]
        %v4583 = vld [vmem:[%s623 + $0x70] sm:$0xff]
        %v4584 = vld [vmem:[%s623 + $0x78] sm:$0xff]
        %v4585 = vld [vmem:[%s623 + $0x80] sm:$0xff]
        %v4586 = vld [vmem:[%s623 + $0x88] sm:$0xff]
        %v4587 = vld [vmem:[%s623 + $0x90] sm:$0xff]
        %v4588 = vld [vmem:[%s623 + $0x98] sm:$0xff]
        %v4589 = vld [vmem:[%s623 + $0xa0] sm:$0xff]
        %v4590 = vld [vmem:[%s623 + $0xa8] sm:$0xff]
        %v4591 = vld [vmem:[%s623 + $0xb0] sm:$0xff]
        %v4592 = vld [vmem:[%s623 + $0xb8] sm:$0xff]
        %v4593 = vld [vmem:[%s623 + $0xc0] sm:$0xff]
        %v4594 = vld [vmem:[%s623 + $0xc8] sm:$0xff]
        %v4595 = vld [vmem:[%s623 + $0xd0] sm:$0xff]
        %v4596 = vld [vmem:[%s623 + $0xd8] sm:$0xff]
        %v4597 = vld [vmem:[%s623 + $0xe0] sm:$0xff]
        %v4598 = vld [vmem:[%s623 + $0xe8] sm:$0xff]
        %v4599 = vld [vmem:[%s623 + $0xf0] sm:$0xff]
        %v4600 = vld [vmem:[%s623 + $0xf8] sm:$0xff]
        %v4601 = vld [vmem:[%s623 + $0x100] sm:$0xff]
        %v4602 = vld [vmem:[%s623 + $0x108] sm:$0xff]
        %v4603 = vld [vmem:[%s623 + $0x110] sm:$0xff]
        %v4604 = vld [vmem:[%s623 + $0x118] sm:$0xff]
        %v4605 = vld [vmem:[%s623 + $0x120] sm:$0xff]
        %v4606 = vld [vmem:[%s623 + $0x128] sm:$0xff]
        %v4607 = vld [vmem:[%s623 + $0x130] sm:$0xff]
        %v4608 = vld [vmem:[%s623 + $0x138] sm:$0xff]
        %v4609 = vld [vmem:[%s623 + $0x140] sm:$0xff]
        %v4610 = vld [vmem:[%s623 + $0x148] sm:$0xff]
        %v4611 = vld [vmem:[%s623 + $0x150] sm:$0xff]
        %v4612 = vld [vmem:[%s623 + $0x158] sm:$0xff]
        %v4613 = vld [vmem:[%s623 + $0x160] sm:$0xff]
        %v4614 = vld [vmem:[%s623 + $0x168] sm:$0xff]
        %v4615 = vld [vmem:[%s623 + $0x170] sm:$0xff]
        %v4616 = vld [vmem:[%s623 + $0x178] sm:$0xff]
        %v4617 = vld [vmem:[%s623 + $0x180] sm:$0xff]
        %v4618 = vld [vmem:[%s623 + $0x188] sm:$0xff]
        %v4619 = vld [vmem:[%s623 + $0x190] sm:$0xff]
        %v4620 = vld [vmem:[%s623 + $0x198] sm:$0xff]
        %v4621 = vld [vmem:[%s623 + $0x1a0] sm:$0xff]
        %v4622 = vld [vmem:[%s623 + $0x1a8] sm:$0xff]
        %v4623 = vld [vmem:[%s623 + $0x1b0] sm:$0xff]
        %v4624 = vld [vmem:[%s623 + $0x1b8] sm:$0xff]
        %v4625 = vld [vmem:[%s623 + $0x1c0] sm:$0xff]
        %v4626 = vld [vmem:[%s623 + $0x1c8] sm:$0xff]
        %v4627 = vld [vmem:[%s623 + $0x1d0] sm:$0xff]
        %v4628 = vld [vmem:[%s623 + $0x1d8] sm:$0xff]
        %v4629 = vld [vmem:[%s623 + $0x1e0] sm:$0xff]
        %v4630 = vld [vmem:[%s623 + $0x1e8] sm:$0xff]
        %v4631 = vld [vmem:[%s623 + $0x1f0] sm:$0xff]
        %v4632 = vld [vmem:[%s623 + $0x1f8] sm:$0xff]
        %v4633 = vld [vmem:[%s623 + $0x200] sm:$0xff]
        %v4634 = vld [vmem:[%s623 + $0x208] sm:$0xff]
        %v4635 = vld [vmem:[%s623 + $0x210] sm:$0xff]
        %v4636 = vld [vmem:[%s623 + $0x218] sm:$0xff]
        %v4637 = vld [vmem:[%s623 + $0x220] sm:$0xff]
        %v4638 = vld [vmem:[%s623 + $0x228] sm:$0xff]
        %v4639 = vld [vmem:[%s623 + $0x230] sm:$0xff]
        %v4640 = vld [vmem:[%s623 + $0x238] sm:$0xff]
        %v4641 = vld [vmem:[%s623 + $0x240] sm:$0xff]
        %v4642 = vld [vmem:[%s623 + $0x248] sm:$0xff]
        %v4643 = vld [vmem:[%s623 + $0x250] sm:$0xff]
        %v4644 = vld [vmem:[%s623 + $0x258] sm:$0xff]
        %v4645 = vld [vmem:[%s623 + $0x260] sm:$0xff]
        %v4646 = vld [vmem:[%s623 + $0x268] sm:$0xff]
        %v4647 = vld [vmem:[%s623 + $0x270] sm:$0xff]
        %v4648 = vld [vmem:[%s623 + $0x278] sm:$0xff]
        %v4649 = vld [vmem:[%s623 + $0x280] sm:$0xff]
        %v4650 = vld [vmem:[%s623 + $0x288] sm:$0xff]
        %v4651 = vld [vmem:[%s623 + $0x290] sm:$0xff]
        %v4652 = vld [vmem:[%s623 + $0x298] sm:$0xff]
        %v4653 = vld [vmem:[%s623 + $0x2a0] sm:$0xff]
        %v4654 = vld [vmem:[%s623 + $0x2a8] sm:$0xff]
        %v4655 = vld [vmem:[%s623 + $0x2b0] sm:$0xff]
        %v4656 = vld [vmem:[%s623 + $0x2b8] sm:$0xff]
        %v4657 = vld [vmem:[%s623 + $0x2c0] sm:$0xff]
        %v4658 = vld [vmem:[%s623 + $0x2c8] sm:$0xff]
        %v4659 = vld [vmem:[%s623 + $0x2d0] sm:$0xff]
        %v4660 = vld [vmem:[%s623 + $0x2d8] sm:$0xff]
        %v4661 = vld [vmem:[%s623 + $0x2e0] sm:$0xff]
        %v4662 = vld [vmem:[%s623 + $0x2e8] sm:$0xff]
        %v4663 = vld [vmem:[%s623 + $0x2f0] sm:$0xff]
        %v4664 = vld [vmem:[%s623 + $0x2f8] sm:$0xff]
        %v4665 = vld [vmem:[%s623 + $0x300] sm:$0xff]
        %v4666 = vld [vmem:[%s623 + $0x308] sm:$0xff]
        %v4667 = vld [vmem:[%s623 + $0x310] sm:$0xff]
        %v4668 = vld [vmem:[%s623 + $0x318] sm:$0xff]
        %v4669 = vld [vmem:[%s623 + $0x320] sm:$0xff]
        %v4670 = vld [vmem:[%s623 + $0x328] sm:$0xff]
        %v4671 = vld [vmem:[%s623 + $0x330] sm:$0xff]
        %v4672 = vld [vmem:[%s623 + $0x338] sm:$0xff]
        %v4673 = vld [vmem:[%s623 + $0x340] sm:$0xff]
        %v4674 = vld [vmem:[%s623 + $0x348] sm:$0xff]
        %v4675 = vld [vmem:[%s623 + $0x350] sm:$0xff]
        %v4676 = vld [vmem:[%s623 + $0x358] sm:$0xff]
        %v4677 = vld [vmem:[%s623 + $0x360] sm:$0xff]
        %v4678 = vld [vmem:[%s623 + $0x368] sm:$0xff]
        %v4679 = vld [vmem:[%s623 + $0x370] sm:$0xff]
        %v4680 = vld [vmem:[%s623 + $0x378] sm:$0xff]
        %v4681 = vld [vmem:[%s623 + $0x380] sm:$0xff]
        %v4682 = vld [vmem:[%s623 + $0x388] sm:$0xff]
        %v4683 = vld [vmem:[%s623 + $0x390] sm:$0xff]
        %v4684 = vld [vmem:[%s623 + $0x398] sm:$0xff]
        %v4685 = vld [vmem:[%s623 + $0x3a0] sm:$0xff]
        %v4686 = vld [vmem:[%s623 + $0x3a8] sm:$0xff]
        %v4687 = vld [vmem:[%s623 + $0x3b0] sm:$0xff]
        %v4688 = vld [vmem:[%s623 + $0x3b8] sm:$0xff]
        %v4689 = vld [vmem:[%s623 + $0x3c0] sm:$0xff]
        %v4690 = vld [vmem:[%s623 + $0x3c8] sm:$0xff]
        %v4691 = vld [vmem:[%s623 + $0x3d0] sm:$0xff]
        %v4692 = vld [vmem:[%s623 + $0x3d8] sm:$0xff]
        %v4693 = vld [vmem:[%s623 + $0x3e0] sm:$0xff]
        %v4694 = vld [vmem:[%s623 + $0x3e8] sm:$0xff]
        %v4695 = vld [vmem:[%s623 + $0x3f0] sm:$0xff]
        %v4696 = vld [vmem:[%s623 + $0x3f8] sm:$0xff]
        %v4697 = vld [vmem:[%s623 + $0x400] sm:$0xff]
        %v4698 = vld [vmem:[%s623 + $0x408] sm:$0xff]
        %v4699 = vld [vmem:[%s623 + $0x410] sm:$0xff]
        %v4700 = vld [vmem:[%s623 + $0x418] sm:$0xff]
        %v4701 = vld [vmem:[%s623 + $0x420] sm:$0xff]
        %v4702 = vld [vmem:[%s623 + $0x428] sm:$0xff]
        %v4703 = vld [vmem:[%s623 + $0x430] sm:$0xff]
        %v4704 = vld [vmem:[%s623 + $0x438] sm:$0xff]
        %v4705 = vld [vmem:[%s623 + $0x440] sm:$0xff]
        %v4706 = vld [vmem:[%s623 + $0x448] sm:$0xff]
        %v4707 = vld [vmem:[%s623 + $0x450] sm:$0xff]
        %v4708 = vld [vmem:[%s623 + $0x458] sm:$0xff]
        %v4709 = vld [vmem:[%s623 + $0x460] sm:$0xff]
        %v4710 = vld [vmem:[%s623 + $0x468] sm:$0xff]
        %v4711 = vld [vmem:[%s623 + $0x470] sm:$0xff]
        %v4712 = vld [vmem:[%s623 + $0x478] sm:$0xff]
        %v4713 = vld [vmem:[%s623 + $0x480] sm:$0xff]
        %v4714 = vld [vmem:[%s623 + $0x488] sm:$0xff]
        %v4715 = vld [vmem:[%s623 + $0x490] sm:$0xff]
        %v4716 = vld [vmem:[%s623 + $0x498] sm:$0xff]
        %v4717 = vld [vmem:[%s623 + $0x4a0] sm:$0xff]
        %v4718 = vld [vmem:[%s623 + $0x4a8] sm:$0xff]
        %v4719 = vld [vmem:[%s623 + $0x4b0] sm:$0xff]
        %v4720 = vld [vmem:[%s623 + $0x4b8] sm:$0xff]
        %v4721 = vld [vmem:[%s623 + $0x4c0] sm:$0xff]
        %v4722 = vld [vmem:[%s623 + $0x4c8] sm:$0xff]
        %v4723 = vld [vmem:[%s623 + $0x4d0] sm:$0xff]
        %v4724 = vld [vmem:[%s623 + $0x4d8] sm:$0xff]
        %v4725 = vld [vmem:[%s623 + $0x4e0] sm:$0xff]
        %v4726 = vld [vmem:[%s623 + $0x4e8] sm:$0xff]
        %v4727 = vld [vmem:[%s623 + $0x4f0] sm:$0xff]
        %v4728 = vld [vmem:[%s623 + $0x4f8] sm:$0xff]
        %v4729 = vld [vmem:[%s623 + $0x500] sm:$0xff]
        %v4730 = vld [vmem:[%s623 + $0x508] sm:$0xff]
        %v4731 = vld [vmem:[%s623 + $0x510] sm:$0xff]
        %v4732 = vld [vmem:[%s623 + $0x518] sm:$0xff]
        %v4733 = vld [vmem:[%s623 + $0x520] sm:$0xff]
        %v4734 = vld [vmem:[%s623 + $0x528] sm:$0xff]
        %v4735 = vld [vmem:[%s623 + $0x530] sm:$0xff]
        %v4736 = vld [vmem:[%s623 + $0x538] sm:$0xff]
        %v4737 = vld [vmem:[%s623 + $0x540] sm:$0xff]
        %v4738 = vld [vmem:[%s623 + $0x548] sm:$0xff]
        %v4739 = vld [vmem:[%s623 + $0x550] sm:$0xff]
        %v4740 = vld [vmem:[%s623 + $0x558] sm:$0xff]
        %v4741 = vld [vmem:[%s623 + $0x560] sm:$0xff]
        %v4742 = vld [vmem:[%s623 + $0x568] sm:$0xff]
        %v4743 = vld [vmem:[%s623 + $0x570] sm:$0xff]
        %v4744 = vld [vmem:[%s623 + $0x578] sm:$0xff]
        %v4745 = vld [vmem:[%s623 + $0x580] sm:$0xff]
        %v4746 = vld [vmem:[%s623 + $0x588] sm:$0xff]
        %v4747 = vld [vmem:[%s623 + $0x590] sm:$0xff]
        %v4748 = vld [vmem:[%s623 + $0x598] sm:$0xff]
        %v4749 = vld [vmem:[%s623 + $0x5a0] sm:$0xff]
        %v4750 = vld [vmem:[%s623 + $0x5a8] sm:$0xff]
        %v4751 = vld [vmem:[%s623 + $0x5b0] sm:$0xff]
        %v4752 = vld [vmem:[%s623 + $0x5b8] sm:$0xff]
        %v4753 = vld [vmem:[%s623 + $0x5c0] sm:$0xff]
        %v4754 = vld [vmem:[%s623 + $0x5c8] sm:$0xff]
        %v4755 = vld [vmem:[%s623 + $0x5d0] sm:$0xff]
        %v4756 = vld [vmem:[%s623 + $0x5d8] sm:$0xff]
        %v4757 = vld [vmem:[%s623 + $0x5e0] sm:$0xff]
        %v4758 = vld [vmem:[%s623 + $0x5e8] sm:$0xff]
        %v4759 = vld [vmem:[%s623 + $0x5f0] sm:$0xff]
        %v4760 = vld [vmem:[%s623 + $0x5f8] sm:$0xff]
        %v4761 = vld [vmem:[%s623 + $0x600] sm:$0xff]
        %v4762 = vld [vmem:[%s623 + $0x608] sm:$0xff]
        %v4763 = vld [vmem:[%s623 + $0x610] sm:$0xff]
        %v4764 = vld [vmem:[%s623 + $0x618] sm:$0xff]
        %v4765 = vld [vmem:[%s623 + $0x620] sm:$0xff]
        %v4766 = vld [vmem:[%s623 + $0x628] sm:$0xff]
        %v4767 = vld [vmem:[%s623 + $0x630] sm:$0xff]
        %v4768 = vld [vmem:[%s623 + $0x638] sm:$0xff]
        %v4769 = vld [vmem:[%s623 + $0x640] sm:$0xff]
        %v4770 = vld [vmem:[%s623 + $0x648] sm:$0xff]
        %v4771 = vld [vmem:[%s623 + $0x650] sm:$0xff]
        %v4772 = vld [vmem:[%s623 + $0x658] sm:$0xff]
        %v4773 = vld [vmem:[%s623 + $0x660] sm:$0xff]
        %v4774 = vld [vmem:[%s623 + $0x668] sm:$0xff]
        %v4775 = vld [vmem:[%s623 + $0x670] sm:$0xff]
        %v4776 = vld [vmem:[%s623 + $0x678] sm:$0xff]
        %v4777 = vld [vmem:[%s623 + $0x680] sm:$0xff]
        %v4778 = vld [vmem:[%s623 + $0x688] sm:$0xff]
        %v4779 = vld [vmem:[%s623 + $0x690] sm:$0xff]
        %v4780 = vld [vmem:[%s623 + $0x698] sm:$0xff]
        %v4781 = vld [vmem:[%s623 + $0x6a0] sm:$0xff]
        %v4782 = vld [vmem:[%s623 + $0x6a8] sm:$0xff]
        %v4783 = vld [vmem:[%s623 + $0x6b0] sm:$0xff]
        %v4784 = vld [vmem:[%s623 + $0x6b8] sm:$0xff]
        %v4785 = vld [vmem:[%s623 + $0x6c0] sm:$0xff]
        %v4786 = vld [vmem:[%s623 + $0x6c8] sm:$0xff]
        %v4787 = vld [vmem:[%s623 + $0x6d0] sm:$0xff]
        %v4788 = vld [vmem:[%s623 + $0x6d8] sm:$0xff]
        %v4789 = vld [vmem:[%s623 + $0x6e0] sm:$0xff]
        %v4790 = vld [vmem:[%s623 + $0x6e8] sm:$0xff]
        %v4791 = vld [vmem:[%s623 + $0x6f0] sm:$0xff]
        %v4792 = vld [vmem:[%s623 + $0x6f8] sm:$0xff]
        %v4793 = vld [vmem:[%s623 + $0x700] sm:$0xff]
        %v4794 = vld [vmem:[%s623 + $0x708] sm:$0xff]
        %v4795 = vld [vmem:[%s623 + $0x710] sm:$0xff]
        %v4796 = vld [vmem:[%s623 + $0x718] sm:$0xff]
        %v4797 = vld [vmem:[%s623 + $0x720] sm:$0xff]
        %v4798 = vld [vmem:[%s623 + $0x728] sm:$0xff]
        %v4799 = vld [vmem:[%s623 + $0x730] sm:$0xff]
        %v4800 = vld [vmem:[%s623 + $0x738] sm:$0xff]
        %v4801 = vld [vmem:[%s623 + $0x740] sm:$0xff]
        %v4802 = vld [vmem:[%s623 + $0x748] sm:$0xff]
        %v4803 = vld [vmem:[%s623 + $0x750] sm:$0xff]
        %v4804 = vld [vmem:[%s623 + $0x758] sm:$0xff]
        %v4805 = vld [vmem:[%s623 + $0x760] sm:$0xff]
        %v4806 = vld [vmem:[%s623 + $0x768] sm:$0xff]
        %v4807 = vld [vmem:[%s623 + $0x770] sm:$0xff]
        %v4808 = vld [vmem:[%s623 + $0x778] sm:$0xff]
        %v4809 = vld [vmem:[%s623 + $0x780] sm:$0xff]
        %v4810 = vld [vmem:[%s623 + $0x788] sm:$0xff]
        %v4811 = vld [vmem:[%s623 + $0x790] sm:$0xff]
        %v4812 = vld [vmem:[%s623 + $0x798] sm:$0xff]
        %v4813 = vld [vmem:[%s623 + $0x7a0] sm:$0xff]
        %v4814 = vld [vmem:[%s623 + $0x7a8] sm:$0xff]
        %v4815 = vld [vmem:[%s623 + $0x7b0] sm:$0xff]
        %v4816 = vld [vmem:[%s623 + $0x7b8] sm:$0xff]
        %v4817 = vld [vmem:[%s623 + $0x7c0] sm:$0xff]
        %v4818 = vld [vmem:[%s623 + $0x7c8] sm:$0xff]
        %v4819 = vld [vmem:[%s623 + $0x7d0] sm:$0xff]
        %v4820 = vld [vmem:[%s623 + $0x7d8] sm:$0xff]
        %v4821 = vld [vmem:[%s623 + $0x7e0] sm:$0xff]
        %v4822 = vld [vmem:[%s623 + $0x7e8] sm:$0xff]
        %v4823 = vld [vmem:[%s623 + $0x7f0] sm:$0xff]
        %v4824 = vld [vmem:[%s623 + $0x7f8] sm:$0xff]
        %v4825 = vld [vmem:[%s623 + $0x800] sm:$0xff]
        %v4826 = vld [vmem:[%s623 + $0x808] sm:$0xff]
        %v4827 = vld [vmem:[%s623 + $0x810] sm:$0xff]
        %v4828 = vld [vmem:[%s623 + $0x818] sm:$0xff]
        %v4829 = vld [vmem:[%s623 + $0x820] sm:$0xff]
        %v4830 = vld [vmem:[%s623 + $0x828] sm:$0xff]
        %v4831 = vld [vmem:[%s623 + $0x830] sm:$0xff]
        %v4832 = vld [vmem:[%s623 + $0x838] sm:$0xff]
        %v4833 = vld [vmem:[%s623 + $0x840] sm:$0xff]
        %v4834 = vld [vmem:[%s623 + $0x848] sm:$0xff]
        %v4835 = vld [vmem:[%s623 + $0x850] sm:$0xff]
        %v4836 = vld [vmem:[%s623 + $0x858] sm:$0xff]
        %v4837 = vld [vmem:[%s623 + $0x860] sm:$0xff]
        %v4838 = vld [vmem:[%s623 + $0x868] sm:$0xff]
        %v4839 = vld [vmem:[%s623 + $0x870] sm:$0xff]
        %v4840 = vld [vmem:[%s623 + $0x878] sm:$0xff]
        %v4841 = vld [vmem:[%s623 + $0x880] sm:$0xff]
        %v4842 = vld [vmem:[%s623 + $0x888] sm:$0xff]
        %v4843 = vld [vmem:[%s623 + $0x890] sm:$0xff]
        %v4844 = vld [vmem:[%s623 + $0x898] sm:$0xff]
        %v4845 = vld [vmem:[%s623 + $0x8a0] sm:$0xff]
        %v4846 = vld [vmem:[%s623 + $0x8a8] sm:$0xff]
        %v4847 = vld [vmem:[%s623 + $0x8b0] sm:$0xff]
        %v4848 = vld [vmem:[%s623 + $0x8b8] sm:$0xff]
        %v4849 = vld [vmem:[%s623 + $0x8c0] sm:$0xff]
        %v4850 = vld [vmem:[%s623 + $0x8c8] sm:$0xff]
        %v4851 = vld [vmem:[%s623 + $0x8d0] sm:$0xff]
        %v4852 = vld [vmem:[%s623 + $0x8d8] sm:$0xff]
        %v4853 = vld [vmem:[%s623 + $0x8e0] sm:$0xff]
        %v4854 = vld [vmem:[%s623 + $0x8e8] sm:$0xff]
        %v4855 = vld [vmem:[%s623 + $0x8f0] sm:$0xff]
        %v4856 = vld [vmem:[%s623 + $0x8f8] sm:$0xff]
        %v5001 = vunpack.c.l.b16 %v4713
        %v5002 = vunpack.c.h.b16 %v4713
        %v5003 = vunpack.c.l.b16 %v4714
        %v5004 = vunpack.c.h.b16 %v4714
        %v5005 = vunpack.c.l.b16 %v4715
        %v5006 = vunpack.c.h.b16 %v4715
        %v5007 = vunpack.c.l.b16 %v4716
        %v5008 = vunpack.c.h.b16 %v4716
        %v5009 = vunpack.c.l.b16 %v4717
        %v5010 = vunpack.c.h.b16 %v4717
        %v5011 = vunpack.c.l.b16 %v4718
        %v5012 = vunpack.c.h.b16 %v4718
        %v5013 = vunpack.c.l.b16 %v4719
        %v5014 = vunpack.c.h.b16 %v4719
        %v5015 = vunpack.c.l.b16 %v4720
        %v5016 = vunpack.c.h.b16 %v4720
        %v5017 = vunpack.c.l.b16 %v4721
        %v5018 = vunpack.c.h.b16 %v4721
        %v5019 = vunpack.c.l.b16 %v4722
        %v5020 = vunpack.c.h.b16 %v4722
        %v5021 = vunpack.c.l.b16 %v4723
        %v5022 = vunpack.c.h.b16 %v4723
        %v5023 = vunpack.c.l.b16 %v4724
        %v5024 = vunpack.c.h.b16 %v4724
        %v5025 = vunpack.c.l.b16 %v4725
        %v5026 = vunpack.c.h.b16 %v4725
        %v5027 = vunpack.c.l.b16 %v4726
        %v5028 = vunpack.c.h.b16 %v4726
        %v5029 = vunpack.c.l.b16 %v4727
        %v5030 = vunpack.c.h.b16 %v4727
        %v5031 = vunpack.c.l.b16 %v4728
        %v5032 = vunpack.c.h.b16 %v4728
        %v5033 = vunpack.c.l.b16 %v4729
        %v5034 = vunpack.c.h.b16 %v4729
        %v5035 = vunpack.c.l.b16 %v4730
        %v5036 = vunpack.c.h.b16 %v4730
        %v5037 = vunpack.c.l.b16 %v4731
        %v5038 = vunpack.c.h.b16 %v4731
        %v5039 = vunpack.c.l.b16 %v4732
        %v5040 = vunpack.c.h.b16 %v4732
        %v5041 = vunpack.c.l.b16 %v4733
        %v5042 = vunpack.c.h.b16 %v4733
        %v5043 = vunpack.c.l.b16 %v4734
        %v5044 = vunpack.c.h.b16 %v4734
        %v5045 = vunpack.c.l.b16 %v4735
        %v5046 = vunpack.c.h.b16 %v4735
        %v5047 = vunpack.c.l.b16 %v4736
        %v5048 = vunpack.c.h.b16 %v4736
        %v5049 = vunpack.c.l.b16 %v4737
        %v5050 = vunpack.c.h.b16 %v4737
        %v5051 = vunpack.c.l.b16 %v4738
        %v5052 = vunpack.c.h.b16 %v4738
        %v5053 = vunpack.c.l.b16 %v4739
        %v5054 = vunpack.c.h.b16 %v4739
        %v5055 = vunpack.c.l.b16 %v4740
        %v5056 = vunpack.c.h.b16 %v4740
        %v5057 = vunpack.c.l.b16 %v4741
        %v5058 = vunpack.c.h.b16 %v4741
        %v5059 = vunpack.c.l.b16 %v4742
        %v5060 = vunpack.c.h.b16 %v4742
        %v5061 = vunpack.c.l.b16 %v4743
        %v5062 = vunpack.c.h.b16 %v4743
        %v5063 = vunpack.c.l.b16 %v4744
        %v5064 = vunpack.c.h.b16 %v4744
        %v5065 = vunpack.c.l.b16 %v4745
        %v5066 = vunpack.c.h.b16 %v4745
        %v5067 = vunpack.c.l.b16 %v4746
        %v5068 = vunpack.c.h.b16 %v4746
        %v5069 = vunpack.c.l.b16 %v4747
        %v5070 = vunpack.c.h.b16 %v4747
        %v5071 = vunpack.c.l.b16 %v4748
        %v5072 = vunpack.c.h.b16 %v4748
        %v5073 = vunpack.c.l.b16 %v4749
        %v5074 = vunpack.c.h.b16 %v4749
        %v5075 = vunpack.c.l.b16 %v4750
        %v5076 = vunpack.c.h.b16 %v4750
        %v5077 = vunpack.c.l.b16 %v4751
        %v5078 = vunpack.c.h.b16 %v4751
        %v5079 = vunpack.c.l.b16 %v4752
        %v5080 = vunpack.c.h.b16 %v4752
        %v5081 = vunpack.c.l.b16 %v4753
        %v5082 = vunpack.c.h.b16 %v4753
        %v5083 = vunpack.c.l.b16 %v4754
        %v5084 = vunpack.c.h.b16 %v4754
        %v5085 = vunpack.c.l.b16 %v4755
        %v5086 = vunpack.c.h.b16 %v4755
        %v5087 = vunpack.c.l.b16 %v4756
        %v5088 = vunpack.c.h.b16 %v4756
        %v5089 = vunpack.c.l.b16 %v4757
        %v5090 = vunpack.c.h.b16 %v4757
        %v5091 = vunpack.c.l.b16 %v4758
        %v5092 = vunpack.c.h.b16 %v4758
        %v5093 = vunpack.c.l.b16 %v4759
        %v5094 = vunpack.c.h.b16 %v4759
        %v5095 = vunpack.c.l.b16 %v4760
        %v5096 = vunpack.c.h.b16 %v4760
        %v5097 = vunpack.c.l.b16 %v4761
        %v5098 = vunpack.c.h.b16 %v4761
        %v5099 = vunpack.c.l.b16 %v4762
        %v5100 = vunpack.c.h.b16 %v4762
        %v5101 = vunpack.c.l.b16 %v4763
        %v5102 = vunpack.c.h.b16 %v4763
        %v5103 = vunpack.c.l.b16 %v4764
        %v5104 = vunpack.c.h.b16 %v4764
        %v5105 = vunpack.c.l.b16 %v4765
        %v5106 = vunpack.c.h.b16 %v4765
        %v5107 = vunpack.c.l.b16 %v4766
        %v5108 = vunpack.c.h.b16 %v4766
        %v5109 = vunpack.c.l.b16 %v4767
        %v5110 = vunpack.c.h.b16 %v4767
        %v5111 = vunpack.c.l.b16 %v4768
        %v5112 = vunpack.c.h.b16 %v4768
        %v5113 = vunpack.c.l.b16 %v4769
        %v5114 = vunpack.c.h.b16 %v4769
        %v5115 = vunpack.c.l.b16 %v4770
        %v5116 = vunpack.c.h.b16 %v4770
        %v5117 = vunpack.c.l.b16 %v4771
        %v5118 = vunpack.c.h.b16 %v4771
        %v5119 = vunpack.c.l.b16 %v4772
        %v5120 = vunpack.c.h.b16 %v4772
        %v5121 = vunpack.c.l.b16 %v4773
        %v5122 = vunpack.c.h.b16 %v4773
        %v5123 = vunpack.c.l.b16 %v4774
        %v5124 = vunpack.c.h.b16 %v4774
        %v5125 = vunpack.c.l.b16 %v4775
        %v5126 = vunpack.c.h.b16 %v4775
        %v5127 = vunpack.c.l.b16 %v4776
        %v5128 = vunpack.c.h.b16 %v4776
        %v5129 = vunpack.c.l.b16 %v4777
        %v5130 = vunpack.c.h.b16 %v4777
        %v5131 = vunpack.c.l.b16 %v4778
        %v5132 = vunpack.c.h.b16 %v4778
        %v5133 = vunpack.c.l.b16 %v4779
        %v5134 = vunpack.c.h.b16 %v4779
        %v5135 = vunpack.c.l.b16 %v4780
        %v5136 = vunpack.c.h.b16 %v4780
        %v5137 = vunpack.c.l.b16 %v4781
        %v5138 = vunpack.c.h.b16 %v4781
        %v5139 = vunpack.c.l.b16 %v4782
        %v5140 = vunpack.c.h.b16 %v4782
        %v5141 = vunpack.c.l.b16 %v4783
        %v5142 = vunpack.c.h.b16 %v4783
        %v5143 = vunpack.c.l.b16 %v4784
        %v5144 = vunpack.c.h.b16 %v4784
        %v5145 = vunpack.c.l.b16 %v4785
        %v5146 = vunpack.c.h.b16 %v4785
        %v5147 = vunpack.c.l.b16 %v4786
        %v5148 = vunpack.c.h.b16 %v4786
        %v5149 = vunpack.c.l.b16 %v4787
        %v5150 = vunpack.c.h.b16 %v4787
        %v5151 = vunpack.c.l.b16 %v4788
        %v5152 = vunpack.c.h.b16 %v4788
        %v5153 = vunpack.c.l.b16 %v4789
        %v5154 = vunpack.c.h.b16 %v4789
        %v5155 = vunpack.c.l.b16 %v4790
        %v5156 = vunpack.c.h.b16 %v4790
        %v5157 = vunpack.c.l.b16 %v4791
        %v5158 = vunpack.c.h.b16 %v4791
        %v5159 = vunpack.c.l.b16 %v4792
        %v5160 = vunpack.c.h.b16 %v4792
        %v5161 = vunpack.c.l.b16 %v4793
        %v5162 = vunpack.c.h.b16 %v4793
        %v5163 = vunpack.c.l.b16 %v4794
        %v5164 = vunpack.c.h.b16 %v4794
        %v5165 = vunpack.c.l.b16 %v4795
        %v5166 = vunpack.c.h.b16 %v4795
        %v5167 = vunpack.c.l.b16 %v4796
        %v5168 = vunpack.c.h.b16 %v4796
        %v5169 = vunpack.c.l.b16 %v4797
        %v5170 = vunpack.c.h.b16 %v4797
        %v5171 = vunpack.c.l.b16 %v4798
        %v5172 = vunpack.c.h.b16 %v4798
        %v5173 = vunpack.c.l.b16 %v4799
        %v5174 = vunpack.c.h.b16 %v4799
        %v5175 = vunpack.c.l.b16 %v4800
        %v5176 = vunpack.c.h.b16 %v4800
        %v5177 = vunpack.c.l.b16 %v4801
        %v5178 = vunpack.c.h.b16 %v4801
        %v5179 = vunpack.c.l.b16 %v4802
        %v5180 = vunpack.c.h.b16 %v4802
        %v5181 = vunpack.c.l.b16 %v4803
        %v5182 = vunpack.c.h.b16 %v4803
        %v5183 = vunpack.c.l.b16 %v4804
        %v5184 = vunpack.c.h.b16 %v4804
        %v5185 = vunpack.c.l.b16 %v4805
        %v5186 = vunpack.c.h.b16 %v4805
        %v5187 = vunpack.c.l.b16 %v4806
        %v5188 = vunpack.c.h.b16 %v4806
        %v5189 = vunpack.c.l.b16 %v4807
        %v5190 = vunpack.c.h.b16 %v4807
        %v5191 = vunpack.c.l.b16 %v4808
        %v5192 = vunpack.c.h.b16 %v4808
        %v5193 = vunpack.c.l.b16 %v4809
        %v5194 = vunpack.c.h.b16 %v4809
        %v5195 = vunpack.c.l.b16 %v4810
        %v5196 = vunpack.c.h.b16 %v4810
        %v5197 = vunpack.c.l.b16 %v4811
        %v5198 = vunpack.c.h.b16 %v4811
        %v5199 = vunpack.c.l.b16 %v4812
        %v5200 = vunpack.c.h.b16 %v4812
        %v5201 = vunpack.c.l.b16 %v4813
        %v5202 = vunpack.c.h.b16 %v4813
        %v5203 = vunpack.c.l.b16 %v4814
        %v5204 = vunpack.c.h.b16 %v4814
        %v5205 = vunpack.c.l.b16 %v4815
        %v5206 = vunpack.c.h.b16 %v4815
        %v5207 = vunpack.c.l.b16 %v4816
        %v5208 = vunpack.c.h.b16 %v4816
        %v5209 = vunpack.c.l.b16 %v4817
        %v5210 = vunpack.c.h.b16 %v4817
        %v5211 = vunpack.c.l.b16 %v4818
        %v5212 = vunpack.c.h.b16 %v4818
        %v5213 = vunpack.c.l.b16 %v4819
        %v5214 = vunpack.c.h.b16 %v4819
        %v5215 = vunpack.c.l.b16 %v4820
        %v5216 = vunpack.c.h.b16 %v4820
        %v5217 = vunpack.c.l.b16 %v4821
        %v5218 = vunpack.c.h.b16 %v4821
        %v5219 = vunpack.c.l.b16 %v4822
        %v5220 = vunpack.c.h.b16 %v4822
        %v5221 = vunpack.c.l.b16 %v4823
        %v5222 = vunpack.c.h.b16 %v4823
        %v5223 = vunpack.c.l.b16 %v4824
        %v5224 = vunpack.c.h.b16 %v4824
        %v5225 = vunpack.c.l.b16 %v4825
        %v5226 = vunpack.c.h.b16 %v4825
        %v5227 = vunpack.c.l.b16 %v4826
        %v5228 = vunpack.c.h.b16 %v4826
        %v5229 = vunpack.c.l.b16 %v4827
        %v5230 = vunpack.c.h.b16 %v4827
        %v5231 = vunpack.c.l.b16 %v4828
        %v5232 = vunpack.c.h.b16 %v4828
        %v5233 = vunpack.c.l.b16 %v4829
        %v5234 = vunpack.c.h.b16 %v4829
        %v5235 = vunpack.c.l.b16 %v4830
        %v5236 = vunpack.c.h.b16 %v4830
        %v5237 = vunpack.c.l.b16 %v4831
        %v5238 = vunpack.c.h.b16 %v4831
        %v5239 = vunpack.c.l.b16 %v4832
        %v5240 = vunpack.c.h.b16 %v4832
        %v5241 = vunpack.c.l.b16 %v4833
        %v5242 = vunpack.c.h.b16 %v4833
        %v5243 = vunpack.c.l.b16 %v4834
        %v5244 = vunpack.c.h.b16 %v4834
        %v5245 = vunpack.c.l.b16 %v4835
        %v5246 = vunpack.c.h.b16 %v4835
        %v5247 = vunpack.c.l.b16 %v4836
        %v5248 = vunpack.c.h.b16 %v4836
        %v5249 = vunpack.c.l.b16 %v4837
        %v5250 = vunpack.c.h.b16 %v4837
        %v5251 = vunpack.c.l.b16 %v4838
        %v5252 = vunpack.c.h.b16 %v4838
        %v5253 = vunpack.c.l.b16 %v4839
        %v5254 = vunpack.c.h.b16 %v4839
        %v5255 = vunpack.c.l.b16 %v4840
        %v5256 = vunpack.c.h.b16 %v4840
        %v5257 = vunpack.c.l.b16 %v4841
        %v5258 = vunpack.c.h.b16 %v4841
        %v5259 = vunpack.c.l.b16 %v4842
        %v5260 = vunpack.c.h.b16 %v4842
        %v5261 = vunpack.c.l.b16 %v4843
        %v5262 = vunpack.c.h.b16 %v4843
        %v5263 = vunpack.c.l.b16 %v4844
        %v5264 = vunpack.c.h.b16 %v4844
        %v5265 = vunpack.c.l.b16 %v4845
        %v5266 = vunpack.c.h.b16 %v4845
        %v5267 = vunpack.c.l.b16 %v4846
        %v5268 = vunpack.c.h.b16 %v4846
        %v5269 = vunpack.c.l.b16 %v4847
        %v5270 = vunpack.c.h.b16 %v4847
        %v5271 = vunpack.c.l.b16 %v4848
        %v5272 = vunpack.c.h.b16 %v4848
        %v5273 = vunpack.c.l.b16 %v4849
        %v5274 = vunpack.c.h.b16 %v4849
        %v5275 = vunpack.c.l.b16 %v4850
        %v5276 = vunpack.c.h.b16 %v4850
        %v5277 = vunpack.c.l.b16 %v4851
        %v5278 = vunpack.c.h.b16 %v4851
        %v5279 = vunpack.c.l.b16 %v4852
        %v5280 = vunpack.c.h.b16 %v4852
        %v5281 = vunpack.c.l.b16 %v4853
        %v5282 = vunpack.c.h.b16 %v4853
        %v5283 = vunpack.c.l.b16 %v4854
        %v5284 = vunpack.c.h.b16 %v4854
        %v5285 = vunpack.c.l.b16 %v4855
        %v5286 = vunpack.c.h.b16 %v4855
        %v5287 = vunpack.c.l.b16 %v4856
        %v5288 = vunpack.c.h.b16 %v4856
        %v5289 = vpack.c.b16 %v5013, %v5001
        %v5290 = vpack.c.b16 %v5014, %v5002
        %v5291 = vpack.c.b16 %v5015, %v5003
        %v5292 = vpack.c.b16 %v5016, %v5004
        %v5293 = vpack.c.b16 %v5017, %v5005
        %v5294 = vpack.c.b16 %v5018, %v5006
        %v5295 = vpack.c.b16 %v5019, %v5007
        %v5296 = vpack.c.b16 %v5020, %v5008
        %v5297 = vpack.c.b16 %v5021, %v5009
        %v5298 = vpack.c.b16 %v5022, %v5010
        %v5299 = vpack.c.b16 %v5023, %v5011
        %v5300 = vpack.c.b16 %v5024, %v5012
        %v5301 = vpack.c.b16 %v5037, %v5025
        %v5302 = vpack.c.b16 %v5038, %v5026
        %v5303 = vpack.c.b16 %v5039, %v5027
        %v5304 = vpack.c.b16 %v5040, %v5028
        %v5305 = vpack.c.b16 %v5041, %v5029
        %v5306 = vpack.c.b16 %v5042, %v5030
        %v5307 = vpack.c.b16 %v5043, %v5031
        %v5308 = vpack.c.b16 %v5044, %v5032
        %v5309 = vpack.c.b16 %v5045, %v5033
        %v5310 = vpack.c.b16 %v5046, %v5034
        %v5311 = vpack.c.b16 %v5047, %v5035
        %v5312 = vpack.c.b16 %v5048, %v5036
        %v5313 = vpack.c.b16 %v5061, %v5049
        %v5314 = vpack.c.b16 %v5062, %v5050
        %v5315 = vpack.c.b16 %v5063, %v5051
        %v5316 = vpack.c.b16 %v5064, %v5052
        %v5317 = vpack.c.b16 %v5065, %v5053
        %v5318 = vpack.c.b16 %v5066, %v5054
        %v5319 = vpack.c.b16 %v5067, %v5055
        %v5320 = vpack.c.b16 %v5068, %v5056
        %v5321 = vpack.c.b16 %v5069, %v5057
        %v5322 = vpack.c.b16 %v5070, %v5058
        %v5323 = vpack.c.b16 %v5071, %v5059
        %v5324 = vpack.c.b16 %v5072, %v5060
        %v5325 = vpack.c.b16 %v5085, %v5073
        %v5326 = vpack.c.b16 %v5086, %v5074
        %v5327 = vpack.c.b16 %v5087, %v5075
        %v5328 = vpack.c.b16 %v5088, %v5076
        %v5329 = vpack.c.b16 %v5089, %v5077
        %v5330 = vpack.c.b16 %v5090, %v5078
        %v5331 = vpack.c.b16 %v5091, %v5079
        %v5332 = vpack.c.b16 %v5092, %v5080
        %v5333 = vpack.c.b16 %v5093, %v5081
        %v5334 = vpack.c.b16 %v5094, %v5082
        %v5335 = vpack.c.b16 %v5095, %v5083
        %v5336 = vpack.c.b16 %v5096, %v5084
        %v5337 = vpack.c.b16 %v5109, %v5097
        %v5338 = vpack.c.b16 %v5110, %v5098
        %v5339 = vpack.c.b16 %v5111, %v5099
        %v5340 = vpack.c.b16 %v5112, %v5100
        %v5341 = vpack.c.b16 %v5113, %v5101
        %v5342 = vpack.c.b16 %v5114, %v5102
        %v5343 = vpack.c.b16 %v5115, %v5103
        %v5344 = vpack.c.b16 %v5116, %v5104
        %v5345 = vpack.c.b16 %v5117, %v5105
        %v5346 = vpack.c.b16 %v5118, %v5106
        %v5347 = vpack.c.b16 %v5119, %v5107
        %v5348 = vpack.c.b16 %v5120, %v5108
        %v5349 = vpack.c.b16 %v5133, %v5121
        %v5350 = vpack.c.b16 %v5134, %v5122
        %v5351 = vpack.c.b16 %v5135, %v5123
        %v5352 = vpack.c.b16 %v5136, %v5124
        %v5353 = vpack.c.b16 %v5137, %v5125
        %v5354 = vpack.c.b16 %v5138, %v5126
        %v5355 = vpack.c.b16 %v5139, %v5127
        %v5356 = vpack.c.b16 %v5140, %v5128
        %v5357 = vpack.c.b16 %v5141, %v5129
        %v5358 = vpack.c.b16 %v5142, %v5130
        %v5359 = vpack.c.b16 %v5143, %v5131
        %v5360 = vpack.c.b16 %v5144, %v5132
        %v5361 = vpack.c.b16 %v5157, %v5145
        %v5362 = vpack.c.b16 %v5158, %v5146
        %v5363 = vpack.c.b16 %v5159, %v5147
        %v5364 = vpack.c.b16 %v5160, %v5148
        %v5365 = vpack.c.b16 %v5161, %v5149
        %v5366 = vpack.c.b16 %v5162, %v5150
        %v5367 = vpack.c.b16 %v5163, %v5151
        %v5368 = vpack.c.b16 %v5164, %v5152
        %v5369 = vpack.c.b16 %v5165, %v5153
        %v5370 = vpack.c.b16 %v5166, %v5154
        %v5371 = vpack.c.b16 %v5167, %v5155
        %v5372 = vpack.c.b16 %v5168, %v5156
        %v5373 = vpack.c.b16 %v5181, %v5169
        %v5374 = vpack.c.b16 %v5182, %v5170
        %v5375 = vpack.c.b16 %v5183, %v5171
        %v5376 = vpack.c.b16 %v5184, %v5172
        %v5377 = vpack.c.b16 %v5185, %v5173
        %v5378 = vpack.c.b16 %v5186, %v5174
        %v5379 = vpack.c.b16 %v5187, %v5175
        %v5380 = vpack.c.b16 %v5188, %v5176
        %v5381 = vpack.c.b16 %v5189, %v5177
        %v5382 = vpack.c.b16 %v5190, %v5178
        %v5383 = vpack.c.b16 %v5191, %v5179
        %v5384 = vpack.c.b16 %v5192, %v5180
        %v5385 = vpack.c.b16 %v5205, %v5193
        %v5386 = vpack.c.b16 %v5206, %v5194
        %v5387 = vpack.c.b16 %v5207, %v5195
        %v5388 = vpack.c.b16 %v5208, %v5196
        %v5389 = vpack.c.b16 %v5209, %v5197
        %v5390 = vpack.c.b16 %v5210, %v5198
        %v5391 = vpack.c.b16 %v5211, %v5199
        %v5392 = vpack.c.b16 %v5212, %v5200
        %v5393 = vpack.c.b16 %v5213, %v5201
        %v5394 = vpack.c.b16 %v5214, %v5202
        %v5395 = vpack.c.b16 %v5215, %v5203
        %v5396 = vpack.c.b16 %v5216, %v5204
        %v5397 = vpack.c.b16 %v5229, %v5217
        %v5398 = vpack.c.b16 %v5230, %v5218
        %v5399 = vpack.c.b16 %v5231, %v5219
        %v5400 = vpack.c.b16 %v5232, %v5220
        %v5401 = vpack.c.b16 %v5233, %v5221
        %v5402 = vpack.c.b16 %v5234, %v5222
        %v5403 = vpack.c.b16 %v5235, %v5223
        %v5404 = vpack.c.b16 %v5236, %v5224
        %v5405 = vpack.c.b16 %v5237, %v5225
        %v5406 = vpack.c.b16 %v5238, %v5226
        %v5407 = vpack.c.b16 %v5239, %v5227
        %v5408 = vpack.c.b16 %v5240, %v5228
        %v5409 = vpack.c.b16 %v5253, %v5241
        %v5410 = vpack.c.b16 %v5254, %v5242
        %v5411 = vpack.c.b16 %v5255, %v5243
        %v5412 = vpack.c.b16 %v5256, %v5244
        %v5413 = vpack.c.b16 %v5257, %v5245
        %v5414 = vpack.c.b16 %v5258, %v5246
        %v5415 = vpack.c.b16 %v5259, %v5247
        %v5416 = vpack.c.b16 %v5260, %v5248
        %v5417 = vpack.c.b16 %v5261, %v5249
        %v5418 = vpack.c.b16 %v5262, %v5250
        %v5419 = vpack.c.b16 %v5263, %v5251
        %v5420 = vpack.c.b16 %v5264, %v5252
        %v5421 = vpack.c.b16 %v5277, %v5265
        %v5422 = vpack.c.b16 %v5278, %v5266
        %v5423 = vpack.c.b16 %v5279, %v5267
        %v5424 = vpack.c.b16 %v5280, %v5268
        %v5425 = vpack.c.b16 %v5281, %v5269
        %v5426 = vpack.c.b16 %v5282, %v5270
        %v5427 = vpack.c.b16 %v5283, %v5271
        %v5428 = vpack.c.b16 %v5284, %v5272
        %v5429 = vpack.c.b16 %v5285, %v5273
        %v5430 = vpack.c.b16 %v5286, %v5274
        %v5431 = vpack.c.b16 %v5287, %v5275
        %v5432 = vpack.c.b16 %v5288, %v5276
        %vm5577 = vcmask 523264
        %v5579 = vsel %vm5577, %v4560, 0
        %v5582 = vsel %vm5577, %v4562, 0
        %v5585 = vsel %vm5577, %v4564, 0
        %v5588 = vsel %vm5577, %v4566, 0
        %v5591 = vsel %vm5577, %v4568, 0
        %5593 = vmatprep.subr.bf16.mxu0 %v5290
        %5594 = vmatpush1.bf16.msra.mxu0 %v5289
        %5595 = vmatprep.subr.bf16.mxu0 %v5302
        %5596 = vmatpush1.bf16.msra.mxu0 %v5301
        %5597 = vmatprep.subr.bf16.mxu0 %v5314
        %5598 = vmatpush1.bf16.msra.mxu0 %v5313
        %5599 = vmatprep.subr.bf16.mxu0 %v5326
        %5600 = vmatpush1.bf16.msra.mxu0 %v5325
        %5601 = vmatprep.subr.bf16.mxu0 %v5338
        %5602 = vmatpush1.bf16.msra.mxu0 %v5337
        %5603 = vmatprep.subr.bf16.mxu0 %v5350
        %5604 = vmatpush1.bf16.msra.mxu0 %v5349
        %5605 = vmatprep.subr.bf16.mxu0 %v5362
        %5606 = vmatpush1.bf16.msra.mxu0 %v5361
        %5607 = vmatprep.subr.bf16.mxu0 %v5374
        %5608 = vmatpush1.bf16.msra.mxu0 %v5373
        %5609 = vmatprep.subr.bf16.mxu0 %v5386
        %5610 = vmatpush1.bf16.msra.mxu0 %v5385
        %5611 = vmatprep.subr.bf16.mxu0 %v5398
        %5612 = vmatpush1.bf16.msra.mxu0 %v5397
        %5613 = vmatprep.subr.bf16.mxu0 %v5410
        %5614 = vmatpush1.bf16.msra.mxu0 %v5409
        %5615 = vmatprep.subr.bf16.mxu0 %v5422
        %5616 = vmatpush1.bf16.msra.mxu0 %v5421
        %5617 = vmatprep.subr.bf16.mxu0 0
        %5618 = vmatpush1.bf16.msra.mxu0 0
        %5619 = vmatprep.subr.bf16.mxu0 0
        %5620 = vmatpush1.bf16.msra.mxu0 0
        %5621 = vmatprep.subr.bf16.mxu0 0
        %5622 = vmatpush1.bf16.msra.mxu0 0
        %5623 = vmatprep.subr.bf16.mxu0 0
        %5624 = vmatpush1.bf16.msra.mxu0 0
        %5625 = vmatprep.mubr.bf16.mxu0 %v5579
        %5626 = vmatmul.mubr.bf16.gmra.mrb[0].mxu0 %v4559
        %v5627 = vpop.f32.mrb[0].mxu0
        %v5628 = vadd.f32 0.0, %v5627
        %v5629 = vpop.f32.mrb[0].mxu0
        %v5630 = vadd.f32 0.0, %v5629
        %v5631 = vpop.f32.mrb[0].mxu0
        %v5632 = vpop.f32.mrb[0].mxu0
        %5633 = vmatprep.mubr.bf16.mxu0 %v5582
        %5634 = vmatmul.mubr.bf16.gmra.mrb[0].mxu0 %v4561
        %v5635 = vpop.f32.mrb[0].mxu0
        %v5636 = vpop.f32.mrb[0].mxu0
        %v5637 = vpop.f32.mrb[0].mxu0
        %v5638 = vpop.f32.mrb[0].mxu0
        %5639 = vmatprep.mubr.bf16.mxu0 %v5585
        %5640 = vmatmul.mubr.bf16.gmra.mrb[0].mxu0 %v4563
        %v5641 = vpop.f32.mrb[0].mxu0
        %v5642 = vpop.f32.mrb[0].mxu0
        %v5643 = vpop.f32.mrb[0].mxu0
        %v5644 = vpop.f32.mrb[0].mxu0
        %5645 = vmatprep.mubr.bf16.mxu0 %v5588
        %5646 = vmatmul.mubr.bf16.gmra.mrb[0].mxu0 %v4565
        %v5647 = vpop.f32.mrb[0].mxu0
        %v5648 = vpop.f32.mrb[0].mxu0
        %v5649 = vpop.f32.mrb[0].mxu0
        %v5650 = vpop.f32.mrb[0].mxu0
        %5651 = vmatprep.mubr.bf16.mxu0 %v5591
        %5652 = vmatmul.mubr.bf16.gmra.mrb[0].mxu0 %v4567
        %v5653 = vpop.f32.mrb[0].mxu0
        %v5654 = vpop.f32.mrb[0].mxu0
        %v5655 = vpop.f32.mrb[0].mxu0
        %v5656 = vpop.f32.mrb[0].mxu0
        %5657 = vdwg.mxu0
        %5658 = vmatprep.subr.bf16.mxu0 %v5292
        %5659 = vmatpush1.bf16.msra.mxu0 %v5291
        %5660 = vmatprep.subr.bf16.mxu0 %v5304
        %5661 = vmatpush1.bf16.msra.mxu0 %v5303
        %5662 = vmatprep.subr.bf16.mxu0 %v5316
        %5663 = vmatpush1.bf16.msra.mxu0 %v5315
        %5664 = vmatprep.subr.bf16.mxu0 %v5328
        %5665 = vmatpush1.bf16.msra.mxu0 %v5327
        %5666 = vmatprep.subr.bf16.mxu0 %v5340
        %5667 = vmatpush1.bf16.msra.mxu0 %v5339
        %5668 = vmatprep.subr.bf16.mxu0 %v5352
        %5669 = vmatpush1.bf16.msra.mxu0 %v5351
        %5670 = vmatprep.subr.bf16.mxu0 %v5364
        %5671 = vmatpush1.bf16.msra.mxu0 %v5363
        %5672 = vmatprep.subr.bf16.mxu0 %v5376
        %5673 = vmatpush1.bf16.msra.mxu0 %v5375
        %5674 = vmatprep.subr.bf16.mxu0 %v5388
        %5675 = vmatpush1.bf16.msra.mxu0 %v5387
        %5676 = vmatprep.subr.bf16.mxu0 %v5400
        %5677 = vmatpush1.bf16.msra.mxu0 %v5399
        %5678 = vmatprep.subr.bf16.mxu0 %v5412
        %5679 = vmatpush1.bf16.msra.mxu0 %v5411
        %5680 = vmatprep.subr.bf16.mxu0 %v5424
        %5681 = vmatpush1.bf16.msra.mxu0 %v5423
        %5682 = vmatprep.subr.bf16.mxu0 0
        %5683 = vmatpush1.bf16.msra.mxu0 0
        %5684 = vmatprep.subr.bf16.mxu0 0
        %5685 = vmatpush1.bf16.msra.mxu0 0
        %5686 = vmatprep.subr.bf16.mxu0 0
        %5687 = vmatpush1.bf16.msra.mxu0 0
        %5688 = vmatprep.subr.bf16.mxu0 0
        %5689 = vmatpush1.bf16.msra.mxu0 0
        %5690 = vmatprep.mubr.bf16.mxu0 %v5579
        %5691 = vmatmul.mubr.bf16.gmra.mrb[0].mxu0 %v4559
        %v5692 = vpop.f32.mrb[0].mxu0
        %v5693 = vadd.f32 0.0, %v5692
        %v5694 = vpop.f32.mrb[0].mxu0
        %v5695 = vadd.f32 0.0, %v5694
        %v5696 = vpop.f32.mrb[0].mxu0
        %v5697 = vpop.f32.mrb[0].mxu0
        %5698 = vmatprep.mubr.bf16.mxu0 %v5582
        %5699 = vmatmul.mubr.bf16.gmra.mrb[0].mxu0 %v4561
        %v5700 = vpop.f32.mrb[0].mxu0
        %v5701 = vpop.f32.mrb[0].mxu0
        %v5702 = vpop.f32.mrb[0].mxu0
        %v5703 = vpop.f32.mrb[0].mxu0
        %5704 = vmatprep.mubr.bf16.mxu0 %v5585
        %5705 = vmatmul.mubr.bf16.gmra.mrb[0].mxu0 %v4563
        %v5706 = vpop.f32.mrb[0].mxu0
        %v5707 = vpop.f32.mrb[0].mxu0
        %v5708 = vpop.f32.mrb[0].mxu0
        %v5709 = vpop.f32.mrb[0].mxu0
        %5710 = vmatprep.mubr.bf16.mxu0 %v5588
        %5711 = vmatmul.mubr.bf16.gmra.mrb[0].mxu0 %v4565
        %v5712 = vpop.f32.mrb[0].mxu0
        %v5713 = vpop.f32.mrb[0].mxu0
        %v5714 = vpop.f32.mrb[0].mxu0
        %v5715 = vpop.f32.mrb[0].mxu0
        %5716 = vmatprep.mubr.bf16.mxu0 %v5591
        %5717 = vmatmul.mubr.bf16.gmra.mrb[0].mxu0 %v4567
        %v5718 = vpop.f32.mrb[0].mxu0
        %v5719 = vpop.f32.mrb[0].mxu0
        %v5720 = vpop.f32.mrb[0].mxu0
        %v5721 = vpop.f32.mrb[0].mxu0
        %5722 = vdwg.mxu0
        %5723 = vmatprep.subr.bf16.mxu0 %v5294
        %5724 = vmatpush1.bf16.msra.mxu0 %v5293
        %5725 = vmatprep.subr.bf16.mxu0 %v5306
        %5726 = vmatpush1.bf16.msra.mxu0 %v5305
        %5727 = vmatprep.subr.bf16.mxu0 %v5318
        %5728 = vmatpush1.bf16.msra.mxu0 %v5317
        %5729 = vmatprep.subr.bf16.mxu0 %v5330
        %5730 = vmatpush1.bf16.msra.mxu0 %v5329
        %5731 = vmatprep.subr.bf16.mxu0 %v5342
        %5732 = vmatpush1.bf16.msra.mxu0 %v5341
        %5733 = vmatprep.subr.bf16.mxu0 %v5354
        %5734 = vmatpush1.bf16.msra.mxu0 %v5353
        %5735 = vmatprep.subr.bf16.mxu0 %v5366
        %5736 = vmatpush1.bf16.msra.mxu0 %v5365
        %5737 = vmatprep.subr.bf16.mxu0 %v5378
        %5738 = vmatpush1.bf16.msra.mxu0 %v5377
        %5739 = vmatprep.subr.bf16.mxu0 %v5390
        %5740 = vmatpush1.bf16.msra.mxu0 %v5389
        %5741 = vmatprep.subr.bf16.mxu0 %v5402
        %5742 = vmatpush1.bf16.msra.mxu0 %v5401
        %5743 = vmatprep.subr.bf16.mxu0 %v5414
        %5744 = vmatpush1.bf16.msra.mxu0 %v5413
        %5745 = vmatprep.subr.bf16.mxu0 %v5426
        %5746 = vmatpush1.bf16.msra.mxu0 %v5425
        %5747 = vmatprep.subr.bf16.mxu0 0
        %5748 = vmatpush1.bf16.msra.mxu0 0
        %5749 = vmatprep.subr.bf16.mxu0 0
        %5750 = vmatpush1.bf16.msra.mxu0 0
        %5751 = vmatprep.subr.bf16.mxu0 0
        %5752 = vmatpush1.bf16.msra.mxu0 0
        %5753 = vmatprep.subr.bf16.mxu0 0
        %5754 = vmatpush1.bf16.msra.mxu0 0
        %5755 = vmatprep.mubr.bf16.mxu0 %v5579
        %5756 = vmatmul.mubr.bf16.gmra.mrb[0].mxu0 %v4559
        %v5757 = vpop.f32.mrb[0].mxu0
        %v5758 = vpop.f32.mrb[0].mxu0
        %v5759 = vpop.f32.mrb[0].mxu0
        %v5760 = vadd.f32 0.0, %v5759
        %v5761 = vpop.f32.mrb[0].mxu0
        %v5762 = vadd.f32 0.0, %v5761
        %5763 = vmatprep.mubr.bf16.mxu0 %v5582
        %5764 = vmatmul.mubr.bf16.gmra.mrb[0].mxu0 %v4561
        %v5765 = vpop.f32.mrb[0].mxu0
        %v5766 = vadd.f32 0.0, %v5765
        %v5767 = vpop.f32.mrb[0].mxu0
        %v5768 = vadd.f32 0.0, %v5767
        %v5769 = vpop.f32.mrb[0].mxu0
        %v5770 = vadd.f32 0.0, %v5769
        %v5771 = vpop.f32.mrb[0].mxu0
        %v5772 = vadd.f32 0.0, %v5771
        %5773 = vmatprep.mubr.bf16.mxu0 %v5585
        %5774 = vmatmul.mubr.bf16.gmra.mrb[0].mxu0 %v4563
        %v5775 = vpop.f32.mrb[0].mxu0
        %v5776 = vadd.f32 0.0, %v5775
        %v5777 = vpop.f32.mrb[0].mxu0
        %v5778 = vadd.f32 0.0, %v5777
        %v5779 = vpop.f32.mrb[0].mxu0
        %v5780 = vadd.f32 0.0, %v5779
        %v5781 = vpop.f32.mrb[0].mxu0
        %v5782 = vadd.f32 0.0, %v5781
        %5783 = vmatprep.mubr.bf16.mxu0 %v5588
        %5784 = vmatmul.mubr.bf16.gmra.mrb[0].mxu0 %v4565
        %v5785 = vpop.f32.mrb[0].mxu0
        %v5786 = vadd.f32 0.0, %v5785
        %v5787 = vpop.f32.mrb[0].mxu0
        %v5788 = vadd.f32 0.0, %v5787
        %v5789 = vpop.f32.mrb[0].mxu0
        %v5790 = vadd.f32 0.0, %v5789
        %v5791 = vpop.f32.mrb[0].mxu0
        %v5792 = vadd.f32 0.0, %v5791
        %5793 = vmatprep.mubr.bf16.mxu0 %v5591
        %5794 = vmatmul.mubr.bf16.gmra.mrb[0].mxu0 %v4567
        %v5795 = vpop.f32.mrb[0].mxu0
        %v5796 = vadd.f32 0.0, %v5795
        %v5797 = vpop.f32.mrb[0].mxu0
        %v5798 = vadd.f32 0.0, %v5797
        %v5799 = vpop.f32.mrb[0].mxu0
        %v5800 = vpop.f32.mrb[0].mxu0
        %5801 = vdwg.mxu0
        %5802 = vmatprep.subr.bf16.mxu0 %v5296
        %5803 = vmatpush1.bf16.msra.mxu0 %v5295
        %5804 = vmatprep.subr.bf16.mxu0 %v5308
        %5805 = vmatpush1.bf16.msra.mxu0 %v5307
        %5806 = vmatprep.subr.bf16.mxu0 %v5320
        %5807 = vmatpush1.bf16.msra.mxu0 %v5319
        %5808 = vmatprep.subr.bf16.mxu0 %v5332
        %5809 = vmatpush1.bf16.msra.mxu0 %v5331
        %5810 = vmatprep.subr.bf16.mxu0 %v5344
        %5811 = vmatpush1.bf16.msra.mxu0 %v5343
        %5812 = vmatprep.subr.bf16.mxu0 %v5356
        %5813 = vmatpush1.bf16.msra.mxu0 %v5355
        %5814 = vmatprep.subr.bf16.mxu0 %v5368
        %5815 = vmatpush1.bf16.msra.mxu0 %v5367
        %5816 = vmatprep.subr.bf16.mxu0 %v5380
        %5817 = vmatpush1.bf16.msra.mxu0 %v5379
        %5818 = vmatprep.subr.bf16.mxu0 %v5392
        %5819 = vmatpush1.bf16.msra.mxu0 %v5391
        %5820 = vmatprep.subr.bf16.mxu0 %v5404
        %5821 = vmatpush1.bf16.msra.mxu0 %v5403
        %5822 = vmatprep.subr.bf16.mxu0 %v5416
        %5823 = vmatpush1.bf16.msra.mxu0 %v5415
        %5824 = vmatprep.subr.bf16.mxu0 %v5428
        %5825 = vmatpush1.bf16.msra.mxu0 %v5427
        %5826 = vmatprep.subr.bf16.mxu0 0
        %5827 = vmatpush1.bf16.msra.mxu0 0
        %5828 = vmatprep.subr.bf16.mxu0 0
        %5829 = vmatpush1.bf16.msra.mxu0 0
        %5830 = vmatprep.subr.bf16.mxu0 0
        %5831 = vmatpush1.bf16.msra.mxu0 0
        %5832 = vmatprep.subr.bf16.mxu0 0
        %5833 = vmatpush1.bf16.msra.mxu0 0
        %5834 = vmatprep.mubr.bf16.mxu0 %v5579
        %5835 = vmatmul.mubr.bf16.gmra.mrb[0].mxu0 %v4559
        %v5836 = vpop.f32.mrb[0].mxu0
        %v5837 = vpop.f32.mrb[0].mxu0
        %v5838 = vpop.f32.mrb[0].mxu0
        %v5839 = vadd.f32 0.0, %v5838
        %v5840 = vpop.f32.mrb[0].mxu0
        %v5841 = vadd.f32 0.0, %v5840
        %5842 = vmatprep.mubr.bf16.mxu0 %v5582
        %5843 = vmatmul.mubr.bf16.gmra.mrb[0].mxu0 %v4561
        %v5844 = vpop.f32.mrb[0].mxu0
        %v5845 = vadd.f32 0.0, %v5844
        %v5846 = vpop.f32.mrb[0].mxu0
        %v5847 = vadd.f32 0.0, %v5846
        %v5848 = vpop.f32.mrb[0].mxu0
        %v5849 = vadd.f32 0.0, %v5848
        %v5850 = vpop.f32.mrb[0].mxu0
        %v5851 = vadd.f32 0.0, %v5850
        %5852 = vmatprep.mubr.bf16.mxu0 %v5585
        %5853 = vmatmul.mubr.bf16.gmra.mrb[0].mxu0 %v4563
        %v5854 = vpop.f32.mrb[0].mxu0
        %v5855 = vadd.f32 0.0, %v5854
        %v5856 = vpop.f32.mrb[0].mxu0
        %v5857 = vadd.f32 0.0, %v5856
        %v5858 = vpop.f32.mrb[0].mxu0
        %v5859 = vadd.f32 0.0, %v5858
        %v5860 = vpop.f32.mrb[0].mxu0
        %v5861 = vadd.f32 0.0, %v5860
        %5862 = vmatprep.mubr.bf16.mxu0 %v5588
        %5863 = vmatmul.mubr.bf16.gmra.mrb[0].mxu0 %v4565
        %v5864 = vpop.f32.mrb[0].mxu0
        %v5865 = vadd.f32 0.0, %v5864
        %v5866 = vpop.f32.mrb[0].mxu0
        %v5867 = vadd.f32 0.0, %v5866
        %v5868 = vpop.f32.mrb[0].mxu0
        %v5869 = vadd.f32 0.0, %v5868
        %v5870 = vpop.f32.mrb[0].mxu0
        %v5871 = vadd.f32 0.0, %v5870
        %5872 = vmatprep.mubr.bf16.mxu0 %v5591
        %5873 = vmatmul.mubr.bf16.gmra.mrb[0].mxu0 %v4567
        %v5874 = vpop.f32.mrb[0].mxu0
        %v5875 = vadd.f32 0.0, %v5874
        %v5876 = vpop.f32.mrb[0].mxu0
        %v5877 = vadd.f32 0.0, %v5876
        %v5878 = vpop.f32.mrb[0].mxu0
        %v5879 = vpop.f32.mrb[0].mxu0
        %5880 = vdwg.mxu0
        %5881 = vmatprep.subr.bf16.mxu0 %v5298
        %5882 = vmatpush1.bf16.msra.mxu0 %v5297
        %5883 = vmatprep.subr.bf16.mxu0 %v5310
        %5884 = vmatpush1.bf16.msra.mxu0 %v5309
        %5885 = vmatprep.subr.bf16.mxu0 %v5322
        %5886 = vmatpush1.bf16.msra.mxu0 %v5321
        %5887 = vmatprep.subr.bf16.mxu0 %v5334
        %5888 = vmatpush1.bf16.msra.mxu0 %v5333
        %5889 = vmatprep.subr.bf16.mxu0 %v5346
        %5890 = vmatpush1.bf16.msra.mxu0 %v5345
        %5891 = vmatprep.subr.bf16.mxu0 %v5358
        %5892 = vmatpush1.bf16.msra.mxu0 %v5357
        %5893 = vmatprep.subr.bf16.mxu0 %v5370
        %5894 = vmatpush1.bf16.msra.mxu0 %v5369
        %5895 = vmatprep.subr.bf16.mxu0 %v5382
        %5896 = vmatpush1.bf16.msra.mxu0 %v5381
        %5897 = vmatprep.subr.bf16.mxu0 %v5394
        %5898 = vmatpush1.bf16.msra.mxu0 %v5393
        %5899 = vmatprep.subr.bf16.mxu0 %v5406
        %5900 = vmatpush1.bf16.msra.mxu0 %v5405
        %5901 = vmatprep.subr.bf16.mxu0 %v5418
        %5902 = vmatpush1.bf16.msra.mxu0 %v5417
        %5903 = vmatprep.subr.bf16.mxu0 %v5430
        %5904 = vmatpush1.bf16.msra.mxu0 %v5429
        %5905 = vmatprep.subr.bf16.mxu0 0
        %5906 = vmatpush1.bf16.msra.mxu0 0
        %5907 = vmatprep.subr.bf16.mxu0 0
        %5908 = vmatpush1.bf16.msra.mxu0 0
        %5909 = vmatprep.subr.bf16.mxu0 0
        %5910 = vmatpush1.bf16.msra.mxu0 0
        %5911 = vmatprep.subr.bf16.mxu0 0
        %5912 = vmatpush1.bf16.msra.mxu0 0
        %5913 = vmatprep.mubr.bf16.mxu0 %v5579
        %5914 = vmatmul.mubr.bf16.gmra.mrb[0].mxu0 %v4559
        %v5915 = vpop.f32.mrb[0].mxu0
        %v5916 = vpop.f32.mrb[0].mxu0
        %v5917 = vpop.f32.mrb[0].mxu0
        %v5918 = vadd.f32 0.0, %v5917
        %v5919 = vpop.f32.mrb[0].mxu0
        %v5920 = vadd.f32 0.0, %v5919
        %5921 = vmatprep.mubr.bf16.mxu0 %v5582
        %5922 = vmatmul.mubr.bf16.gmra.mrb[0].mxu0 %v4561
        %v5923 = vpop.f32.mrb[0].mxu0
        %v5924 = vadd.f32 0.0, %v5923
        %v5925 = vpop.f32.mrb[0].mxu0
        %v5926 = vadd.f32 0.0, %v5925
        %v5927 = vpop.f32.mrb[0].mxu0
        %v5928 = vadd.f32 0.0, %v5927
        %v5929 = vpop.f32.mrb[0].mxu0
        %v5930 = vadd.f32 0.0, %v5929
        %5931 = vmatprep.mubr.bf16.mxu0 %v5585
        %5932 = vmatmul.mubr.bf16.gmra.mrb[0].mxu0 %v4563
        %v5933 = vpop.f32.mrb[0].mxu0
        %v5934 = vadd.f32 0.0, %v5933
        %v5935 = vpop.f32.mrb[0].mxu0
        %v5936 = vadd.f32 0.0, %v5935
        %v5937 = vpop.f32.mrb[0].mxu0
        %v5938 = vadd.f32 0.0, %v5937
        %v5939 = vpop.f32.mrb[0].mxu0
        %v5940 = vadd.f32 0.0, %v5939
        %5941 = vmatprep.mubr.bf16.mxu0 %v5588
        %5942 = vmatmul.mubr.bf16.gmra.mrb[0].mxu0 %v4565
        %v5943 = vpop.f32.mrb[0].mxu0
        %v5944 = vadd.f32 0.0, %v5943
        %v5945 = vpop.f32.mrb[0].mxu0
        %v5946 = vadd.f32 0.0, %v5945
        %v5947 = vpop.f32.mrb[0].mxu0
        %v5948 = vadd.f32 0.0, %v5947
        %v5949 = vpop.f32.mrb[0].mxu0
        %v5950 = vadd.f32 0.0, %v5949
        %5951 = vmatprep.mubr.bf16.mxu0 %v5591
        %5952 = vmatmul.mubr.bf16.gmra.mrb[0].mxu0 %v4567
        %v5953 = vpop.f32.mrb[0].mxu0
        %v5954 = vadd.f32 0.0, %v5953
        %v5955 = vpop.f32.mrb[0].mxu0
        %v5956 = vadd.f32 0.0, %v5955
        %v5957 = vpop.f32.mrb[0].mxu0
        %v5958 = vpop.f32.mrb[0].mxu0
        %5959 = vdwg.mxu0
        %5960 = vmatprep.subr.bf16.mxu0 %v5300
        %5961 = vmatpush1.bf16.msra.mxu0 %v5299
        %5962 = vmatprep.subr.bf16.mxu0 %v5312
        %5963 = vmatpush1.bf16.msra.mxu0 %v5311
        %5964 = vmatprep.subr.bf16.mxu0 %v5324
        %5965 = vmatpush1.bf16.msra.mxu0 %v5323
        %5966 = vmatprep.subr.bf16.mxu0 %v5336
        %5967 = vmatpush1.bf16.msra.mxu0 %v5335
        %5968 = vmatprep.subr.bf16.mxu0 %v5348
        %5969 = vmatpush1.bf16.msra.mxu0 %v5347
        %5970 = vmatprep.subr.bf16.mxu0 %v5360
        %5971 = vmatpush1.bf16.msra.mxu0 %v5359
        %5972 = vmatprep.subr.bf16.mxu0 %v5372
        %5973 = vmatpush1.bf16.msra.mxu0 %v5371
        %5974 = vmatprep.subr.bf16.mxu0 %v5384
        %5975 = vmatpush1.bf16.msra.mxu0 %v5383
        %5976 = vmatprep.subr.bf16.mxu0 %v5396
        %5977 = vmatpush1.bf16.msra.mxu0 %v5395
        %5978 = vmatprep.subr.bf16.mxu0 %v5408
        %5979 = vmatpush1.bf16.msra.mxu0 %v5407
        %5980 = vmatprep.subr.bf16.mxu0 %v5420
        %5981 = vmatpush1.bf16.msra.mxu0 %v5419
        %5982 = vmatprep.subr.bf16.mxu0 %v5432
        %5983 = vmatpush1.bf16.msra.mxu0 %v5431
        %5984 = vmatprep.subr.bf16.mxu0 0
        %5985 = vmatpush1.bf16.msra.mxu0 0
        %5986 = vmatprep.subr.bf16.mxu0 0
        %5987 = vmatpush1.bf16.msra.mxu0 0
        %5988 = vmatprep.subr.bf16.mxu0 0
        %5989 = vmatpush1.bf16.msra.mxu0 0
        %5990 = vmatprep.subr.bf16.mxu0 0
        %5991 = vmatpush1.bf16.msra.mxu0 0
        %5992 = vmatprep.mubr.bf16.mxu0 %v5579
        %5993 = vmatmul.mubr.bf16.gmra.mrb[0].mxu0 %v4559
        %v5994 = vpop.f32.mrb[0].mxu0
        %v5995 = vpop.f32.mrb[0].mxu0
        %v5996 = vpop.f32.mrb[0].mxu0
        %v5997 = vadd.f32 0.0, %v5996
        %v5998 = vpop.f32.mrb[0].mxu0
        %v5999 = vadd.f32 0.0, %v5998
        %6000 = vmatprep.mubr.bf16.mxu0 %v5582
        %6001 = vmatmul.mubr.bf16.gmra.mrb[0].mxu0 %v4561
        %v6002 = vpop.f32.mrb[0].mxu0
        %v6003 = vadd.f32 0.0, %v6002
        %v6004 = vpop.f32.mrb[0].mxu0
        %v6005 = vadd.f32 0.0, %v6004
        %v6006 = vpop.f32.mrb[0].mxu0
        %v6007 = vadd.f32 0.0, %v6006
        %v6008 = vpop.f32.mrb[0].mxu0
        %v6009 = vadd.f32 0.0, %v6008
        %6010 = vmatprep.mubr.bf16.mxu0 %v5585
        %6011 = vmatmul.mubr.bf16.gmra.mrb[0].mxu0 %v4563
        %v6012 = vpop.f32.mrb[0].mxu0
        %v6013 = vadd.f32 0.0, %v6012
        %v6014 = vpop.f32.mrb[0].mxu0
        %v6015 = vadd.f32 0.0, %v6014
        %v6016 = vpop.f32.mrb[0].mxu0
        %v6017 = vadd.f32 0.0, %v6016
        %v6018 = vpop.f32.mrb[0].mxu0
        %v6019 = vadd.f32 0.0, %v6018
        %6020 = vmatprep.mubr.bf16.mxu0 %v5588
        %6021 = vmatmul.mubr.bf16.gmra.mrb[0].mxu0 %v4565
        %v6022 = vpop.f32.mrb[0].mxu0
        %v6023 = vadd.f32 0.0, %v6022
        %v6024 = vpop.f32.mrb[0].mxu0
        %v6025 = vadd.f32 0.0, %v6024
        %v6026 = vpop.f32.mrb[0].mxu0
        %v6027 = vadd.f32 0.0, %v6026
        %v6028 = vpop.f32.mrb[0].mxu0
        %v6029 = vadd.f32 0.0, %v6028
        %6030 = vmatprep.mubr.bf16.mxu0 %v5591
        %6031 = vmatmul.mubr.bf16.gmra.mrb[0].mxu0 %v4567
        %v6032 = vpop.f32.mrb[0].mxu0
        %v6033 = vadd.f32 0.0, %v6032
        %v6034 = vpop.f32.mrb[0].mxu0
        %v6035 = vadd.f32 0.0, %v6034
        %v6036 = vpop.f32.mrb[0].mxu0
        %v6037 = vpop.f32.mrb[0].mxu0
        %6038 = vdwg.mxu0
        %v6183 = vunpack.c.l.b16 %v4569
        %v6184 = vunpack.c.h.b16 %v4569
        %v6185 = vunpack.c.l.b16 %v4570
        %v6186 = vunpack.c.h.b16 %v4570
        %v6187 = vunpack.c.l.b16 %v4571
        %v6188 = vunpack.c.h.b16 %v4571
        %v6189 = vunpack.c.l.b16 %v4572
        %v6190 = vunpack.c.h.b16 %v4572
        %v6191 = vunpack.c.l.b16 %v4573
        %v6192 = vunpack.c.h.b16 %v4573
        %v6193 = vunpack.c.l.b16 %v4574
        %v6194 = vunpack.c.h.b16 %v4574
        %v6195 = vunpack.c.l.b16 %v4575
        %v6196 = vunpack.c.h.b16 %v4575
        %v6197 = vunpack.c.l.b16 %v4576
        %v6198 = vunpack.c.h.b16 %v4576
        %v6199 = vunpack.c.l.b16 %v4577
        %v6200 = vunpack.c.h.b16 %v4577
        %v6201 = vunpack.c.l.b16 %v4578
        %v6202 = vunpack.c.h.b16 %v4578
        %v6203 = vunpack.c.l.b16 %v4579
        %v6204 = vunpack.c.h.b16 %v4579
        %v6205 = vunpack.c.l.b16 %v4580
        %v6206 = vunpack.c.h.b16 %v4580
        %v6207 = vunpack.c.l.b16 %v4581
        %v6208 = vunpack.c.h.b16 %v4581
        %v6209 = vunpack.c.l.b16 %v4582
        %v6210 = vunpack.c.h.b16 %v4582
        %v6211 = vunpack.c.l.b16 %v4583
        %v6212 = vunpack.c.h.b16 %v4583
        %v6213 = vunpack.c.l.b16 %v4584
        %v6214 = vunpack.c.h.b16 %v4584
        %v6215 = vunpack.c.l.b16 %v4585
        %v6216 = vunpack.c.h.b16 %v4585
        %v6217 = vunpack.c.l.b16 %v4586
        %v6218 = vunpack.c.h.b16 %v4586
        %v6219 = vunpack.c.l.b16 %v4587
        %v6220 = vunpack.c.h.b16 %v4587
        %v6221 = vunpack.c.l.b16 %v4588
        %v6222 = vunpack.c.h.b16 %v4588
        %v6223 = vunpack.c.l.b16 %v4589
        %v6224 = vunpack.c.h.b16 %v4589
        %v6225 = vunpack.c.l.b16 %v4590
        %v6226 = vunpack.c.h.b16 %v4590
        %v6227 = vunpack.c.l.b16 %v4591
        %v6228 = vunpack.c.h.b16 %v4591
        %v6229 = vunpack.c.l.b16 %v4592
        %v6230 = vunpack.c.h.b16 %v4592
        %v6231 = vunpack.c.l.b16 %v4593
        %v6232 = vunpack.c.h.b16 %v4593
        %v6233 = vunpack.c.l.b16 %v4594
        %v6234 = vunpack.c.h.b16 %v4594
        %v6235 = vunpack.c.l.b16 %v4595
        %v6236 = vunpack.c.h.b16 %v4595
        %v6237 = vunpack.c.l.b16 %v4596
        %v6238 = vunpack.c.h.b16 %v4596
        %v6239 = vunpack.c.l.b16 %v4597
        %v6240 = vunpack.c.h.b16 %v4597
        %v6241 = vunpack.c.l.b16 %v4598
        %v6242 = vunpack.c.h.b16 %v4598
        %v6243 = vunpack.c.l.b16 %v4599
        %v6244 = vunpack.c.h.b16 %v4599
        %v6245 = vunpack.c.l.b16 %v4600
        %v6246 = vunpack.c.h.b16 %v4600
        %v6247 = vunpack.c.l.b16 %v4601
        %v6248 = vunpack.c.h.b16 %v4601
        %v6249 = vunpack.c.l.b16 %v4602
        %v6250 = vunpack.c.h.b16 %v4602
        %v6251 = vunpack.c.l.b16 %v4603
        %v6252 = vunpack.c.h.b16 %v4603
        %v6253 = vunpack.c.l.b16 %v4604
        %v6254 = vunpack.c.h.b16 %v4604
        %v6255 = vunpack.c.l.b16 %v4605
        %v6256 = vunpack.c.h.b16 %v4605
        %v6257 = vunpack.c.l.b16 %v4606
        %v6258 = vunpack.c.h.b16 %v4606
        %v6259 = vunpack.c.l.b16 %v4607
        %v6260 = vunpack.c.h.b16 %v4607
        %v6261 = vunpack.c.l.b16 %v4608
        %v6262 = vunpack.c.h.b16 %v4608
        %v6263 = vunpack.c.l.b16 %v4609
        %v6264 = vunpack.c.h.b16 %v4609
        %v6265 = vunpack.c.l.b16 %v4610
        %v6266 = vunpack.c.h.b16 %v4610
        %v6267 = vunpack.c.l.b16 %v4611
        %v6268 = vunpack.c.h.b16 %v4611
        %v6269 = vunpack.c.l.b16 %v4612
        %v6270 = vunpack.c.h.b16 %v4612
        %v6271 = vunpack.c.l.b16 %v4613
        %v6272 = vunpack.c.h.b16 %v4613
        %v6273 = vunpack.c.l.b16 %v4614
        %v6274 = vunpack.c.h.b16 %v4614
        %v6275 = vunpack.c.l.b16 %v4615
        %v6276 = vunpack.c.h.b16 %v4615
        %v6277 = vunpack.c.l.b16 %v4616
        %v6278 = vunpack.c.h.b16 %v4616
        %v6279 = vunpack.c.l.b16 %v4617
        %v6280 = vunpack.c.h.b16 %v4617
        %v6281 = vunpack.c.l.b16 %v4618
        %v6282 = vunpack.c.h.b16 %v4618
        %v6283 = vunpack.c.l.b16 %v4619
        %v6284 = vunpack.c.h.b16 %v4619
        %v6285 = vunpack.c.l.b16 %v4620
        %v6286 = vunpack.c.h.b16 %v4620
        %v6287 = vunpack.c.l.b16 %v4621
        %v6288 = vunpack.c.h.b16 %v4621
        %v6289 = vunpack.c.l.b16 %v4622
        %v6290 = vunpack.c.h.b16 %v4622
        %v6291 = vunpack.c.l.b16 %v4623
        %v6292 = vunpack.c.h.b16 %v4623
        %v6293 = vunpack.c.l.b16 %v4624
        %v6294 = vunpack.c.h.b16 %v4624
        %v6295 = vunpack.c.l.b16 %v4625
        %v6296 = vunpack.c.h.b16 %v4625
        %v6297 = vunpack.c.l.b16 %v4626
        %v6298 = vunpack.c.h.b16 %v4626
        %v6299 = vunpack.c.l.b16 %v4627
        %v6300 = vunpack.c.h.b16 %v4627
        %v6301 = vunpack.c.l.b16 %v4628
        %v6302 = vunpack.c.h.b16 %v4628
        %v6303 = vunpack.c.l.b16 %v4629
        %v6304 = vunpack.c.h.b16 %v4629
        %v6305 = vunpack.c.l.b16 %v4630
        %v6306 = vunpack.c.h.b16 %v4630
        %v6307 = vunpack.c.l.b16 %v4631
        %v6308 = vunpack.c.h.b16 %v4631
        %v6309 = vunpack.c.l.b16 %v4632
        %v6310 = vunpack.c.h.b16 %v4632
        %v6311 = vunpack.c.l.b16 %v4633
        %v6312 = vunpack.c.h.b16 %v4633
        %v6313 = vunpack.c.l.b16 %v4634
        %v6314 = vunpack.c.h.b16 %v4634
        %v6315 = vunpack.c.l.b16 %v4635
        %v6316 = vunpack.c.h.b16 %v4635
        %v6317 = vunpack.c.l.b16 %v4636
        %v6318 = vunpack.c.h.b16 %v4636
        %v6319 = vunpack.c.l.b16 %v4637
        %v6320 = vunpack.c.h.b16 %v4637
        %v6321 = vunpack.c.l.b16 %v4638
        %v6322 = vunpack.c.h.b16 %v4638
        %v6323 = vunpack.c.l.b16 %v4639
        %v6324 = vunpack.c.h.b16 %v4639
        %v6325 = vunpack.c.l.b16 %v4640
        %v6326 = vunpack.c.h.b16 %v4640
        %v6327 = vunpack.c.l.b16 %v4641
        %v6328 = vunpack.c.h.b16 %v4641
        %v6329 = vunpack.c.l.b16 %v4642
        %v6330 = vunpack.c.h.b16 %v4642
        %v6331 = vunpack.c.l.b16 %v4643
        %v6332 = vunpack.c.h.b16 %v4643
        %v6333 = vunpack.c.l.b16 %v4644
        %v6334 = vunpack.c.h.b16 %v4644
        %v6335 = vunpack.c.l.b16 %v4645
        %v6336 = vunpack.c.h.b16 %v4645
        %v6337 = vunpack.c.l.b16 %v4646
        %v6338 = vunpack.c.h.b16 %v4646
        %v6339 = vunpack.c.l.b16 %v4647
        %v6340 = vunpack.c.h.b16 %v4647
        %v6341 = vunpack.c.l.b16 %v4648
        %v6342 = vunpack.c.h.b16 %v4648
        %v6343 = vunpack.c.l.b16 %v4649
        %v6344 = vunpack.c.h.b16 %v4649
        %v6345 = vunpack.c.l.b16 %v4650
        %v6346 = vunpack.c.h.b16 %v4650
        %v6347 = vunpack.c.l.b16 %v4651
        %v6348 = vunpack.c.h.b16 %v4651
        %v6349 = vunpack.c.l.b16 %v4652
        %v6350 = vunpack.c.h.b16 %v4652
        %v6351 = vunpack.c.l.b16 %v4653
        %v6352 = vunpack.c.h.b16 %v4653
        %v6353 = vunpack.c.l.b16 %v4654
        %v6354 = vunpack.c.h.b16 %v4654
        %v6355 = vunpack.c.l.b16 %v4655
        %v6356 = vunpack.c.h.b16 %v4655
        %v6357 = vunpack.c.l.b16 %v4656
        %v6358 = vunpack.c.h.b16 %v4656
        %v6359 = vunpack.c.l.b16 %v4657
        %v6360 = vunpack.c.h.b16 %v4657
        %v6361 = vunpack.c.l.b16 %v4658
        %v6362 = vunpack.c.h.b16 %v4658
        %v6363 = vunpack.c.l.b16 %v4659
        %v6364 = vunpack.c.h.b16 %v4659
        %v6365 = vunpack.c.l.b16 %v4660
        %v6366 = vunpack.c.h.b16 %v4660
        %v6367 = vunpack.c.l.b16 %v4661
        %v6368 = vunpack.c.h.b16 %v4661
        %v6369 = vunpack.c.l.b16 %v4662
        %v6370 = vunpack.c.h.b16 %v4662
        %v6371 = vunpack.c.l.b16 %v4663
        %v6372 = vunpack.c.h.b16 %v4663
        %v6373 = vunpack.c.l.b16 %v4664
        %v6374 = vunpack.c.h.b16 %v4664
        %v6375 = vunpack.c.l.b16 %v4665
        %v6376 = vunpack.c.h.b16 %v4665
        %v6377 = vunpack.c.l.b16 %v4666
        %v6378 = vunpack.c.h.b16 %v4666
        %v6379 = vunpack.c.l.b16 %v4667
        %v6380 = vunpack.c.h.b16 %v4667
        %v6381 = vunpack.c.l.b16 %v4668
        %v6382 = vunpack.c.h.b16 %v4668
        %v6383 = vunpack.c.l.b16 %v4669
        %v6384 = vunpack.c.h.b16 %v4669
        %v6385 = vunpack.c.l.b16 %v4670
        %v6386 = vunpack.c.h.b16 %v4670
        %v6387 = vunpack.c.l.b16 %v4671
        %v6388 = vunpack.c.h.b16 %v4671
        %v6389 = vunpack.c.l.b16 %v4672
        %v6390 = vunpack.c.h.b16 %v4672
        %v6391 = vunpack.c.l.b16 %v4673
        %v6392 = vunpack.c.h.b16 %v4673
        %v6393 = vunpack.c.l.b16 %v4674
        %v6394 = vunpack.c.h.b16 %v4674
        %v6395 = vunpack.c.l.b16 %v4675
        %v6396 = vunpack.c.h.b16 %v4675
        %v6397 = vunpack.c.l.b16 %v4676
        %v6398 = vunpack.c.h.b16 %v4676
        %v6399 = vunpack.c.l.b16 %v4677
        %v6400 = vunpack.c.h.b16 %v4677
        %v6401 = vunpack.c.l.b16 %v4678
        %v6402 = vunpack.c.h.b16 %v4678
        %v6403 = vunpack.c.l.b16 %v4679
        %v6404 = vunpack.c.h.b16 %v4679
        %v6405 = vunpack.c.l.b16 %v4680
        %v6406 = vunpack.c.h.b16 %v4680
        %v6407 = vunpack.c.l.b16 %v4681
        %v6408 = vunpack.c.h.b16 %v4681
        %v6409 = vunpack.c.l.b16 %v4682
        %v6410 = vunpack.c.h.b16 %v4682
        %v6411 = vunpack.c.l.b16 %v4683
        %v6412 = vunpack.c.h.b16 %v4683
        %v6413 = vunpack.c.l.b16 %v4684
        %v6414 = vunpack.c.h.b16 %v4684
        %v6415 = vunpack.c.l.b16 %v4685
        %v6416 = vunpack.c.h.b16 %v4685
        %v6417 = vunpack.c.l.b16 %v4686
        %v6418 = vunpack.c.h.b16 %v4686
        %v6419 = vunpack.c.l.b16 %v4687
        %v6420 = vunpack.c.h.b16 %v4687
        %v6421 = vunpack.c.l.b16 %v4688
        %v6422 = vunpack.c.h.b16 %v4688
        %v6423 = vunpack.c.l.b16 %v4689
        %v6424 = vunpack.c.h.b16 %v4689
        %v6425 = vunpack.c.l.b16 %v4690
        %v6426 = vunpack.c.h.b16 %v4690
        %v6427 = vunpack.c.l.b16 %v4691
        %v6428 = vunpack.c.h.b16 %v4691
        %v6429 = vunpack.c.l.b16 %v4692
        %v6430 = vunpack.c.h.b16 %v4692
        %v6431 = vunpack.c.l.b16 %v4693
        %v6432 = vunpack.c.h.b16 %v4693
        %v6433 = vunpack.c.l.b16 %v4694
        %v6434 = vunpack.c.h.b16 %v4694
        %v6435 = vunpack.c.l.b16 %v4695
        %v6436 = vunpack.c.h.b16 %v4695
        %v6437 = vunpack.c.l.b16 %v4696
        %v6438 = vunpack.c.h.b16 %v4696
        %v6439 = vunpack.c.l.b16 %v4697
        %v6440 = vunpack.c.h.b16 %v4697
        %v6441 = vunpack.c.l.b16 %v4698
        %v6442 = vunpack.c.h.b16 %v4698
        %v6443 = vunpack.c.l.b16 %v4699
        %v6444 = vunpack.c.h.b16 %v4699
        %v6445 = vunpack.c.l.b16 %v4700
        %v6446 = vunpack.c.h.b16 %v4700
        %v6447 = vunpack.c.l.b16 %v4701
        %v6448 = vunpack.c.h.b16 %v4701
        %v6449 = vunpack.c.l.b16 %v4702
        %v6450 = vunpack.c.h.b16 %v4702
        %v6451 = vunpack.c.l.b16 %v4703
        %v6452 = vunpack.c.h.b16 %v4703
        %v6453 = vunpack.c.l.b16 %v4704
        %v6454 = vunpack.c.h.b16 %v4704
        %v6455 = vunpack.c.l.b16 %v4705
        %v6456 = vunpack.c.h.b16 %v4705
        %v6457 = vunpack.c.l.b16 %v4706
        %v6458 = vunpack.c.h.b16 %v4706
        %v6459 = vunpack.c.l.b16 %v4707
        %v6460 = vunpack.c.h.b16 %v4707
        %v6461 = vunpack.c.l.b16 %v4708
        %v6462 = vunpack.c.h.b16 %v4708
        %v6463 = vunpack.c.l.b16 %v4709
        %v6464 = vunpack.c.h.b16 %v4709
        %v6465 = vunpack.c.l.b16 %v4710
        %v6466 = vunpack.c.h.b16 %v4710
        %v6467 = vunpack.c.l.b16 %v4711
        %v6468 = vunpack.c.h.b16 %v4711
        %v6469 = vunpack.c.l.b16 %v4712
        %v6470 = vunpack.c.h.b16 %v4712
        %v6471 = vpack.c.b16 %v6195, %v6183
        %v6472 = vpack.c.b16 %v6196, %v6184
        %v6473 = vpack.c.b16 %v6197, %v6185
        %v6474 = vpack.c.b16 %v6198, %v6186
        %v6475 = vpack.c.b16 %v6199, %v6187
        %v6476 = vpack.c.b16 %v6200, %v6188
        %v6477 = vpack.c.b16 %v6201, %v6189
        %v6478 = vpack.c.b16 %v6202, %v6190
        %v6479 = vpack.c.b16 %v6203, %v6191
        %v6480 = vpack.c.b16 %v6204, %v6192
        %v6481 = vpack.c.b16 %v6205, %v6193
        %v6482 = vpack.c.b16 %v6206, %v6194
        %v6483 = vpack.c.b16 %v6219, %v6207
        %v6484 = vpack.c.b16 %v6220, %v6208
        %v6485 = vpack.c.b16 %v6221, %v6209
        %v6486 = vpack.c.b16 %v6222, %v6210
        %v6487 = vpack.c.b16 %v6223, %v6211
        %v6488 = vpack.c.b16 %v6224, %v6212
        %v6489 = vpack.c.b16 %v6225, %v6213
        %v6490 = vpack.c.b16 %v6226, %v6214
        %v6491 = vpack.c.b16 %v6227, %v6215
        %v6492 = vpack.c.b16 %v6228, %v6216
        %v6493 = vpack.c.b16 %v6229, %v6217
        %v6494 = vpack.c.b16 %v6230, %v6218
        %v6495 = vpack.c.b16 %v6243, %v6231
        %v6496 = vpack.c.b16 %v6244, %v6232
        %v6497 = vpack.c.b16 %v6245, %v6233
        %v6498 = vpack.c.b16 %v6246, %v6234
        %v6499 = vpack.c.b16 %v6247, %v6235
        %v6500 = vpack.c.b16 %v6248, %v6236
        %v6501 = vpack.c.b16 %v6249, %v6237
        %v6502 = vpack.c.b16 %v6250, %v6238
        %v6503 = vpack.c.b16 %v6251, %v6239
        %v6504 = vpack.c.b16 %v6252, %v6240
        %v6505 = vpack.c.b16 %v6253, %v6241
        %v6506 = vpack.c.b16 %v6254, %v6242
        %v6507 = vpack.c.b16 %v6267, %v6255
        %v6508 = vpack.c.b16 %v6268, %v6256
        %v6509 = vpack.c.b16 %v6269, %v6257
        %v6510 = vpack.c.b16 %v6270, %v6258
        %v6511 = vpack.c.b16 %v6271, %v6259
        %v6512 = vpack.c.b16 %v6272, %v6260
        %v6513 = vpack.c.b16 %v6273, %v6261
        %v6514 = vpack.c.b16 %v6274, %v6262
        %v6515 = vpack.c.b16 %v6275, %v6263
        %v6516 = vpack.c.b16 %v6276, %v6264
        %v6517 = vpack.c.b16 %v6277, %v6265
        %v6518 = vpack.c.b16 %v6278, %v6266
        %v6519 = vpack.c.b16 %v6291, %v6279
        %v6520 = vpack.c.b16 %v6292, %v6280
        %v6521 = vpack.c.b16 %v6293, %v6281
        %v6522 = vpack.c.b16 %v6294, %v6282
        %v6523 = vpack.c.b16 %v6295, %v6283
        %v6524 = vpack.c.b16 %v6296, %v6284
        %v6525 = vpack.c.b16 %v6297, %v6285
        %v6526 = vpack.c.b16 %v6298, %v6286
        %v6527 = vpack.c.b16 %v6299, %v6287
        %v6528 = vpack.c.b16 %v6300, %v6288
        %v6529 = vpack.c.b16 %v6301, %v6289
        %v6530 = vpack.c.b16 %v6302, %v6290
        %v6531 = vpack.c.b16 %v6315, %v6303
        %v6532 = vpack.c.b16 %v6316, %v6304
        %v6533 = vpack.c.b16 %v6317, %v6305
        %v6534 = vpack.c.b16 %v6318, %v6306
        %v6535 = vpack.c.b16 %v6319, %v6307
        %v6536 = vpack.c.b16 %v6320, %v6308
        %v6537 = vpack.c.b16 %v6321, %v6309
        %v6538 = vpack.c.b16 %v6322, %v6310
        %v6539 = vpack.c.b16 %v6323, %v6311
        %v6540 = vpack.c.b16 %v6324, %v6312
        %v6541 = vpack.c.b16 %v6325, %v6313
        %v6542 = vpack.c.b16 %v6326, %v6314
        %v6543 = vpack.c.b16 %v6339, %v6327
        %v6544 = vpack.c.b16 %v6340, %v6328
        %v6545 = vpack.c.b16 %v6341, %v6329
        %v6546 = vpack.c.b16 %v6342, %v6330
        %v6547 = vpack.c.b16 %v6343, %v6331
        %v6548 = vpack.c.b16 %v6344, %v6332
        %v6549 = vpack.c.b16 %v6345, %v6333
        %v6550 = vpack.c.b16 %v6346, %v6334
        %v6551 = vpack.c.b16 %v6347, %v6335
        %v6552 = vpack.c.b16 %v6348, %v6336
        %v6553 = vpack.c.b16 %v6349, %v6337
        %v6554 = vpack.c.b16 %v6350, %v6338
        %v6555 = vpack.c.b16 %v6363, %v6351
        %v6556 = vpack.c.b16 %v6364, %v6352
        %v6557 = vpack.c.b16 %v6365, %v6353
        %v6558 = vpack.c.b16 %v6366, %v6354
        %v6559 = vpack.c.b16 %v6367, %v6355
        %v6560 = vpack.c.b16 %v6368, %v6356
        %v6561 = vpack.c.b16 %v6369, %v6357
        %v6562 = vpack.c.b16 %v6370, %v6358
        %v6563 = vpack.c.b16 %v6371, %v6359
        %v6564 = vpack.c.b16 %v6372, %v6360
        %v6565 = vpack.c.b16 %v6373, %v6361
        %v6566 = vpack.c.b16 %v6374, %v6362
        %v6567 = vpack.c.b16 %v6387, %v6375
        %v6568 = vpack.c.b16 %v6388, %v6376
        %v6569 = vpack.c.b16 %v6389, %v6377
        %v6570 = vpack.c.b16 %v6390, %v6378
        %v6571 = vpack.c.b16 %v6391, %v6379
        %v6572 = vpack.c.b16 %v6392, %v6380
        %v6573 = vpack.c.b16 %v6393, %v6381
        %v6574 = vpack.c.b16 %v6394, %v6382
        %v6575 = vpack.c.b16 %v6395, %v6383
        %v6576 = vpack.c.b16 %v6396, %v6384
        %v6577 = vpack.c.b16 %v6397, %v6385
        %v6578 = vpack.c.b16 %v6398, %v6386
        %v6579 = vpack.c.b16 %v6411, %v6399
        %v6580 = vpack.c.b16 %v6412, %v6400
        %v6581 = vpack.c.b16 %v6413, %v6401
        %v6582 = vpack.c.b16 %v6414, %v6402
        %v6583 = vpack.c.b16 %v6415, %v6403
        %v6584 = vpack.c.b16 %v6416, %v6404
        %v6585 = vpack.c.b16 %v6417, %v6405
        %v6586 = vpack.c.b16 %v6418, %v6406
        %v6587 = vpack.c.b16 %v6419, %v6407
        %v6588 = vpack.c.b16 %v6420, %v6408
        %v6589 = vpack.c.b16 %v6421, %v6409
        %v6590 = vpack.c.b16 %v6422, %v6410
        %v6591 = vpack.c.b16 %v6435, %v6423
        %v6592 = vpack.c.b16 %v6436, %v6424
        %v6593 = vpack.c.b16 %v6437, %v6425
        %v6594 = vpack.c.b16 %v6438, %v6426
        %v6595 = vpack.c.b16 %v6439, %v6427
        %v6596 = vpack.c.b16 %v6440, %v6428
        %v6597 = vpack.c.b16 %v6441, %v6429
        %v6598 = vpack.c.b16 %v6442, %v6430
        %v6599 = vpack.c.b16 %v6443, %v6431
        %v6600 = vpack.c.b16 %v6444, %v6432
        %v6601 = vpack.c.b16 %v6445, %v6433
        %v6602 = vpack.c.b16 %v6446, %v6434
        %v6603 = vpack.c.b16 %v6459, %v6447
        %v6604 = vpack.c.b16 %v6460, %v6448
        %v6605 = vpack.c.b16 %v6461, %v6449
        %v6606 = vpack.c.b16 %v6462, %v6450
        %v6607 = vpack.c.b16 %v6463, %v6451
        %v6608 = vpack.c.b16 %v6464, %v6452
        %v6609 = vpack.c.b16 %v6465, %v6453
        %v6610 = vpack.c.b16 %v6466, %v6454
        %v6611 = vpack.c.b16 %v6467, %v6455
        %v6612 = vpack.c.b16 %v6468, %v6456
        %v6613 = vpack.c.b16 %v6469, %v6457
        %v6614 = vpack.c.b16 %v6470, %v6458
        %v6760 = vsel %vm5577, %v2696, 0
        %v6763 = vsel %vm5577, %v2698, 0
        %v6766 = vsel %vm5577, %v2700, 0
        %v6769 = vsel %vm5577, %v2702, 0
        %v6772 = vsel %vm5577, %v2704, 0
        %6774 = vmatprep.subr.bf16.mxu0 %v6472
        %6775 = vmatpush1.bf16.msra.mxu0 %v6471
        %6776 = vmatprep.subr.bf16.mxu0 %v6484
        %6777 = vmatpush1.bf16.msra.mxu0 %v6483
        %6778 = vmatprep.subr.bf16.mxu0 %v6496
        %6779 = vmatpush1.bf16.msra.mxu0 %v6495
        %6780 = vmatprep.subr.bf16.mxu0 %v6508
        %6781 = vmatpush1.bf16.msra.mxu0 %v6507
        %6782 = vmatprep.subr.bf16.mxu0 %v6520
        %6783 = vmatpush1.bf16.msra.mxu0 %v6519
        %6784 = vmatprep.subr.bf16.mxu0 %v6532
        %6785 = vmatpush1.bf16.msra.mxu0 %v6531
        %6786 = vmatprep.subr.bf16.mxu0 %v6544
        %6787 = vmatpush1.bf16.msra.mxu0 %v6543
        %6788 = vmatprep.subr.bf16.mxu0 %v6556
        %6789 = vmatpush1.bf16.msra.mxu0 %v6555
        %6790 = vmatprep.subr.bf16.mxu0 %v6568
        %6791 = vmatpush1.bf16.msra.mxu0 %v6567
        %6792 = vmatprep.subr.bf16.mxu0 %v6580
        %6793 = vmatpush1.bf16.msra.mxu0 %v6579
        %6794 = vmatprep.subr.bf16.mxu0 %v6592
        %6795 = vmatpush1.bf16.msra.mxu0 %v6591
        %6796 = vmatprep.subr.bf16.mxu0 %v6604
        %6797 = vmatpush1.bf16.msra.mxu0 %v6603
        %6798 = vmatprep.subr.bf16.mxu0 0
        %6799 = vmatpush1.bf16.msra.mxu0 0
        %6800 = vmatprep.subr.bf16.mxu0 0
        %6801 = vmatpush1.bf16.msra.mxu0 0
        %6802 = vmatprep.subr.bf16.mxu0 0
        %6803 = vmatpush1.bf16.msra.mxu0 0
        %6804 = vmatprep.subr.bf16.mxu0 0
        %6805 = vmatpush1.bf16.msra.mxu0 0
        %6806 = vmatprep.mubr.bf16.mxu0 %v6760
        %6807 = vmatmul.mubr.bf16.gmra.mrb[0].mxu0 %v2695
        %v6808 = vpop.f32.mrb[0].mxu0
        %v6809 = vadd.f32 %v5628, %v6808
        %v6810 = vpop.f32.mrb[0].mxu0
        %v6811 = vadd.f32 %v5630, %v6810
        %v6812 = vpop.f32.mrb[0].mxu0
        %v6813 = vpop.f32.mrb[0].mxu0
        %6814 = vmatprep.mubr.bf16.mxu0 %v6763
        %6815 = vmatmul.mubr.bf16.gmra.mrb[0].mxu0 %v2697
        %v6816 = vpop.f32.mrb[0].mxu0
        %v6817 = vpop.f32.mrb[0].mxu0
        %v6818 = vpop.f32.mrb[0].mxu0
        %v6819 = vpop.f32.mrb[0].mxu0
        %6820 = vmatprep.mubr.bf16.mxu0 %v6766
        %6821 = vmatmul.mubr.bf16.gmra.mrb[0].mxu0 %v2699
        %v6822 = vpop.f32.mrb[0].mxu0
        %v6823 = vpop.f32.mrb[0].mxu0
        %v6824 = vpop.f32.mrb[0].mxu0
        %v6825 = vpop.f32.mrb[0].mxu0
        %6826 = vmatprep.mubr.bf16.mxu0 %v6769
        %6827 = vmatmul.mubr.bf16.gmra.mrb[0].mxu0 %v2701
        %v6828 = vpop.f32.mrb[0].mxu0
        %v6829 = vpop.f32.mrb[0].mxu0
        %v6830 = vpop.f32.mrb[0].mxu0
        %v6831 = vpop.f32.mrb[0].mxu0
        %6832 = vmatprep.mubr.bf16.mxu0 %v6772
        %6833 = vmatmul.mubr.bf16.gmra.mrb[0].mxu0 %v2703
        %v6834 = vpop.f32.mrb[0].mxu0
        %v6835 = vpop.f32.mrb[0].mxu0
        %v6836 = vpop.f32.mrb[0].mxu0
        %v6837 = vpop.f32.mrb[0].mxu0
        %6838 = vdwg.mxu0
        %6839 = vmatprep.subr.bf16.mxu0 %v6474
        %6840 = vmatpush1.bf16.msra.mxu0 %v6473
        %6841 = vmatprep.subr.bf16.mxu0 %v6486
        %6842 = vmatpush1.bf16.msra.mxu0 %v6485
        %6843 = vmatprep.subr.bf16.mxu0 %v6498
        %6844 = vmatpush1.bf16.msra.mxu0 %v6497
        %6845 = vmatprep.subr.bf16.mxu0 %v6510
        %6846 = vmatpush1.bf16.msra.mxu0 %v6509
        %6847 = vmatprep.subr.bf16.mxu0 %v6522
        %6848 = vmatpush1.bf16.msra.mxu0 %v6521
        %6849 = vmatprep.subr.bf16.mxu0 %v6534
        %6850 = vmatpush1.bf16.msra.mxu0 %v6533
        %6851 = vmatprep.subr.bf16.mxu0 %v6546
        %6852 = vmatpush1.bf16.msra.mxu0 %v6545
        %6853 = vmatprep.subr.bf16.mxu0 %v6558
        %6854 = vmatpush1.bf16.msra.mxu0 %v6557
        %6855 = vmatprep.subr.bf16.mxu0 %v6570
        %6856 = vmatpush1.bf16.msra.mxu0 %v6569
        %6857 = vmatprep.subr.bf16.mxu0 %v6582
        %6858 = vmatpush1.bf16.msra.mxu0 %v6581
        %6859 = vmatprep.subr.bf16.mxu0 %v6594
        %6860 = vmatpush1.bf16.msra.mxu0 %v6593
        %6861 = vmatprep.subr.bf16.mxu0 %v6606
        %6862 = vmatpush1.bf16.msra.mxu0 %v6605
        %6863 = vmatprep.subr.bf16.mxu0 0
        %6864 = vmatpush1.bf16.msra.mxu0 0
        %6865 = vmatprep.subr.bf16.mxu0 0
        %6866 = vmatpush1.bf16.msra.mxu0 0
        %6867 = vmatprep.subr.bf16.mxu0 0
        %6868 = vmatpush1.bf16.msra.mxu0 0
        %6869 = vmatprep.subr.bf16.mxu0 0
        %6870 = vmatpush1.bf16.msra.mxu0 0
        %6871 = vmatprep.mubr.bf16.mxu0 %v6760
        %6872 = vmatmul.mubr.bf16.gmra.mrb[0].mxu0 %v2695
        %v6873 = vpop.f32.mrb[0].mxu0
        %v6874 = vadd.f32 %v5693, %v6873
        %v6875 = vpop.f32.mrb[0].mxu0
        %v6876 = vadd.f32 %v5695, %v6875
        %v6877 = vpop.f32.mrb[0].mxu0
        %v6878 = vpop.f32.mrb[0].mxu0
        %6879 = vmatprep.mubr.bf16.mxu0 %v6763
        %6880 = vmatmul.mubr.bf16.gmra.mrb[0].mxu0 %v2697
        %v6881 = vpop.f32.mrb[0].mxu0
        %v6882 = vpop.f32.mrb[0].mxu0
        %v6883 = vpop.f32.mrb[0].mxu0
        %v6884 = vpop.f32.mrb[0].mxu0
        %6885 = vmatprep.mubr.bf16.mxu0 %v6766
        %6886 = vmatmul.mubr.bf16.gmra.mrb[0].mxu0 %v2699
        %v6887 = vpop.f32.mrb[0].mxu0
        %v6888 = vpop.f32.mrb[0].mxu0
        %v6889 = vpop.f32.mrb[0].mxu0
        %v6890 = vpop.f32.mrb[0].mxu0
        %6891 = vmatprep.mubr.bf16.mxu0 %v6769
        %6892 = vmatmul.mubr.bf16.gmra.mrb[0].mxu0 %v2701
        %v6893 = vpop.f32.mrb[0].mxu0
        %v6894 = vpop.f32.mrb[0].mxu0
        %v6895 = vpop.f32.mrb[0].mxu0
        %v6896 = vpop.f32.mrb[0].mxu0
        %6897 = vmatprep.mubr.bf16.mxu0 %v6772
        %6898 = vmatmul.mubr.bf16.gmra.mrb[0].mxu0 %v2703
        %v6899 = vpop.f32.mrb[0].mxu0
        %v6900 = vpop.f32.mrb[0].mxu0
        %v6901 = vpop.f32.mrb[0].mxu0
        %v6902 = vpop.f32.mrb[0].mxu0
        %6903 = vdwg.mxu0
        %6904 = vmatprep.subr.bf16.mxu0 %v6476
        %6905 = vmatpush1.bf16.msra.mxu0 %v6475
        %6906 = vmatprep.subr.bf16.mxu0 %v6488
        %6907 = vmatpush1.bf16.msra.mxu0 %v6487
        %6908 = vmatprep.subr.bf16.mxu0 %v6500
        %6909 = vmatpush1.bf16.msra.mxu0 %v6499
        %6910 = vmatprep.subr.bf16.mxu0 %v6512
        %6911 = vmatpush1.bf16.msra.mxu0 %v6511
        %6912 = vmatprep.subr.bf16.mxu0 %v6524
        %6913 = vmatpush1.bf16.msra.mxu0 %v6523
        %6914 = vmatprep.subr.bf16.mxu0 %v6536
        %6915 = vmatpush1.bf16.msra.mxu0 %v6535
        %6916 = vmatprep.subr.bf16.mxu0 %v6548
        %6917 = vmatpush1.bf16.msra.mxu0 %v6547
        %6918 = vmatprep.subr.bf16.mxu0 %v6560
        %6919 = vmatpush1.bf16.msra.mxu0 %v6559
        %6920 = vmatprep.subr.bf16.mxu0 %v6572
        %6921 = vmatpush1.bf16.msra.mxu0 %v6571
        %6922 = vmatprep.subr.bf16.mxu0 %v6584
        %6923 = vmatpush1.bf16.msra.mxu0 %v6583
        %6924 = vmatprep.subr.bf16.mxu0 %v6596
        %6925 = vmatpush1.bf16.msra.mxu0 %v6595
        %6926 = vmatprep.subr.bf16.mxu0 %v6608
        %6927 = vmatpush1.bf16.msra.mxu0 %v6607
        %6928 = vmatprep.subr.bf16.mxu0 0
        %6929 = vmatpush1.bf16.msra.mxu0 0
        %6930 = vmatprep.subr.bf16.mxu0 0
        %6931 = vmatpush1.bf16.msra.mxu0 0
        %6932 = vmatprep.subr.bf16.mxu0 0
        %6933 = vmatpush1.bf16.msra.mxu0 0
        %6934 = vmatprep.subr.bf16.mxu0 0
        %6935 = vmatpush1.bf16.msra.mxu0 0
        %6936 = vmatprep.mubr.bf16.mxu0 %v6760
        %6937 = vmatmul.mubr.bf16.gmra.mrb[0].mxu0 %v2695
        %v6938 = vpop.f32.mrb[0].mxu0
        %v6939 = vpop.f32.mrb[0].mxu0
        %v6940 = vpop.f32.mrb[0].mxu0
        %v6941 = vadd.f32 %v5760, %v6940
        %v6942 = vpop.f32.mrb[0].mxu0
        %v6943 = vadd.f32 %v5762, %v6942
        %6944 = vmatprep.mubr.bf16.mxu0 %v6763
        %6945 = vmatmul.mubr.bf16.gmra.mrb[0].mxu0 %v2697
        %v6946 = vpop.f32.mrb[0].mxu0
        %v6947 = vadd.f32 %v5766, %v6946
        %v6948 = vpop.f32.mrb[0].mxu0
        %v6949 = vadd.f32 %v5768, %v6948
        %v6950 = vpop.f32.mrb[0].mxu0
        %v6951 = vadd.f32 %v5770, %v6950
        %v6952 = vpop.f32.mrb[0].mxu0
        %v6953 = vadd.f32 %v5772, %v6952
        %6954 = vmatprep.mubr.bf16.mxu0 %v6766
        %6955 = vmatmul.mubr.bf16.gmra.mrb[0].mxu0 %v2699
        %v6956 = vpop.f32.mrb[0].mxu0
        %v6957 = vadd.f32 %v5776, %v6956
        %v6958 = vpop.f32.mrb[0].mxu0
        %v6959 = vadd.f32 %v5778, %v6958
        %v6960 = vpop.f32.mrb[0].mxu0
        %v6961 = vadd.f32 %v5780, %v6960
        %v6962 = vpop.f32.mrb[0].mxu0
        %v6963 = vadd.f32 %v5782, %v6962
        %6964 = vmatprep.mubr.bf16.mxu0 %v6769
        %6965 = vmatmul.mubr.bf16.gmra.mrb[0].mxu0 %v2701
        %v6966 = vpop.f32.mrb[0].mxu0
        %v6967 = vadd.f32 %v5786, %v6966
        %v6968 = vpop.f32.mrb[0].mxu0
        %v6969 = vadd.f32 %v5788, %v6968
        %v6970 = vpop.f32.mrb[0].mxu0
        %v6971 = vadd.f32 %v5790, %v6970
        %v6972 = vpop.f32.mrb[0].mxu0
        %v6973 = vadd.f32 %v5792, %v6972
        %6974 = vmatprep.mubr.bf16.mxu0 %v6772
        %6975 = vmatmul.mubr.bf16.gmra.mrb[0].mxu0 %v2703
        %v6976 = vpop.f32.mrb[0].mxu0
        %v6977 = vadd.f32 %v5796, %v6976
        %v6978 = vpop.f32.mrb[0].mxu0
        %v6979 = vadd.f32 %v5798, %v6978
        %v6980 = vpop.f32.mrb[0].mxu0
        %v6981 = vpop.f32.mrb[0].mxu0
        %6982 = vdwg.mxu0
        %6983 = vmatprep.subr.bf16.mxu0 %v6478
        %6984 = vmatpush1.bf16.msra.mxu0 %v6477
        %6985 = vmatprep.subr.bf16.mxu0 %v6490
        %6986 = vmatpush1.bf16.msra.mxu0 %v6489
        %6987 = vmatprep.subr.bf16.mxu0 %v6502
        %6988 = vmatpush1.bf16.msra.mxu0 %v6501
        %6989 = vmatprep.subr.bf16.mxu0 %v6514
        %6990 = vmatpush1.bf16.msra.mxu0 %v6513
        %6991 = vmatprep.subr.bf16.mxu0 %v6526
        %6992 = vmatpush1.bf16.msra.mxu0 %v6525
        %6993 = vmatprep.subr.bf16.mxu0 %v6538
        %6994 = vmatpush1.bf16.msra.mxu0 %v6537
        %6995 = vmatprep.subr.bf16.mxu0 %v6550
        %6996 = vmatpush1.bf16.msra.mxu0 %v6549
        %6997 = vmatprep.subr.bf16.mxu0 %v6562
        %6998 = vmatpush1.bf16.msra.mxu0 %v6561
        %6999 = vmatprep.subr.bf16.mxu0 %v6574
        %7000 = vmatpush1.bf16.msra.mxu0 %v6573
        %7001 = vmatprep.subr.bf16.mxu0 %v6586
        %7002 = vmatpush1.bf16.msra.mxu0 %v6585
        %7003 = vmatprep.subr.bf16.mxu0 %v6598
        %7004 = vmatpush1.bf16.msra.mxu0 %v6597
        %7005 = vmatprep.subr.bf16.mxu0 %v6610
        %7006 = vmatpush1.bf16.msra.mxu0 %v6609
        %7007 = vmatprep.subr.bf16.mxu0 0
        %7008 = vmatpush1.bf16.msra.mxu0 0
        %7009 = vmatprep.subr.bf16.mxu0 0
        %7010 = vmatpush1.bf16.msra.mxu0 0
        %7011 = vmatprep.subr.bf16.mxu0 0
        %7012 = vmatpush1.bf16.msra.mxu0 0
        %7013 = vmatprep.subr.bf16.mxu0 0
        %7014 = vmatpush1.bf16.msra.mxu0 0
        %7015 = vmatprep.mubr.bf16.mxu0 %v6760
        %7016 = vmatmul.mubr.bf16.gmra.mrb[0].mxu0 %v2695
        %v7017 = vpop.f32.mrb[0].mxu0
        %v7018 = vpop.f32.mrb[0].mxu0
        %v7019 = vpop.f32.mrb[0].mxu0
        %v7020 = vadd.f32 %v5839, %v7019
        %v7021 = vpop.f32.mrb[0].mxu0
        %v7022 = vadd.f32 %v5841, %v7021
        %7023 = vmatprep.mubr.bf16.mxu0 %v6763
        %7024 = vmatmul.mubr.bf16.gmra.mrb[0].mxu0 %v2697
        %v7025 = vpop.f32.mrb[0].mxu0
        %v7026 = vadd.f32 %v5845, %v7025
        %v7027 = vpop.f32.mrb[0].mxu0
        %v7028 = vadd.f32 %v5847, %v7027
        %v7029 = vpop.f32.mrb[0].mxu0
        %v7030 = vadd.f32 %v5849, %v7029
        %v7031 = vpop.f32.mrb[0].mxu0
        %v7032 = vadd.f32 %v5851, %v7031
        %7033 = vmatprep.mubr.bf16.mxu0 %v6766
        %7034 = vmatmul.mubr.bf16.gmra.mrb[0].mxu0 %v2699
        %v7035 = vpop.f32.mrb[0].mxu0
        %v7036 = vadd.f32 %v5855, %v7035
        %v7037 = vpop.f32.mrb[0].mxu0
        %v7038 = vadd.f32 %v5857, %v7037
        %v7039 = vpop.f32.mrb[0].mxu0
        %v7040 = vadd.f32 %v5859, %v7039
        %v7041 = vpop.f32.mrb[0].mxu0
        %v7042 = vadd.f32 %v5861, %v7041
        %7043 = vmatprep.mubr.bf16.mxu0 %v6769
        %7044 = vmatmul.mubr.bf16.gmra.mrb[0].mxu0 %v2701
        %v7045 = vpop.f32.mrb[0].mxu0
        %v7046 = vadd.f32 %v5865, %v7045
        %v7047 = vpop.f32.mrb[0].mxu0
        %v7048 = vadd.f32 %v5867, %v7047
        %v7049 = vpop.f32.mrb[0].mxu0
        %v7050 = vadd.f32 %v5869, %v7049
        %v7051 = vpop.f32.mrb[0].mxu0
        %v7052 = vadd.f32 %v5871, %v7051
        %7053 = vmatprep.mubr.bf16.mxu0 %v6772
        %7054 = vmatmul.mubr.bf16.gmra.mrb[0].mxu0 %v2703
        %v7055 = vpop.f32.mrb[0].mxu0
        %v7056 = vadd.f32 %v5875, %v7055
        %v7057 = vpop.f32.mrb[0].mxu0
        %v7058 = vadd.f32 %v5877, %v7057
        %v7059 = vpop.f32.mrb[0].mxu0
        %v7060 = vpop.f32.mrb[0].mxu0
        %7061 = vdwg.mxu0
        %7062 = vmatprep.subr.bf16.mxu0 %v6480
        %7063 = vmatpush1.bf16.msra.mxu0 %v6479
        %7064 = vmatprep.subr.bf16.mxu0 %v6492
        %7065 = vmatpush1.bf16.msra.mxu0 %v6491
        %7066 = vmatprep.subr.bf16.mxu0 %v6504
        %7067 = vmatpush1.bf16.msra.mxu0 %v6503
        %7068 = vmatprep.subr.bf16.mxu0 %v6516
        %7069 = vmatpush1.bf16.msra.mxu0 %v6515
        %7070 = vmatprep.subr.bf16.mxu0 %v6528
        %7071 = vmatpush1.bf16.msra.mxu0 %v6527
        %7072 = vmatprep.subr.bf16.mxu0 %v6540
        %7073 = vmatpush1.bf16.msra.mxu0 %v6539
        %7074 = vmatprep.subr.bf16.mxu0 %v6552
        %7075 = vmatpush1.bf16.msra.mxu0 %v6551
        %7076 = vmatprep.subr.bf16.mxu0 %v6564
        %7077 = vmatpush1.bf16.msra.mxu0 %v6563
        %7078 = vmatprep.subr.bf16.mxu0 %v6576
        %7079 = vmatpush1.bf16.msra.mxu0 %v6575
        %7080 = vmatprep.subr.bf16.mxu0 %v6588
        %7081 = vmatpush1.bf16.msra.mxu0 %v6587
        %7082 = vmatprep.subr.bf16.mxu0 %v6600
        %7083 = vmatpush1.bf16.msra.mxu0 %v6599
        %7084 = vmatprep.subr.bf16.mxu0 %v6612
        %7085 = vmatpush1.bf16.msra.mxu0 %v6611
        %7086 = vmatprep.subr.bf16.mxu0 0
        %7087 = vmatpush1.bf16.msra.mxu0 0
        %7088 = vmatprep.subr.bf16.mxu0 0
        %7089 = vmatpush1.bf16.msra.mxu0 0
        %7090 = vmatprep.subr.bf16.mxu0 0
        %7091 = vmatpush1.bf16.msra.mxu0 0
        %7092 = vmatprep.subr.bf16.mxu0 0
        %7093 = vmatpush1.bf16.msra.mxu0 0
        %7094 = vmatprep.mubr.bf16.mxu0 %v6760
        %7095 = vmatmul.mubr.bf16.gmra.mrb[0].mxu0 %v2695
        %v7096 = vpop.f32.mrb[0].mxu0
        %v7097 = vpop.f32.mrb[0].mxu0
        %v7098 = vpop.f32.mrb[0].mxu0
        %v7099 = vadd.f32 %v5918, %v7098
        %v7100 = vpop.f32.mrb[0].mxu0
        %v7101 = vadd.f32 %v5920, %v7100
        %7102 = vmatprep.mubr.bf16.mxu0 %v6763
        %7103 = vmatmul.mubr.bf16.gmra.mrb[0].mxu0 %v2697
        %v7104 = vpop.f32.mrb[0].mxu0
        %v7105 = vadd.f32 %v5924, %v7104
        %v7106 = vpop.f32.mrb[0].mxu0
        %v7107 = vadd.f32 %v5926, %v7106
        %v7108 = vpop.f32.mrb[0].mxu0
        %v7109 = vadd.f32 %v5928, %v7108
        %v7110 = vpop.f32.mrb[0].mxu0
        %v7111 = vadd.f32 %v5930, %v7110
        %7112 = vmatprep.mubr.bf16.mxu0 %v6766
        %7113 = vmatmul.mubr.bf16.gmra.mrb[0].mxu0 %v2699
        %v7114 = vpop.f32.mrb[0].mxu0
        %v7115 = vadd.f32 %v5934, %v7114
        %v7116 = vpop.f32.mrb[0].mxu0
        %v7117 = vadd.f32 %v5936, %v7116
        %v7118 = vpop.f32.mrb[0].mxu0
        %v7119 = vadd.f32 %v5938, %v7118
        %v7120 = vpop.f32.mrb[0].mxu0
        %v7121 = vadd.f32 %v5940, %v7120
        %7122 = vmatprep.mubr.bf16.mxu0 %v6769
        %7123 = vmatmul.mubr.bf16.gmra.mrb[0].mxu0 %v2701
        %v7124 = vpop.f32.mrb[0].mxu0
        %v7125 = vadd.f32 %v5944, %v7124
        %v7126 = vpop.f32.mrb[0].mxu0
        %v7127 = vadd.f32 %v5946, %v7126
        %v7128 = vpop.f32.mrb[0].mxu0
        %v7129 = vadd.f32 %v5948, %v7128
        %v7130 = vpop.f32.mrb[0].mxu0
        %v7131 = vadd.f32 %v5950, %v7130
        %7132 = vmatprep.mubr.bf16.mxu0 %v6772
        %7133 = vmatmul.mubr.bf16.gmra.mrb[0].mxu0 %v2703
        %v7134 = vpop.f32.mrb[0].mxu0
        %v7135 = vadd.f32 %v5954, %v7134
        %v7136 = vpop.f32.mrb[0].mxu0
        %v7137 = vadd.f32 %v5956, %v7136
        %v7138 = vpop.f32.mrb[0].mxu0
        %v7139 = vpop.f32.mrb[0].mxu0
        %7140 = vdwg.mxu0
        %7141 = vmatprep.subr.bf16.mxu0 %v6482
        %7142 = vmatpush1.bf16.msra.mxu0 %v6481
        %7143 = vmatprep.subr.bf16.mxu0 %v6494
        %7144 = vmatpush1.bf16.msra.mxu0 %v6493
        %7145 = vmatprep.subr.bf16.mxu0 %v6506
        %7146 = vmatpush1.bf16.msra.mxu0 %v6505
        %7147 = vmatprep.subr.bf16.mxu0 %v6518
        %7148 = vmatpush1.bf16.msra.mxu0 %v6517
        %7149 = vmatprep.subr.bf16.mxu0 %v6530
        %7150 = vmatpush1.bf16.msra.mxu0 %v6529
        %7151 = vmatprep.subr.bf16.mxu0 %v6542
        %7152 = vmatpush1.bf16.msra.mxu0 %v6541
        %7153 = vmatprep.subr.bf16.mxu0 %v6554
        %7154 = vmatpush1.bf16.msra.mxu0 %v6553
        %7155 = vmatprep.subr.bf16.mxu0 %v6566
        %7156 = vmatpush1.bf16.msra.mxu0 %v6565
        %7157 = vmatprep.subr.bf16.mxu0 %v6578
        %7158 = vmatpush1.bf16.msra.mxu0 %v6577
        %7159 = vmatprep.subr.bf16.mxu0 %v6590
        %7160 = vmatpush1.bf16.msra.mxu0 %v6589
        %7161 = vmatprep.subr.bf16.mxu0 %v6602
        %7162 = vmatpush1.bf16.msra.mxu0 %v6601
        %7163 = vmatprep.subr.bf16.mxu0 %v6614
        %7164 = vmatpush1.bf16.msra.mxu0 %v6613
        %7165 = vmatprep.subr.bf16.mxu0 0
        %7166 = vmatpush1.bf16.msra.mxu0 0
        %7167 = vmatprep.subr.bf16.mxu0 0
        %7168 = vmatpush1.bf16.msra.mxu0 0
        %7169 = vmatprep.subr.bf16.mxu0 0
        %7170 = vmatpush1.bf16.msra.mxu0 0
        %7171 = vmatprep.subr.bf16.mxu0 0
        %7172 = vmatpush1.bf16.msra.mxu0 0
        %7173 = vmatprep.mubr.bf16.mxu0 %v6760
        %7174 = vmatmul.mubr.bf16.gmra.mrb[0].mxu0 %v2695
        %v7175 = vpop.f32.mrb[0].mxu0
        %v7176 = vpop.f32.mrb[0].mxu0
        %v7177 = vpop.f32.mrb[0].mxu0
        %v7178 = vadd.f32 %v5997, %v7177
        %v7179 = vpop.f32.mrb[0].mxu0
        %v7180 = vadd.f32 %v5999, %v7179
        %7181 = vmatprep.mubr.bf16.mxu0 %v6763
        %7182 = vmatmul.mubr.bf16.gmra.mrb[0].mxu0 %v2697
        %v7183 = vpop.f32.mrb[0].mxu0
        %v7184 = vadd.f32 %v6003, %v7183
        %v7185 = vpop.f32.mrb[0].mxu0
        %v7186 = vadd.f32 %v6005, %v7185
        %v7187 = vpop.f32.mrb[0].mxu0
        %v7188 = vadd.f32 %v6007, %v7187
        %v7189 = vpop.f32.mrb[0].mxu0
        %v7190 = vadd.f32 %v6009, %v7189
        %7191 = vmatprep.mubr.bf16.mxu0 %v6766
        %7192 = vmatmul.mubr.bf16.gmra.mrb[0].mxu0 %v2699
        %v7193 = vpop.f32.mrb[0].mxu0
        %v7194 = vadd.f32 %v6013, %v7193
        %v7195 = vpop.f32.mrb[0].mxu0
        %v7196 = vadd.f32 %v6015, %v7195
        %v7197 = vpop.f32.mrb[0].mxu0
        %v7198 = vadd.f32 %v6017, %v7197
        %v7199 = vpop.f32.mrb[0].mxu0
        %v7200 = vadd.f32 %v6019, %v7199
        %7201 = vmatprep.mubr.bf16.mxu0 %v6769
        %7202 = vmatmul.mubr.bf16.gmra.mrb[0].mxu0 %v2701
        %v7203 = vpop.f32.mrb[0].mxu0
        %v7204 = vadd.f32 %v6023, %v7203
        %v7205 = vpop.f32.mrb[0].mxu0
        %v7206 = vadd.f32 %v6025, %v7205
        %v7207 = vpop.f32.mrb[0].mxu0
        %v7208 = vadd.f32 %v6027, %v7207
        %v7209 = vpop.f32.mrb[0].mxu0
        %v7210 = vadd.f32 %v6029, %v7209
        %7211 = vmatprep.mubr.bf16.mxu0 %v6772
        %7212 = vmatmul.mubr.bf16.gmra.mrb[0].mxu0 %v2703
        %v7213 = vpop.f32.mrb[0].mxu0
        %v7214 = vadd.f32 %v6033, %v7213
        %v7215 = vpop.f32.mrb[0].mxu0
        %v7216 = vadd.f32 %v6035, %v7215
        %v7217 = vpop.f32.mrb[0].mxu0
        %v7218 = vpop.f32.mrb[0].mxu0
        %7219 = vdwg.mxu0
        %v7220 = vld [vmem:[%s632] sm:$0xff]
        %v7221 = vld [vmem:[%s632 + $0x8] sm:$0xf]
        %v7224 = vlaneseq
        %v7225 = vshrl.u32 %v7224, 7
        %v7226 = vsub.s32 0, %v7225
        %v7227 = vrot.slane %v7220, %v7226
        %v7228 = vlaneseq
        %v7229 = vshrl.u32 %v7228, 7
        %v7230 = vsub.s32 1, %v7229
        %v7231 = vrot.slane %v7220, %v7230
        %v7232 = vlaneseq
        %v7233 = vshrl.u32 %v7232, 7
        %v7234 = vsub.s32 2, %v7233
        %v7235 = vrot.slane %v7220, %v7234
        %v7236 = vlaneseq
        %v7237 = vshrl.u32 %v7236, 7
        %v7238 = vsub.s32 3, %v7237
        %v7239 = vrot.slane %v7220, %v7238
        %v7240 = vlaneseq
        %v7241 = vshrl.u32 %v7240, 7
        %v7242 = vsub.s32 4, %v7241
        %v7243 = vrot.slane %v7220, %v7242
        %v7244 = vlaneseq
        %v7245 = vshrl.u32 %v7244, 7
        %v7246 = vsub.s32 5, %v7245
        %v7247 = vrot.slane %v7220, %v7246
        %v7248 = vlaneseq
        %v7249 = vshrl.u32 %v7248, 7
        %v7250 = vsub.s32 6, %v7249
        %v7251 = vrot.slane %v7220, %v7250
        %v7252 = vlaneseq
        %v7253 = vshrl.u32 %v7252, 7
        %v7254 = vsub.s32 7, %v7253
        %v7255 = vrot.slane %v7220, %v7254
        %v7256 = vlaneseq
        %v7257 = vshrl.u32 %v7256, 7
        %v7258 = vsub.s32 0, %v7257
        %v7259 = vrot.slane %v7221, %v7258
        %v7260 = vlaneseq
        %v7261 = vshrl.u32 %v7260, 7
        %v7262 = vsub.s32 1, %v7261
        %v7263 = vrot.slane %v7221, %v7262
        %v7264 = vlaneseq
        %v7265 = vshrl.u32 %v7264, 7
        %v7266 = vsub.s32 2, %v7265
        %v7267 = vrot.slane %v7221, %v7266
        %v7268 = vlaneseq
        %v7269 = vshrl.u32 %v7268, 7
        %v7270 = vsub.s32 3, %v7269
        %v7271 = vrot.slane %v7221, %v7270
        %v7284 = vadd.f32 %v6809, %v7227
        %v7285 = vadd.f32 %v6811, %v7231
        %v7286 = vadd.f32 %v6874, %v7235
        %v7287 = vadd.f32 %v6876, %v7239
        %v7288 = vadd.f32 %v6941, %v7243
        %v7289 = vadd.f32 %v6943, %v7247
        %v7290 = vadd.f32 %v7020, %v7251
        %v7291 = vadd.f32 %v7022, %v7255
        %v7292 = vadd.f32 %v7099, %v7259
        %v7293 = vadd.f32 %v7101, %v7263
        %v7294 = vadd.f32 %v7178, %v7267
        %v7295 = vadd.f32 %v7180, %v7271
        %v7296 = vadd.f32 %v6947, %v7243
        %v7297 = vadd.f32 %v6949, %v7247
        %v7298 = vadd.f32 %v7026, %v7251
        %v7299 = vadd.f32 %v7028, %v7255
        %v7300 = vadd.f32 %v7105, %v7259
        %v7301 = vadd.f32 %v7107, %v7263
        %v7302 = vadd.f32 %v7184, %v7267
        %v7303 = vadd.f32 %v7186, %v7271
        %v7304 = vadd.f32 %v6951, %v7243
        %v7305 = vadd.f32 %v6953, %v7247
        %v7306 = vadd.f32 %v7030, %v7251
        %v7307 = vadd.f32 %v7032, %v7255
        %v7308 = vadd.f32 %v7109, %v7259
        %v7309 = vadd.f32 %v7111, %v7263
        %v7310 = vadd.f32 %v7188, %v7267
        %v7311 = vadd.f32 %v7190, %v7271
        %v7312 = vadd.f32 %v6957, %v7243
        %v7313 = vadd.f32 %v6959, %v7247
        %v7314 = vadd.f32 %v7036, %v7251
        %v7315 = vadd.f32 %v7038, %v7255
        %v7316 = vadd.f32 %v7115, %v7259
        %v7317 = vadd.f32 %v7117, %v7263
        %v7318 = vadd.f32 %v7194, %v7267
        %v7319 = vadd.f32 %v7196, %v7271
        %v7320 = vadd.f32 %v6961, %v7243
        %v7321 = vadd.f32 %v6963, %v7247
        %v7322 = vadd.f32 %v7040, %v7251
        %v7323 = vadd.f32 %v7042, %v7255
        %v7324 = vadd.f32 %v7119, %v7259
        %v7325 = vadd.f32 %v7121, %v7263
        %v7326 = vadd.f32 %v7198, %v7267
        %v7327 = vadd.f32 %v7200, %v7271
        %v7328 = vadd.f32 %v6967, %v7243
        %v7329 = vadd.f32 %v6969, %v7247
        %v7330 = vadd.f32 %v7046, %v7251
        %v7331 = vadd.f32 %v7048, %v7255
        %v7332 = vadd.f32 %v7125, %v7259
        %v7333 = vadd.f32 %v7127, %v7263
        %v7334 = vadd.f32 %v7204, %v7267
        %v7335 = vadd.f32 %v7206, %v7271
        %v7336 = vadd.f32 %v6971, %v7243
        %v7337 = vadd.f32 %v6973, %v7247
        %v7338 = vadd.f32 %v7050, %v7251
        %v7339 = vadd.f32 %v7052, %v7255
        %v7340 = vadd.f32 %v7129, %v7259
        %v7341 = vadd.f32 %v7131, %v7263
        %v7342 = vadd.f32 %v7208, %v7267
        %v7343 = vadd.f32 %v7210, %v7271
        %v7344 = vadd.f32 %v6977, %v7243
        %v7345 = vadd.f32 %v6979, %v7247
        %v7346 = vadd.f32 %v7056, %v7251
        %v7347 = vadd.f32 %v7058, %v7255
        %v7348 = vadd.f32 %v7135, %v7259
        %v7349 = vadd.f32 %v7137, %v7263
        %v7350 = vadd.f32 %v7214, %v7267
        %v7351 = vadd.f32 %v7216, %v7271
        %v7352 = vpack.c.bf16 %v7284, %v7284
        %v7353 = vpack.c.bf16 %v7285, %v7285
        %v7354 = vpack.c.bf16 %v7286, %v7286
        %v7355 = vpack.c.bf16 %v7287, %v7287
        %v7356 = vpack.c.bf16 %v7296, %v7288
        %v7357 = vpack.c.bf16 %v7297, %v7289
        %v7358 = vpack.c.bf16 %v7298, %v7290
        %v7359 = vpack.c.bf16 %v7299, %v7291
        %v7360 = vpack.c.bf16 %v7312, %v7304
        %v7361 = vpack.c.bf16 %v7313, %v7305
        %v7362 = vpack.c.bf16 %v7314, %v7306
        %v7363 = vpack.c.bf16 %v7315, %v7307
        %v7364 = vpack.c.bf16 %v7328, %v7320
        %v7365 = vpack.c.bf16 %v7329, %v7321
        %v7366 = vpack.c.bf16 %v7330, %v7322
        %v7367 = vpack.c.bf16 %v7331, %v7323
        %v7368 = vpack.c.bf16 %v7344, %v7336
        %v7369 = vpack.c.bf16 %v7345, %v7337
        %v7370 = vpack.c.bf16 %v7346, %v7338
        %v7371 = vpack.c.bf16 %v7347, %v7339
        %v7372 = vpack.c.bf16 %v7300, %v7292
        %v7373 = vpack.c.bf16 %v7301, %v7293
        %v7374 = vpack.c.bf16 %v7302, %v7294
        %v7375 = vpack.c.bf16 %v7303, %v7295
        %v7376 = vpack.c.bf16 %v7316, %v7308
        %v7377 = vpack.c.bf16 %v7317, %v7309
        %v7378 = vpack.c.bf16 %v7318, %v7310
        %v7379 = vpack.c.bf16 %v7319, %v7311
        %v7380 = vpack.c.bf16 %v7332, %v7324
        %v7381 = vpack.c.bf16 %v7333, %v7325
        %v7382 = vpack.c.bf16 %v7334, %v7326
        %v7383 = vpack.c.bf16 %v7335, %v7327
        %v7384 = vpack.c.bf16 %v7348, %v7340
        %v7385 = vpack.c.bf16 %v7349, %v7341
        %v7386 = vpack.c.bf16 %v7350, %v7342
        %v7387 = vpack.c.bf16 %v7351, %v7343
        %v7388 = vld [vmem:[%s614] sm:$0x1]
        %v7389 = vld [vmem:[%s641] sm:$0xff]
        %v7390 = vld [vmem:[%s641 + $0x8] sm:$0xf]
        %v7391 = vld [vmem:[%s641 + $0xc] sm:$0xff]
        %v7392 = vld [vmem:[%s641 + $0x14] sm:$0xf]
        %v7393 = vld [vmem:[%s641 + $0x18] sm:$0xff]
        %v7394 = vld [vmem:[%s641 + $0x20] sm:$0xf]
        %v7395 = vld [vmem:[%s641 + $0x24] sm:$0xff]
        %v7396 = vld [vmem:[%s641 + $0x2c] sm:$0xf]
        %v7397 = vld [vmem:[%s641 + $0x30] sm:$0xff]
        %v7398 = vld [vmem:[%s641 + $0x38] sm:$0xf]
        %v7399 = vld [vmem:[%s641 + $0x3c] sm:$0xff]
        %v7400 = vld [vmem:[%s641 + $0x44] sm:$0xf]
        %v7401 = vld [vmem:[%s641 + $0x48] sm:$0xff]
        %v7402 = vld [vmem:[%s641 + $0x50] sm:$0xf]
        %v7403 = vld [vmem:[%s641 + $0x54] sm:$0xff]
        %v7404 = vld [vmem:[%s641 + $0x5c] sm:$0xf]
        %v7405 = vld [vmem:[%s641 + $0x60] sm:$0xff]
        %v7406 = vld [vmem:[%s641 + $0x68] sm:$0xf]
        %v7407 = vld [vmem:[%s641 + $0x6c] sm:$0xff]
        %v7408 = vld [vmem:[%s641 + $0x74] sm:$0xf]
        %v7409 = vld [vmem:[%s641 + $0x78] sm:$0xff]
        %v7410 = vld [vmem:[%s641 + $0x80] sm:$0xf]
        %v7411 = vld [vmem:[%s641 + $0x84] sm:$0xff]
        %v7412 = vld [vmem:[%s641 + $0x8c] sm:$0xf]
        %v7413 = vld [vmem:[%s641 + $0x90] sm:$0xff]
        %v7414 = vld [vmem:[%s641 + $0x98] sm:$0xf]
        %v7415 = vld [vmem:[%s641 + $0x9c] sm:$0xff]
        %v7416 = vld [vmem:[%s641 + $0xa4] sm:$0xf]
        %v7417 = vld [vmem:[%s641 + $0xa8] sm:$0xff]
        %v7418 = vld [vmem:[%s641 + $0xb0] sm:$0xf]
        %v7419 = vld [vmem:[%s641 + $0xb4] sm:$0xff]
        %v7420 = vld [vmem:[%s641 + $0xbc] sm:$0xf]
        %v7421 = vld [vmem:[%s641 + $0xc0] sm:$0xff]
        %v7422 = vld [vmem:[%s641 + $0xc8] sm:$0xf]
        %v7423 = vld [vmem:[%s641 + $0xcc] sm:$0xff]
        %v7424 = vld [vmem:[%s641 + $0xd4] sm:$0xf]
        %v7425 = vld [vmem:[%s641 + $0xd8] sm:$0xff]
        %v7426 = vld [vmem:[%s641 + $0xe0] sm:$0xf]
        %v7427 = vld [vmem:[%s641 + $0xe4] sm:$0xff]
        %v7428 = vld [vmem:[%s641 + $0xec] sm:$0xf]
        %v7429 = vld [vmem:[%s641 + $0xf0] sm:$0xff]
        %v7430 = vld [vmem:[%s641 + $0xf8] sm:$0xf]
        %v7431 = vld [vmem:[%s641 + $0xfc] sm:$0xff]
        %v7432 = vld [vmem:[%s641 + $0x104] sm:$0xf]
        %v7433 = vld [vmem:[%s641 + $0x108] sm:$0xff]
        %v7434 = vld [vmem:[%s641 + $0x110] sm:$0xf]
        %v7435 = vld [vmem:[%s641 + $0x114] sm:$0xff]
        %v7436 = vld [vmem:[%s641 + $0x11c] sm:$0xf]
        %v7437 = vld [vmem:[%s641 + $0x120] sm:$0xff]
        %v7438 = vld [vmem:[%s641 + $0x128] sm:$0xf]
        %v7439 = vld [vmem:[%s641 + $0x12c] sm:$0xff]
        %v7440 = vld [vmem:[%s641 + $0x134] sm:$0xf]
        %v7441 = vld [vmem:[%s641 + $0x138] sm:$0xff]
        %v7442 = vld [vmem:[%s641 + $0x140] sm:$0xf]
        %v7443 = vld [vmem:[%s641 + $0x144] sm:$0xff]
        %v7444 = vld [vmem:[%s641 + $0x14c] sm:$0xf]
        %v7445 = vld [vmem:[%s641 + $0x150] sm:$0xff]
        %v7446 = vld [vmem:[%s641 + $0x158] sm:$0xf]
        %v7447 = vld [vmem:[%s641 + $0x15c] sm:$0xff]
        %v7448 = vld [vmem:[%s641 + $0x164] sm:$0xf]
        %v7449 = vld [vmem:[%s641 + $0x168] sm:$0xff]
        %v7450 = vld [vmem:[%s641 + $0x170] sm:$0xf]
        %v7451 = vld [vmem:[%s641 + $0x174] sm:$0xff]
        %v7452 = vld [vmem:[%s641 + $0x17c] sm:$0xf]
        %v7453 = vld [vmem:[%s641 + $0x180] sm:$0xff]
        %v7454 = vld [vmem:[%s641 + $0x188] sm:$0xf]
        %v7455 = vld [vmem:[%s641 + $0x18c] sm:$0xff]
        %v7456 = vld [vmem:[%s641 + $0x194] sm:$0xf]
        %v7457 = vld [vmem:[%s641 + $0x198] sm:$0xff]
        %v7458 = vld [vmem:[%s641 + $0x1a0] sm:$0xf]
        %v7459 = vld [vmem:[%s641 + $0x1a4] sm:$0xff]
        %v7460 = vld [vmem:[%s641 + $0x1ac] sm:$0xf]
        %v7461 = vld [vmem:[%s641 + $0x1b0] sm:$0xff]
        %v7462 = vld [vmem:[%s641 + $0x1b8] sm:$0xf]
        %v7463 = vld [vmem:[%s641 + $0x1bc] sm:$0xff]
        %v7464 = vld [vmem:[%s641 + $0x1c4] sm:$0xf]
        %v7465 = vld [vmem:[%s641 + $0x1c8] sm:$0xff]
        %v7466 = vld [vmem:[%s641 + $0x1d0] sm:$0xf]
        %v7467 = vld [vmem:[%s641 + $0x1d4] sm:$0xff]
        %v7468 = vld [vmem:[%s641 + $0x1dc] sm:$0xf]
        %v7469 = vld [vmem:[%s641 + $0x1e0] sm:$0xff]
        %v7470 = vld [vmem:[%s641 + $0x1e8] sm:$0xf]
        %v7471 = vld [vmem:[%s641 + $0x1ec] sm:$0xff]
        %v7472 = vld [vmem:[%s641 + $0x1f4] sm:$0xf]
        %v7473 = vld [vmem:[%s641 + $0x1f8] sm:$0xff]
        %v7474 = vld [vmem:[%s641 + $0x200] sm:$0xf]
        %v7475 = vld [vmem:[%s641 + $0x204] sm:$0xff]
        %v7476 = vld [vmem:[%s641 + $0x20c] sm:$0xf]
        %v7477 = vld [vmem:[%s641 + $0x210] sm:$0xff]
        %v7478 = vld [vmem:[%s641 + $0x218] sm:$0xf]
        %v7479 = vld [vmem:[%s641 + $0x21c] sm:$0xff]
        %v7480 = vld [vmem:[%s641 + $0x224] sm:$0xf]
        %v7481 = vld [vmem:[%s641 + $0x228] sm:$0xff]
        %v7482 = vld [vmem:[%s641 + $0x230] sm:$0xf]
        %v7483 = vld [vmem:[%s641 + $0x234] sm:$0xff]
        %v7484 = vld [vmem:[%s641 + $0x23c] sm:$0xf]
        %v7485 = vld [vmem:[%s641 + $0x240] sm:$0xff]
        %v7486 = vld [vmem:[%s641 + $0x248] sm:$0xf]
        %v7487 = vld [vmem:[%s641 + $0x24c] sm:$0xff]
        %v7488 = vld [vmem:[%s641 + $0x254] sm:$0xf]
        %v7489 = vld [vmem:[%s641 + $0x258] sm:$0xff]
        %v7490 = vld [vmem:[%s641 + $0x260] sm:$0xf]
        %v7491 = vld [vmem:[%s641 + $0x264] sm:$0xff]
        %v7492 = vld [vmem:[%s641 + $0x26c] sm:$0xf]
        %v7493 = vld [vmem:[%s641 + $0x270] sm:$0xff]
        %v7494 = vld [vmem:[%s641 + $0x278] sm:$0xf]
        %v7495 = vld [vmem:[%s641 + $0x27c] sm:$0xff]
        %v7496 = vld [vmem:[%s641 + $0x284] sm:$0xf]
        %v7497 = vld [vmem:[%s641 + $0x288] sm:$0xff]
        %v7498 = vld [vmem:[%s641 + $0x290] sm:$0xf]
        %v7499 = vld [vmem:[%s641 + $0x294] sm:$0xff]
        %v7500 = vld [vmem:[%s641 + $0x29c] sm:$0xf]
        %v7501 = vld [vmem:[%s641 + $0x2a0] sm:$0xff]
        %v7502 = vld [vmem:[%s641 + $0x2a8] sm:$0xf]
        %v7503 = vld [vmem:[%s641 + $0x2ac] sm:$0xff]
        %v7504 = vld [vmem:[%s641 + $0x2b4] sm:$0xf]
        %v7505 = vld [vmem:[%s641 + $0x2b8] sm:$0xff]
        %v7506 = vld [vmem:[%s641 + $0x2c0] sm:$0xf]
        %v7507 = vld [vmem:[%s641 + $0x2c4] sm:$0xff]
        %v7508 = vld [vmem:[%s641 + $0x2cc] sm:$0xf]
        %v7509 = vld [vmem:[%s641 + $0x2d0] sm:$0xff]
        %v7510 = vld [vmem:[%s641 + $0x2d8] sm:$0xf]
        %v7511 = vld [vmem:[%s641 + $0x2dc] sm:$0xff]
        %v7512 = vld [vmem:[%s641 + $0x2e4] sm:$0xf]
        %v7513 = vld [vmem:[%s641 + $0x2e8] sm:$0xff]
        %v7514 = vld [vmem:[%s641 + $0x2f0] sm:$0xf]
        %v7515 = vld [vmem:[%s641 + $0x2f4] sm:$0xff]
        %v7516 = vld [vmem:[%s641 + $0x2fc] sm:$0xf]
        %v7517 = vld [vmem:[%s650] sm:$0x7]
        %v7519 = vlaneseq
        %v7520 = vshrl.u32 %v7519, 7
        %v7521 = vsub.s32 0, %v7520
        %v7522 = vrot.slane %v7517, %v7521
        %v7523 = vlaneseq
        %v7524 = vshrl.u32 %v7523, 7
        %v7525 = vsub.s32 1, %v7524
        %v7526 = vrot.slane %v7517, %v7525
        %v7527 = vlaneseq
        %v7528 = vshrl.u32 %v7527, 7
        %v7529 = vsub.s32 2, %v7528
        %v7530 = vrot.slane %v7517, %v7529
        %v7534 = vadd.f32 %v7522, 0.0
        %v7535 = vadd.f32 %v7526, 0.0
        %v7536 = vadd.f32 %v7530, 0.0
        %v7538 = vlaneseq
        %v7539 = vshrl.u32 %v7538, 7
        %v7540 = vsub.s32 0, %v7539
        %v7541 = vrot.slane %v7388, %v7540
        %v7544 = vsel %vm5577, %v7352, 0
        %v7547 = vsel %vm5577, %v7356, 0
        %v7550 = vsel %vm5577, %v7360, 0
        %v7553 = vsel %vm5577, %v7364, 0
        %v7556 = vsel %vm5577, %v7368, 0
        %7558 = vmatprep.subr.bf16.mxu0 0
        %7559 = vmatpush1.bf16.xpose.msra.mxu0 %v7547
        %7560 = vmatprep.subr.bf16.mxu0 0
        %7561 = vmatpush1.bf16.xpose.msra.mxu0 %v7550
        %7562 = vmatprep.subr.bf16.mxu0 0
        %7563 = vmatpush1.bf16.xpose.msra.mxu0 %v7553
        %7564 = vmatprep.subr.bf16.mxu0 0
        %7565 = vmatpush1.bf16.xpose.msra.mxu0 %v7556
        %7566 = vmatprep.subr.bf16.mxu0 0
        %7567 = vmatpush1.bf16.xpose.msra.mxu0 0
        %7568 = vmatprep.subr.bf16.mxu0 0
        %7569 = vmatpush1.bf16.xpose.msra.mxu0 0
        %7570 = vmatprep.subr.bf16.mxu0 0
        %7571 = vmatpush1.bf16.xpose.msra.mxu0 0
        %7572 = vmatprep.subr.bf16.mxu0 0
        %7573 = vmatpush1.bf16.xpose.msra.mxu0 0
        %7574 = vmatprep.subr.bf16.mxu0 0
        %7575 = vmatpush1.bf16.xpose.msra.mxu0 0
        %7576 = vmatprep.subr.bf16.mxu0 0
        %7577 = vmatpush1.bf16.xpose.msra.mxu0 0
        %7578 = vmatprep.subr.bf16.mxu0 0
        %7579 = vmatpush1.bf16.xpose.msra.mxu0 0
        %7580 = vmatprep.subr.bf16.mxu0 0
        %7581 = vmatpush1.bf16.xpose.msra.mxu0 0
        %7582 = vmatprep.subr.bf16.mxu0 0
        %7583 = vmatpush1.bf16.xpose.msra.mxu0 0
        %7584 = vmatprep.subr.bf16.mxu0 0
        %7585 = vmatpush1.bf16.xpose.msra.mxu0 0
        %7586 = vmatprep.subr.bf16.mxu0 0
        %7587 = vmatpush1.bf16.xpose.msra.mxu0 0
        %7588 = vmatprep.subr.bf16.mxu0 0
        %7589 = vmatpush1.bf16.xpose.msra.mxu0 0
        %7590 = vmatprep.mubr.bf16.mxu0 0
        %7591 = vmatmul.mubr.bf16.gmra.mrb[0].mxu0 %v7544
        %v7592 = vpop.f32.mrb[0].mxu0
        %v7593 = vadd.f32 %v7541, %v7592
        %v7594 = vpop.f32.mrb[0].mxu0
        %v7595 = vpop.f32.mrb[0].mxu0
        %v7596 = vpop.f32.mrb[0].mxu0
        %7597 = vdwg.mxu0
        %v7598 = vsel %vm5577, %v7593, -inf
        %7599 = vmax.xlane.f32.xlu0 %v7598
        %v7600 = vpop.xlane.xlu0 %7599
        %v7601 = vsub.f32 %v7593, %v7600
        %v7602 = vmul.f32 %v7601, 1.442695
        %v7603 = vpow.pop %v7602
        %v7604 = vsel %vm5577, %v7603, 0.0
        %7605 = vadd.xlane.f32.xlu0 %v7604
        %v7606 = vpop.xlane.xlu0 %7605
        %v7607 = vrcp.pop %v7606
        %v7608 = vmul.f32 %v7603, %v7607
        %v7609 = vpack.c.bf16 %v7608, %v7608
        %v7611 = vsel %vm5577, %v7609, 0
        %7613 = vmatprep.subr.bf16.mxu0 0
        %7614 = vmatpush1.bf16.msra.mxu0 %v7372
        %7615 = vmatprep.subr.bf16.mxu0 0
        %7616 = vmatpush1.bf16.msra.mxu0 %v7376
        %7617 = vmatprep.subr.bf16.mxu0 0
        %7618 = vmatpush1.bf16.msra.mxu0 %v7380
        %7619 = vmatprep.subr.bf16.mxu0 0
        %7620 = vmatpush1.bf16.msra.mxu0 %v7384
        %7621 = vmatprep.subr.bf16.mxu0 0
        %7622 = vmatpush1.bf16.msra.mxu0 0
        %7623 = vmatprep.subr.bf16.mxu0 0
        %7624 = vmatpush1.bf16.msra.mxu0 0
        %7625 = vmatprep.subr.bf16.mxu0 0
        %7626 = vmatpush1.bf16.msra.mxu0 0
        %7627 = vmatprep.subr.bf16.mxu0 0
        %7628 = vmatpush1.bf16.msra.mxu0 0
        %7629 = vmatprep.subr.bf16.mxu0 0
        %7630 = vmatpush1.bf16.msra.mxu0 0
        %7631 = vmatprep.subr.bf16.mxu0 0
        %7632 = vmatpush1.bf16.msra.mxu0 0
        %7633 = vmatprep.subr.bf16.mxu0 0
        %7634 = vmatpush1.bf16.msra.mxu0 0
        %7635 = vmatprep.subr.bf16.mxu0 0
        %7636 = vmatpush1.bf16.msra.mxu0 0
        %7637 = vmatprep.subr.bf16.mxu0 0
        %7638 = vmatpush1.bf16.msra.mxu0 0
        %7639 = vmatprep.subr.bf16.mxu0 0
        %7640 = vmatpush1.bf16.msra.mxu0 0
        %7641 = vmatprep.subr.bf16.mxu0 0
        %7642 = vmatpush1.bf16.msra.mxu0 0
        %7643 = vmatprep.subr.bf16.mxu0 0
        %7644 = vmatpush1.bf16.msra.mxu0 0
        %7645 = vmatprep.mubr.bf16.mxu0 0
        %7646 = vmatmul.mubr.bf16.gmra.mrb[0].mxu0 %v7611
        %v7647 = vpop.f32.mrb[0].mxu0
        %v7648 = vadd.f32 0.0, %v7647
        %v7649 = vpop.f32.mrb[0].mxu0
        %v7650 = vpop.f32.mrb[0].mxu0
        %v7651 = vpop.f32.mrb[0].mxu0
        %7652 = vdwg.mxu0
        %v7653 = vpack.c.bf16 %v7648, %v7648
        %v7670 = vunpack.c.l.b16 %v7389
        %v7671 = vunpack.c.h.b16 %v7389
        %v7672 = vunpack.c.l.b16 %v7390
        %v7673 = vunpack.c.l.b16 %v7391
        %v7674 = vunpack.c.h.b16 %v7391
        %v7675 = vunpack.c.l.b16 %v7392
        %v7676 = vunpack.c.l.b16 %v7393
        %v7677 = vunpack.c.h.b16 %v7393
        %v7678 = vunpack.c.l.b16 %v7394
        %v7679 = vunpack.c.l.b16 %v7395
        %v7680 = vunpack.c.h.b16 %v7395
        %v7681 = vunpack.c.l.b16 %v7396
        %v7682 = vunpack.c.l.b16 %v7397
        %v7683 = vunpack.c.h.b16 %v7397
        %v7684 = vunpack.c.l.b16 %v7398
        %v7685 = vunpack.c.l.b16 %v7399
        %v7686 = vunpack.c.h.b16 %v7399
        %v7687 = vunpack.c.l.b16 %v7400
        %v7688 = vunpack.c.l.b16 %v7401
        %v7689 = vunpack.c.h.b16 %v7401
        %v7690 = vunpack.c.l.b16 %v7402
        %v7691 = vunpack.c.l.b16 %v7403
        %v7692 = vunpack.c.h.b16 %v7403
        %v7693 = vunpack.c.l.b16 %v7404
        %v7694 = vpack.c.b16 %v7673, %v7670
        %v7695 = vpack.c.b16 %v7674, %v7671
        %v7696 = vpack.c.b16 %v7675, %v7672
        %v7697 = vpack.c.b16 %v7679, %v7676
        %v7698 = vpack.c.b16 %v7680, %v7677
        %v7699 = vpack.c.b16 %v7681, %v7678
        %v7700 = vpack.c.b16 %v7685, %v7682
        %v7701 = vpack.c.b16 %v7686, %v7683
        %v7702 = vpack.c.b16 %v7687, %v7684
        %v7703 = vpack.c.b16 %v7691, %v7688
        %v7704 = vpack.c.b16 %v7692, %v7689
        %v7705 = vpack.c.b16 %v7693, %v7690
        %v7719 = vsel %vm5577, %v7653, 0
        %7721 = vmatprep.subr.bf16.mxu0 %v7695
        %7722 = vmatpush1.bf16.msra.mxu0 %v7694
        %7723 = vmatprep.subr.bf16.mxu0 %v7698
        %7724 = vmatpush1.bf16.msra.mxu0 %v7697
        %7725 = vmatprep.subr.bf16.mxu0 %v7701
        %7726 = vmatpush1.bf16.msra.mxu0 %v7700
        %7727 = vmatprep.subr.bf16.mxu0 %v7704
        %7728 = vmatpush1.bf16.msra.mxu0 %v7703
        %7729 = vmatprep.subr.bf16.mxu0 0
        %7730 = vmatpush1.bf16.msra.mxu0 0
        %7731 = vmatprep.subr.bf16.mxu0 0
        %7732 = vmatpush1.bf16.msra.mxu0 0
        %7733 = vmatprep.subr.bf16.mxu0 0
        %7734 = vmatpush1.bf16.msra.mxu0 0
        %7735 = vmatprep.subr.bf16.mxu0 0
        %7736 = vmatpush1.bf16.msra.mxu0 0
        %7737 = vmatprep.subr.bf16.mxu0 0
        %7738 = vmatpush1.bf16.msra.mxu0 0
        %7739 = vmatprep.subr.bf16.mxu0 0
        %7740 = vmatpush1.bf16.msra.mxu0 0
        %7741 = vmatprep.subr.bf16.mxu0 0
        %7742 = vmatpush1.bf16.msra.mxu0 0
        %7743 = vmatprep.subr.bf16.mxu0 0
        %7744 = vmatpush1.bf16.msra.mxu0 0
        %7745 = vmatprep.subr.bf16.mxu0 0
        %7746 = vmatpush1.bf16.msra.mxu0 0
        %7747 = vmatprep.subr.bf16.mxu0 0
        %7748 = vmatpush1.bf16.msra.mxu0 0
        %7749 = vmatprep.subr.bf16.mxu0 0
        %7750 = vmatpush1.bf16.msra.mxu0 0
        %7751 = vmatprep.subr.bf16.mxu0 0
        %7752 = vmatpush1.bf16.msra.mxu0 0
        %7753 = vmatprep.mubr.bf16.mxu0 0
        %7754 = vmatmul.mubr.bf16.gmra.mrb[0].mxu0 %v7719
        %v7755 = vpop.f32.mrb[0].mxu0
        %v7756 = vadd.f32 0.0, %v7755
        %v7757 = vpop.f32.mrb[0].mxu0
        %v7758 = vadd.f32 0.0, %v7757
        %v7759 = vpop.f32.mrb[0].mxu0
        %v7760 = vpop.f32.mrb[0].mxu0
        %7761 = vdwg.mxu0
        %7762 = vmatprep.subr.bf16.mxu0 0
        %7763 = vmatpush1.bf16.msra.mxu0 %v7696
        %7764 = vmatprep.subr.bf16.mxu0 0
        %7765 = vmatpush1.bf16.msra.mxu0 %v7699
        %7766 = vmatprep.subr.bf16.mxu0 0
        %7767 = vmatpush1.bf16.msra.mxu0 %v7702
        %7768 = vmatprep.subr.bf16.mxu0 0
        %7769 = vmatpush1.bf16.msra.mxu0 %v7705
        %7770 = vmatprep.subr.bf16.mxu0 0
        %7771 = vmatpush1.bf16.msra.mxu0 0
        %7772 = vmatprep.subr.bf16.mxu0 0
        %7773 = vmatpush1.bf16.msra.mxu0 0
        %7774 = vmatprep.subr.bf16.mxu0 0
        %7775 = vmatpush1.bf16.msra.mxu0 0
        %7776 = vmatprep.subr.bf16.mxu0 0
        %7777 = vmatpush1.bf16.msra.mxu0 0
        %7778 = vmatprep.subr.bf16.mxu0 0
        %7779 = vmatpush1.bf16.msra.mxu0 0
        %7780 = vmatprep.subr.bf16.mxu0 0
        %7781 = vmatpush1.bf16.msra.mxu0 0
        %7782 = vmatprep.subr.bf16.mxu0 0
        %7783 = vmatpush1.bf16.msra.mxu0 0
        %7784 = vmatprep.subr.bf16.mxu0 0
        %7785 = vmatpush1.bf16.msra.mxu0 0
        %7786 = vmatprep.subr.bf16.mxu0 0
        %7787 = vmatpush1.bf16.msra.mxu0 0
        %7788 = vmatprep.subr.bf16.mxu0 0
        %7789 = vmatpush1.bf16.msra.mxu0 0
        %7790 = vmatprep.subr.bf16.mxu0 0
        %7791 = vmatpush1.bf16.msra.mxu0 0
        %7792 = vmatprep.subr.bf16.mxu0 0
        %7793 = vmatpush1.bf16.msra.mxu0 0
        %7794 = vmatprep.mubr.bf16.mxu0 0
        %7795 = vmatmul.mubr.bf16.gmra.mrb[0].mxu0 %v7719
        %v7796 = vpop.f32.mrb[0].mxu0
        %v7797 = vadd.f32 0.0, %v7796
        %v7798 = vpop.f32.mrb[0].mxu0
        %v7799 = vpop.f32.mrb[0].mxu0
        %v7800 = vpop.f32.mrb[0].mxu0
        %7801 = vdwg.mxu0
        %v7802 = vadd.f32 %v7534, %v7756
        %v7803 = vadd.f32 %v7535, %v7758
        %v7804 = vadd.f32 %v7536, %v7797
        %7806 = vrot.lane.b32.xlu0 %v7352, 64
        %v7807 = vpop.permute.xlu0 %7806
        %7812 = vrot.lane.b32.xlu0 %v7356, 64
        %v7813 = vpop.permute.xlu0 %7812
        %7814 = vrot.lane.b32.xlu0 %v7360, 64
        %v7815 = vpop.permute.xlu0 %7814
        %7816 = vrot.lane.b32.xlu0 %v7364, 64
        %v7817 = vpop.permute.xlu0 %7816
        %7818 = vrot.lane.b32.xlu0 %v7368, 64
        %v7819 = vpop.permute.xlu0 %7818
        %v7821 = vsel %vm5577, %v7807, 0
        %v7824 = vsel %vm5577, %v7813, 0
        %v7827 = vsel %vm5577, %v7815, 0
        %v7830 = vsel %vm5577, %v7817, 0
        %v7833 = vsel %vm5577, %v7819, 0
        %7835 = vmatprep.subr.bf16.mxu0 0
        %7836 = vmatpush1.bf16.xpose.msra.mxu0 %v7824
        %7837 = vmatprep.subr.bf16.mxu0 0
        %7838 = vmatpush1.bf16.xpose.msra.mxu0 %v7827
        %7839 = vmatprep.subr.bf16.mxu0 0
        %7840 = vmatpush1.bf16.xpose.msra.mxu0 %v7830
        %7841 = vmatprep.subr.bf16.mxu0 0
        %7842 = vmatpush1.bf16.xpose.msra.mxu0 %v7833
        %7843 = vmatprep.subr.bf16.mxu0 0
        %7844 = vmatpush1.bf16.xpose.msra.mxu0 0
        %7845 = vmatprep.subr.bf16.mxu0 0
        %7846 = vmatpush1.bf16.xpose.msra.mxu0 0
        %7847 = vmatprep.subr.bf16.mxu0 0
        %7848 = vmatpush1.bf16.xpose.msra.mxu0 0
        %7849 = vmatprep.subr.bf16.mxu0 0
        %7850 = vmatpush1.bf16.xpose.msra.mxu0 0
        %7851 = vmatprep.subr.bf16.mxu0 0
        %7852 = vmatpush1.bf16.xpose.msra.mxu0 0
        %7853 = vmatprep.subr.bf16.mxu0 0
        %7854 = vmatpush1.bf16.xpose.msra.mxu0 0
        %7855 = vmatprep.subr.bf16.mxu0 0
        %7856 = vmatpush1.bf16.xpose.msra.mxu0 0
        %7857 = vmatprep.subr.bf16.mxu0 0
        %7858 = vmatpush1.bf16.xpose.msra.mxu0 0
        %7859 = vmatprep.subr.bf16.mxu0 0
        %7860 = vmatpush1.bf16.xpose.msra.mxu0 0
        %7861 = vmatprep.subr.bf16.mxu0 0
        %7862 = vmatpush1.bf16.xpose.msra.mxu0 0
        %7863 = vmatprep.subr.bf16.mxu0 0
        %7864 = vmatpush1.bf16.xpose.msra.mxu0 0
        %7865 = vmatprep.subr.bf16.mxu0 0
        %7866 = vmatpush1.bf16.xpose.msra.mxu0 0
        %7867 = vmatprep.mubr.bf16.mxu0 0
        %7868 = vmatmul.mubr.bf16.gmra.mrb[0].mxu0 %v7821
        %v7869 = vpop.f32.mrb[0].mxu0
        %v7870 = vadd.f32 %v7541, %v7869
        %v7871 = vpop.f32.mrb[0].mxu0
        %v7872 = vpop.f32.mrb[0].mxu0
        %v7873 = vpop.f32.mrb[0].mxu0
        %7874 = vdwg.mxu0
        %v7875 = vsel %vm5577, %v7870, -inf
        %7876 = vmax.xlane.f32.xlu0 %v7875
        %v7877 = vpop.xlane.xlu0 %7876
        %v7878 = vsub.f32 %v7870, %v7877
        %v7879 = vmul.f32 %v7878, 1.442695
        %v7880 = vpow.pop %v7879
        %v7881 = vsel %vm5577, %v7880, 0.0
        %7882 = vadd.xlane.f32.xlu0 %v7881
        %v7883 = vpop.xlane.xlu0 %7882
        %v7884 = vrcp.pop %v7883
        %v7885 = vmul.f32 %v7880, %v7884
        %v7886 = vpack.c.bf16 %v7885, %v7885
        %7891 = vrot.lane.b32.xlu0 %v7372, 64
        %v7892 = vpop.permute.xlu0 %7891
        %7893 = vrot.lane.b32.xlu0 %v7376, 64
        %v7894 = vpop.permute.xlu0 %7893
        %7895 = vrot.lane.b32.xlu0 %v7380, 64
        %v7896 = vpop.permute.xlu0 %7895
        %7897 = vrot.lane.b32.xlu0 %v7384, 64
        %v7898 = vpop.permute.xlu0 %7897
        %v7904 = vsel %vm5577, %v7886, 0
        %7906 = vmatprep.subr.bf16.mxu0 0
        %7907 = vmatpush1.bf16.msra.mxu0 %v7892
        %7908 = vmatprep.subr.bf16.mxu0 0
        %7909 = vmatpush1.bf16.msra.mxu0 %v7894
        %7910 = vmatprep.subr.bf16.mxu0 0
        %7911 = vmatpush1.bf16.msra.mxu0 %v7896
        %7912 = vmatprep.subr.bf16.mxu0 0
        %7913 = vmatpush1.bf16.msra.mxu0 %v7898
        %7914 = vmatprep.subr.bf16.mxu0 0
        %7915 = vmatpush1.bf16.msra.mxu0 0
        %7916 = vmatprep.subr.bf16.mxu0 0
        %7917 = vmatpush1.bf16.msra.mxu0 0
        %7918 = vmatprep.subr.bf16.mxu0 0
        %7919 = vmatpush1.bf16.msra.mxu0 0
        %7920 = vmatprep.subr.bf16.mxu0 0
        %7921 = vmatpush1.bf16.msra.mxu0 0
        %7922 = vmatprep.subr.bf16.mxu0 0
        %7923 = vmatpush1.bf16.msra.mxu0 0
        %7924 = vmatprep.subr.bf16.mxu0 0
        %7925 = vmatpush1.bf16.msra.mxu0 0
        %7926 = vmatprep.subr.bf16.mxu0 0
        %7927 = vmatpush1.bf16.msra.mxu0 0
        %7928 = vmatprep.subr.bf16.mxu0 0
        %7929 = vmatpush1.bf16.msra.mxu0 0
        %7930 = vmatprep.subr.bf16.mxu0 0
        %7931 = vmatpush1.bf16.msra.mxu0 0
        %7932 = vmatprep.subr.bf16.mxu0 0
        %7933 = vmatpush1.bf16.msra.mxu0 0
        %7934 = vmatprep.subr.bf16.mxu0 0
        %7935 = vmatpush1.bf16.msra.mxu0 0
        %7936 = vmatprep.subr.bf16.mxu0 0
        %7937 = vmatpush1.bf16.msra.mxu0 0
        %7938 = vmatprep.mubr.bf16.mxu0 0
        %7939 = vmatmul.mubr.bf16.gmra.mrb[0].mxu0 %v7904
        %v7940 = vpop.f32.mrb[0].mxu0
        %v7941 = vadd.f32 0.0, %v7940
        %v7942 = vpop.f32.mrb[0].mxu0
        %v7943 = vpop.f32.mrb[0].mxu0
        %v7944 = vpop.f32.mrb[0].mxu0
        %7945 = vdwg.mxu0
        %v7946 = vpack.c.bf16 %v7941, %v7941
        %v7963 = vunpack.c.l.b16 %v7405
        %v7964 = vunpack.c.h.b16 %v7405
        %v7965 = vunpack.c.l.b16 %v7406
        %v7966 = vunpack.c.l.b16 %v7407
        %v7967 = vunpack.c.h.b16 %v7407
        %v7968 = vunpack.c.l.b16 %v7408
        %v7969 = vunpack.c.l.b16 %v7409
        %v7970 = vunpack.c.h.b16 %v7409
        %v7971 = vunpack.c.l.b16 %v7410
        %v7972 = vunpack.c.l.b16 %v7411
        %v7973 = vunpack.c.h.b16 %v7411
        %v7974 = vunpack.c.l.b16 %v7412
        %v7975 = vunpack.c.l.b16 %v7413
        %v7976 = vunpack.c.h.b16 %v7413
        %v7977 = vunpack.c.l.b16 %v7414
        %v7978 = vunpack.c.l.b16 %v7415
        %v7979 = vunpack.c.h.b16 %v7415
        %v7980 = vunpack.c.l.b16 %v7416
        %v7981 = vunpack.c.l.b16 %v7417
        %v7982 = vunpack.c.h.b16 %v7417
        %v7983 = vunpack.c.l.b16 %v7418
        %v7984 = vunpack.c.l.b16 %v7419
        %v7985 = vunpack.c.h.b16 %v7419
        %v7986 = vunpack.c.l.b16 %v7420
        %v7987 = vpack.c.b16 %v7966, %v7963
        %v7988 = vpack.c.b16 %v7967, %v7964
        %v7989 = vpack.c.b16 %v7968, %v7965
        %v7990 = vpack.c.b16 %v7972, %v7969
        %v7991 = vpack.c.b16 %v7973, %v7970
        %v7992 = vpack.c.b16 %v7974, %v7971
        %v7993 = vpack.c.b16 %v7978, %v7975
        %v7994 = vpack.c.b16 %v7979, %v7976
        %v7995 = vpack.c.b16 %v7980, %v7977
        %v7996 = vpack.c.b16 %v7984, %v7981
        %v7997 = vpack.c.b16 %v7985, %v7982
        %v7998 = vpack.c.b16 %v7986, %v7983
        %v8012 = vsel %vm5577, %v7946, 0
        %8014 = vmatprep.subr.bf16.mxu0 %v7988
        %8015 = vmatpush1.bf16.msra.mxu0 %v7987
        %8016 = vmatprep.subr.bf16.mxu0 %v7991
        %8017 = vmatpush1.bf16.msra.mxu0 %v7990
        %8018 = vmatprep.subr.bf16.mxu0 %v7994
        %8019 = vmatpush1.bf16.msra.mxu0 %v7993
        %8020 = vmatprep.subr.bf16.mxu0 %v7997
        %8021 = vmatpush1.bf16.msra.mxu0 %v7996
        %8022 = vmatprep.subr.bf16.mxu0 0
        %8023 = vmatpush1.bf16.msra.mxu0 0
        %8024 = vmatprep.subr.bf16.mxu0 0
        %8025 = vmatpush1.bf16.msra.mxu0 0
        %8026 = vmatprep.subr.bf16.mxu0 0
        %8027 = vmatpush1.bf16.msra.mxu0 0
        %8028 = vmatprep.subr.bf16.mxu0 0
        %8029 = vmatpush1.bf16.msra.mxu0 0
        %8030 = vmatprep.subr.bf16.mxu0 0
        %8031 = vmatpush1.bf16.msra.mxu0 0
        %8032 = vmatprep.subr.bf16.mxu0 0
        %8033 = vmatpush1.bf16.msra.mxu0 0
        %8034 = vmatprep.subr.bf16.mxu0 0
        %8035 = vmatpush1.bf16.msra.mxu0 0
        %8036 = vmatprep.subr.bf16.mxu0 0
        %8037 = vmatpush1.bf16.msra.mxu0 0
        %8038 = vmatprep.subr.bf16.mxu0 0
        %8039 = vmatpush1.bf16.msra.mxu0 0
        %8040 = vmatprep.subr.bf16.mxu0 0
        %8041 = vmatpush1.bf16.msra.mxu0 0
        %8042 = vmatprep.subr.bf16.mxu0 0
        %8043 = vmatpush1.bf16.msra.mxu0 0
        %8044 = vmatprep.subr.bf16.mxu0 0
        %8045 = vmatpush1.bf16.msra.mxu0 0
        %8046 = vmatprep.mubr.bf16.mxu0 0
        %8047 = vmatmul.mubr.bf16.gmra.mrb[0].mxu0 %v8012
        %v8048 = vpop.f32.mrb[0].mxu0
        %v8049 = vadd.f32 0.0, %v8048
        %v8050 = vpop.f32.mrb[0].mxu0
        %v8051 = vadd.f32 0.0, %v8050
        %v8052 = vpop.f32.mrb[0].mxu0
        %v8053 = vpop.f32.mrb[0].mxu0
        %8054 = vdwg.mxu0
        %8055 = vmatprep.subr.bf16.mxu0 0
        %8056 = vmatpush1.bf16.msra.mxu0 %v7989
        %8057 = vmatprep.subr.bf16.mxu0 0
        %8058 = vmatpush1.bf16.msra.mxu0 %v7992
        %8059 = vmatprep.subr.bf16.mxu0 0
        %8060 = vmatpush1.bf16.msra.mxu0 %v7995
        %8061 = vmatprep.subr.bf16.mxu0 0
        %8062 = vmatpush1.bf16.msra.mxu0 %v7998
        %8063 = vmatprep.subr.bf16.mxu0 0
        %8064 = vmatpush1.bf16.msra.mxu0 0
        %8065 = vmatprep.subr.bf16.mxu0 0
        %8066 = vmatpush1.bf16.msra.mxu0 0
        %8067 = vmatprep.subr.bf16.mxu0 0
        %8068 = vmatpush1.bf16.msra.mxu0 0
        %8069 = vmatprep.subr.bf16.mxu0 0
        %8070 = vmatpush1.bf16.msra.mxu0 0
        %8071 = vmatprep.subr.bf16.mxu0 0
        %8072 = vmatpush1.bf16.msra.mxu0 0
        %8073 = vmatprep.subr.bf16.mxu0 0
        %8074 = vmatpush1.bf16.msra.mxu0 0
        %8075 = vmatprep.subr.bf16.mxu0 0
        %8076 = vmatpush1.bf16.msra.mxu0 0
        %8077 = vmatprep.subr.bf16.mxu0 0
        %8078 = vmatpush1.bf16.msra.mxu0 0
        %8079 = vmatprep.subr.bf16.mxu0 0
        %8080 = vmatpush1.bf16.msra.mxu0 0
        %8081 = vmatprep.subr.bf16.mxu0 0
        %8082 = vmatpush1.bf16.msra.mxu0 0
        %8083 = vmatprep.subr.bf16.mxu0 0
        %8084 = vmatpush1.bf16.msra.mxu0 0
        %8085 = vmatprep.subr.bf16.mxu0 0
        %8086 = vmatpush1.bf16.msra.mxu0 0
        %8087 = vmatprep.mubr.bf16.mxu0 0
        %8088 = vmatmul.mubr.bf16.gmra.mrb[0].mxu0 %v8012
        %v8089 = vpop.f32.mrb[0].mxu0
        %v8090 = vadd.f32 0.0, %v8089
        %v8091 = vpop.f32.mrb[0].mxu0
        %v8092 = vpop.f32.mrb[0].mxu0
        %v8093 = vpop.f32.mrb[0].mxu0
        %8094 = vdwg.mxu0
        %v8095 = vadd.f32 %v7802, %v8049
        %v8096 = vadd.f32 %v7803, %v8051
        %v8097 = vadd.f32 %v7804, %v8090
        %v8099 = vsel %vm5577, %v7353, 0
        %v8102 = vsel %vm5577, %v7357, 0
        %v8105 = vsel %vm5577, %v7361, 0
        %v8108 = vsel %vm5577, %v7365, 0
        %v8111 = vsel %vm5577, %v7369, 0
        %8113 = vmatprep.subr.bf16.mxu0 0
        %8114 = vmatpush1.bf16.xpose.msra.mxu0 %v8102
        %8115 = vmatprep.subr.bf16.mxu0 0
        %8116 = vmatpush1.bf16.xpose.msra.mxu0 %v8105
        %8117 = vmatprep.subr.bf16.mxu0 0
        %8118 = vmatpush1.bf16.xpose.msra.mxu0 %v8108
        %8119 = vmatprep.subr.bf16.mxu0 0
        %8120 = vmatpush1.bf16.xpose.msra.mxu0 %v8111
        %8121 = vmatprep.subr.bf16.mxu0 0
        %8122 = vmatpush1.bf16.xpose.msra.mxu0 0
        %8123 = vmatprep.subr.bf16.mxu0 0
        %8124 = vmatpush1.bf16.xpose.msra.mxu0 0
        %8125 = vmatprep.subr.bf16.mxu0 0
        %8126 = vmatpush1.bf16.xpose.msra.mxu0 0
        %8127 = vmatprep.subr.bf16.mxu0 0
        %8128 = vmatpush1.bf16.xpose.msra.mxu0 0
        %8129 = vmatprep.subr.bf16.mxu0 0
        %8130 = vmatpush1.bf16.xpose.msra.mxu0 0
        %8131 = vmatprep.subr.bf16.mxu0 0
        %8132 = vmatpush1.bf16.xpose.msra.mxu0 0
        %8133 = vmatprep.subr.bf16.mxu0 0
        %8134 = vmatpush1.bf16.xpose.msra.mxu0 0
        %8135 = vmatprep.subr.bf16.mxu0 0
        %8136 = vmatpush1.bf16.xpose.msra.mxu0 0
        %8137 = vmatprep.subr.bf16.mxu0 0
        %8138 = vmatpush1.bf16.xpose.msra.mxu0 0
        %8139 = vmatprep.subr.bf16.mxu0 0
        %8140 = vmatpush1.bf16.xpose.msra.mxu0 0
        %8141 = vmatprep.subr.bf16.mxu0 0
        %8142 = vmatpush1.bf16.xpose.msra.mxu0 0
        %8143 = vmatprep.subr.bf16.mxu0 0
        %8144 = vmatpush1.bf16.xpose.msra.mxu0 0
        %8145 = vmatprep.mubr.bf16.mxu0 0
        %8146 = vmatmul.mubr.bf16.gmra.mrb[0].mxu0 %v8099
        %v8147 = vpop.f32.mrb[0].mxu0
        %v8148 = vadd.f32 %v7541, %v8147
        %v8149 = vpop.f32.mrb[0].mxu0
        %v8150 = vpop.f32.mrb[0].mxu0
        %v8151 = vpop.f32.mrb[0].mxu0
        %8152 = vdwg.mxu0
        %v8153 = vsel %vm5577, %v8148, -inf
        %8154 = vmax.xlane.f32.xlu0 %v8153
        %v8155 = vpop.xlane.xlu0 %8154
        %v8156 = vsub.f32 %v8148, %v8155
        %v8157 = vmul.f32 %v8156, 1.442695
        %v8158 = vpow.pop %v8157
        %v8159 = vsel %vm5577, %v8158, 0.0
        %8160 = vadd.xlane.f32.xlu0 %v8159
        %v8161 = vpop.xlane.xlu0 %8160
        %v8162 = vrcp.pop %v8161
        %v8163 = vmul.f32 %v8158, %v8162
        %v8164 = vpack.c.bf16 %v8163, %v8163
        %v8166 = vsel %vm5577, %v8164, 0
        %8168 = vmatprep.subr.bf16.mxu0 0
        %8169 = vmatpush1.bf16.msra.mxu0 %v7373
        %8170 = vmatprep.subr.bf16.mxu0 0
        %8171 = vmatpush1.bf16.msra.mxu0 %v7377
        %8172 = vmatprep.subr.bf16.mxu0 0
        %8173 = vmatpush1.bf16.msra.mxu0 %v7381
        %8174 = vmatprep.subr.bf16.mxu0 0
        %8175 = vmatpush1.bf16.msra.mxu0 %v7385
        %8176 = vmatprep.subr.bf16.mxu0 0
        %8177 = vmatpush1.bf16.msra.mxu0 0
        %8178 = vmatprep.subr.bf16.mxu0 0
        %8179 = vmatpush1.bf16.msra.mxu0 0
        %8180 = vmatprep.subr.bf16.mxu0 0
        %8181 = vmatpush1.bf16.msra.mxu0 0
        %8182 = vmatprep.subr.bf16.mxu0 0
        %8183 = vmatpush1.bf16.msra.mxu0 0
        %8184 = vmatprep.subr.bf16.mxu0 0
        %8185 = vmatpush1.bf16.msra.mxu0 0
        %8186 = vmatprep.subr.bf16.mxu0 0
        %8187 = vmatpush1.bf16.msra.mxu0 0
        %8188 = vmatprep.subr.bf16.mxu0 0
        %8189 = vmatpush1.bf16.msra.mxu0 0
        %8190 = vmatprep.subr.bf16.mxu0 0
        %8191 = vmatpush1.bf16.msra.mxu0 0
        %8192 = vmatprep.subr.bf16.mxu0 0
        %8193 = vmatpush1.bf16.msra.mxu0 0
        %8194 = vmatprep.subr.bf16.mxu0 0
        %8195 = vmatpush1.bf16.msra.mxu0 0
        %8196 = vmatprep.subr.bf16.mxu0 0
        %8197 = vmatpush1.bf16.msra.mxu0 0
        %8198 = vmatprep.subr.bf16.mxu0 0
        %8199 = vmatpush1.bf16.msra.mxu0 0
        %8200 = vmatprep.mubr.bf16.mxu0 0
        %8201 = vmatmul.mubr.bf16.gmra.mrb[0].mxu0 %v8166
        %v8202 = vpop.f32.mrb[0].mxu0
        %v8203 = vadd.f32 0.0, %v8202
        %v8204 = vpop.f32.mrb[0].mxu0
        %v8205 = vpop.f32.mrb[0].mxu0
        %v8206 = vpop.f32.mrb[0].mxu0
        %8207 = vdwg.mxu0
        %v8208 = vpack.c.bf16 %v8203, %v8203
        %v8225 = vunpack.c.l.b16 %v7421
        %v8226 = vunpack.c.h.b16 %v7421
        %v8227 = vunpack.c.l.b16 %v7422
        %v8228 = vunpack.c.l.b16 %v7423
        %v8229 = vunpack.c.h.b16 %v7423
        %v8230 = vunpack.c.l.b16 %v7424
        %v8231 = vunpack.c.l.b16 %v7425
        %v8232 = vunpack.c.h.b16 %v7425
        %v8233 = vunpack.c.l.b16 %v7426
        %v8234 = vunpack.c.l.b16 %v7427
        %v8235 = vunpack.c.h.b16 %v7427
        %v8236 = vunpack.c.l.b16 %v7428
        %v8237 = vunpack.c.l.b16 %v7429
        %v8238 = vunpack.c.h.b16 %v7429
        %v8239 = vunpack.c.l.b16 %v7430
        %v8240 = vunpack.c.l.b16 %v7431
        %v8241 = vunpack.c.h.b16 %v7431
        %v8242 = vunpack.c.l.b16 %v7432
        %v8243 = vunpack.c.l.b16 %v7433
        %v8244 = vunpack.c.h.b16 %v7433
        %v8245 = vunpack.c.l.b16 %v7434
        %v8246 = vunpack.c.l.b16 %v7435
        %v8247 = vunpack.c.h.b16 %v7435
        %v8248 = vunpack.c.l.b16 %v7436
        %v8249 = vpack.c.b16 %v8228, %v8225
        %v8250 = vpack.c.b16 %v8229, %v8226
        %v8251 = vpack.c.b16 %v8230, %v8227
        %v8252 = vpack.c.b16 %v8234, %v8231
        %v8253 = vpack.c.b16 %v8235, %v8232
        %v8254 = vpack.c.b16 %v8236, %v8233
        %v8255 = vpack.c.b16 %v8240, %v8237
        %v8256 = vpack.c.b16 %v8241, %v8238
        %v8257 = vpack.c.b16 %v8242, %v8239
        %v8258 = vpack.c.b16 %v8246, %v8243
        %v8259 = vpack.c.b16 %v8247, %v8244
        %v8260 = vpack.c.b16 %v8248, %v8245
        %v8274 = vsel %vm5577, %v8208, 0
        %8276 = vmatprep.subr.bf16.mxu0 %v8250
        %8277 = vmatpush1.bf16.msra.mxu0 %v8249
        %8278 = vmatprep.subr.bf16.mxu0 %v8253
        %8279 = vmatpush1.bf16.msra.mxu0 %v8252
        %8280 = vmatprep.subr.bf16.mxu0 %v8256
        %8281 = vmatpush1.bf16.msra.mxu0 %v8255
        %8282 = vmatprep.subr.bf16.mxu0 %v8259
        %8283 = vmatpush1.bf16.msra.mxu0 %v8258
        %8284 = vmatprep.subr.bf16.mxu0 0
        %8285 = vmatpush1.bf16.msra.mxu0 0
        %8286 = vmatprep.subr.bf16.mxu0 0
        %8287 = vmatpush1.bf16.msra.mxu0 0
        %8288 = vmatprep.subr.bf16.mxu0 0
        %8289 = vmatpush1.bf16.msra.mxu0 0
        %8290 = vmatprep.subr.bf16.mxu0 0
        %8291 = vmatpush1.bf16.msra.mxu0 0
        %8292 = vmatprep.subr.bf16.mxu0 0
        %8293 = vmatpush1.bf16.msra.mxu0 0
        %8294 = vmatprep.subr.bf16.mxu0 0
        %8295 = vmatpush1.bf16.msra.mxu0 0
        %8296 = vmatprep.subr.bf16.mxu0 0
        %8297 = vmatpush1.bf16.msra.mxu0 0
        %8298 = vmatprep.subr.bf16.mxu0 0
        %8299 = vmatpush1.bf16.msra.mxu0 0
        %8300 = vmatprep.subr.bf16.mxu0 0
        %8301 = vmatpush1.bf16.msra.mxu0 0
        %8302 = vmatprep.subr.bf16.mxu0 0
        %8303 = vmatpush1.bf16.msra.mxu0 0
        %8304 = vmatprep.subr.bf16.mxu0 0
        %8305 = vmatpush1.bf16.msra.mxu0 0
        %8306 = vmatprep.subr.bf16.mxu0 0
        %8307 = vmatpush1.bf16.msra.mxu0 0
        %8308 = vmatprep.mubr.bf16.mxu0 0
        %8309 = vmatmul.mubr.bf16.gmra.mrb[0].mxu0 %v8274
        %v8310 = vpop.f32.mrb[0].mxu0
        %v8311 = vadd.f32 0.0, %v8310
        %v8312 = vpop.f32.mrb[0].mxu0
        %v8313 = vadd.f32 0.0, %v8312
        %v8314 = vpop.f32.mrb[0].mxu0
        %v8315 = vpop.f32.mrb[0].mxu0
        %8316 = vdwg.mxu0
        %8317 = vmatprep.subr.bf16.mxu0 0
        %8318 = vmatpush1.bf16.msra.mxu0 %v8251
        %8319 = vmatprep.subr.bf16.mxu0 0
        %8320 = vmatpush1.bf16.msra.mxu0 %v8254
        %8321 = vmatprep.subr.bf16.mxu0 0
        %8322 = vmatpush1.bf16.msra.mxu0 %v8257
        %8323 = vmatprep.subr.bf16.mxu0 0
        %8324 = vmatpush1.bf16.msra.mxu0 %v8260
        %8325 = vmatprep.subr.bf16.mxu0 0
        %8326 = vmatpush1.bf16.msra.mxu0 0
        %8327 = vmatprep.subr.bf16.mxu0 0
        %8328 = vmatpush1.bf16.msra.mxu0 0
        %8329 = vmatprep.subr.bf16.mxu0 0
        %8330 = vmatpush1.bf16.msra.mxu0 0
        %8331 = vmatprep.subr.bf16.mxu0 0
        %8332 = vmatpush1.bf16.msra.mxu0 0
        %8333 = vmatprep.subr.bf16.mxu0 0
        %8334 = vmatpush1.bf16.msra.mxu0 0
        %8335 = vmatprep.subr.bf16.mxu0 0
        %8336 = vmatpush1.bf16.msra.mxu0 0
        %8337 = vmatprep.subr.bf16.mxu0 0
        %8338 = vmatpush1.bf16.msra.mxu0 0
        %8339 = vmatprep.subr.bf16.mxu0 0
        %8340 = vmatpush1.bf16.msra.mxu0 0
        %8341 = vmatprep.subr.bf16.mxu0 0
        %8342 = vmatpush1.bf16.msra.mxu0 0
        %8343 = vmatprep.subr.bf16.mxu0 0
        %8344 = vmatpush1.bf16.msra.mxu0 0
        %8345 = vmatprep.subr.bf16.mxu0 0
        %8346 = vmatpush1.bf16.msra.mxu0 0
        %8347 = vmatprep.subr.bf16.mxu0 0
        %8348 = vmatpush1.bf16.msra.mxu0 0
        %8349 = vmatprep.mubr.bf16.mxu0 0
        %8350 = vmatmul.mubr.bf16.gmra.mrb[0].mxu0 %v8274
        %v8351 = vpop.f32.mrb[0].mxu0
        %v8352 = vadd.f32 0.0, %v8351
        %v8353 = vpop.f32.mrb[0].mxu0
        %v8354 = vpop.f32.mrb[0].mxu0
        %v8355 = vpop.f32.mrb[0].mxu0
        %8356 = vdwg.mxu0
        %v8357 = vadd.f32 %v8095, %v8311
        %v8358 = vadd.f32 %v8096, %v8313
        %v8359 = vadd.f32 %v8097, %v8352
        %8361 = vrot.lane.b32.xlu0 %v7353, 64
        %v8362 = vpop.permute.xlu0 %8361
        %8367 = vrot.lane.b32.xlu0 %v7357, 64
        %v8368 = vpop.permute.xlu0 %8367
        %8369 = vrot.lane.b32.xlu0 %v7361, 64
        %v8370 = vpop.permute.xlu0 %8369
        %8371 = vrot.lane.b32.xlu0 %v7365, 64
        %v8372 = vpop.permute.xlu0 %8371
        %8373 = vrot.lane.b32.xlu0 %v7369, 64
        %v8374 = vpop.permute.xlu0 %8373
        %v8376 = vsel %vm5577, %v8362, 0
        %v8379 = vsel %vm5577, %v8368, 0
        %v8382 = vsel %vm5577, %v8370, 0
        %v8385 = vsel %vm5577, %v8372, 0
        %v8388 = vsel %vm5577, %v8374, 0
        %8390 = vmatprep.subr.bf16.mxu0 0
        %8391 = vmatpush1.bf16.xpose.msra.mxu0 %v8379
        %8392 = vmatprep.subr.bf16.mxu0 0
        %8393 = vmatpush1.bf16.xpose.msra.mxu0 %v8382
        %8394 = vmatprep.subr.bf16.mxu0 0
        %8395 = vmatpush1.bf16.xpose.msra.mxu0 %v8385
        %8396 = vmatprep.subr.bf16.mxu0 0
        %8397 = vmatpush1.bf16.xpose.msra.mxu0 %v8388
        %8398 = vmatprep.subr.bf16.mxu0 0
        %8399 = vmatpush1.bf16.xpose.msra.mxu0 0
        %8400 = vmatprep.subr.bf16.mxu0 0
        %8401 = vmatpush1.bf16.xpose.msra.mxu0 0
        %8402 = vmatprep.subr.bf16.mxu0 0
        %8403 = vmatpush1.bf16.xpose.msra.mxu0 0
        %8404 = vmatprep.subr.bf16.mxu0 0
        %8405 = vmatpush1.bf16.xpose.msra.mxu0 0
        %8406 = vmatprep.subr.bf16.mxu0 0
        %8407 = vmatpush1.bf16.xpose.msra.mxu0 0
        %8408 = vmatprep.subr.bf16.mxu0 0
        %8409 = vmatpush1.bf16.xpose.msra.mxu0 0
        %8410 = vmatprep.subr.bf16.mxu0 0
        %8411 = vmatpush1.bf16.xpose.msra.mxu0 0
        %8412 = vmatprep.subr.bf16.mxu0 0
        %8413 = vmatpush1.bf16.xpose.msra.mxu0 0
        %8414 = vmatprep.subr.bf16.mxu0 0
        %8415 = vmatpush1.bf16.xpose.msra.mxu0 0
        %8416 = vmatprep.subr.bf16.mxu0 0
        %8417 = vmatpush1.bf16.xpose.msra.mxu0 0
        %8418 = vmatprep.subr.bf16.mxu0 0
        %8419 = vmatpush1.bf16.xpose.msra.mxu0 0
        %8420 = vmatprep.subr.bf16.mxu0 0
        %8421 = vmatpush1.bf16.xpose.msra.mxu0 0
        %8422 = vmatprep.mubr.bf16.mxu0 0
        %8423 = vmatmul.mubr.bf16.gmra.mrb[0].mxu0 %v8376
        %v8424 = vpop.f32.mrb[0].mxu0
        %v8425 = vadd.f32 %v7541, %v8424
        %v8426 = vpop.f32.mrb[0].mxu0
        %v8427 = vpop.f32.mrb[0].mxu0
        %v8428 = vpop.f32.mrb[0].mxu0
        %8429 = vdwg.mxu0
        %v8430 = vsel %vm5577, %v8425, -inf
        %8431 = vmax.xlane.f32.xlu0 %v8430
        %v8432 = vpop.xlane.xlu0 %8431
        %v8433 = vsub.f32 %v8425, %v8432
        %v8434 = vmul.f32 %v8433, 1.442695
        %v8435 = vpow.pop %v8434
        %v8436 = vsel %vm5577, %v8435, 0.0
        %8437 = vadd.xlane.f32.xlu0 %v8436
        %v8438 = vpop.xlane.xlu0 %8437
        %v8439 = vrcp.pop %v8438
        %v8440 = vmul.f32 %v8435, %v8439
        %v8441 = vpack.c.bf16 %v8440, %v8440
        %8446 = vrot.lane.b32.xlu0 %v7373, 64
        %v8447 = vpop.permute.xlu0 %8446
        %8448 = vrot.lane.b32.xlu0 %v7377, 64
        %v8449 = vpop.permute.xlu0 %8448
        %8450 = vrot.lane.b32.xlu0 %v7381, 64
        %v8451 = vpop.permute.xlu0 %8450
        %8452 = vrot.lane.b32.xlu0 %v7385, 64
        %v8453 = vpop.permute.xlu0 %8452
        %v8459 = vsel %vm5577, %v8441, 0
        %8461 = vmatprep.subr.bf16.mxu0 0
        %8462 = vmatpush1.bf16.msra.mxu0 %v8447
        %8463 = vmatprep.subr.bf16.mxu0 0
        %8464 = vmatpush1.bf16.msra.mxu0 %v8449
        %8465 = vmatprep.subr.bf16.mxu0 0
        %8466 = vmatpush1.bf16.msra.mxu0 %v8451
        %8467 = vmatprep.subr.bf16.mxu0 0
        %8468 = vmatpush1.bf16.msra.mxu0 %v8453
        %8469 = vmatprep.subr.bf16.mxu0 0
        %8470 = vmatpush1.bf16.msra.mxu0 0
        %8471 = vmatprep.subr.bf16.mxu0 0
        %8472 = vmatpush1.bf16.msra.mxu0 0
        %8473 = vmatprep.subr.bf16.mxu0 0
        %8474 = vmatpush1.bf16.msra.mxu0 0
        %8475 = vmatprep.subr.bf16.mxu0 0
        %8476 = vmatpush1.bf16.msra.mxu0 0
        %8477 = vmatprep.subr.bf16.mxu0 0
        %8478 = vmatpush1.bf16.msra.mxu0 0
        %8479 = vmatprep.subr.bf16.mxu0 0
        %8480 = vmatpush1.bf16.msra.mxu0 0
        %8481 = vmatprep.subr.bf16.mxu0 0
        %8482 = vmatpush1.bf16.msra.mxu0 0
        %8483 = vmatprep.subr.bf16.mxu0 0
        %8484 = vmatpush1.bf16.msra.mxu0 0
        %8485 = vmatprep.subr.bf16.mxu0 0
        %8486 = vmatpush1.bf16.msra.mxu0 0
        %8487 = vmatprep.subr.bf16.mxu0 0
        %8488 = vmatpush1.bf16.msra.mxu0 0
        %8489 = vmatprep.subr.bf16.mxu0 0
        %8490 = vmatpush1.bf16.msra.mxu0 0
        %8491 = vmatprep.subr.bf16.mxu0 0
        %8492 = vmatpush1.bf16.msra.mxu0 0
        %8493 = vmatprep.mubr.bf16.mxu0 0
        %8494 = vmatmul.mubr.bf16.gmra.mrb[0].mxu0 %v8459
        %v8495 = vpop.f32.mrb[0].mxu0
        %v8496 = vadd.f32 0.0, %v8495
        %v8497 = vpop.f32.mrb[0].mxu0
        %v8498 = vpop.f32.mrb[0].mxu0
        %v8499 = vpop.f32.mrb[0].mxu0
        %8500 = vdwg.mxu0
        %v8501 = vpack.c.bf16 %v8496, %v8496
        %v8518 = vunpack.c.l.b16 %v7437
        %v8519 = vunpack.c.h.b16 %v7437
        %v8520 = vunpack.c.l.b16 %v7438
        %v8521 = vunpack.c.l.b16 %v7439
        %v8522 = vunpack.c.h.b16 %v7439
        %v8523 = vunpack.c.l.b16 %v7440
        %v8524 = vunpack.c.l.b16 %v7441
        %v8525 = vunpack.c.h.b16 %v7441
        %v8526 = vunpack.c.l.b16 %v7442
        %v8527 = vunpack.c.l.b16 %v7443
        %v8528 = vunpack.c.h.b16 %v7443
        %v8529 = vunpack.c.l.b16 %v7444
        %v8530 = vunpack.c.l.b16 %v7445
        %v8531 = vunpack.c.h.b16 %v7445
        %v8532 = vunpack.c.l.b16 %v7446
        %v8533 = vunpack.c.l.b16 %v7447
        %v8534 = vunpack.c.h.b16 %v7447
        %v8535 = vunpack.c.l.b16 %v7448
        %v8536 = vunpack.c.l.b16 %v7449
        %v8537 = vunpack.c.h.b16 %v7449
        %v8538 = vunpack.c.l.b16 %v7450
        %v8539 = vunpack.c.l.b16 %v7451
        %v8540 = vunpack.c.h.b16 %v7451
        %v8541 = vunpack.c.l.b16 %v7452
        %v8542 = vpack.c.b16 %v8521, %v8518
        %v8543 = vpack.c.b16 %v8522, %v8519
        %v8544 = vpack.c.b16 %v8523, %v8520
        %v8545 = vpack.c.b16 %v8527, %v8524
        %v8546 = vpack.c.b16 %v8528, %v8525
        %v8547 = vpack.c.b16 %v8529, %v8526
        %v8548 = vpack.c.b16 %v8533, %v8530
        %v8549 = vpack.c.b16 %v8534, %v8531
        %v8550 = vpack.c.b16 %v8535, %v8532
        %v8551 = vpack.c.b16 %v8539, %v8536
        %v8552 = vpack.c.b16 %v8540, %v8537
        %v8553 = vpack.c.b16 %v8541, %v8538
        %v8567 = vsel %vm5577, %v8501, 0
        %8569 = vmatprep.subr.bf16.mxu0 %v8543
        %8570 = vmatpush1.bf16.msra.mxu0 %v8542
        %8571 = vmatprep.subr.bf16.mxu0 %v8546
        %8572 = vmatpush1.bf16.msra.mxu0 %v8545
        %8573 = vmatprep.subr.bf16.mxu0 %v8549
        %8574 = vmatpush1.bf16.msra.mxu0 %v8548
        %8575 = vmatprep.subr.bf16.mxu0 %v8552
        %8576 = vmatpush1.bf16.msra.mxu0 %v8551
        %8577 = vmatprep.subr.bf16.mxu0 0
        %8578 = vmatpush1.bf16.msra.mxu0 0
        %8579 = vmatprep.subr.bf16.mxu0 0
        %8580 = vmatpush1.bf16.msra.mxu0 0
        %8581 = vmatprep.subr.bf16.mxu0 0
        %8582 = vmatpush1.bf16.msra.mxu0 0
        %8583 = vmatprep.subr.bf16.mxu0 0
        %8584 = vmatpush1.bf16.msra.mxu0 0
        %8585 = vmatprep.subr.bf16.mxu0 0
        %8586 = vmatpush1.bf16.msra.mxu0 0
        %8587 = vmatprep.subr.bf16.mxu0 0
        %8588 = vmatpush1.bf16.msra.mxu0 0
        %8589 = vmatprep.subr.bf16.mxu0 0
        %8590 = vmatpush1.bf16.msra.mxu0 0
        %8591 = vmatprep.subr.bf16.mxu0 0
        %8592 = vmatpush1.bf16.msra.mxu0 0
        %8593 = vmatprep.subr.bf16.mxu0 0
        %8594 = vmatpush1.bf16.msra.mxu0 0
        %8595 = vmatprep.subr.bf16.mxu0 0
        %8596 = vmatpush1.bf16.msra.mxu0 0
        %8597 = vmatprep.subr.bf16.mxu0 0
        %8598 = vmatpush1.bf16.msra.mxu0 0
        %8599 = vmatprep.subr.bf16.mxu0 0
        %8600 = vmatpush1.bf16.msra.mxu0 0
        %8601 = vmatprep.mubr.bf16.mxu0 0
        %8602 = vmatmul.mubr.bf16.gmra.mrb[0].mxu0 %v8567
        %v8603 = vpop.f32.mrb[0].mxu0
        %v8604 = vadd.f32 0.0, %v8603
        %v8605 = vpop.f32.mrb[0].mxu0
        %v8606 = vadd.f32 0.0, %v8605
        %v8607 = vpop.f32.mrb[0].mxu0
        %v8608 = vpop.f32.mrb[0].mxu0
        %8609 = vdwg.mxu0
        %8610 = vmatprep.subr.bf16.mxu0 0
        %8611 = vmatpush1.bf16.msra.mxu0 %v8544
        %8612 = vmatprep.subr.bf16.mxu0 0
        %8613 = vmatpush1.bf16.msra.mxu0 %v8547
        %8614 = vmatprep.subr.bf16.mxu0 0
        %8615 = vmatpush1.bf16.msra.mxu0 %v8550
        %8616 = vmatprep.subr.bf16.mxu0 0
        %8617 = vmatpush1.bf16.msra.mxu0 %v8553
        %8618 = vmatprep.subr.bf16.mxu0 0
        %8619 = vmatpush1.bf16.msra.mxu0 0
        %8620 = vmatprep.subr.bf16.mxu0 0
        %8621 = vmatpush1.bf16.msra.mxu0 0
        %8622 = vmatprep.subr.bf16.mxu0 0
        %8623 = vmatpush1.bf16.msra.mxu0 0
        %8624 = vmatprep.subr.bf16.mxu0 0
        %8625 = vmatpush1.bf16.msra.mxu0 0
        %8626 = vmatprep.subr.bf16.mxu0 0
        %8627 = vmatpush1.bf16.msra.mxu0 0
        %8628 = vmatprep.subr.bf16.mxu0 0
        %8629 = vmatpush1.bf16.msra.mxu0 0
        %8630 = vmatprep.subr.bf16.mxu0 0
        %8631 = vmatpush1.bf16.msra.mxu0 0
        %8632 = vmatprep.subr.bf16.mxu0 0
        %8633 = vmatpush1.bf16.msra.mxu0 0
        %8634 = vmatprep.subr.bf16.mxu0 0
        %8635 = vmatpush1.bf16.msra.mxu0 0
        %8636 = vmatprep.subr.bf16.mxu0 0
        %8637 = vmatpush1.bf16.msra.mxu0 0
        %8638 = vmatprep.subr.bf16.mxu0 0
        %8639 = vmatpush1.bf16.msra.mxu0 0
        %8640 = vmatprep.subr.bf16.mxu0 0
        %8641 = vmatpush1.bf16.msra.mxu0 0
        %8642 = vmatprep.mubr.bf16.mxu0 0
        %8643 = vmatmul.mubr.bf16.gmra.mrb[0].mxu0 %v8567
        %v8644 = vpop.f32.mrb[0].mxu0
        %v8645 = vadd.f32 0.0, %v8644
        %v8646 = vpop.f32.mrb[0].mxu0
        %v8647 = vpop.f32.mrb[0].mxu0
        %v8648 = vpop.f32.mrb[0].mxu0
        %8649 = vdwg.mxu0
        %v8650 = vadd.f32 %v8357, %v8604
        %v8651 = vadd.f32 %v8358, %v8606
        %v8652 = vadd.f32 %v8359, %v8645
        %v8654 = vsel %vm5577, %v7354, 0
        %v8657 = vsel %vm5577, %v7358, 0
        %v8660 = vsel %vm5577, %v7362, 0
        %v8663 = vsel %vm5577, %v7366, 0
        %v8666 = vsel %vm5577, %v7370, 0
        %8668 = vmatprep.subr.bf16.mxu0 0
        %8669 = vmatpush1.bf16.xpose.msra.mxu0 %v8657
        %8670 = vmatprep.subr.bf16.mxu0 0
        %8671 = vmatpush1.bf16.xpose.msra.mxu0 %v8660
        %8672 = vmatprep.subr.bf16.mxu0 0
        %8673 = vmatpush1.bf16.xpose.msra.mxu0 %v8663
        %8674 = vmatprep.subr.bf16.mxu0 0
        %8675 = vmatpush1.bf16.xpose.msra.mxu0 %v8666
        %8676 = vmatprep.subr.bf16.mxu0 0
        %8677 = vmatpush1.bf16.xpose.msra.mxu0 0
        %8678 = vmatprep.subr.bf16.mxu0 0
        %8679 = vmatpush1.bf16.xpose.msra.mxu0 0
        %8680 = vmatprep.subr.bf16.mxu0 0
        %8681 = vmatpush1.bf16.xpose.msra.mxu0 0
        %8682 = vmatprep.subr.bf16.mxu0 0
        %8683 = vmatpush1.bf16.xpose.msra.mxu0 0
        %8684 = vmatprep.subr.bf16.mxu0 0
        %8685 = vmatpush1.bf16.xpose.msra.mxu0 0
        %8686 = vmatprep.subr.bf16.mxu0 0
        %8687 = vmatpush1.bf16.xpose.msra.mxu0 0
        %8688 = vmatprep.subr.bf16.mxu0 0
        %8689 = vmatpush1.bf16.xpose.msra.mxu0 0
        %8690 = vmatprep.subr.bf16.mxu0 0
        %8691 = vmatpush1.bf16.xpose.msra.mxu0 0
        %8692 = vmatprep.subr.bf16.mxu0 0
        %8693 = vmatpush1.bf16.xpose.msra.mxu0 0
        %8694 = vmatprep.subr.bf16.mxu0 0
        %8695 = vmatpush1.bf16.xpose.msra.mxu0 0
        %8696 = vmatprep.subr.bf16.mxu0 0
        %8697 = vmatpush1.bf16.xpose.msra.mxu0 0
        %8698 = vmatprep.subr.bf16.mxu0 0
        %8699 = vmatpush1.bf16.xpose.msra.mxu0 0
        %8700 = vmatprep.mubr.bf16.mxu0 0
        %8701 = vmatmul.mubr.bf16.gmra.mrb[0].mxu0 %v8654
        %v8702 = vpop.f32.mrb[0].mxu0
        %v8703 = vadd.f32 %v7541, %v8702
        %v8704 = vpop.f32.mrb[0].mxu0
        %v8705 = vpop.f32.mrb[0].mxu0
        %v8706 = vpop.f32.mrb[0].mxu0
        %8707 = vdwg.mxu0
        %v8708 = vsel %vm5577, %v8703, -inf
        %8709 = vmax.xlane.f32.xlu0 %v8708
        %v8710 = vpop.xlane.xlu0 %8709
        %v8711 = vsub.f32 %v8703, %v8710
        %v8712 = vmul.f32 %v8711, 1.442695
        %v8713 = vpow.pop %v8712
        %v8714 = vsel %vm5577, %v8713, 0.0
        %8715 = vadd.xlane.f32.xlu0 %v8714
        %v8716 = vpop.xlane.xlu0 %8715
        %v8717 = vrcp.pop %v8716
        %v8718 = vmul.f32 %v8713, %v8717
        %v8719 = vpack.c.bf16 %v8718, %v8718
        %v8721 = vsel %vm5577, %v8719, 0
        %8723 = vmatprep.subr.bf16.mxu0 0
        %8724 = vmatpush1.bf16.msra.mxu0 %v7374
        %8725 = vmatprep.subr.bf16.mxu0 0
        %8726 = vmatpush1.bf16.msra.mxu0 %v7378
        %8727 = vmatprep.subr.bf16.mxu0 0
        %8728 = vmatpush1.bf16.msra.mxu0 %v7382
        %8729 = vmatprep.subr.bf16.mxu0 0
        %8730 = vmatpush1.bf16.msra.mxu0 %v7386
        %8731 = vmatprep.subr.bf16.mxu0 0
        %8732 = vmatpush1.bf16.msra.mxu0 0
        %8733 = vmatprep.subr.bf16.mxu0 0
        %8734 = vmatpush1.bf16.msra.mxu0 0
        %8735 = vmatprep.subr.bf16.mxu0 0
        %8736 = vmatpush1.bf16.msra.mxu0 0
        %8737 = vmatprep.subr.bf16.mxu0 0
        %8738 = vmatpush1.bf16.msra.mxu0 0
        %8739 = vmatprep.subr.bf16.mxu0 0
        %8740 = vmatpush1.bf16.msra.mxu0 0
        %8741 = vmatprep.subr.bf16.mxu0 0
        %8742 = vmatpush1.bf16.msra.mxu0 0
        %8743 = vmatprep.subr.bf16.mxu0 0
        %8744 = vmatpush1.bf16.msra.mxu0 0
        %8745 = vmatprep.subr.bf16.mxu0 0
        %8746 = vmatpush1.bf16.msra.mxu0 0
        %8747 = vmatprep.subr.bf16.mxu0 0
        %8748 = vmatpush1.bf16.msra.mxu0 0
        %8749 = vmatprep.subr.bf16.mxu0 0
        %8750 = vmatpush1.bf16.msra.mxu0 0
        %8751 = vmatprep.subr.bf16.mxu0 0
        %8752 = vmatpush1.bf16.msra.mxu0 0
        %8753 = vmatprep.subr.bf16.mxu0 0
        %8754 = vmatpush1.bf16.msra.mxu0 0
        %8755 = vmatprep.mubr.bf16.mxu0 0
        %8756 = vmatmul.mubr.bf16.gmra.mrb[0].mxu0 %v8721
        %v8757 = vpop.f32.mrb[0].mxu0
        %v8758 = vadd.f32 0.0, %v8757
        %v8759 = vpop.f32.mrb[0].mxu0
        %v8760 = vpop.f32.mrb[0].mxu0
        %v8761 = vpop.f32.mrb[0].mxu0
        %8762 = vdwg.mxu0
        %v8763 = vpack.c.bf16 %v8758, %v8758
        %v8780 = vunpack.c.l.b16 %v7453
        %v8781 = vunpack.c.h.b16 %v7453
        %v8782 = vunpack.c.l.b16 %v7454
        %v8783 = vunpack.c.l.b16 %v7455
        %v8784 = vunpack.c.h.b16 %v7455
        %v8785 = vunpack.c.l.b16 %v7456
        %v8786 = vunpack.c.l.b16 %v7457
        %v8787 = vunpack.c.h.b16 %v7457
        %v8788 = vunpack.c.l.b16 %v7458
        %v8789 = vunpack.c.l.b16 %v7459
        %v8790 = vunpack.c.h.b16 %v7459
        %v8791 = vunpack.c.l.b16 %v7460
        %v8792 = vunpack.c.l.b16 %v7461
        %v8793 = vunpack.c.h.b16 %v7461
        %v8794 = vunpack.c.l.b16 %v7462
        %v8795 = vunpack.c.l.b16 %v7463
        %v8796 = vunpack.c.h.b16 %v7463
        %v8797 = vunpack.c.l.b16 %v7464
        %v8798 = vunpack.c.l.b16 %v7465
        %v8799 = vunpack.c.h.b16 %v7465
        %v8800 = vunpack.c.l.b16 %v7466
        %v8801 = vunpack.c.l.b16 %v7467
        %v8802 = vunpack.c.h.b16 %v7467
        %v8803 = vunpack.c.l.b16 %v7468
        %v8804 = vpack.c.b16 %v8783, %v8780
        %v8805 = vpack.c.b16 %v8784, %v8781
        %v8806 = vpack.c.b16 %v8785, %v8782
        %v8807 = vpack.c.b16 %v8789, %v8786
        %v8808 = vpack.c.b16 %v8790, %v8787
        %v8809 = vpack.c.b16 %v8791, %v8788
        %v8810 = vpack.c.b16 %v8795, %v8792
        %v8811 = vpack.c.b16 %v8796, %v8793
        %v8812 = vpack.c.b16 %v8797, %v8794
        %v8813 = vpack.c.b16 %v8801, %v8798
        %v8814 = vpack.c.b16 %v8802, %v8799
        %v8815 = vpack.c.b16 %v8803, %v8800
        %v8829 = vsel %vm5577, %v8763, 0
        %8831 = vmatprep.subr.bf16.mxu0 %v8805
        %8832 = vmatpush1.bf16.msra.mxu0 %v8804
        %8833 = vmatprep.subr.bf16.mxu0 %v8808
        %8834 = vmatpush1.bf16.msra.mxu0 %v8807
        %8835 = vmatprep.subr.bf16.mxu0 %v8811
        %8836 = vmatpush1.bf16.msra.mxu0 %v8810
        %8837 = vmatprep.subr.bf16.mxu0 %v8814
        %8838 = vmatpush1.bf16.msra.mxu0 %v8813
        %8839 = vmatprep.subr.bf16.mxu0 0
        %8840 = vmatpush1.bf16.msra.mxu0 0
        %8841 = vmatprep.subr.bf16.mxu0 0
        %8842 = vmatpush1.bf16.msra.mxu0 0
        %8843 = vmatprep.subr.bf16.mxu0 0
        %8844 = vmatpush1.bf16.msra.mxu0 0
        %8845 = vmatprep.subr.bf16.mxu0 0
        %8846 = vmatpush1.bf16.msra.mxu0 0
        %8847 = vmatprep.subr.bf16.mxu0 0
        %8848 = vmatpush1.bf16.msra.mxu0 0
        %8849 = vmatprep.subr.bf16.mxu0 0
        %8850 = vmatpush1.bf16.msra.mxu0 0
        %8851 = vmatprep.subr.bf16.mxu0 0
        %8852 = vmatpush1.bf16.msra.mxu0 0
        %8853 = vmatprep.subr.bf16.mxu0 0
        %8854 = vmatpush1.bf16.msra.mxu0 0
        %8855 = vmatprep.subr.bf16.mxu0 0
        %8856 = vmatpush1.bf16.msra.mxu0 0
        %8857 = vmatprep.subr.bf16.mxu0 0
        %8858 = vmatpush1.bf16.msra.mxu0 0
        %8859 = vmatprep.subr.bf16.mxu0 0
        %8860 = vmatpush1.bf16.msra.mxu0 0
        %8861 = vmatprep.subr.bf16.mxu0 0
        %8862 = vmatpush1.bf16.msra.mxu0 0
        %8863 = vmatprep.mubr.bf16.mxu0 0
        %8864 = vmatmul.mubr.bf16.gmra.mrb[0].mxu0 %v8829
        %v8865 = vpop.f32.mrb[0].mxu0
        %v8866 = vadd.f32 0.0, %v8865
        %v8867 = vpop.f32.mrb[0].mxu0
        %v8868 = vadd.f32 0.0, %v8867
        %v8869 = vpop.f32.mrb[0].mxu0
        %v8870 = vpop.f32.mrb[0].mxu0
        %8871 = vdwg.mxu0
        %8872 = vmatprep.subr.bf16.mxu0 0
        %8873 = vmatpush1.bf16.msra.mxu0 %v8806
        %8874 = vmatprep.subr.bf16.mxu0 0
        %8875 = vmatpush1.bf16.msra.mxu0 %v8809
        %8876 = vmatprep.subr.bf16.mxu0 0
        %8877 = vmatpush1.bf16.msra.mxu0 %v8812
        %8878 = vmatprep.subr.bf16.mxu0 0
        %8879 = vmatpush1.bf16.msra.mxu0 %v8815
        %8880 = vmatprep.subr.bf16.mxu0 0
        %8881 = vmatpush1.bf16.msra.mxu0 0
        %8882 = vmatprep.subr.bf16.mxu0 0
        %8883 = vmatpush1.bf16.msra.mxu0 0
        %8884 = vmatprep.subr.bf16.mxu0 0
        %8885 = vmatpush1.bf16.msra.mxu0 0
        %8886 = vmatprep.subr.bf16.mxu0 0
        %8887 = vmatpush1.bf16.msra.mxu0 0
        %8888 = vmatprep.subr.bf16.mxu0 0
        %8889 = vmatpush1.bf16.msra.mxu0 0
        %8890 = vmatprep.subr.bf16.mxu0 0
        %8891 = vmatpush1.bf16.msra.mxu0 0
        %8892 = vmatprep.subr.bf16.mxu0 0
        %8893 = vmatpush1.bf16.msra.mxu0 0
        %8894 = vmatprep.subr.bf16.mxu0 0
        %8895 = vmatpush1.bf16.msra.mxu0 0
        %8896 = vmatprep.subr.bf16.mxu0 0
        %8897 = vmatpush1.bf16.msra.mxu0 0
        %8898 = vmatprep.subr.bf16.mxu0 0
        %8899 = vmatpush1.bf16.msra.mxu0 0
        %8900 = vmatprep.subr.bf16.mxu0 0
        %8901 = vmatpush1.bf16.msra.mxu0 0
        %8902 = vmatprep.subr.bf16.mxu0 0
        %8903 = vmatpush1.bf16.msra.mxu0 0
        %8904 = vmatprep.mubr.bf16.mxu0 0
        %8905 = vmatmul.mubr.bf16.gmra.mrb[0].mxu0 %v8829
        %v8906 = vpop.f32.mrb[0].mxu0
        %v8907 = vadd.f32 0.0, %v8906
        %v8908 = vpop.f32.mrb[0].mxu0
        %v8909 = vpop.f32.mrb[0].mxu0
        %v8910 = vpop.f32.mrb[0].mxu0
        %8911 = vdwg.mxu0
        %v8912 = vadd.f32 %v8650, %v8866
        %v8913 = vadd.f32 %v8651, %v8868
        %v8914 = vadd.f32 %v8652, %v8907
        %8916 = vrot.lane.b32.xlu0 %v7354, 64
        %v8917 = vpop.permute.xlu0 %8916
        %8922 = vrot.lane.b32.xlu0 %v7358, 64
        %v8923 = vpop.permute.xlu0 %8922
        %8924 = vrot.lane.b32.xlu0 %v7362, 64
        %v8925 = vpop.permute.xlu0 %8924
        %8926 = vrot.lane.b32.xlu0 %v7366, 64
        %v8927 = vpop.permute.xlu0 %8926
        %8928 = vrot.lane.b32.xlu0 %v7370, 64
        %v8929 = vpop.permute.xlu0 %8928
        %v8931 = vsel %vm5577, %v8917, 0
        %v8934 = vsel %vm5577, %v8923, 0
        %v8937 = vsel %vm5577, %v8925, 0
        %v8940 = vsel %vm5577, %v8927, 0
        %v8943 = vsel %vm5577, %v8929, 0
        %8945 = vmatprep.subr.bf16.mxu0 0
        %8946 = vmatpush1.bf16.xpose.msra.mxu0 %v8934
        %8947 = vmatprep.subr.bf16.mxu0 0
        %8948 = vmatpush1.bf16.xpose.msra.mxu0 %v8937
        %8949 = vmatprep.subr.bf16.mxu0 0
        %8950 = vmatpush1.bf16.xpose.msra.mxu0 %v8940
        %8951 = vmatprep.subr.bf16.mxu0 0
        %8952 = vmatpush1.bf16.xpose.msra.mxu0 %v8943
        %8953 = vmatprep.subr.bf16.mxu0 0
        %8954 = vmatpush1.bf16.xpose.msra.mxu0 0
        %8955 = vmatprep.subr.bf16.mxu0 0
        %8956 = vmatpush1.bf16.xpose.msra.mxu0 0
        %8957 = vmatprep.subr.bf16.mxu0 0
        %8958 = vmatpush1.bf16.xpose.msra.mxu0 0
        %8959 = vmatprep.subr.bf16.mxu0 0
        %8960 = vmatpush1.bf16.xpose.msra.mxu0 0
        %8961 = vmatprep.subr.bf16.mxu0 0
        %8962 = vmatpush1.bf16.xpose.msra.mxu0 0
        %8963 = vmatprep.subr.bf16.mxu0 0
        %8964 = vmatpush1.bf16.xpose.msra.mxu0 0
        %8965 = vmatprep.subr.bf16.mxu0 0
        %8966 = vmatpush1.bf16.xpose.msra.mxu0 0
        %8967 = vmatprep.subr.bf16.mxu0 0
        %8968 = vmatpush1.bf16.xpose.msra.mxu0 0
        %8969 = vmatprep.subr.bf16.mxu0 0
        %8970 = vmatpush1.bf16.xpose.msra.mxu0 0
        %8971 = vmatprep.subr.bf16.mxu0 0
        %8972 = vmatpush1.bf16.xpose.msra.mxu0 0
        %8973 = vmatprep.subr.bf16.mxu0 0
        %8974 = vmatpush1.bf16.xpose.msra.mxu0 0
        %8975 = vmatprep.subr.bf16.mxu0 0
        %8976 = vmatpush1.bf16.xpose.msra.mxu0 0
        %8977 = vmatprep.mubr.bf16.mxu0 0
        %8978 = vmatmul.mubr.bf16.gmra.mrb[0].mxu0 %v8931
        %v8979 = vpop.f32.mrb[0].mxu0
        %v8980 = vadd.f32 %v7541, %v8979
        %v8981 = vpop.f32.mrb[0].mxu0
        %v8982 = vpop.f32.mrb[0].mxu0
        %v8983 = vpop.f32.mrb[0].mxu0
        %8984 = vdwg.mxu0
        %v8985 = vsel %vm5577, %v8980, -inf
        %8986 = vmax.xlane.f32.xlu0 %v8985
        %v8987 = vpop.xlane.xlu0 %8986
        %v8988 = vsub.f32 %v8980, %v8987
        %v8989 = vmul.f32 %v8988, 1.442695
        %v8990 = vpow.pop %v8989
        %v8991 = vsel %vm5577, %v8990, 0.0
        %8992 = vadd.xlane.f32.xlu0 %v8991
        %v8993 = vpop.xlane.xlu0 %8992
        %v8994 = vrcp.pop %v8993
        %v8995 = vmul.f32 %v8990, %v8994
        %v8996 = vpack.c.bf16 %v8995, %v8995
        %9001 = vrot.lane.b32.xlu0 %v7374, 64
        %v9002 = vpop.permute.xlu0 %9001
        %9003 = vrot.lane.b32.xlu0 %v7378, 64
        %v9004 = vpop.permute.xlu0 %9003
        %9005 = vrot.lane.b32.xlu0 %v7382, 64
        %v9006 = vpop.permute.xlu0 %9005
        %9007 = vrot.lane.b32.xlu0 %v7386, 64
        %v9008 = vpop.permute.xlu0 %9007
        %v9014 = vsel %vm5577, %v8996, 0
        %9016 = vmatprep.subr.bf16.mxu0 0
        %9017 = vmatpush1.bf16.msra.mxu0 %v9002
        %9018 = vmatprep.subr.bf16.mxu0 0
        %9019 = vmatpush1.bf16.msra.mxu0 %v9004
        %9020 = vmatprep.subr.bf16.mxu0 0
        %9021 = vmatpush1.bf16.msra.mxu0 %v9006
        %9022 = vmatprep.subr.bf16.mxu0 0
        %9023 = vmatpush1.bf16.msra.mxu0 %v9008
        %9024 = vmatprep.subr.bf16.mxu0 0
        %9025 = vmatpush1.bf16.msra.mxu0 0
        %9026 = vmatprep.subr.bf16.mxu0 0
        %9027 = vmatpush1.bf16.msra.mxu0 0
        %9028 = vmatprep.subr.bf16.mxu0 0
        %9029 = vmatpush1.bf16.msra.mxu0 0
        %9030 = vmatprep.subr.bf16.mxu0 0
        %9031 = vmatpush1.bf16.msra.mxu0 0
        %9032 = vmatprep.subr.bf16.mxu0 0
        %9033 = vmatpush1.bf16.msra.mxu0 0
        %9034 = vmatprep.subr.bf16.mxu0 0
        %9035 = vmatpush1.bf16.msra.mxu0 0
        %9036 = vmatprep.subr.bf16.mxu0 0
        %9037 = vmatpush1.bf16.msra.mxu0 0
        %9038 = vmatprep.subr.bf16.mxu0 0
        %9039 = vmatpush1.bf16.msra.mxu0 0
        %9040 = vmatprep.subr.bf16.mxu0 0
        %9041 = vmatpush1.bf16.msra.mxu0 0
        %9042 = vmatprep.subr.bf16.mxu0 0
        %9043 = vmatpush1.bf16.msra.mxu0 0
        %9044 = vmatprep.subr.bf16.mxu0 0
        %9045 = vmatpush1.bf16.msra.mxu0 0
        %9046 = vmatprep.subr.bf16.mxu0 0
        %9047 = vmatpush1.bf16.msra.mxu0 0
        %9048 = vmatprep.mubr.bf16.mxu0 0
        %9049 = vmatmul.mubr.bf16.gmra.mrb[0].mxu0 %v9014
        %v9050 = vpop.f32.mrb[0].mxu0
        %v9051 = vadd.f32 0.0, %v9050
        %v9052 = vpop.f32.mrb[0].mxu0
        %v9053 = vpop.f32.mrb[0].mxu0
        %v9054 = vpop.f32.mrb[0].mxu0
        %9055 = vdwg.mxu0
        %v9056 = vpack.c.bf16 %v9051, %v9051
        %v9073 = vunpack.c.l.b16 %v7469
        %v9074 = vunpack.c.h.b16 %v7469
        %v9075 = vunpack.c.l.b16 %v7470
        %v9076 = vunpack.c.l.b16 %v7471
        %v9077 = vunpack.c.h.b16 %v7471
        %v9078 = vunpack.c.l.b16 %v7472
        %v9079 = vunpack.c.l.b16 %v7473
        %v9080 = vunpack.c.h.b16 %v7473
        %v9081 = vunpack.c.l.b16 %v7474
        %v9082 = vunpack.c.l.b16 %v7475
        %v9083 = vunpack.c.h.b16 %v7475
        %v9084 = vunpack.c.l.b16 %v7476
        %v9085 = vunpack.c.l.b16 %v7477
        %v9086 = vunpack.c.h.b16 %v7477
        %v9087 = vunpack.c.l.b16 %v7478
        %v9088 = vunpack.c.l.b16 %v7479
        %v9089 = vunpack.c.h.b16 %v7479
        %v9090 = vunpack.c.l.b16 %v7480
        %v9091 = vunpack.c.l.b16 %v7481
        %v9092 = vunpack.c.h.b16 %v7481
        %v9093 = vunpack.c.l.b16 %v7482
        %v9094 = vunpack.c.l.b16 %v7483
        %v9095 = vunpack.c.h.b16 %v7483
        %v9096 = vunpack.c.l.b16 %v7484
        %v9097 = vpack.c.b16 %v9076, %v9073
        %v9098 = vpack.c.b16 %v9077, %v9074
        %v9099 = vpack.c.b16 %v9078, %v9075
        %v9100 = vpack.c.b16 %v9082, %v9079
        %v9101 = vpack.c.b16 %v9083, %v9080
        %v9102 = vpack.c.b16 %v9084, %v9081
        %v9103 = vpack.c.b16 %v9088, %v9085
        %v9104 = vpack.c.b16 %v9089, %v9086
        %v9105 = vpack.c.b16 %v9090, %v9087
        %v9106 = vpack.c.b16 %v9094, %v9091
        %v9107 = vpack.c.b16 %v9095, %v9092
        %v9108 = vpack.c.b16 %v9096, %v9093
        %v9122 = vsel %vm5577, %v9056, 0
        %9124 = vmatprep.subr.bf16.mxu0 %v9098
        %9125 = vmatpush1.bf16.msra.mxu0 %v9097
        %9126 = vmatprep.subr.bf16.mxu0 %v9101
        %9127 = vmatpush1.bf16.msra.mxu0 %v9100
        %9128 = vmatprep.subr.bf16.mxu0 %v9104
        %9129 = vmatpush1.bf16.msra.mxu0 %v9103
        %9130 = vmatprep.subr.bf16.mxu0 %v9107
        %9131 = vmatpush1.bf16.msra.mxu0 %v9106
        %9132 = vmatprep.subr.bf16.mxu0 0
        %9133 = vmatpush1.bf16.msra.mxu0 0
        %9134 = vmatprep.subr.bf16.mxu0 0
        %9135 = vmatpush1.bf16.msra.mxu0 0
        %9136 = vmatprep.subr.bf16.mxu0 0
        %9137 = vmatpush1.bf16.msra.mxu0 0
        %9138 = vmatprep.subr.bf16.mxu0 0
        %9139 = vmatpush1.bf16.msra.mxu0 0
        %9140 = vmatprep.subr.bf16.mxu0 0
        %9141 = vmatpush1.bf16.msra.mxu0 0
        %9142 = vmatprep.subr.bf16.mxu0 0
        %9143 = vmatpush1.bf16.msra.mxu0 0
        %9144 = vmatprep.subr.bf16.mxu0 0
        %9145 = vmatpush1.bf16.msra.mxu0 0
        %9146 = vmatprep.subr.bf16.mxu0 0
        %9147 = vmatpush1.bf16.msra.mxu0 0
        %9148 = vmatprep.subr.bf16.mxu0 0
        %9149 = vmatpush1.bf16.msra.mxu0 0
        %9150 = vmatprep.subr.bf16.mxu0 0
        %9151 = vmatpush1.bf16.msra.mxu0 0
        %9152 = vmatprep.subr.bf16.mxu0 0
        %9153 = vmatpush1.bf16.msra.mxu0 0
        %9154 = vmatprep.subr.bf16.mxu0 0
        %9155 = vmatpush1.bf16.msra.mxu0 0
        %9156 = vmatprep.mubr.bf16.mxu0 0
        %9157 = vmatmul.mubr.bf16.gmra.mrb[0].mxu0 %v9122
        %v9158 = vpop.f32.mrb[0].mxu0
        %v9159 = vadd.f32 0.0, %v9158
        %v9160 = vpop.f32.mrb[0].mxu0
        %v9161 = vadd.f32 0.0, %v9160
        %v9162 = vpop.f32.mrb[0].mxu0
        %v9163 = vpop.f32.mrb[0].mxu0
        %9164 = vdwg.mxu0
        %9165 = vmatprep.subr.bf16.mxu0 0
        %9166 = vmatpush1.bf16.msra.mxu0 %v9099
        %9167 = vmatprep.subr.bf16.mxu0 0
        %9168 = vmatpush1.bf16.msra.mxu0 %v9102
        %9169 = vmatprep.subr.bf16.mxu0 0
        %9170 = vmatpush1.bf16.msra.mxu0 %v9105
        %9171 = vmatprep.subr.bf16.mxu0 0
        %9172 = vmatpush1.bf16.msra.mxu0 %v9108
        %9173 = vmatprep.subr.bf16.mxu0 0
        %9174 = vmatpush1.bf16.msra.mxu0 0
        %9175 = vmatprep.subr.bf16.mxu0 0
        %9176 = vmatpush1.bf16.msra.mxu0 0
        %9177 = vmatprep.subr.bf16.mxu0 0
        %9178 = vmatpush1.bf16.msra.mxu0 0
        %9179 = vmatprep.subr.bf16.mxu0 0
        %9180 = vmatpush1.bf16.msra.mxu0 0
        %9181 = vmatprep.subr.bf16.mxu0 0
        %9182 = vmatpush1.bf16.msra.mxu0 0
        %9183 = vmatprep.subr.bf16.mxu0 0
        %9184 = vmatpush1.bf16.msra.mxu0 0
        %9185 = vmatprep.subr.bf16.mxu0 0
        %9186 = vmatpush1.bf16.msra.mxu0 0
        %9187 = vmatprep.subr.bf16.mxu0 0
        %9188 = vmatpush1.bf16.msra.mxu0 0
        %9189 = vmatprep.subr.bf16.mxu0 0
        %9190 = vmatpush1.bf16.msra.mxu0 0
        %9191 = vmatprep.subr.bf16.mxu0 0
        %9192 = vmatpush1.bf16.msra.mxu0 0
        %9193 = vmatprep.subr.bf16.mxu0 0
        %9194 = vmatpush1.bf16.msra.mxu0 0
        %9195 = vmatprep.subr.bf16.mxu0 0
        %9196 = vmatpush1.bf16.msra.mxu0 0
        %9197 = vmatprep.mubr.bf16.mxu0 0
        %9198 = vmatmul.mubr.bf16.gmra.mrb[0].mxu0 %v9122
        %v9199 = vpop.f32.mrb[0].mxu0
        %v9200 = vadd.f32 0.0, %v9199
        %v9201 = vpop.f32.mrb[0].mxu0
        %v9202 = vpop.f32.mrb[0].mxu0
        %v9203 = vpop.f32.mrb[0].mxu0
        %9204 = vdwg.mxu0
        %v9205 = vadd.f32 %v8912, %v9159
        %v9206 = vadd.f32 %v8913, %v9161
        %v9207 = vadd.f32 %v8914, %v9200
        %v9209 = vsel %vm5577, %v7355, 0
        %v9212 = vsel %vm5577, %v7359, 0
        %v9215 = vsel %vm5577, %v7363, 0
        %v9218 = vsel %vm5577, %v7367, 0
        %v9221 = vsel %vm5577, %v7371, 0
        %9223 = vmatprep.subr.bf16.mxu0 0
        %9224 = vmatpush1.bf16.xpose.msra.mxu0 %v9212
        %9225 = vmatprep.subr.bf16.mxu0 0
        %9226 = vmatpush1.bf16.xpose.msra.mxu0 %v9215
        %9227 = vmatprep.subr.bf16.mxu0 0
        %9228 = vmatpush1.bf16.xpose.msra.mxu0 %v9218
        %9229 = vmatprep.subr.bf16.mxu0 0
        %9230 = vmatpush1.bf16.xpose.msra.mxu0 %v9221
        %9231 = vmatprep.subr.bf16.mxu0 0
        %9232 = vmatpush1.bf16.xpose.msra.mxu0 0
        %9233 = vmatprep.subr.bf16.mxu0 0
        %9234 = vmatpush1.bf16.xpose.msra.mxu0 0
        %9235 = vmatprep.subr.bf16.mxu0 0
        %9236 = vmatpush1.bf16.xpose.msra.mxu0 0
        %9237 = vmatprep.subr.bf16.mxu0 0
        %9238 = vmatpush1.bf16.xpose.msra.mxu0 0
        %9239 = vmatprep.subr.bf16.mxu0 0
        %9240 = vmatpush1.bf16.xpose.msra.mxu0 0
        %9241 = vmatprep.subr.bf16.mxu0 0
        %9242 = vmatpush1.bf16.xpose.msra.mxu0 0
        %9243 = vmatprep.subr.bf16.mxu0 0
        %9244 = vmatpush1.bf16.xpose.msra.mxu0 0
        %9245 = vmatprep.subr.bf16.mxu0 0
        %9246 = vmatpush1.bf16.xpose.msra.mxu0 0
        %9247 = vmatprep.subr.bf16.mxu0 0
        %9248 = vmatpush1.bf16.xpose.msra.mxu0 0
        %9249 = vmatprep.subr.bf16.mxu0 0
        %9250 = vmatpush1.bf16.xpose.msra.mxu0 0
        %9251 = vmatprep.subr.bf16.mxu0 0
        %9252 = vmatpush1.bf16.xpose.msra.mxu0 0
        %9253 = vmatprep.subr.bf16.mxu0 0
        %9254 = vmatpush1.bf16.xpose.msra.mxu0 0
        %9255 = vmatprep.mubr.bf16.mxu0 0
        %9256 = vmatmul.mubr.bf16.gmra.mrb[0].mxu0 %v9209
        %v9257 = vpop.f32.mrb[0].mxu0
        %v9258 = vadd.f32 %v7541, %v9257
        %v9259 = vpop.f32.mrb[0].mxu0
        %v9260 = vpop.f32.mrb[0].mxu0
        %v9261 = vpop.f32.mrb[0].mxu0
        %9262 = vdwg.mxu0
        %v9263 = vsel %vm5577, %v9258, -inf
        %9264 = vmax.xlane.f32.xlu0 %v9263
        %v9265 = vpop.xlane.xlu0 %9264
        %v9266 = vsub.f32 %v9258, %v9265
        %v9267 = vmul.f32 %v9266, 1.442695
        %v9268 = vpow.pop %v9267
        %v9269 = vsel %vm5577, %v9268, 0.0
        %9270 = vadd.xlane.f32.xlu0 %v9269
        %v9271 = vpop.xlane.xlu0 %9270
        %v9272 = vrcp.pop %v9271
        %v9273 = vmul.f32 %v9268, %v9272
        %v9274 = vpack.c.bf16 %v9273, %v9273
        %v9276 = vsel %vm5577, %v9274, 0
        %9278 = vmatprep.subr.bf16.mxu0 0
        %9279 = vmatpush1.bf16.msra.mxu0 %v7375
        %9280 = vmatprep.subr.bf16.mxu0 0
        %9281 = vmatpush1.bf16.msra.mxu0 %v7379
        %9282 = vmatprep.subr.bf16.mxu0 0
        %9283 = vmatpush1.bf16.msra.mxu0 %v7383
        %9284 = vmatprep.subr.bf16.mxu0 0
        %9285 = vmatpush1.bf16.msra.mxu0 %v7387
        %9286 = vmatprep.subr.bf16.mxu0 0
        %9287 = vmatpush1.bf16.msra.mxu0 0
        %9288 = vmatprep.subr.bf16.mxu0 0
        %9289 = vmatpush1.bf16.msra.mxu0 0
        %9290 = vmatprep.subr.bf16.mxu0 0
        %9291 = vmatpush1.bf16.msra.mxu0 0
        %9292 = vmatprep.subr.bf16.mxu0 0
        %9293 = vmatpush1.bf16.msra.mxu0 0
        %9294 = vmatprep.subr.bf16.mxu0 0
        %9295 = vmatpush1.bf16.msra.mxu0 0
        %9296 = vmatprep.subr.bf16.mxu0 0
        %9297 = vmatpush1.bf16.msra.mxu0 0
        %9298 = vmatprep.subr.bf16.mxu0 0
        %9299 = vmatpush1.bf16.msra.mxu0 0
        %9300 = vmatprep.subr.bf16.mxu0 0
        %9301 = vmatpush1.bf16.msra.mxu0 0
        %9302 = vmatprep.subr.bf16.mxu0 0
        %9303 = vmatpush1.bf16.msra.mxu0 0
        %9304 = vmatprep.subr.bf16.mxu0 0
        %9305 = vmatpush1.bf16.msra.mxu0 0
        %9306 = vmatprep.subr.bf16.mxu0 0
        %9307 = vmatpush1.bf16.msra.mxu0 0
        %9308 = vmatprep.subr.bf16.mxu0 0
        %9309 = vmatpush1.bf16.msra.mxu0 0
        %9310 = vmatprep.mubr.bf16.mxu0 0
        %9311 = vmatmul.mubr.bf16.gmra.mrb[0].mxu0 %v9276
        %v9312 = vpop.f32.mrb[0].mxu0
        %v9313 = vadd.f32 0.0, %v9312
        %v9314 = vpop.f32.mrb[0].mxu0
        %v9315 = vpop.f32.mrb[0].mxu0
        %v9316 = vpop.f32.mrb[0].mxu0
        %9317 = vdwg.mxu0
        %v9318 = vpack.c.bf16 %v9313, %v9313
        %v9335 = vunpack.c.l.b16 %v7485
        %v9336 = vunpack.c.h.b16 %v7485
        %v9337 = vunpack.c.l.b16 %v7486
        %v9338 = vunpack.c.l.b16 %v7487
        %v9339 = vunpack.c.h.b16 %v7487
        %v9340 = vunpack.c.l.b16 %v7488
        %v9341 = vunpack.c.l.b16 %v7489
        %v9342 = vunpack.c.h.b16 %v7489
        %v9343 = vunpack.c.l.b16 %v7490
        %v9344 = vunpack.c.l.b16 %v7491
        %v9345 = vunpack.c.h.b16 %v7491
        %v9346 = vunpack.c.l.b16 %v7492
        %v9347 = vunpack.c.l.b16 %v7493
        %v9348 = vunpack.c.h.b16 %v7493
        %v9349 = vunpack.c.l.b16 %v7494
        %v9350 = vunpack.c.l.b16 %v7495
        %v9351 = vunpack.c.h.b16 %v7495
        %v9352 = vunpack.c.l.b16 %v7496
        %v9353 = vunpack.c.l.b16 %v7497
        %v9354 = vunpack.c.h.b16 %v7497
        %v9355 = vunpack.c.l.b16 %v7498
        %v9356 = vunpack.c.l.b16 %v7499
        %v9357 = vunpack.c.h.b16 %v7499
        %v9358 = vunpack.c.l.b16 %v7500
        %v9359 = vpack.c.b16 %v9338, %v9335
        %v9360 = vpack.c.b16 %v9339, %v9336
        %v9361 = vpack.c.b16 %v9340, %v9337
        %v9362 = vpack.c.b16 %v9344, %v9341
        %v9363 = vpack.c.b16 %v9345, %v9342
        %v9364 = vpack.c.b16 %v9346, %v9343
        %v9365 = vpack.c.b16 %v9350, %v9347
        %v9366 = vpack.c.b16 %v9351, %v9348
        %v9367 = vpack.c.b16 %v9352, %v9349
        %v9368 = vpack.c.b16 %v9356, %v9353
        %v9369 = vpack.c.b16 %v9357, %v9354
        %v9370 = vpack.c.b16 %v9358, %v9355
        %v9384 = vsel %vm5577, %v9318, 0
        %9386 = vmatprep.subr.bf16.mxu0 %v9360
        %9387 = vmatpush1.bf16.msra.mxu0 %v9359
        %9388 = vmatprep.subr.bf16.mxu0 %v9363
        %9389 = vmatpush1.bf16.msra.mxu0 %v9362
        %9390 = vmatprep.subr.bf16.mxu0 %v9366
        %9391 = vmatpush1.bf16.msra.mxu0 %v9365
        %9392 = vmatprep.subr.bf16.mxu0 %v9369
        %9393 = vmatpush1.bf16.msra.mxu0 %v9368
        %9394 = vmatprep.subr.bf16.mxu0 0
        %9395 = vmatpush1.bf16.msra.mxu0 0
        %9396 = vmatprep.subr.bf16.mxu0 0
        %9397 = vmatpush1.bf16.msra.mxu0 0
        %9398 = vmatprep.subr.bf16.mxu0 0
        %9399 = vmatpush1.bf16.msra.mxu0 0
        %9400 = vmatprep.subr.bf16.mxu0 0
        %9401 = vmatpush1.bf16.msra.mxu0 0
        %9402 = vmatprep.subr.bf16.mxu0 0
        %9403 = vmatpush1.bf16.msra.mxu0 0
        %9404 = vmatprep.subr.bf16.mxu0 0
        %9405 = vmatpush1.bf16.msra.mxu0 0
        %9406 = vmatprep.subr.bf16.mxu0 0
        %9407 = vmatpush1.bf16.msra.mxu0 0
        %9408 = vmatprep.subr.bf16.mxu0 0
        %9409 = vmatpush1.bf16.msra.mxu0 0
        %9410 = vmatprep.subr.bf16.mxu0 0
        %9411 = vmatpush1.bf16.msra.mxu0 0
        %9412 = vmatprep.subr.bf16.mxu0 0
        %9413 = vmatpush1.bf16.msra.mxu0 0
        %9414 = vmatprep.subr.bf16.mxu0 0
        %9415 = vmatpush1.bf16.msra.mxu0 0
        %9416 = vmatprep.subr.bf16.mxu0 0
        %9417 = vmatpush1.bf16.msra.mxu0 0
        %9418 = vmatprep.mubr.bf16.mxu0 0
        %9419 = vmatmul.mubr.bf16.gmra.mrb[0].mxu0 %v9384
        %v9420 = vpop.f32.mrb[0].mxu0
        %v9421 = vadd.f32 0.0, %v9420
        %v9422 = vpop.f32.mrb[0].mxu0
        %v9423 = vadd.f32 0.0, %v9422
        %v9424 = vpop.f32.mrb[0].mxu0
        %v9425 = vpop.f32.mrb[0].mxu0
        %9426 = vdwg.mxu0
        %9427 = vmatprep.subr.bf16.mxu0 0
        %9428 = vmatpush1.bf16.msra.mxu0 %v9361
        %9429 = vmatprep.subr.bf16.mxu0 0
        %9430 = vmatpush1.bf16.msra.mxu0 %v9364
        %9431 = vmatprep.subr.bf16.mxu0 0
        %9432 = vmatpush1.bf16.msra.mxu0 %v9367
        %9433 = vmatprep.subr.bf16.mxu0 0
        %9434 = vmatpush1.bf16.msra.mxu0 %v9370
        %9435 = vmatprep.subr.bf16.mxu0 0
        %9436 = vmatpush1.bf16.msra.mxu0 0
        %9437 = vmatprep.subr.bf16.mxu0 0
        %9438 = vmatpush1.bf16.msra.mxu0 0
        %9439 = vmatprep.subr.bf16.mxu0 0
        %9440 = vmatpush1.bf16.msra.mxu0 0
        %9441 = vmatprep.subr.bf16.mxu0 0
        %9442 = vmatpush1.bf16.msra.mxu0 0
        %9443 = vmatprep.subr.bf16.mxu0 0
        %9444 = vmatpush1.bf16.msra.mxu0 0
        %9445 = vmatprep.subr.bf16.mxu0 0
        %9446 = vmatpush1.bf16.msra.mxu0 0
        %9447 = vmatprep.subr.bf16.mxu0 0
        %9448 = vmatpush1.bf16.msra.mxu0 0
        %9449 = vmatprep.subr.bf16.mxu0 0
        %9450 = vmatpush1.bf16.msra.mxu0 0
        %9451 = vmatprep.subr.bf16.mxu0 0
        %9452 = vmatpush1.bf16.msra.mxu0 0
        %9453 = vmatprep.subr.bf16.mxu0 0
        %9454 = vmatpush1.bf16.msra.mxu0 0
        %9455 = vmatprep.subr.bf16.mxu0 0
        %9456 = vmatpush1.bf16.msra.mxu0 0
        %9457 = vmatprep.subr.bf16.mxu0 0
        %9458 = vmatpush1.bf16.msra.mxu0 0
        %9459 = vmatprep.mubr.bf16.mxu0 0
        %9460 = vmatmul.mubr.bf16.gmra.mrb[0].mxu0 %v9384
        %v9461 = vpop.f32.mrb[0].mxu0
        %v9462 = vadd.f32 0.0, %v9461
        %v9463 = vpop.f32.mrb[0].mxu0
        %v9464 = vpop.f32.mrb[0].mxu0
        %v9465 = vpop.f32.mrb[0].mxu0
        %9466 = vdwg.mxu0
        %v9467 = vadd.f32 %v9205, %v9421
        %v9468 = vadd.f32 %v9206, %v9423
        %v9469 = vadd.f32 %v9207, %v9462
        %9471 = vrot.lane.b32.xlu0 %v7355, 64
        %v9472 = vpop.permute.xlu0 %9471
        %9477 = vrot.lane.b32.xlu0 %v7359, 64
        %v9478 = vpop.permute.xlu0 %9477
        %9479 = vrot.lane.b32.xlu0 %v7363, 64
        %v9480 = vpop.permute.xlu0 %9479
        %9481 = vrot.lane.b32.xlu0 %v7367, 64
        %v9482 = vpop.permute.xlu0 %9481
        %9483 = vrot.lane.b32.xlu0 %v7371, 64
        %v9484 = vpop.permute.xlu0 %9483
        %v9486 = vsel %vm5577, %v9472, 0
        %v9489 = vsel %vm5577, %v9478, 0
        %v9492 = vsel %vm5577, %v9480, 0
        %v9495 = vsel %vm5577, %v9482, 0
        %v9498 = vsel %vm5577, %v9484, 0
        %9500 = vmatprep.subr.bf16.mxu0 0
        %9501 = vmatpush1.bf16.xpose.msra.mxu0 %v9489
        %9502 = vmatprep.subr.bf16.mxu0 0
        %9503 = vmatpush1.bf16.xpose.msra.mxu0 %v9492
        %9504 = vmatprep.subr.bf16.mxu0 0
        %9505 = vmatpush1.bf16.xpose.msra.mxu0 %v9495
        %9506 = vmatprep.subr.bf16.mxu0 0
        %9507 = vmatpush1.bf16.xpose.msra.mxu0 %v9498
        %9508 = vmatprep.subr.bf16.mxu0 0
        %9509 = vmatpush1.bf16.xpose.msra.mxu0 0
        %9510 = vmatprep.subr.bf16.mxu0 0
        %9511 = vmatpush1.bf16.xpose.msra.mxu0 0
        %9512 = vmatprep.subr.bf16.mxu0 0
        %9513 = vmatpush1.bf16.xpose.msra.mxu0 0
        %9514 = vmatprep.subr.bf16.mxu0 0
        %9515 = vmatpush1.bf16.xpose.msra.mxu0 0
        %9516 = vmatprep.subr.bf16.mxu0 0
        %9517 = vmatpush1.bf16.xpose.msra.mxu0 0
        %9518 = vmatprep.subr.bf16.mxu0 0
        %9519 = vmatpush1.bf16.xpose.msra.mxu0 0
        %9520 = vmatprep.subr.bf16.mxu0 0
        %9521 = vmatpush1.bf16.xpose.msra.mxu0 0
        %9522 = vmatprep.subr.bf16.mxu0 0
        %9523 = vmatpush1.bf16.xpose.msra.mxu0 0
        %9524 = vmatprep.subr.bf16.mxu0 0
        %9525 = vmatpush1.bf16.xpose.msra.mxu0 0
        %9526 = vmatprep.subr.bf16.mxu0 0
        %9527 = vmatpush1.bf16.xpose.msra.mxu0 0
        %9528 = vmatprep.subr.bf16.mxu0 0
        %9529 = vmatpush1.bf16.xpose.msra.mxu0 0
        %9530 = vmatprep.subr.bf16.mxu0 0
        %9531 = vmatpush1.bf16.xpose.msra.mxu0 0
        %9532 = vmatprep.mubr.bf16.mxu0 0
        %9533 = vmatmul.mubr.bf16.gmra.mrb[0].mxu0 %v9486
        %v9534 = vpop.f32.mrb[0].mxu0
        %v9535 = vadd.f32 %v7541, %v9534
        %v9536 = vpop.f32.mrb[0].mxu0
        %v9537 = vpop.f32.mrb[0].mxu0
        %v9538 = vpop.f32.mrb[0].mxu0
        %9539 = vdwg.mxu0
        %v9540 = vsel %vm5577, %v9535, -inf
        %9541 = vmax.xlane.f32.xlu0 %v9540
        %v9542 = vpop.xlane.xlu0 %9541
        %v9543 = vsub.f32 %v9535, %v9542
        %v9544 = vmul.f32 %v9543, 1.442695
        %v9545 = vpow.pop %v9544
        %v9546 = vsel %vm5577, %v9545, 0.0
        %9547 = vadd.xlane.f32.xlu0 %v9546
        %v9548 = vpop.xlane.xlu0 %9547
        %v9549 = vrcp.pop %v9548
        %v9550 = vmul.f32 %v9545, %v9549
        %v9551 = vpack.c.bf16 %v9550, %v9550
        %9556 = vrot.lane.b32.xlu0 %v7375, 64
        %v9557 = vpop.permute.xlu0 %9556
        %9558 = vrot.lane.b32.xlu0 %v7379, 64
        %v9559 = vpop.permute.xlu0 %9558
        %9560 = vrot.lane.b32.xlu0 %v7383, 64
        %v9561 = vpop.permute.xlu0 %9560
        %9562 = vrot.lane.b32.xlu0 %v7387, 64
        %v9563 = vpop.permute.xlu0 %9562
        %v9569 = vsel %vm5577, %v9551, 0
        %9571 = vmatprep.subr.bf16.mxu0 0
        %9572 = vmatpush1.bf16.msra.mxu0 %v9557
        %9573 = vmatprep.subr.bf16.mxu0 0
        %9574 = vmatpush1.bf16.msra.mxu0 %v9559
        %9575 = vmatprep.subr.bf16.mxu0 0
        %9576 = vmatpush1.bf16.msra.mxu0 %v9561
        %9577 = vmatprep.subr.bf16.mxu0 0
        %9578 = vmatpush1.bf16.msra.mxu0 %v9563
        %9579 = vmatprep.subr.bf16.mxu0 0
        %9580 = vmatpush1.bf16.msra.mxu0 0
        %9581 = vmatprep.subr.bf16.mxu0 0
        %9582 = vmatpush1.bf16.msra.mxu0 0
        %9583 = vmatprep.subr.bf16.mxu0 0
        %9584 = vmatpush1.bf16.msra.mxu0 0
        %9585 = vmatprep.subr.bf16.mxu0 0
        %9586 = vmatpush1.bf16.msra.mxu0 0
        %9587 = vmatprep.subr.bf16.mxu0 0
        %9588 = vmatpush1.bf16.msra.mxu0 0
        %9589 = vmatprep.subr.bf16.mxu0 0
        %9590 = vmatpush1.bf16.msra.mxu0 0
        %9591 = vmatprep.subr.bf16.mxu0 0
        %9592 = vmatpush1.bf16.msra.mxu0 0
        %9593 = vmatprep.subr.bf16.mxu0 0
        %9594 = vmatpush1.bf16.msra.mxu0 0
        %9595 = vmatprep.subr.bf16.mxu0 0
        %9596 = vmatpush1.bf16.msra.mxu0 0
        %9597 = vmatprep.subr.bf16.mxu0 0
        %9598 = vmatpush1.bf16.msra.mxu0 0
        %9599 = vmatprep.subr.bf16.mxu0 0
        %9600 = vmatpush1.bf16.msra.mxu0 0
        %9601 = vmatprep.subr.bf16.mxu0 0
        %9602 = vmatpush1.bf16.msra.mxu0 0
        %9603 = vmatprep.mubr.bf16.mxu0 0
        %9604 = vmatmul.mubr.bf16.gmra.mrb[0].mxu0 %v9569
        %v9605 = vpop.f32.mrb[0].mxu0
        %v9606 = vadd.f32 0.0, %v9605
        %v9607 = vpop.f32.mrb[0].mxu0
        %v9608 = vpop.f32.mrb[0].mxu0
        %v9609 = vpop.f32.mrb[0].mxu0
        %9610 = vdwg.mxu0
        %v9611 = vpack.c.bf16 %v9606, %v9606
        %v9628 = vunpack.c.l.b16 %v7501
        %v9629 = vunpack.c.h.b16 %v7501
        %v9630 = vunpack.c.l.b16 %v7502
        %v9631 = vunpack.c.l.b16 %v7503
        %v9632 = vunpack.c.h.b16 %v7503
        %v9633 = vunpack.c.l.b16 %v7504
        %v9634 = vunpack.c.l.b16 %v7505
        %v9635 = vunpack.c.h.b16 %v7505
        %v9636 = vunpack.c.l.b16 %v7506
        %v9637 = vunpack.c.l.b16 %v7507
        %v9638 = vunpack.c.h.b16 %v7507
        %v9639 = vunpack.c.l.b16 %v7508
        %v9640 = vunpack.c.l.b16 %v7509
        %v9641 = vunpack.c.h.b16 %v7509
        %v9642 = vunpack.c.l.b16 %v7510
        %v9643 = vunpack.c.l.b16 %v7511
        %v9644 = vunpack.c.h.b16 %v7511
        %v9645 = vunpack.c.l.b16 %v7512
        %v9646 = vunpack.c.l.b16 %v7513
        %v9647 = vunpack.c.h.b16 %v7513
        %v9648 = vunpack.c.l.b16 %v7514
        %v9649 = vunpack.c.l.b16 %v7515
        %v9650 = vunpack.c.h.b16 %v7515
        %v9651 = vunpack.c.l.b16 %v7516
        %v9652 = vpack.c.b16 %v9631, %v9628
        %v9653 = vpack.c.b16 %v9632, %v9629
        %v9654 = vpack.c.b16 %v9633, %v9630
        %v9655 = vpack.c.b16 %v9637, %v9634
        %v9656 = vpack.c.b16 %v9638, %v9635
        %v9657 = vpack.c.b16 %v9639, %v9636
        %v9658 = vpack.c.b16 %v9643, %v9640
        %v9659 = vpack.c.b16 %v9644, %v9641
        %v9660 = vpack.c.b16 %v9645, %v9642
        %v9661 = vpack.c.b16 %v9649, %v9646
        %v9662 = vpack.c.b16 %v9650, %v9647
        %v9663 = vpack.c.b16 %v9651, %v9648
        %v9677 = vsel %vm5577, %v9611, 0
        %9679 = vmatprep.subr.bf16.mxu0 %v9653
        %9680 = vmatpush1.bf16.msra.mxu0 %v9652
        %9681 = vmatprep.subr.bf16.mxu0 %v9656
        %9682 = vmatpush1.bf16.msra.mxu0 %v9655
        %9683 = vmatprep.subr.bf16.mxu0 %v9659
        %9684 = vmatpush1.bf16.msra.mxu0 %v9658
        %9685 = vmatprep.subr.bf16.mxu0 %v9662
        %9686 = vmatpush1.bf16.msra.mxu0 %v9661
        %9687 = vmatprep.subr.bf16.mxu0 0
        %9688 = vmatpush1.bf16.msra.mxu0 0
        %9689 = vmatprep.subr.bf16.mxu0 0
        %9690 = vmatpush1.bf16.msra.mxu0 0
        %9691 = vmatprep.subr.bf16.mxu0 0
        %9692 = vmatpush1.bf16.msra.mxu0 0
        %9693 = vmatprep.subr.bf16.mxu0 0
        %9694 = vmatpush1.bf16.msra.mxu0 0
        %9695 = vmatprep.subr.bf16.mxu0 0
        %9696 = vmatpush1.bf16.msra.mxu0 0
        %9697 = vmatprep.subr.bf16.mxu0 0
        %9698 = vmatpush1.bf16.msra.mxu0 0
        %9699 = vmatprep.subr.bf16.mxu0 0
        %9700 = vmatpush1.bf16.msra.mxu0 0
        %9701 = vmatprep.subr.bf16.mxu0 0
        %9702 = vmatpush1.bf16.msra.mxu0 0
        %9703 = vmatprep.subr.bf16.mxu0 0
        %9704 = vmatpush1.bf16.msra.mxu0 0
        %9705 = vmatprep.subr.bf16.mxu0 0
        %9706 = vmatpush1.bf16.msra.mxu0 0
        %9707 = vmatprep.subr.bf16.mxu0 0
        %9708 = vmatpush1.bf16.msra.mxu0 0
        %9709 = vmatprep.subr.bf16.mxu0 0
        %9710 = vmatpush1.bf16.msra.mxu0 0
        %9711 = vmatprep.mubr.bf16.mxu0 0
        %9712 = vmatmul.mubr.bf16.gmra.mrb[0].mxu0 %v9677
        %v9713 = vpop.f32.mrb[0].mxu0
        %v9714 = vadd.f32 0.0, %v9713
        %v9715 = vpop.f32.mrb[0].mxu0
        %v9716 = vadd.f32 0.0, %v9715
        %v9717 = vpop.f32.mrb[0].mxu0
        %v9718 = vpop.f32.mrb[0].mxu0
        %9719 = vdwg.mxu0
        %9720 = vmatprep.subr.bf16.mxu0 0
        %9721 = vmatpush1.bf16.msra.mxu0 %v9654
        %9722 = vmatprep.subr.bf16.mxu0 0
        %9723 = vmatpush1.bf16.msra.mxu0 %v9657
        %9724 = vmatprep.subr.bf16.mxu0 0
        %9725 = vmatpush1.bf16.msra.mxu0 %v9660
        %9726 = vmatprep.subr.bf16.mxu0 0
        %9727 = vmatpush1.bf16.msra.mxu0 %v9663
        %9728 = vmatprep.subr.bf16.mxu0 0
        %9729 = vmatpush1.bf16.msra.mxu0 0
        %9730 = vmatprep.subr.bf16.mxu0 0
        %9731 = vmatpush1.bf16.msra.mxu0 0
        %9732 = vmatprep.subr.bf16.mxu0 0
        %9733 = vmatpush1.bf16.msra.mxu0 0
        %9734 = vmatprep.subr.bf16.mxu0 0
        %9735 = vmatpush1.bf16.msra.mxu0 0
        %9736 = vmatprep.subr.bf16.mxu0 0
        %9737 = vmatpush1.bf16.msra.mxu0 0
        %9738 = vmatprep.subr.bf16.mxu0 0
        %9739 = vmatpush1.bf16.msra.mxu0 0
        %9740 = vmatprep.subr.bf16.mxu0 0
        %9741 = vmatpush1.bf16.msra.mxu0 0
        %9742 = vmatprep.subr.bf16.mxu0 0
        %9743 = vmatpush1.bf16.msra.mxu0 0
        %9744 = vmatprep.subr.bf16.mxu0 0
        %9745 = vmatpush1.bf16.msra.mxu0 0
        %9746 = vmatprep.subr.bf16.mxu0 0
        %9747 = vmatpush1.bf16.msra.mxu0 0
        %9748 = vmatprep.subr.bf16.mxu0 0
        %9749 = vmatpush1.bf16.msra.mxu0 0
        %9750 = vmatprep.subr.bf16.mxu0 0
        %9751 = vmatpush1.bf16.msra.mxu0 0
        %9752 = vmatprep.mubr.bf16.mxu0 0
        %9753 = vmatmul.mubr.bf16.gmra.mrb[0].mxu0 %v9677
        %v9754 = vpop.f32.mrb[0].mxu0
        %v9755 = vadd.f32 0.0, %v9754
        %v9756 = vpop.f32.mrb[0].mxu0
        %v9757 = vpop.f32.mrb[0].mxu0
        %v9758 = vpop.f32.mrb[0].mxu0
        %9759 = vdwg.mxu0
        %v9760 = vadd.f32 %v9467, %v9714
        %v9761 = vadd.f32 %v9468, %v9716
        %v9762 = vadd.f32 %v9469, %v9755
        %v9763 = vpack.c.bf16 %v9760, %v9760
        %v9764 = vpack.c.bf16 %v9761, %v9761
        %v9765 = vpack.c.bf16 %v9762, %v9762
        %v9766 = vld [vmem:[%s659] sm:$0xff]
        %v9767 = vld [vmem:[%s659 + $0x8] sm:$0xff]
        %v9768 = vld [vmem:[%s659 + $0x10] sm:$0xff]
        %v9769 = vld [vmem:[%s659 + $0x18] sm:$0xff]
        %v9770 = vld [vmem:[%s659 + $0x20] sm:$0xff]
        %v9771 = vld [vmem:[%s659 + $0x28] sm:$0xff]
        %v9772 = vld [vmem:[%s659 + $0x30] sm:$0xff]
        %v9773 = vld [vmem:[%s659 + $0x38] sm:$0xff]
        %v9774 = vld [vmem:[%s659 + $0x40] sm:$0xff]
        %v9775 = vld [vmem:[%s659 + $0x48] sm:$0xff]
        %v9776 = vld [vmem:[%s659 + $0x50] sm:$0xff]
        %v9777 = vld [vmem:[%s659 + $0x58] sm:$0xff]
        %v9778 = vld [vmem:[%s659 + $0x60] sm:$0xff]
        %v9779 = vld [vmem:[%s659 + $0x68] sm:$0xff]
        %v9780 = vld [vmem:[%s659 + $0x70] sm:$0xff]
        %v9781 = vld [vmem:[%s659 + $0x78] sm:$0xff]
        %v9782 = vld [vmem:[%s659 + $0x80] sm:$0xff]
        %v9783 = vld [vmem:[%s659 + $0x88] sm:$0xff]
        %v9784 = vld [vmem:[%s659 + $0x90] sm:$0xff]
        %v9785 = vld [vmem:[%s659 + $0x98] sm:$0xff]
        %v9786 = vld [vmem:[%s659 + $0xa0] sm:$0xff]
        %v9787 = vld [vmem:[%s659 + $0xa8] sm:$0xff]
        %v9788 = vld [vmem:[%s659 + $0xb0] sm:$0xff]
        %v9789 = vld [vmem:[%s659 + $0xb8] sm:$0xff]
        %v9790 = vld [vmem:[%s659 + $0xc0] sm:$0xff]
        %v9791 = vld [vmem:[%s659 + $0xc8] sm:$0xff]
        %v9792 = vld [vmem:[%s659 + $0xd0] sm:$0xff]
        %v9793 = vld [vmem:[%s659 + $0xd8] sm:$0xff]
        %v9794 = vld [vmem:[%s659 + $0xe0] sm:$0xff]
        %v9795 = vld [vmem:[%s659 + $0xe8] sm:$0xff]
        %v9796 = vld [vmem:[%s659 + $0xf0] sm:$0xff]
        %v9797 = vld [vmem:[%s659 + $0xf8] sm:$0xff]
        %v9798 = vld [vmem:[%s659 + $0x100] sm:$0xff]
        %v9799 = vld [vmem:[%s659 + $0x108] sm:$0xff]
        %v9800 = vld [vmem:[%s659 + $0x110] sm:$0xff]
        %v9801 = vld [vmem:[%s659 + $0x118] sm:$0xff]
        %v9802 = vld [vmem:[%s659 + $0x120] sm:$0xff]
        %v9803 = vld [vmem:[%s659 + $0x128] sm:$0xff]
        %v9804 = vld [vmem:[%s659 + $0x130] sm:$0xff]
        %v9805 = vld [vmem:[%s659 + $0x138] sm:$0xff]
        %v9806 = vld [vmem:[%s659 + $0x140] sm:$0xff]
        %v9807 = vld [vmem:[%s659 + $0x148] sm:$0xff]
        %v9808 = vld [vmem:[%s659 + $0x150] sm:$0xff]
        %v9809 = vld [vmem:[%s659 + $0x158] sm:$0xff]
        %v9810 = vld [vmem:[%s659 + $0x160] sm:$0xff]
        %v9811 = vld [vmem:[%s659 + $0x168] sm:$0xff]
        %v9812 = vld [vmem:[%s659 + $0x170] sm:$0xff]
        %v9813 = vld [vmem:[%s659 + $0x178] sm:$0xff]
        %v9814 = vld [vmem:[%s668] sm:$0x3]
        %v9816 = vlaneseq
        %v9817 = vshrl.u32 %v9816, 7
        %v9818 = vsub.s32 0, %v9817
        %v9819 = vrot.slane %v9814, %v9818
        %v9820 = vlaneseq
        %v9821 = vshrl.u32 %v9820, 7
        %v9822 = vsub.s32 1, %v9821
        %v9823 = vrot.slane %v9814, %v9822
        %v9874 = vunpack.c.l.b16 %v9766
        %v9875 = vunpack.c.h.b16 %v9766
        %v9876 = vunpack.c.l.b16 %v9767
        %v9877 = vunpack.c.h.b16 %v9767
        %v9878 = vunpack.c.l.b16 %v9768
        %v9879 = vunpack.c.h.b16 %v9768
        %v9880 = vunpack.c.l.b16 %v9769
        %v9881 = vunpack.c.h.b16 %v9769
        %v9882 = vunpack.c.l.b16 %v9770
        %v9883 = vunpack.c.h.b16 %v9770
        %v9884 = vunpack.c.l.b16 %v9771
        %v9885 = vunpack.c.h.b16 %v9771
        %v9886 = vunpack.c.l.b16 %v9772
        %v9887 = vunpack.c.h.b16 %v9772
        %v9888 = vunpack.c.l.b16 %v9773
        %v9889 = vunpack.c.h.b16 %v9773
        %v9890 = vunpack.c.l.b16 %v9774
        %v9891 = vunpack.c.h.b16 %v9774
        %v9892 = vunpack.c.l.b16 %v9775
        %v9893 = vunpack.c.h.b16 %v9775
        %v9894 = vunpack.c.l.b16 %v9776
        %v9895 = vunpack.c.h.b16 %v9776
        %v9896 = vunpack.c.l.b16 %v9777
        %v9897 = vunpack.c.h.b16 %v9777
        %v9898 = vunpack.c.l.b16 %v9778
        %v9899 = vunpack.c.h.b16 %v9778
        %v9900 = vunpack.c.l.b16 %v9779
        %v9901 = vunpack.c.h.b16 %v9779
        %v9902 = vunpack.c.l.b16 %v9780
        %v9903 = vunpack.c.h.b16 %v9780
        %v9904 = vunpack.c.l.b16 %v9781
        %v9905 = vunpack.c.h.b16 %v9781
        %v9906 = vunpack.c.l.b16 %v9782
        %v9907 = vunpack.c.h.b16 %v9782
        %v9908 = vunpack.c.l.b16 %v9783
        %v9909 = vunpack.c.h.b16 %v9783
        %v9910 = vunpack.c.l.b16 %v9784
        %v9911 = vunpack.c.h.b16 %v9784
        %v9912 = vunpack.c.l.b16 %v9785
        %v9913 = vunpack.c.h.b16 %v9785
        %v9914 = vunpack.c.l.b16 %v9786
        %v9915 = vunpack.c.h.b16 %v9786
        %v9916 = vunpack.c.l.b16 %v9787
        %v9917 = vunpack.c.h.b16 %v9787
        %v9918 = vunpack.c.l.b16 %v9788
        %v9919 = vunpack.c.h.b16 %v9788
        %v9920 = vunpack.c.l.b16 %v9789
        %v9921 = vunpack.c.h.b16 %v9789
        %v9922 = vunpack.c.l.b16 %v9790
        %v9923 = vunpack.c.h.b16 %v9790
        %v9924 = vunpack.c.l.b16 %v9791
        %v9925 = vunpack.c.h.b16 %v9791
        %v9926 = vunpack.c.l.b16 %v9792
        %v9927 = vunpack.c.h.b16 %v9792
        %v9928 = vunpack.c.l.b16 %v9793
        %v9929 = vunpack.c.h.b16 %v9793
        %v9930 = vunpack.c.l.b16 %v9794
        %v9931 = vunpack.c.h.b16 %v9794
        %v9932 = vunpack.c.l.b16 %v9795
        %v9933 = vunpack.c.h.b16 %v9795
        %v9934 = vunpack.c.l.b16 %v9796
        %v9935 = vunpack.c.h.b16 %v9796
        %v9936 = vunpack.c.l.b16 %v9797
        %v9937 = vunpack.c.h.b16 %v9797
        %v9938 = vunpack.c.l.b16 %v9798
        %v9939 = vunpack.c.h.b16 %v9798
        %v9940 = vunpack.c.l.b16 %v9799
        %v9941 = vunpack.c.h.b16 %v9799
        %v9942 = vunpack.c.l.b16 %v9800
        %v9943 = vunpack.c.h.b16 %v9800
        %v9944 = vunpack.c.l.b16 %v9801
        %v9945 = vunpack.c.h.b16 %v9801
        %v9946 = vunpack.c.l.b16 %v9802
        %v9947 = vunpack.c.h.b16 %v9802
        %v9948 = vunpack.c.l.b16 %v9803
        %v9949 = vunpack.c.h.b16 %v9803
        %v9950 = vunpack.c.l.b16 %v9804
        %v9951 = vunpack.c.h.b16 %v9804
        %v9952 = vunpack.c.l.b16 %v9805
        %v9953 = vunpack.c.h.b16 %v9805
        %v9954 = vunpack.c.l.b16 %v9806
        %v9955 = vunpack.c.h.b16 %v9806
        %v9956 = vunpack.c.l.b16 %v9807
        %v9957 = vunpack.c.h.b16 %v9807
        %v9958 = vunpack.c.l.b16 %v9808
        %v9959 = vunpack.c.h.b16 %v9808
        %v9960 = vunpack.c.l.b16 %v9809
        %v9961 = vunpack.c.h.b16 %v9809
        %v9962 = vunpack.c.l.b16 %v9810
        %v9963 = vunpack.c.h.b16 %v9810
        %v9964 = vunpack.c.l.b16 %v9811
        %v9965 = vunpack.c.h.b16 %v9811
        %v9966 = vunpack.c.l.b16 %v9812
        %v9967 = vunpack.c.h.b16 %v9812
        %v9968 = vunpack.c.l.b16 %v9813
        %v9969 = vunpack.c.h.b16 %v9813
        %v9970 = vpack.c.b16 %v9876, %v9874
        %v9971 = vpack.c.b16 %v9877, %v9875
        %v9972 = vpack.c.b16 %v9880, %v9878
        %v9973 = vpack.c.b16 %v9881, %v9879
        %v9974 = vpack.c.b16 %v9884, %v9882
        %v9975 = vpack.c.b16 %v9885, %v9883
        %v9976 = vpack.c.b16 %v9888, %v9886
        %v9977 = vpack.c.b16 %v9889, %v9887
        %v9978 = vpack.c.b16 %v9892, %v9890
        %v9979 = vpack.c.b16 %v9893, %v9891
        %v9980 = vpack.c.b16 %v9896, %v9894
        %v9981 = vpack.c.b16 %v9897, %v9895
        %v9982 = vpack.c.b16 %v9900, %v9898
        %v9983 = vpack.c.b16 %v9901, %v9899
        %v9984 = vpack.c.b16 %v9904, %v9902
        %v9985 = vpack.c.b16 %v9905, %v9903
        %v9986 = vpack.c.b16 %v9908, %v9906
        %v9987 = vpack.c.b16 %v9909, %v9907
        %v9988 = vpack.c.b16 %v9912, %v9910
        %v9989 = vpack.c.b16 %v9913, %v9911
        %v9990 = vpack.c.b16 %v9916, %v9914
        %v9991 = vpack.c.b16 %v9917, %v9915
        %v9992 = vpack.c.b16 %v9920, %v9918
        %v9993 = vpack.c.b16 %v9921, %v9919
        %v9994 = vpack.c.b16 %v9924, %v9922
        %v9995 = vpack.c.b16 %v9925, %v9923
        %v9996 = vpack.c.b16 %v9928, %v9926
        %v9997 = vpack.c.b16 %v9929, %v9927
        %v9998 = vpack.c.b16 %v9932, %v9930
        %v9999 = vpack.c.b16 %v9933, %v9931
        %v10000 = vpack.c.b16 %v9936, %v9934
        %v10001 = vpack.c.b16 %v9937, %v9935
        %v10002 = vpack.c.b16 %v9940, %v9938
        %v10003 = vpack.c.b16 %v9941, %v9939
        %v10004 = vpack.c.b16 %v9944, %v9942
        %v10005 = vpack.c.b16 %v9945, %v9943
        %v10006 = vpack.c.b16 %v9948, %v9946
        %v10007 = vpack.c.b16 %v9949, %v9947
        %v10008 = vpack.c.b16 %v9952, %v9950
        %v10009 = vpack.c.b16 %v9953, %v9951
        %v10010 = vpack.c.b16 %v9956, %v9954
        %v10011 = vpack.c.b16 %v9957, %v9955
        %v10012 = vpack.c.b16 %v9960, %v9958
        %v10013 = vpack.c.b16 %v9961, %v9959
        %v10014 = vpack.c.b16 %v9964, %v9962
        %v10015 = vpack.c.b16 %v9965, %v9963
        %v10016 = vpack.c.b16 %v9968, %v9966
        %v10017 = vpack.c.b16 %v9969, %v9967
        %10066 = vmatprep.subr.bf16.mxu0 %v9971
        %10067 = vmatpush1.bf16.msra.mxu0 %v9970
        %10068 = vmatprep.subr.bf16.mxu0 %v9973
        %10069 = vmatpush1.bf16.msra.mxu0 %v9972
        %10070 = vmatprep.subr.bf16.mxu0 %v9975
        %10071 = vmatpush1.bf16.msra.mxu0 %v9974
        %10072 = vmatprep.subr.bf16.mxu0 %v9977
        %10073 = vmatpush1.bf16.msra.mxu0 %v9976
        %10074 = vmatprep.subr.bf16.mxu0 %v9979
        %10075 = vmatpush1.bf16.msra.mxu0 %v9978
        %10076 = vmatprep.subr.bf16.mxu0 %v9981
        %10077 = vmatpush1.bf16.msra.mxu0 %v9980
        %10078 = vmatprep.subr.bf16.mxu0 %v9983
        %10079 = vmatpush1.bf16.msra.mxu0 %v9982
        %10080 = vmatprep.subr.bf16.mxu0 %v9985
        %10081 = vmatpush1.bf16.msra.mxu0 %v9984
        %10082 = vmatprep.subr.bf16.mxu0 %v9987
        %10083 = vmatpush1.bf16.msra.mxu0 %v9986
        %10084 = vmatprep.subr.bf16.mxu0 %v9989
        %10085 = vmatpush1.bf16.msra.mxu0 %v9988
        %10086 = vmatprep.subr.bf16.mxu0 %v9991
        %10087 = vmatpush1.bf16.msra.mxu0 %v9990
        %10088 = vmatprep.subr.bf16.mxu0 %v9993
        %10089 = vmatpush1.bf16.msra.mxu0 %v9992
        %10090 = vmatprep.subr.bf16.mxu0 %v9995
        %10091 = vmatpush1.bf16.msra.mxu0 %v9994
        %10092 = vmatprep.subr.bf16.mxu0 %v9997
        %10093 = vmatpush1.bf16.msra.mxu0 %v9996
        %10094 = vmatprep.subr.bf16.mxu0 %v9999
        %10095 = vmatpush1.bf16.msra.mxu0 %v9998
        %10096 = vmatprep.subr.bf16.mxu0 %v10001
        %10097 = vmatpush1.bf16.msra.mxu0 %v10000
        %10098 = vmatprep.mubr.bf16.mxu0 %v9764
        %10099 = vmatmul.mubr.bf16.gmra.mrb[0].mxu0 %v9763
        %v10100 = vpop.f32.mrb[0].mxu0
        %v10101 = vadd.f32 %v9819, %v10100
        %v10102 = vpop.f32.mrb[0].mxu0
        %v10103 = vadd.f32 %v9823, %v10102
        %v10104 = vpop.f32.mrb[0].mxu0
        %v10105 = vpop.f32.mrb[0].mxu0
        %10106 = vdwg.mxu0
        %10107 = vmatprep.subr.bf16.mxu0 %v10003
        %10108 = vmatpush1.bf16.msra.mxu0 %v10002
        %10109 = vmatprep.subr.bf16.mxu0 %v10005
        %10110 = vmatpush1.bf16.msra.mxu0 %v10004
        %10111 = vmatprep.subr.bf16.mxu0 %v10007
        %10112 = vmatpush1.bf16.msra.mxu0 %v10006
        %10113 = vmatprep.subr.bf16.mxu0 %v10009
        %10114 = vmatpush1.bf16.msra.mxu0 %v10008
        %10115 = vmatprep.subr.bf16.mxu0 %v10011
        %10116 = vmatpush1.bf16.msra.mxu0 %v10010
        %10117 = vmatprep.subr.bf16.mxu0 %v10013
        %10118 = vmatpush1.bf16.msra.mxu0 %v10012
        %10119 = vmatprep.subr.bf16.mxu0 %v10015
        %10120 = vmatpush1.bf16.msra.mxu0 %v10014
        %10121 = vmatprep.subr.bf16.mxu0 %v10017
        %10122 = vmatpush1.bf16.msra.mxu0 %v10016
        %10123 = vmatprep.subr.bf16.mxu0 0
        %10124 = vmatpush1.bf16.msra.mxu0 0
        %10125 = vmatprep.subr.bf16.mxu0 0
        %10126 = vmatpush1.bf16.msra.mxu0 0
        %10127 = vmatprep.subr.bf16.mxu0 0
        %10128 = vmatpush1.bf16.msra.mxu0 0
        %10129 = vmatprep.subr.bf16.mxu0 0
        %10130 = vmatpush1.bf16.msra.mxu0 0
        %10131 = vmatprep.subr.bf16.mxu0 0
        %10132 = vmatpush1.bf16.msra.mxu0 0
        %10133 = vmatprep.subr.bf16.mxu0 0
        %10134 = vmatpush1.bf16.msra.mxu0 0
        %10135 = vmatprep.subr.bf16.mxu0 0
        %10136 = vmatpush1.bf16.msra.mxu0 0
        %10137 = vmatprep.subr.bf16.mxu0 0
        %10138 = vmatpush1.bf16.msra.mxu0 0
        %10139 = vmatprep.mubr.bf16.mxu0 0
        %10140 = vmatmul.mubr.bf16.gmra.mrb[0].mxu0 %v9765
        %v10141 = vpop.f32.mrb[0].mxu0
        %v10142 = vadd.f32 %v10101, %v10141
        %v10143 = vpop.f32.mrb[0].mxu0
        %v10144 = vadd.f32 %v10103, %v10143
        %v10145 = vpop.f32.mrb[0].mxu0
        %v10146 = vpop.f32.mrb[0].mxu0
        %10147 = vdwg.mxu0
        %v10148 = vmax.f32 %v10142, 0.0
        %v10149 = vmax.f32 %v10144, 0.0
        %v10150 = vpack.c.bf16 %v10148, %v10148
        %v10151 = vpack.c.bf16 %v10149, %v10149
        %v10152 = vld [vmem:[%s677] sm:$0xff]
        %v10153 = vld [vmem:[%s677 + $0x8] sm:$0xf]
        %v10154 = vld [vmem:[%s677 + $0xc] sm:$0xff]
        %v10155 = vld [vmem:[%s677 + $0x14] sm:$0xf]
        %v10156 = vld [vmem:[%s677 + $0x18] sm:$0xff]
        %v10157 = vld [vmem:[%s677 + $0x20] sm:$0xf]
        %v10158 = vld [vmem:[%s677 + $0x24] sm:$0xff]
        %v10159 = vld [vmem:[%s677 + $0x2c] sm:$0xf]
        %v10160 = vld [vmem:[%s677 + $0x30] sm:$0xff]
        %v10161 = vld [vmem:[%s677 + $0x38] sm:$0xf]
        %v10162 = vld [vmem:[%s677 + $0x3c] sm:$0xff]
        %v10163 = vld [vmem:[%s677 + $0x44] sm:$0xf]
        %v10164 = vld [vmem:[%s677 + $0x48] sm:$0xff]
        %v10165 = vld [vmem:[%s677 + $0x50] sm:$0xf]
        %v10166 = vld [vmem:[%s677 + $0x54] sm:$0xff]
        %v10167 = vld [vmem:[%s677 + $0x5c] sm:$0xf]
        %v10168 = vld [vmem:[%s677 + $0x60] sm:$0xff]
        %v10169 = vld [vmem:[%s677 + $0x68] sm:$0xf]
        %v10170 = vld [vmem:[%s677 + $0x6c] sm:$0xff]
        %v10171 = vld [vmem:[%s677 + $0x74] sm:$0xf]
        %v10172 = vld [vmem:[%s677 + $0x78] sm:$0xff]
        %v10173 = vld [vmem:[%s677 + $0x80] sm:$0xf]
        %v10174 = vld [vmem:[%s677 + $0x84] sm:$0xff]
        %v10175 = vld [vmem:[%s677 + $0x8c] sm:$0xf]
        %v10176 = vld [vmem:[%s677 + $0x90] sm:$0xff]
        %v10177 = vld [vmem:[%s677 + $0x98] sm:$0xf]
        %v10178 = vld [vmem:[%s677 + $0x9c] sm:$0xff]
        %v10179 = vld [vmem:[%s677 + $0xa4] sm:$0xf]
        %v10180 = vld [vmem:[%s677 + $0xa8] sm:$0xff]
        %v10181 = vld [vmem:[%s677 + $0xb0] sm:$0xf]
        %v10182 = vld [vmem:[%s677 + $0xb4] sm:$0xff]
        %v10183 = vld [vmem:[%s677 + $0xbc] sm:$0xf]
        %v10184 = vld [vmem:[%s677 + $0xc0] sm:$0xff]
        %v10185 = vld [vmem:[%s677 + $0xc8] sm:$0xf]
        %v10186 = vld [vmem:[%s677 + $0xcc] sm:$0xff]
        %v10187 = vld [vmem:[%s677 + $0xd4] sm:$0xf]
        %v10188 = vld [vmem:[%s677 + $0xd8] sm:$0xff]
        %v10189 = vld [vmem:[%s677 + $0xe0] sm:$0xf]
        %v10190 = vld [vmem:[%s677 + $0xe4] sm:$0xff]
        %v10191 = vld [vmem:[%s677 + $0xec] sm:$0xf]
        %v10192 = vld [vmem:[%s677 + $0xf0] sm:$0xff]
        %v10193 = vld [vmem:[%s677 + $0xf8] sm:$0xf]
        %v10194 = vld [vmem:[%s677 + $0xfc] sm:$0xff]
        %v10195 = vld [vmem:[%s677 + $0x104] sm:$0xf]
        %v10196 = vld [vmem:[%s677 + $0x108] sm:$0xff]
        %v10197 = vld [vmem:[%s677 + $0x110] sm:$0xf]
        %v10198 = vld [vmem:[%s677 + $0x114] sm:$0xff]
        %v10199 = vld [vmem:[%s677 + $0x11c] sm:$0xf]
        %v10200 = vld [vmem:[%s677 + $0x120] sm:$0xff]
        %v10201 = vld [vmem:[%s677 + $0x128] sm:$0xf]
        %v10202 = vld [vmem:[%s677 + $0x12c] sm:$0xff]
        %v10203 = vld [vmem:[%s677 + $0x134] sm:$0xf]
        %v10204 = vld [vmem:[%s677 + $0x138] sm:$0xff]
        %v10205 = vld [vmem:[%s677 + $0x140] sm:$0xf]
        %v10206 = vld [vmem:[%s677 + $0x144] sm:$0xff]
        %v10207 = vld [vmem:[%s677 + $0x14c] sm:$0xf]
        %v10208 = vld [vmem:[%s677 + $0x150] sm:$0xff]
        %v10209 = vld [vmem:[%s677 + $0x158] sm:$0xf]
        %v10210 = vld [vmem:[%s677 + $0x15c] sm:$0xff]
        %v10211 = vld [vmem:[%s677 + $0x164] sm:$0xf]
        %v10212 = vld [vmem:[%s677 + $0x168] sm:$0xff]
        %v10213 = vld [vmem:[%s677 + $0x170] sm:$0xf]
        %v10214 = vld [vmem:[%s677 + $0x174] sm:$0xff]
        %v10215 = vld [vmem:[%s677 + $0x17c] sm:$0xf]
        %v10216 = vld [vmem:[%s686] sm:$0x7]
        %v10218 = vlaneseq
        %v10219 = vshrl.u32 %v10218, 7
        %v10220 = vsub.s32 0, %v10219
        %v10221 = vrot.slane %v10216, %v10220
        %v10222 = vlaneseq
        %v10223 = vshrl.u32 %v10222, 7
        %v10224 = vsub.s32 1, %v10223
        %v10225 = vrot.slane %v10216, %v10224
        %v10226 = vlaneseq
        %v10227 = vshrl.u32 %v10226, 7
        %v10228 = vsub.s32 2, %v10227
        %v10229 = vrot.slane %v10216, %v10228
        %v10297 = vunpack.c.l.b16 %v10152
        %v10298 = vunpack.c.h.b16 %v10152
        %v10299 = vunpack.c.l.b16 %v10153
        %v10300 = vunpack.c.l.b16 %v10154
        %v10301 = vunpack.c.h.b16 %v10154
        %v10302 = vunpack.c.l.b16 %v10155
        %v10303 = vunpack.c.l.b16 %v10156
        %v10304 = vunpack.c.h.b16 %v10156
        %v10305 = vunpack.c.l.b16 %v10157
        %v10306 = vunpack.c.l.b16 %v10158
        %v10307 = vunpack.c.h.b16 %v10158
        %v10308 = vunpack.c.l.b16 %v10159
        %v10309 = vunpack.c.l.b16 %v10160
        %v10310 = vunpack.c.h.b16 %v10160
        %v10311 = vunpack.c.l.b16 %v10161
        %v10312 = vunpack.c.l.b16 %v10162
        %v10313 = vunpack.c.h.b16 %v10162
        %v10314 = vunpack.c.l.b16 %v10163
        %v10315 = vunpack.c.l.b16 %v10164
        %v10316 = vunpack.c.h.b16 %v10164
        %v10317 = vunpack.c.l.b16 %v10165
        %v10318 = vunpack.c.l.b16 %v10166
        %v10319 = vunpack.c.h.b16 %v10166
        %v10320 = vunpack.c.l.b16 %v10167
        %v10321 = vunpack.c.l.b16 %v10168
        %v10322 = vunpack.c.h.b16 %v10168
        %v10323 = vunpack.c.l.b16 %v10169
        %v10324 = vunpack.c.l.b16 %v10170
        %v10325 = vunpack.c.h.b16 %v10170
        %v10326 = vunpack.c.l.b16 %v10171
        %v10327 = vunpack.c.l.b16 %v10172
        %v10328 = vunpack.c.h.b16 %v10172
        %v10329 = vunpack.c.l.b16 %v10173
        %v10330 = vunpack.c.l.b16 %v10174
        %v10331 = vunpack.c.h.b16 %v10174
        %v10332 = vunpack.c.l.b16 %v10175
        %v10333 = vunpack.c.l.b16 %v10176
        %v10334 = vunpack.c.h.b16 %v10176
        %v10335 = vunpack.c.l.b16 %v10177
        %v10336 = vunpack.c.l.b16 %v10178
        %v10337 = vunpack.c.h.b16 %v10178
        %v10338 = vunpack.c.l.b16 %v10179
        %v10339 = vunpack.c.l.b16 %v10180
        %v10340 = vunpack.c.h.b16 %v10180
        %v10341 = vunpack.c.l.b16 %v10181
        %v10342 = vunpack.c.l.b16 %v10182
        %v10343 = vunpack.c.h.b16 %v10182
        %v10344 = vunpack.c.l.b16 %v10183
        %v10345 = vunpack.c.l.b16 %v10184
        %v10346 = vunpack.c.h.b16 %v10184
        %v10347 = vunpack.c.l.b16 %v10185
        %v10348 = vunpack.c.l.b16 %v10186
        %v10349 = vunpack.c.h.b16 %v10186
        %v10350 = vunpack.c.l.b16 %v10187
        %v10351 = vunpack.c.l.b16 %v10188
        %v10352 = vunpack.c.h.b16 %v10188
        %v10353 = vunpack.c.l.b16 %v10189
        %v10354 = vunpack.c.l.b16 %v10190
        %v10355 = vunpack.c.h.b16 %v10190
        %v10356 = vunpack.c.l.b16 %v10191
        %v10357 = vunpack.c.l.b16 %v10192
        %v10358 = vunpack.c.h.b16 %v10192
        %v10359 = vunpack.c.l.b16 %v10193
        %v10360 = vunpack.c.l.b16 %v10194
        %v10361 = vunpack.c.h.b16 %v10194
        %v10362 = vunpack.c.l.b16 %v10195
        %v10363 = vunpack.c.l.b16 %v10196
        %v10364 = vunpack.c.h.b16 %v10196
        %v10365 = vunpack.c.l.b16 %v10197
        %v10366 = vunpack.c.l.b16 %v10198
        %v10367 = vunpack.c.h.b16 %v10198
        %v10368 = vunpack.c.l.b16 %v10199
        %v10369 = vunpack.c.l.b16 %v10200
        %v10370 = vunpack.c.h.b16 %v10200
        %v10371 = vunpack.c.l.b16 %v10201
        %v10372 = vunpack.c.l.b16 %v10202
        %v10373 = vunpack.c.h.b16 %v10202
        %v10374 = vunpack.c.l.b16 %v10203
        %v10375 = vunpack.c.l.b16 %v10204
        %v10376 = vunpack.c.h.b16 %v10204
        %v10377 = vunpack.c.l.b16 %v10205
        %v10378 = vunpack.c.l.b16 %v10206
        %v10379 = vunpack.c.h.b16 %v10206
        %v10380 = vunpack.c.l.b16 %v10207
        %v10381 = vunpack.c.l.b16 %v10208
        %v10382 = vunpack.c.h.b16 %v10208
        %v10383 = vunpack.c.l.b16 %v10209
        %v10384 = vunpack.c.l.b16 %v10210
        %v10385 = vunpack.c.h.b16 %v10210
        %v10386 = vunpack.c.l.b16 %v10211
        %v10387 = vunpack.c.l.b16 %v10212
        %v10388 = vunpack.c.h.b16 %v10212
        %v10389 = vunpack.c.l.b16 %v10213
        %v10390 = vunpack.c.l.b16 %v10214
        %v10391 = vunpack.c.h.b16 %v10214
        %v10392 = vunpack.c.l.b16 %v10215
        %v10393 = vpack.c.b16 %v10300, %v10297
        %v10394 = vpack.c.b16 %v10301, %v10298
        %v10395 = vpack.c.b16 %v10302, %v10299
        %v10396 = vpack.c.b16 %v10306, %v10303
        %v10397 = vpack.c.b16 %v10307, %v10304
        %v10398 = vpack.c.b16 %v10308, %v10305
        %v10399 = vpack.c.b16 %v10312, %v10309
        %v10400 = vpack.c.b16 %v10313, %v10310
        %v10401 = vpack.c.b16 %v10314, %v10311
        %v10402 = vpack.c.b16 %v10318, %v10315
        %v10403 = vpack.c.b16 %v10319, %v10316
        %v10404 = vpack.c.b16 %v10320, %v10317
        %v10405 = vpack.c.b16 %v10324, %v10321
        %v10406 = vpack.c.b16 %v10325, %v10322
        %v10407 = vpack.c.b16 %v10326, %v10323
        %v10408 = vpack.c.b16 %v10330, %v10327
        %v10409 = vpack.c.b16 %v10331, %v10328
        %v10410 = vpack.c.b16 %v10332, %v10329
        %v10411 = vpack.c.b16 %v10336, %v10333
        %v10412 = vpack.c.b16 %v10337, %v10334
        %v10413 = vpack.c.b16 %v10338, %v10335
        %v10414 = vpack.c.b16 %v10342, %v10339
        %v10415 = vpack.c.b16 %v10343, %v10340
        %v10416 = vpack.c.b16 %v10344, %v10341
        %v10417 = vpack.c.b16 %v10348, %v10345
        %v10418 = vpack.c.b16 %v10349, %v10346
        %v10419 = vpack.c.b16 %v10350, %v10347
        %v10420 = vpack.c.b16 %v10354, %v10351
        %v10421 = vpack.c.b16 %v10355, %v10352
        %v10422 = vpack.c.b16 %v10356, %v10353
        %v10423 = vpack.c.b16 %v10360, %v10357
        %v10424 = vpack.c.b16 %v10361, %v10358
        %v10425 = vpack.c.b16 %v10362, %v10359
        %v10426 = vpack.c.b16 %v10366, %v10363
        %v10427 = vpack.c.b16 %v10367, %v10364
        %v10428 = vpack.c.b16 %v10368, %v10365
        %v10429 = vpack.c.b16 %v10372, %v10369
        %v10430 = vpack.c.b16 %v10373, %v10370
        %v10431 = vpack.c.b16 %v10374, %v10371
        %v10432 = vpack.c.b16 %v10378, %v10375
        %v10433 = vpack.c.b16 %v10379, %v10376
        %v10434 = vpack.c.b16 %v10380, %v10377
        %v10435 = vpack.c.b16 %v10384, %v10381
        %v10436 = vpack.c.b16 %v10385, %v10382
        %v10437 = vpack.c.b16 %v10386, %v10383
        %v10438 = vpack.c.b16 %v10390, %v10387
        %v10439 = vpack.c.b16 %v10391, %v10388
        %v10440 = vpack.c.b16 %v10392, %v10389
        %10489 = vmatprep.subr.bf16.mxu0 %v10394
        %10490 = vmatpush1.bf16.msra.mxu0 %v10393
        %10491 = vmatprep.subr.bf16.mxu0 %v10397
        %10492 = vmatpush1.bf16.msra.mxu0 %v10396
        %10493 = vmatprep.subr.bf16.mxu0 %v10400
        %10494 = vmatpush1.bf16.msra.mxu0 %v10399
        %10495 = vmatprep.subr.bf16.mxu0 %v10403
        %10496 = vmatpush1.bf16.msra.mxu0 %v10402
        %10497 = vmatprep.subr.bf16.mxu0 %v10406
        %10498 = vmatpush1.bf16.msra.mxu0 %v10405
        %10499 = vmatprep.subr.bf16.mxu0 %v10409
        %10500 = vmatpush1.bf16.msra.mxu0 %v10408
        %10501 = vmatprep.subr.bf16.mxu0 %v10412
        %10502 = vmatpush1.bf16.msra.mxu0 %v10411
        %10503 = vmatprep.subr.bf16.mxu0 %v10415
        %10504 = vmatpush1.bf16.msra.mxu0 %v10414
        %10505 = vmatprep.subr.bf16.mxu0 %v10418
        %10506 = vmatpush1.bf16.msra.mxu0 %v10417
        %10507 = vmatprep.subr.bf16.mxu0 %v10421
        %10508 = vmatpush1.bf16.msra.mxu0 %v10420
        %10509 = vmatprep.subr.bf16.mxu0 %v10424
        %10510 = vmatpush1.bf16.msra.mxu0 %v10423
        %10511 = vmatprep.subr.bf16.mxu0 %v10427
        %10512 = vmatpush1.bf16.msra.mxu0 %v10426
        %10513 = vmatprep.subr.bf16.mxu0 %v10430
        %10514 = vmatpush1.bf16.msra.mxu0 %v10429
        %10515 = vmatprep.subr.bf16.mxu0 %v10433
        %10516 = vmatpush1.bf16.msra.mxu0 %v10432
        %10517 = vmatprep.subr.bf16.mxu0 %v10436
        %10518 = vmatpush1.bf16.msra.mxu0 %v10435
        %10519 = vmatprep.subr.bf16.mxu0 %v10439
        %10520 = vmatpush1.bf16.msra.mxu0 %v10438
        %10521 = vmatprep.mubr.bf16.mxu0 %v10151
        %10522 = vmatmul.mubr.bf16.gmra.mrb[0].mxu0 %v10150
        %v10523 = vpop.f32.mrb[0].mxu0
        %v10524 = vadd.f32 %v10221, %v10523
        %v10525 = vpop.f32.mrb[0].mxu0
        %v10526 = vadd.f32 %v10225, %v10525
        %v10527 = vpop.f32.mrb[0].mxu0
        %v10528 = vpop.f32.mrb[0].mxu0
        %10529 = vdwg.mxu0
        %10530 = vmatprep.subr.bf16.mxu0 0
        %10531 = vmatpush1.bf16.msra.mxu0 %v10395
        %10532 = vmatprep.subr.bf16.mxu0 0
        %10533 = vmatpush1.bf16.msra.mxu0 %v10398
        %10534 = vmatprep.subr.bf16.mxu0 0
        %10535 = vmatpush1.bf16.msra.mxu0 %v10401
        %10536 = vmatprep.subr.bf16.mxu0 0
        %10537 = vmatpush1.bf16.msra.mxu0 %v10404
        %10538 = vmatprep.subr.bf16.mxu0 0
        %10539 = vmatpush1.bf16.msra.mxu0 %v10407
        %10540 = vmatprep.subr.bf16.mxu0 0
        %10541 = vmatpush1.bf16.msra.mxu0 %v10410
        %10542 = vmatprep.subr.bf16.mxu0 0
        %10543 = vmatpush1.bf16.msra.mxu0 %v10413
        %10544 = vmatprep.subr.bf16.mxu0 0
        %10545 = vmatpush1.bf16.msra.mxu0 %v10416
        %10546 = vmatprep.subr.bf16.mxu0 0
        %10547 = vmatpush1.bf16.msra.mxu0 %v10419
        %10548 = vmatprep.subr.bf16.mxu0 0
        %10549 = vmatpush1.bf16.msra.mxu0 %v10422
        %10550 = vmatprep.subr.bf16.mxu0 0
        %10551 = vmatpush1.bf16.msra.mxu0 %v10425
        %10552 = vmatprep.subr.bf16.mxu0 0
        %10553 = vmatpush1.bf16.msra.mxu0 %v10428
        %10554 = vmatprep.subr.bf16.mxu0 0
        %10555 = vmatpush1.bf16.msra.mxu0 %v10431
        %10556 = vmatprep.subr.bf16.mxu0 0
        %10557 = vmatpush1.bf16.msra.mxu0 %v10434
        %10558 = vmatprep.subr.bf16.mxu0 0
        %10559 = vmatpush1.bf16.msra.mxu0 %v10437
        %10560 = vmatprep.subr.bf16.mxu0 0
        %10561 = vmatpush1.bf16.msra.mxu0 %v10440
        %10562 = vmatprep.mubr.bf16.mxu0 %v10151
        %10563 = vmatmul.mubr.bf16.gmra.mrb[0].mxu0 %v10150
        %v10564 = vpop.f32.mrb[0].mxu0
        %v10565 = vadd.f32 %v10229, %v10564
        %v10566 = vpop.f32.mrb[0].mxu0
        %v10567 = vpop.f32.mrb[0].mxu0
        %v10568 = vpop.f32.mrb[0].mxu0
        %10569 = vdwg.mxu0
        %10570 = vst [vmem:[%s773] sm:$0xff] %v10524
        %10571 = vst [vmem:[%s773 + $0x8] sm:$0xff] %v10526
        %10572 = vst [vmem:[%s773 + $0x10] sm:$0xff] %v10565
        %s10573 = sand.u32 %s337, 1
        %s10574 = scalar_lea.sflag [#allocation4], %s10573
        %s10575 = sand.u32 %s337, 1
        %s10576 = smul.addr %s10575, 24
        %s10577 = scalar_lea.vmem [#allocation20], %s10576
        // Predicated region
        $region109: #{tpu_custom_call.1} parent=63 // pred_check
          %p10578 = pneg %p347
        $region110: #{tpu_custom_call.1} parent=63 // pred_check_branch
          %10580 = sbr.rel (%p10578) target = $region112
        $region111: #{tpu_custom_call.1} parent=63 // pred_region
          %s10582 = ssub.s32 384, 384
          %10583 = vsyncadd %s10574, %s10582
          %s10584 = smul.addr %s43, 3
          %s10585 = smul.addr %s10584, 128
          %s10586 = scalar_lea.hbm %s11, %s10585
          %s10588 = sshll.u32 %s10577, 4
          %s10589 = int_to_ptr.vmem [resolvable:$true] %s10588
          %10591 = dma.vmem_to_hbm [thread:$0]  %s10589, 384, %s10586, %s10574
        $region112: #{tpu_custom_call.1} parent=63 // pred_fallthru
          _
      $region64: #{tpu_custom_call.1} parent=5 // pred_fallthru
        _
      %p10592 = scmp.le.s32.totalorder 2, %s38
      // Predicated region
      $region113: #{tpu_custom_call.1} parent=5 // pred_check
        %p10593 = pneg %p10592
      $region114: #{tpu_custom_call.1} parent=5 // pred_check_branch
        %10595 = sbr.rel (%p10593) target = $region116
      $region115: #{tpu_custom_call.1} parent=5 // pred_region
        %s10596 = ssub.s32 %s38, 2
        // Predicated region
        $region117: #{tpu_custom_call.1} parent=115 // pred_check
          %p10597 = pneg %p353
        $region118: #{tpu_custom_call.1} parent=115 // pred_check_branch
          %10599 = sbr.rel (%p10597) target = $region120
        $region119: #{tpu_custom_call.1} parent=115 // pred_region
          %s10600 = sand.u32 %s338, 1
          %s10601 = scalar_lea.sflag [#allocation4], %s10600
          %s10602 = sand.u32 %s338, 1
          %s10603 = smul.addr %s10602, 24
          %s10604 = scalar_lea.vmem [#allocation20], %s10603
          %10605 = dma.done %s10601, 384
        $region120: #{tpu_custom_call.1} parent=115 // pred_fallthru
          _
      $region116: #{tpu_custom_call.1} parent=5 // pred_fallthru
        _
    $region6: #{tpu_custom_call.1} parent=1 // loop_footer
      %s42 = sadd.s32 1, %s38
    $region7: #{tpu_custom_call.1} parent=1 // loop_footer_branch
      %37 = sbr.rel target = $region3
    $region8: #{tpu_custom_call.1} parent=1 // loop_exit
      _
    %10606 = vsyncpa [#allocation3], 1
    %s10607 = scalar_lea.sflag [#allocation3], 1
    %10608 = vsyncpa %s10607, 1
    %10609 = vsyncpa [#allocation6], 1
    %s10610 = scalar_lea.sflag [#allocation6], 1
    %10611 = vsyncpa %s10610, 1
    %10612 = vsyncpa [#allocation9], 1
    %s10613 = scalar_lea.sflag [#allocation9], 1
    %10614 = vsyncpa %s10613, 1
    %10615 = vsyncpa [#allocation12], 1
    %s10616 = scalar_lea.sflag [#allocation12], 1
    %10617 = vsyncpa %s10616, 1
    %10618 = vsyncpa [#allocation15], 1
    %s10619 = scalar_lea.sflag [#allocation15], 1
    %10620 = vsyncpa %s10619, 1
    %10621 = vsyncpa [#allocation18], 1
    %s10622 = scalar_lea.sflag [#allocation18], 1
    %10623 = vsyncpa %s10622, 1
    %10624 = vsyncpa [#allocation4], 1
    %s10625 = scalar_lea.sflag [#allocation4], 1
    %10626 = vsyncpa %s10625, 1

</llo_original>
